<compile_context>
chip_gen: v5e
topology: v5e:2x2
jax: 0.10.0
libtpu: 0.0.40
codegen_flags: <defaults>
</compile_context>

<pallas_src>
import functools

import numpy as np
import jax
import jax.numpy as jnp
from jax.experimental import pallas as pl
from jax.experimental.pallas import tpu as pltpu

# (in_channels, out_channels, kernel_size, stride) for the 10 ConvBlocks
LAYER_CONFIGS = [
    (3, 16, 3, 1), (16, 32, 3, 2), (32, 64, 3, 2), (64, 64, 3, 1),
    (64, 128, 3, 2), (128, 128, 3, 1), (128, 256, 3, 2), (256, 256, 3, 1),
    (256, 512, 3, 2), (512, 512, 3, 1),
]
NUM_CLASSES = 10
LANE = 128
BN_EPS = 1e-5


def _conv_out(size, k, s):
    p = k // 2
    return (size + 2 * p - k) // s + 1


def _round_up(x, m):
    return -(-x // m) * m


# ---------------------------------------------------------------------------
# Static, shape-only (batch-independent) geometry per layer.
#   mode 'im2col0' : layer 0, host-side im2col
#   mode 'scratch' : output spatial > 1 -> in-kernel padded-scratch im2col
#   mode 'collapse': output spatial == 1x1 -> dense matmul over the active taps
# ---------------------------------------------------------------------------
def build_plan(h, w):
    plan = []
    H, W = h, w
    for li, (cin, cout, k, s) in enumerate(LAYER_CONFIGS):
        p = k // 2
        Ho, Wo = _conv_out(H, k, s), _conv_out(W, k, s)
        if li == 0:
            mode, taps = 'im2col0', None
        elif Ho > 1 or Wo > 1:
            mode, taps = 'scratch', None
        else:
            mode = 'collapse'
            taps = [(kh, kw) for kh in range(k) for kw in range(k)
                    if 0 <= kh - p < H and 0 <= kw - p < W]
        plan.append(dict(cin=cin, cout=cout, k=k, s=s, H=H, W=W, Ho=Ho, Wo=Wo,
                         Hp=H + 2 * p, Wp=W + 2 * p, mode=mode, taps=taps))
        H, W = Ho, Wo
    return plan


# ---------------------------------------------------------------------------
# Deterministic synthetic parameters (PyTorch-shaped), BN folded for eval mode:
#   scale = gamma / sqrt(var + eps)
#   y     = conv(x, w * scale) + ((conv_bias - mean) * scale + beta)
# Weights stored bf16, packed to match the in-kernel im2col column order.
# ---------------------------------------------------------------------------
def init_params(key, plan):
    kp_layers, rp_layers = [], []
    for (cin, cout, k, _s), lp in zip(LAYER_CONFIGS, plan):
        key, k1, k2, k3, k4, k5, k6 = jax.random.split(key, 7)
        w = jax.random.normal(k1, (cout, cin, k, k), jnp.float32) * 0.05     # OIHW
        b = jax.random.normal(k2, (cout,), jnp.float32) * 0.01
        gamma = 1.0 + 0.1 * jax.random.normal(k3, (cout,), jnp.float32)
        beta = 0.1 * jax.random.normal(k4, (cout,), jnp.float32)
        r_mean = 0.1 * jax.random.normal(k5, (cout,), jnp.float32)
        r_var = 1.0 + 0.1 * jax.random.uniform(k6, (cout,), jnp.float32)
        scale = gamma / jnp.sqrt(r_var + BN_EPS)
        bias_eff = ((b - r_mean) * scale + beta).reshape(1, cout)            # f32
        w_folded = w * scale[:, None, None, None]                            # fold BN
        w_hwio_bf = jnp.transpose(w_folded, (2, 3, 1, 0)).astype(jnp.bfloat16)
        if lp['mode'] in ('im2col0', 'scratch'):
            w_packed = w_hwio_bf.reshape(k * k * cin, cout)                  # (kh,kw,ci) rows
        else:  # 'collapse': only active taps, in (kh,kw) raster order
            w_packed = jnp.concatenate([w_hwio_bf[kh, kw] for (kh, kw) in lp['taps']],
                                       axis=0)
        kp_layers.append({'w': w_packed, 'b': bias_eff})
        rp_layers.append({'w_hwio': w_hwio_bf.astype(jnp.float32), 'b': bias_eff})

    key, kf1, kf2 = jax.random.split(key, 3)
    c_last = LAYER_CONFIGS[-1][1]
    fc_w = jax.random.normal(kf1, (c_last, NUM_CLASSES), jnp.float32) * 0.05
    fc_b = jax.random.normal(kf2, (NUM_CLASSES,), jnp.float32) * 0.01
    fc_w_bf = fc_w.astype(jnp.bfloat16)
    fc_w_pad = jnp.zeros((c_last, LANE), jnp.bfloat16).at[:, :NUM_CLASSES].set(fc_w_bf)
    fc_b_pad = jnp.zeros((1, LANE), jnp.float32).at[0, :NUM_CLASSES].set(fc_b)

    kernel_params = {'layers': kp_layers, 'fc_w': fc_w_pad, 'fc_b': fc_b_pad}
    ref_params = {'layers': rp_layers, 'fc_w': fc_w_bf.astype(jnp.float32),
                  'fc_b': fc_b.reshape(1, NUM_CLASSES)}
    return kernel_params, ref_params


# ---------------------------------------------------------------------------
# Host-side (XLA) im2col for layer 0 ONLY (Cin=3): (N,H,W,C) -> (N*Ho*Wo, k*k*C)
# with (kh, kw, c) column order.
# ---------------------------------------------------------------------------
def _extract_patches_l0(x_nhwc, k, stride):
    N, H, W, C = x_nhwc.shape
    p = k // 2
    xp = jnp.pad(x_nhwc, ((0, 0), (p, p), (p, p), (0, 0)))
    Ho, Wo = _conv_out(H, k, stride), _conv_out(W, k, stride)
    cols = [xp[:, kh:kh + stride * Ho:stride, kw:kw + stride * Wo:stride, :]
            for kh in range(k) for kw in range(k)]
    return jnp.concatenate(cols, axis=-1).reshape(N * Ho * Wo, k * k * C)


# ---------------------------------------------------------------------------
# Whole-network forward pass: one fused Pallas kernel, grid over the batch.
# ---------------------------------------------------------------------------
def nas_forward(x_nchw, kp, plan):
    n = x_nchw.shape[0]
    x = jnp.transpose(x_nchw, (0, 2, 3, 1)).astype(jnp.float32)              # NCHW -> NHWC

    lp0 = plan[0]
    patches0 = _extract_patches_l0(x, lp0['k'], lp0['s'])                    # f32
    m0 = lp0['Ho'] * lp0['Wo']                                               # rows / sample

    # ---- operands + BlockSpecs (weights/biases are whole-array, revisited blocks) ----
    operands = [patches0]
    specs = [pl.BlockSpec((m0, patches0.shape[1]), lambda i: (i, 0))]
    w_pos, b_pos = {}, {}
    for li in range(len(LAYER_CONFIGS)):
        w = kp['layers'][li]['w']
        b = kp['layers'][li]['b']
        w_pos[li] = len(operands); operands.append(w)
        specs.append(pl.BlockSpec(w.shape, lambda i: (0, 0)))
        b_pos[li] = len(operands); operands.append(b)
        specs.append(pl.BlockSpec(b.shape, lambda i: (0, 0)))
    fcw_pos = len(operands); operands.append(kp['fc_w'])
    specs.append(pl.BlockSpec(kp['fc_w'].shape, lambda i: (0, 0)))
    fcb_pos = len(operands); operands.append(kp['fc_b'])
    specs.append(pl.BlockSpec(kp['fc_b'].shape, lambda i: (0, 0)))
    n_in = len(operands)

    # ---- scratch sizing (per-sample, shared across layers) ----
    scratch_layers = [p for p in plan if p['mode'] == 'scratch']
    pad_rows = _round_up(max([p['Hp'] * p['Wp'] for p in scratch_layers] + [8]), 8)
    pad_cols = _round_up(max([p['cin'] for p in scratch_layers] + [LANE]), LANE)
    col_rows = _round_up(max([p['Ho'] * p['Wo'] for p in scratch_layers] + [8]), 8)
    col_cols = _round_up(max([p['k'] * p['k'] * p['cin'] for p in scratch_layers] + [LANE]),
                         LANE)

    c_last = LAYER_CONFIGS[-1][1]
    hw_last = plan[-1]['Ho'] * plan[-1]['Wo']

    # ---- the fused per-sample kernel ----
    def fused_kernel(*args):
        refs = args[:n_in]
        out_ref = args[n_in]
        pad_ref = args[n_in + 1]      # (pad_rows, pad_cols) f32: zero-padded activation
        col_ref = args[n_in + 2]      # (col_rows, col_cols) f32: per-layer im2col

        # layer 0: plain matmul on the pre-extracted patches
        y = jnp.dot(refs[0][...].astype(jnp.bfloat16), refs[w_pos[0]][...],
                    preferred_element_type=jnp.float32)
        act = jnp.maximum(y + refs[b_pos[0]][...], 0.0)                      # (Ho*Wo, 16) f32

        # layers 1..9
        for li in range(1, len(LAYER_CONFIGS)):
            lp = plan[li]
            cin, cout, k, s = lp['cin'], lp['cout'], lp['k'], lp['s']
            p = k // 2
            H, W, Ho, Wo, Hp, Wp = lp['H'], lp['W'], lp['Ho'], lp['Wo'], lp['Hp'], lp['Wp']
            w_ref, b_ref = refs[w_pos[li]], refs[b_pos[li]]

            if lp['mode'] == 'scratch':
                rows_pad = Hp * Wp
                m_out = Ho * Wo
                kdim = k * k * cin
                # zero-padded activation buffer, then overwrite the interior rows
                pad_ref[0:rows_pad, 0:cin] = jnp.zeros((rows_pad, cin), jnp.float32)
                for h in range(H):
                    dst = (h + p) * Wp + p
                    pad_ref[dst:dst + W, 0:cin] = act[h * W:(h + 1) * W, :]
                # build the im2col matrix: one (Wo, cin) row-block per (tap, output row)
                for kh in range(k):
                    for kw in range(k):
                        t = kh * k + kw
                        for oh in range(Ho):
                            base = (oh * s + kh) * Wp + kw
                            if s == 1:
                                blk = pad_ref[base:base + Wo, 0:cin]
                            else:
                                blk = pad_ref[pl.ds(base, Wo, stride=s), 0:cin]
                            col_ref[oh * Wo:(oh + 1) * Wo, t * cin:(t + 1) * cin] = blk
                im2col = col_ref[0:m_out, 0:kdim].astype(jnp.bfloat16)
            else:  # 'collapse': output spatial is 1x1 -> concat the active input taps
                blocks = []
                for (kh, kw) in lp['taps']:
                    r = (kh - p) * W + (kw - p)
                    blocks.append(act[r:r + 1, :])
                im2col = blocks[0] if len(blocks) == 1 else jnp.concatenate(blocks, axis=1)
                im2col = im2col.astype(jnp.bfloat16)

            y = jnp.dot(im2col, w_ref[...], preferred_element_type=jnp.float32)
            act = jnp.maximum(y + b_ref[...], 0.0)

        # global average pool (identity when the final spatial is 1x1)
        if hw_last > 1:
            pooled = jnp.sum(act, axis=0, keepdims=True) * jnp.float32(1.0 / hw_last)
        else:
            pooled = act                                                     # (1, c_last)

        # classifier: pad rows to 8 and lanes to 128 -> fully unmasked (8, 128) store
        pooled8 = jnp.concatenate(
            [pooled, jnp.zeros((8 - pooled.shape[0], c_last), jnp.float32)], axis=0)
        logits = jnp.dot(pooled8.astype(jnp.bfloat16), refs[fcw_pos][...],
                         preferred_element_type=jnp.float32)
        out_ref[...] = logits + refs[fcb_pos][...]

    out = pl.pallas_call(
        fused_kernel,
        out_shape=jax.ShapeDtypeStruct((n * 8, LANE), jnp.float32),
        grid=(n,),
        in_specs=specs,
        out_specs=pl.BlockSpec((8, LANE), lambda i: (i, 0)),
        scratch_shapes=[pltpu.VMEM((pad_rows, pad_cols), jnp.float32),
                        pltpu.VMEM((col_rows, col_cols), jnp.float32)],
        compiler_params=pltpu.CompilerParams(
            dimension_semantics=("parallel",),
            vmem_limit_bytes=48 * 1024 * 1024),
    )(*operands)

    return out.reshape(n, 8, LANE)[:, 0, :NUM_CLASSES]


# ---------------------------------------------------------------------------
# Pure-JAX/XLA reference (same folded bf16-rounded weights, f32 activations).
# ---------------------------------------------------------------------------
def reference_forward(x_nchw, rp):
    x = jnp.transpose(x_nchw, (0, 2, 3, 1)).astype(jnp.float32)
    for (cin, cout, k, s), layer in zip(LAYER_CONFIGS, rp['layers']):
        p = k // 2
        y = jax.lax.conv_general_dilated(
            x, layer['w_hwio'], window_strides=(s, s), padding=[(p, p), (p, p)],
            dimension_numbers=('NHWC', 'HWIO', 'NHWC'))
        x = jnp.maximum(y + layer['b'].reshape(1, 1, 1, cout), 0.0)
    pooled = jnp.mean(x, axis=(1, 2))
    return pooled @ rp['fc_w'] + rp['fc_b']


if __name__ == "__main__":
    key = jax.random.PRNGKey(0)
    key, xkey = jax.random.split(key)
    x = jax.random.normal(xkey, (2, 3, 16, 16), jnp.float32)    # NCHW, like the PyTorch module

    plan = build_plan(h=x.shape[2], w=x.shape[3])               # static, batch-independent
    kp, rp = init_params(key, plan)

    fwd = jax.jit(functools.partial(nas_forward, plan=plan))
    logits = jax.block_until_ready(fwd(x, kp))

    assert logits.shape == (x.shape[0], NUM_CLASSES)
    assert bool(jnp.all(jnp.isfinite(logits)))

    # Semantics cross-check (tolerance covers bf16 matmul-input rounding only).
    ref = jax.jit(reference_forward)(x, rp)
    np.testing.assert_allclose(np.asarray(logits), np.asarray(ref), rtol=5e-2, atol=5e-2)

    print("KERNEL_OK")
</pallas_src>

<mosaic_0001>
module attributes {stable_mosaic.version = 11 : i64} {
  func.func @fused_kernel(%arg0: i32, %arg1: memref<256x27xf32, #tpu.memory_space<vmem>>, %arg2: memref<27x16xbf16, #tpu.memory_space<vmem>>, %arg3: memref<1x16xf32, #tpu.memory_space<vmem>>, %arg4: memref<144x32xbf16, #tpu.memory_space<vmem>>, %arg5: memref<1x32xf32, #tpu.memory_space<vmem>>, %arg6: memref<288x64xbf16, #tpu.memory_space<vmem>>, %arg7: memref<1x64xf32, #tpu.memory_space<vmem>>, %arg8: memref<576x64xbf16, #tpu.memory_space<vmem>>, %arg9: memref<1x64xf32, #tpu.memory_space<vmem>>, %arg10: memref<576x128xbf16, #tpu.memory_space<vmem>>, %arg11: memref<1x128xf32, #tpu.memory_space<vmem>>, %arg12: memref<1152x128xbf16, #tpu.memory_space<vmem>>, %arg13: memref<1x128xf32, #tpu.memory_space<vmem>>, %arg14: memref<512x256xbf16, #tpu.memory_space<vmem>>, %arg15: memref<1x256xf32, #tpu.memory_space<vmem>>, %arg16: memref<256x256xbf16, #tpu.memory_space<vmem>>, %arg17: memref<1x256xf32, #tpu.memory_space<vmem>>, %arg18: memref<256x512xbf16, #tpu.memory_space<vmem>>, %arg19: memref<1x512xf32, #tpu.memory_space<vmem>>, %arg20: memref<512x512xbf16, #tpu.memory_space<vmem>>, %arg21: memref<1x512xf32, #tpu.memory_space<vmem>>, %arg22: memref<512x128xbf16, #tpu.memory_space<vmem>>, %arg23: memref<1x128xf32, #tpu.memory_space<vmem>>, %arg24: memref<8x128xf32, #tpu.memory_space<vmem>>, %arg25: memref<328x128xf32, #tpu.memory_space<vmem>>, %arg26: memref<64x1152xf32, #tpu.memory_space<vmem>>) attributes {dimension_semantics = [#tpu.dimension_semantics<parallel>], iteration_bounds = array<i64: 2>, scalar_prefetch = 0 : i64, scratch_operands = 2 : i64, tpu.core_type = #tpu.core_type<tc>, window_params = [{transform_indices = @transform_0, window_bounds = array<i64: 256, 27>}, {pipeline_mode = #tpu.pipeline_mode<synchronous>, transform_indices = @transform_1, window_bounds = array<i64: 27, 16>}, {pipeline_mode = #tpu.pipeline_mode<synchronous>, transform_indices = @transform_2, window_bounds = array<i64: 1, 16>}, {pipeline_mode = #tpu.pipeline_mode<synchronous>, transform_indices = @transform_3, window_bounds = array<i64: 144, 32>}, {pipeline_mode = #tpu.pipeline_mode<synchronous>, transform_indices = @transform_4, window_bounds = array<i64: 1, 32>}, {pipeline_mode = #tpu.pipeline_mode<synchronous>, transform_indices = @transform_5, window_bounds = array<i64: 288, 64>}, {pipeline_mode = #tpu.pipeline_mode<synchronous>, transform_indices = @transform_6, window_bounds = array<i64: 1, 64>}, {pipeline_mode = #tpu.pipeline_mode<synchronous>, transform_indices = @transform_7, window_bounds = array<i64: 576, 64>}, {pipeline_mode = #tpu.pipeline_mode<synchronous>, transform_indices = @transform_8, window_bounds = array<i64: 1, 64>}, {pipeline_mode = #tpu.pipeline_mode<synchronous>, transform_indices = @transform_9, window_bounds = array<i64: 576, 128>}, {pipeline_mode = #tpu.pipeline_mode<synchronous>, transform_indices = @transform_10, window_bounds = array<i64: 1, 128>}, {pipeline_mode = #tpu.pipeline_mode<synchronous>, transform_indices = @transform_11, window_bounds = array<i64: 1152, 128>}, {pipeline_mode = #tpu.pipeline_mode<synchronous>, transform_indices = @transform_12, window_bounds = array<i64: 1, 128>}, {pipeline_mode = #tpu.pipeline_mode<synchronous>, transform_indices = @transform_13, window_bounds = array<i64: 512, 256>}, {pipeline_mode = #tpu.pipeline_mode<synchronous>, transform_indices = @transform_14, window_bounds = array<i64: 1, 256>}, {pipeline_mode = #tpu.pipeline_mode<synchronous>, transform_indices = @transform_15, window_bounds = array<i64: 256, 256>}, {pipeline_mode = #tpu.pipeline_mode<synchronous>, transform_indices = @transform_16, window_bounds = array<i64: 1, 256>}, {pipeline_mode = #tpu.pipeline_mode<synchronous>, transform_indices = @transform_17, window_bounds = array<i64: 256, 512>}, {pipeline_mode = #tpu.pipeline_mode<synchronous>, transform_indices = @transform_18, window_bounds = array<i64: 1, 512>}, {pipeline_mode = #tpu.pipeline_mode<synchronous>, transform_indices = @transform_19, window_bounds = array<i64: 512, 512>}, {pipeline_mode = #tpu.pipeline_mode<synchronous>, transform_indices = @transform_20, window_bounds = array<i64: 1, 512>}, {pipeline_mode = #tpu.pipeline_mode<synchronous>, transform_indices = @transform_21, window_bounds = array<i64: 512, 128>}, {pipeline_mode = #tpu.pipeline_mode<synchronous>, transform_indices = @transform_22, window_bounds = array<i64: 1, 128>}, {transform_indices = @transform_23, window_bounds = array<i64: 8, 128>}]} {
    %c0 = arith.constant 0 : index
    %c0_0 = arith.constant 0 : index
    %0 = vector.load %arg1[%c0, %c0_0] : memref<256x27xf32, #tpu.memory_space<vmem>>, vector<256x27xf32>
    %1 = arith.truncf %0 : vector<256x27xf32> to vector<256x27xbf16>
    %c0_1 = arith.constant 0 : index
    %c0_2 = arith.constant 0 : index
    %2 = vector.load %arg2[%c0_1, %c0_2] : memref<27x16xbf16, #tpu.memory_space<vmem>>, vector<27x16xbf16>
    %cst = arith.constant dense<0.000000e+00> : vector<256x16xf32>
    %3 = tpu.matmul %1, %2, %cst {dimension_numbers = #tpu.dot_dimension_numbers<[1], [0], [0], [1], [0, 0, 1, 1], [], []>} : vector<256x27xbf16>, vector<27x16xbf16>, vector<256x16xf32> -> vector<256x16xf32>
    %c0_3 = arith.constant 0 : index
    %c0_4 = arith.constant 0 : index
    %4 = vector.load %arg3[%c0_3, %c0_4] : memref<1x16xf32, #tpu.memory_space<vmem>>, vector<1x16xf32>
    %5 = vector.broadcast %4 : vector<1x16xf32> to vector<256x16xf32>
    %6 = arith.addf %3, %5 : vector<256x16xf32>
    %cst_5 = arith.constant 0.000000e+00 : f32
    %7 = vector.broadcast %cst_5 : f32 to vector<256x16xf32>
    %8 = arith.maximumf %6, %7 : vector<256x16xf32>
    %cst_6 = arith.constant 0.000000e+00 : f32
    %9 = vector.broadcast %cst_6 : f32 to vector<324x16xf32>
    %c0_7 = arith.constant 0 : index
    %c0_8 = arith.constant 0 : index
    %10 = vector.load %arg25[%c0_7, %c0_8] : memref<328x128xf32, #tpu.memory_space<vmem>>, vector<324x16xf32>
    tpu.vector_store %arg25[%c0_7, %c0_8], %9 {strides = array<i32>} : memref<328x128xf32, #tpu.memory_space<vmem>>, vector<324x16xf32>,
    %11 = vector.extract_strided_slice %8 {offsets = [0, 0], sizes = [16, 16], strides = [1, 1]} : vector<256x16xf32> to vector<16x16xf32>
    %c19 = arith.constant 19 : index
    %c0_9 = arith.constant 0 : index
    %12 = vector.load %arg25[%c19, %c0_9] : memref<328x128xf32, #tpu.memory_space<vmem>>, vector<16x16xf32>
    tpu.vector_store %arg25[%c19, %c0_9], %11 {strides = array<i32>} : memref<328x128xf32, #tpu.memory_space<vmem>>, vector<16x16xf32>,
    %13 = vector.extract_strided_slice %8 {offsets = [16, 0], sizes = [16, 16], strides = [1, 1]} : vector<256x16xf32> to vector<16x16xf32>
    %c37 = arith.constant 37 : index
    %c0_10 = arith.constant 0 : index
    %14 = vector.load %arg25[%c37, %c0_10] : memref<328x128xf32, #tpu.memory_space<vmem>>, vector<16x16xf32>
    tpu.vector_store %arg25[%c37, %c0_10], %13 {strides = array<i32>} : memref<328x128xf32, #tpu.memory_space<vmem>>, vector<16x16xf32>,
    %15 = vector.extract_strided_slice %8 {offsets = [32, 0], sizes = [16, 16], strides = [1, 1]} : vector<256x16xf32> to vector<16x16xf32>
    %c55 = arith.constant 55 : index
    %c0_11 = arith.constant 0 : index
    %16 = vector.load %arg25[%c55, %c0_11] : memref<328x128xf32, #tpu.memory_space<vmem>>, vector<16x16xf32>
    tpu.vector_store %arg25[%c55, %c0_11], %15 {strides = array<i32>} : memref<328x128xf32, #tpu.memory_space<vmem>>, vector<16x16xf32>,
    %17 = vector.extract_strided_slice %8 {offsets = [48, 0], sizes = [16, 16], strides = [1, 1]} : vector<256x16xf32> to vector<16x16xf32>
    %c73 = arith.constant 73 : index
    %c0_12 = arith.constant 0 : index
    %18 = vector.load %arg25[%c73, %c0_12] : memref<328x128xf32, #tpu.memory_space<vmem>>, vector<16x16xf32>
    tpu.vector_store %arg25[%c73, %c0_12], %17 {strides = array<i32>} : memref<328x128xf32, #tpu.memory_space<vmem>>, vector<16x16xf32>,
    %19 = vector.extract_strided_slice %8 {offsets = [64, 0], sizes = [16, 16], strides = [1, 1]} : vector<256x16xf32> to vector<16x16xf32>
    %c91 = arith.constant 91 : index
    %c0_13 = arith.constant 0 : index
    %20 = vector.load %arg25[%c91, %c0_13] : memref<328x128xf32, #tpu.memory_space<vmem>>, vector<16x16xf32>
    tpu.vector_store %arg25[%c91, %c0_13], %19 {strides = array<i32>} : memref<328x128xf32, #tpu.memory_space<vmem>>, vector<16x16xf32>,
    %21 = vector.extract_strided_slice %8 {offsets = [80, 0], sizes = [16, 16], strides = [1, 1]} : vector<256x16xf32> to vector<16x16xf32>
    %c109 = arith.constant 109 : index
    %c0_14 = arith.constant 0 : index
    %22 = vector.load %arg25[%c109, %c0_14] : memref<328x128xf32, #tpu.memory_space<vmem>>, vector<16x16xf32>
    tpu.vector_store %arg25[%c109, %c0_14], %21 {strides = array<i32>} : memref<328x128xf32, #tpu.memory_space<vmem>>, vector<16x16xf32>,
    %23 = vector.extract_strided_slice %8 {offsets = [96, 0], sizes = [16, 16], strides = [1, 1]} : vector<256x16xf32> to vector<16x16xf32>
    %c127 = arith.constant 127 : index
    %c0_15 = arith.constant 0 : index
    %24 = vector.load %arg25[%c127, %c0_15] : memref<328x128xf32, #tpu.memory_space<vmem>>, vector<16x16xf32>
    tpu.vector_store %arg25[%c127, %c0_15], %23 {strides = array<i32>} : memref<328x128xf32, #tpu.memory_space<vmem>>, vector<16x16xf32>,
    %25 = vector.extract_strided_slice %8 {offsets = [112, 0], sizes = [16, 16], strides = [1, 1]} : vector<256x16xf32> to vector<16x16xf32>
    %c145 = arith.constant 145 : index
    %c0_16 = arith.constant 0 : index
    %26 = vector.load %arg25[%c145, %c0_16] : memref<328x128xf32, #tpu.memory_space<vmem>>, vector<16x16xf32>
    tpu.vector_store %arg25[%c145, %c0_16], %25 {strides = array<i32>} : memref<328x128xf32, #tpu.memory_space<vmem>>, vector<16x16xf32>,
    %27 = vector.extract_strided_slice %8 {offsets = [128, 0], sizes = [16, 16], strides = [1, 1]} : vector<256x16xf32> to vector<16x16xf32>
    %c163 = arith.constant 163 : index
    %c0_17 = arith.constant 0 : index
    %28 = vector.load %arg25[%c163, %c0_17] : memref<328x128xf32, #tpu.memory_space<vmem>>, vector<16x16xf32>
    tpu.vector_store %arg25[%c163, %c0_17], %27 {strides = array<i32>} : memref<328x128xf32, #tpu.memory_space<vmem>>, vector<16x16xf32>,
    %29 = vector.extract_strided_slice %8 {offsets = [144, 0], sizes = [16, 16], strides = [1, 1]} : vector<256x16xf32> to vector<16x16xf32>
    %c181 = arith.constant 181 : index
    %c0_18 = arith.constant 0 : index
    %30 = vector.load %arg25[%c181, %c0_18] : memref<328x128xf32, #tpu.memory_space<vmem>>, vector<16x16xf32>
    tpu.vector_store %arg25[%c181, %c0_18], %29 {strides = array<i32>} : memref<328x128xf32, #tpu.memory_space<vmem>>, vector<16x16xf32>,
    %31 = vector.extract_strided_slice %8 {offsets = [160, 0], sizes = [16, 16], strides = [1, 1]} : vector<256x16xf32> to vector<16x16xf32>
    %c199 = arith.constant 199 : index
    %c0_19 = arith.constant 0 : index
    %32 = vector.load %arg25[%c199, %c0_19] : memref<328x128xf32, #tpu.memory_space<vmem>>, vector<16x16xf32>
    tpu.vector_store %arg25[%c199, %c0_19], %31 {strides = array<i32>} : memref<328x128xf32, #tpu.memory_space<vmem>>, vector<16x16xf32>,
    %33 = vector.extract_strided_slice %8 {offsets = [176, 0], sizes = [16, 16], strides = [1, 1]} : vector<256x16xf32> to vector<16x16xf32>
    %c217 = arith.constant 217 : index
    %c0_20 = arith.constant 0 : index
    %34 = vector.load %arg25[%c217, %c0_20] : memref<328x128xf32, #tpu.memory_space<vmem>>, vector<16x16xf32>
    tpu.vector_store %arg25[%c217, %c0_20], %33 {strides = array<i32>} : memref<328x128xf32, #tpu.memory_space<vmem>>, vector<16x16xf32>,
    %35 = vector.extract_strided_slice %8 {offsets = [192, 0], sizes = [16, 16], strides = [1, 1]} : vector<256x16xf32> to vector<16x16xf32>
    %c235 = arith.constant 235 : index
    %c0_21 = arith.constant 0 : index
    %36 = vector.load %arg25[%c235, %c0_21] : memref<328x128xf32, #tpu.memory_space<vmem>>, vector<16x16xf32>
    tpu.vector_store %arg25[%c235, %c0_21], %35 {strides = array<i32>} : memref<328x128xf32, #tpu.memory_space<vmem>>, vector<16x16xf32>,
    %37 = vector.extract_strided_slice %8 {offsets = [208, 0], sizes = [16, 16], strides = [1, 1]} : vector<256x16xf32> to vector<16x16xf32>
    %c253 = arith.constant 253 : index
    %c0_22 = arith.constant 0 : index
    %38 = vector.load %arg25[%c253, %c0_22] : memref<328x128xf32, #tpu.memory_space<vmem>>, vector<16x16xf32>
    tpu.vector_store %arg25[%c253, %c0_22], %37 {strides = array<i32>} : memref<328x128xf32, #tpu.memory_space<vmem>>, vector<16x16xf32>,
    %39 = vector.extract_strided_slice %8 {offsets = [224, 0], sizes = [16, 16], strides = [1, 1]} : vector<256x16xf32> to vector<16x16xf32>
    %c271 = arith.constant 271 : index
    %c0_23 = arith.constant 0 : index
    %40 = vector.load %arg25[%c271, %c0_23] : memref<328x128xf32, #tpu.memory_space<vmem>>, vector<16x16xf32>
    tpu.vector_store %arg25[%c271, %c0_23], %39 {strides = array<i32>} : memref<328x128xf32, #tpu.memory_space<vmem>>, vector<16x16xf32>,
    %41 = vector.extract_strided_slice %8 {offsets = [240, 0], sizes = [16, 16], strides = [1, 1]} : vector<256x16xf32> to vector<16x16xf32>
    %c289 = arith.constant 289 : index
    %c0_24 = arith.constant 0 : index
    %42 = vector.load %arg25[%c289, %c0_24] : memref<328x128xf32, #tpu.memory_space<vmem>>, vector<16x16xf32>
    tpu.vector_store %arg25[%c289, %c0_24], %41 {strides = array<i32>} : memref<328x128xf32, #tpu.memory_space<vmem>>, vector<16x16xf32>,
    %c0_25 = arith.constant 0 : index
    %c0_26 = arith.constant 0 : index
    %43 = tpu.strided_load %arg25[%c0_25, %c0_26] {strides = array<i32: 2, 1>} : memref<328x128xf32, #tpu.memory_space<vmem>>, vector<8x16xf32>
    %c0_27 = arith.constant 0 : index
    %c0_28 = arith.constant 0 : index
    %44 = vector.load %arg26[%c0_27, %c0_28] : memref<64x1152xf32, #tpu.memory_space<vmem>>, vector<8x16xf32>
    tpu.vector_store %arg26[%c0_27, %c0_28], %43 {strides = array<i32>} : memref<64x1152xf32, #tpu.memory_space<vmem>>, vector<8x16xf32>,
    %c36 = arith.constant 36 : index
    %c0_29 = arith.constant 0 : index
    %45 = tpu.strided_load %arg25[%c36, %c0_29] {strides = array<i32: 2, 1>} : memref<328x128xf32, #tpu.memory_space<vmem>>, vector<8x16xf32>
    %c8 = arith.constant 8 : index
    %c0_30 = arith.constant 0 : index
    %46 = vector.load %arg26[%c8, %c0_30] : memref<64x1152xf32, #tpu.memory_space<vmem>>, vector<8x16xf32>
    tpu.vector_store %arg26[%c8, %c0_30], %45 {strides = array<i32>} : memref<64x1152xf32, #tpu.memory_space<vmem>>, vector<8x16xf32>,
    %c72 = arith.constant 72 : index
    %c0_31 = arith.constant 0 : index
    %47 = tpu.strided_load %arg25[%c72, %c0_31] {strides = array<i32: 2, 1>} : memref<328x128xf32, #tpu.memory_space<vmem>>, vector<8x16xf32>
    %c16 = arith.constant 16 : index
    %c0_32 = arith.constant 0 : index
    %48 = vector.load %arg26[%c16, %c0_32] : memref<64x1152xf32, #tpu.memory_space<vmem>>, vector<8x16xf32>
    tpu.vector_store %arg26[%c16, %c0_32], %47 {strides = array<i32>} : memref<64x1152xf32, #tpu.memory_space<vmem>>, vector<8x16xf32>,
    %c108 = arith.constant 108 : index
    %c0_33 = arith.constant 0 : index
    %49 = tpu.strided_load %arg25[%c108, %c0_33] {strides = array<i32: 2, 1>} : memref<328x128xf32, #tpu.memory_space<vmem>>, vector<8x16xf32>
    %c24 = arith.constant 24 : index
    %c0_34 = arith.constant 0 : index
    %50 = vector.load %arg26[%c24, %c0_34] : memref<64x1152xf32, #tpu.memory_space<vmem>>, vector<8x16xf32>
    tpu.vector_store %arg26[%c24, %c0_34], %49 {strides = array<i32>} : memref<64x1152xf32, #tpu.memory_space<vmem>>, vector<8x16xf32>,
    %c144 = arith.constant 144 : index
    %c0_35 = arith.constant 0 : index
    %51 = tpu.strided_load %arg25[%c144, %c0_35] {strides = array<i32: 2, 1>} : memref<328x128xf32, #tpu.memory_space<vmem>>, vector<8x16xf32>
    %c32 = arith.constant 32 : index
    %c0_36 = arith.constant 0 : index
    %52 = vector.load %arg26[%c32, %c0_36] : memref<64x1152xf32, #tpu.memory_space<vmem>>, vector<8x16xf32>
    tpu.vector_store %arg26[%c32, %c0_36], %51 {strides = array<i32>} : memref<64x1152xf32, #tpu.memory_space<vmem>>, vector<8x16xf32>,
    %c180 = arith.constant 180 : index
    %c0_37 = arith.constant 0 : index
    %53 = tpu.strided_load %arg25[%c180, %c0_37] {strides = array<i32: 2, 1>} : memref<328x128xf32, #tpu.memory_space<vmem>>, vector<8x16xf32>
    %c40 = arith.constant 40 : index
    %c0_38 = arith.constant 0 : index
    %54 = vector.load %arg26[%c40, %c0_38] : memref<64x1152xf32, #tpu.memory_space<vmem>>, vector<8x16xf32>
    tpu.vector_store %arg26[%c40, %c0_38], %53 {strides = array<i32>} : memref<64x1152xf32, #tpu.memory_space<vmem>>, vector<8x16xf32>,
    %c216 = arith.constant 216 : index
    %c0_39 = arith.constant 0 : index
    %55 = tpu.strided_load %arg25[%c216, %c0_39] {strides = array<i32: 2, 1>} : memref<328x128xf32, #tpu.memory_space<vmem>>, vector<8x16xf32>
    %c48 = arith.constant 48 : index
    %c0_40 = arith.constant 0 : index
    %56 = vector.load %arg26[%c48, %c0_40] : memref<64x1152xf32, #tpu.memory_space<vmem>>, vector<8x16xf32>
    tpu.vector_store %arg26[%c48, %c0_40], %55 {strides = array<i32>} : memref<64x1152xf32, #tpu.memory_space<vmem>>, vector<8x16xf32>,
    %c252 = arith.constant 252 : index
    %c0_41 = arith.constant 0 : index
    %57 = tpu.strided_load %arg25[%c252, %c0_41] {strides = array<i32: 2, 1>} : memref<328x128xf32, #tpu.memory_space<vmem>>, vector<8x16xf32>
    %c56 = arith.constant 56 : index
    %c0_42 = arith.constant 0 : index
    %58 = vector.load %arg26[%c56, %c0_42] : memref<64x1152xf32, #tpu.memory_space<vmem>>, vector<8x16xf32>
    tpu.vector_store %arg26[%c56, %c0_42], %57 {strides = array<i32>} : memref<64x1152xf32, #tpu.memory_space<vmem>>, vector<8x16xf32>,
    %c1 = arith.constant 1 : index
    %c0_43 = arith.constant 0 : index
    %59 = tpu.strided_load %arg25[%c1, %c0_43] {strides = array<i32: 2, 1>} : memref<328x128xf32, #tpu.memory_space<vmem>>, vector<8x16xf32>
    %c0_44 = arith.constant 0 : index
    %c16_45 = arith.constant 16 : index
    %60 = vector.load %arg26[%c0_44, %c16_45] : memref<64x1152xf32, #tpu.memory_space<vmem>>, vector<8x16xf32>
    tpu.vector_store %arg26[%c0_44, %c16_45], %59 {strides = array<i32>} : memref<64x1152xf32, #tpu.memory_space<vmem>>, vector<8x16xf32>,
    %c37_46 = arith.constant 37 : index
    %c0_47 = arith.constant 0 : index
    %61 = tpu.strided_load %arg25[%c37_46, %c0_47] {strides = array<i32: 2, 1>} : memref<328x128xf32, #tpu.memory_space<vmem>>, vector<8x16xf32>
    %c8_48 = arith.constant 8 : index
    %c16_49 = arith.constant 16 : index
    %62 = vector.load %arg26[%c8_48, %c16_49] : memref<64x1152xf32, #tpu.memory_space<vmem>>, vector<8x16xf32>
    tpu.vector_store %arg26[%c8_48, %c16_49], %61 {strides = array<i32>} : memref<64x1152xf32, #tpu.memory_space<vmem>>, vector<8x16xf32>,
    %c73_50 = arith.constant 73 : index
    %c0_51 = arith.constant 0 : index
    %63 = tpu.strided_load %arg25[%c73_50, %c0_51] {strides = array<i32: 2, 1>} : memref<328x128xf32, #tpu.memory_space<vmem>>, vector<8x16xf32>
    %c16_52 = arith.constant 16 : index
    %c16_53 = arith.constant 16 : index
    %64 = vector.load %arg26[%c16_52, %c16_53] : memref<64x1152xf32, #tpu.memory_space<vmem>>, vector<8x16xf32>
    tpu.vector_store %arg26[%c16_52, %c16_53], %63 {strides = array<i32>} : memref<64x1152xf32, #tpu.memory_space<vmem>>, vector<8x16xf32>,
    %c109_54 = arith.constant 109 : index
    %c0_55 = arith.constant 0 : index
    %65 = tpu.strided_load %arg25[%c109_54, %c0_55] {strides = array<i32: 2, 1>} : memref<328x128xf32, #tpu.memory_space<vmem>>, vector<8x16xf32>
    %c24_56 = arith.constant 24 : index
    %c16_57 = arith.constant 16 : index
    %66 = vector.load %arg26[%c24_56, %c16_57] : memref<64x1152xf32, #tpu.memory_space<vmem>>, vector<8x16xf32>
    tpu.vector_store %arg26[%c24_56, %c16_57], %65 {strides = array<i32>} : memref<64x1152xf32, #tpu.memory_space<vmem>>, vector<8x16xf32>,
    %c145_58 = arith.constant 145 : index
    %c0_59 = arith.constant 0 : index
    %67 = tpu.strided_load %arg25[%c145_58, %c0_59] {strides = array<i32: 2, 1>} : memref<328x128xf32, #tpu.memory_space<vmem>>, vector<8x16xf32>
    %c32_60 = arith.constant 32 : index
    %c16_61 = arith.constant 16 : index
    %68 = vector.load %arg26[%c32_60, %c16_61] : memref<64x1152xf32, #tpu.memory_space<vmem>>, vector<8x16xf32>
    tpu.vector_store %arg26[%c32_60, %c16_61], %67 {strides = array<i32>} : memref<64x1152xf32, #tpu.memory_space<vmem>>, vector<8x16xf32>,
    %c181_62 = arith.constant 181 : index
    %c0_63 = arith.constant 0 : index
    %69 = tpu.strided_load %arg25[%c181_62, %c0_63] {strides = array<i32: 2, 1>} : memref<328x128xf32, #tpu.memory_space<vmem>>, vector<8x16xf32>
    %c40_64 = arith.constant 40 : index
    %c16_65 = arith.constant 16 : index
    %70 = vector.load %arg26[%c40_64, %c16_65] : memref<64x1152xf32, #tpu.memory_space<vmem>>, vector<8x16xf32>
    tpu.vector_store %arg26[%c40_64, %c16_65], %69 {strides = array<i32>} : memref<64x1152xf32, #tpu.memory_space<vmem>>, vector<8x16xf32>,
    %c217_66 = arith.constant 217 : index
    %c0_67 = arith.constant 0 : index
    %71 = tpu.strided_load %arg25[%c217_66, %c0_67] {strides = array<i32: 2, 1>} : memref<328x128xf32, #tpu.memory_space<vmem>>, vector<8x16xf32>
    %c48_68 = arith.constant 48 : index
    %c16_69 = arith.constant 16 : index
    %72 = vector.load %arg26[%c48_68, %c16_69] : memref<64x1152xf32, #tpu.memory_space<vmem>>, vector<8x16xf32>
    tpu.vector_store %arg26[%c48_68, %c16_69], %71 {strides = array<i32>} : memref<64x1152xf32, #tpu.memory_space<vmem>>, vector<8x16xf32>,
    %c253_70 = arith.constant 253 : index
    %c0_71 = arith.constant 0 : index
    %73 = tpu.strided_load %arg25[%c253_70, %c0_71] {strides = array<i32: 2, 1>} : memref<328x128xf32, #tpu.memory_space<vmem>>, vector<8x16xf32>
    %c56_72 = arith.constant 56 : index
    %c16_73 = arith.constant 16 : index
    %74 = vector.load %arg26[%c56_72, %c16_73] : memref<64x1152xf32, #tpu.memory_space<vmem>>, vector<8x16xf32>
    tpu.vector_store %arg26[%c56_72, %c16_73], %73 {strides = array<i32>} : memref<64x1152xf32, #tpu.memory_space<vmem>>, vector<8x16xf32>,
    %c2 = arith.constant 2 : index
    %c0_74 = arith.constant 0 : index
    %75 = tpu.strided_load %arg25[%c2, %c0_74] {strides = array<i32: 2, 1>} : memref<328x128xf32, #tpu.memory_space<vmem>>, vector<8x16xf32>
    %c0_75 = arith.constant 0 : index
    %c32_76 = arith.constant 32 : index
    %76 = vector.load %arg26[%c0_75, %c32_76] : memref<64x1152xf32, #tpu.memory_space<vmem>>, vector<8x16xf32>
    tpu.vector_store %arg26[%c0_75, %c32_76], %75 {strides = array<i32>} : memref<64x1152xf32, #tpu.memory_space<vmem>>, vector<8x16xf32>,
    %c38 = arith.constant 38 : index
    %c0_77 = arith.constant 0 : index
    %77 = tpu.strided_load %arg25[%c38, %c0_77] {strides = array<i32: 2, 1>} : memref<328x128xf32, #tpu.memory_space<vmem>>, vector<8x16xf32>
    %c8_78 = arith.constant 8 : index
    %c32_79 = arith.constant 32 : index
    %78 = vector.load %arg26[%c8_78, %c32_79] : memref<64x1152xf32, #tpu.memory_space<vmem>>, vector<8x16xf32>
    tpu.vector_store %arg26[%c8_78, %c32_79], %77 {strides = array<i32>} : memref<64x1152xf32, #tpu.memory_space<vmem>>, vector<8x16xf32>,
    %c74 = arith.constant 74 : index
    %c0_80 = arith.constant 0 : index
    %79 = tpu.strided_load %arg25[%c74, %c0_80] {strides = array<i32: 2, 1>} : memref<328x128xf32, #tpu.memory_space<vmem>>, vector<8x16xf32>
    %c16_81 = arith.constant 16 : index
    %c32_82 = arith.constant 32 : index
    %80 = vector.load %arg26[%c16_81, %c32_82] : memref<64x1152xf32, #tpu.memory_space<vmem>>, vector<8x16xf32>
    tpu.vector_store %arg26[%c16_81, %c32_82], %79 {strides = array<i32>} : memref<64x1152xf32, #tpu.memory_space<vmem>>, vector<8x16xf32>,
    %c110 = arith.constant 110 : index
    %c0_83 = arith.constant 0 : index
    %81 = tpu.strided_load %arg25[%c110, %c0_83] {strides = array<i32: 2, 1>} : memref<328x128xf32, #tpu.memory_space<vmem>>, vector<8x16xf32>
    %c24_84 = arith.constant 24 : index
    %c32_85 = arith.constant 32 : index
    %82 = vector.load %arg26[%c24_84, %c32_85] : memref<64x1152xf32, #tpu.memory_space<vmem>>, vector<8x16xf32>
    tpu.vector_store %arg26[%c24_84, %c32_85], %81 {strides = array<i32>} : memref<64x1152xf32, #tpu.memory_space<vmem>>, vector<8x16xf32>,
    %c146 = arith.constant 146 : index
    %c0_86 = arith.constant 0 : index
    %83 = tpu.strided_load %arg25[%c146, %c0_86] {strides = array<i32: 2, 1>} : memref<328x128xf32, #tpu.memory_space<vmem>>, vector<8x16xf32>
    %c32_87 = arith.constant 32 : index
    %c32_88 = arith.constant 32 : index
    %84 = vector.load %arg26[%c32_87, %c32_88] : memref<64x1152xf32, #tpu.memory_space<vmem>>, vector<8x16xf32>
    tpu.vector_store %arg26[%c32_87, %c32_88], %83 {strides = array<i32>} : memref<64x1152xf32, #tpu.memory_space<vmem>>, vector<8x16xf32>,
    %c182 = arith.constant 182 : index
    %c0_89 = arith.constant 0 : index
    %85 = tpu.strided_load %arg25[%c182, %c0_89] {strides = array<i32: 2, 1>} : memref<328x128xf32, #tpu.memory_space<vmem>>, vector<8x16xf32>
    %c40_90 = arith.constant 40 : index
    %c32_91 = arith.constant 32 : index
    %86 = vector.load %arg26[%c40_90, %c32_91] : memref<64x1152xf32, #tpu.memory_space<vmem>>, vector<8x16xf32>
    tpu.vector_store %arg26[%c40_90, %c32_91], %85 {strides = array<i32>} : memref<64x1152xf32, #tpu.memory_space<vmem>>, vector<8x16xf32>,
    %c218 = arith.constant 218 : index
    %c0_92 = arith.constant 0 : index
    %87 = tpu.strided_load %arg25[%c218, %c0_92] {strides = array<i32: 2, 1>} : memref<328x128xf32, #tpu.memory_space<vmem>>, vector<8x16xf32>
    %c48_93 = arith.constant 48 : index
    %c32_94 = arith.constant 32 : index
    %88 = vector.load %arg26[%c48_93, %c32_94] : memref<64x1152xf32, #tpu.memory_space<vmem>>, vector<8x16xf32>
    tpu.vector_store %arg26[%c48_93, %c32_94], %87 {strides = array<i32>} : memref<64x1152xf32, #tpu.memory_space<vmem>>, vector<8x16xf32>,
    %c254 = arith.constant 254 : index
    %c0_95 = arith.constant 0 : index
    %89 = tpu.strided_load %arg25[%c254, %c0_95] {strides = array<i32: 2, 1>} : memref<328x128xf32, #tpu.memory_space<vmem>>, vector<8x16xf32>
    %c56_96 = arith.constant 56 : index
    %c32_97 = arith.constant 32 : index
    %90 = vector.load %arg26[%c56_96, %c32_97] : memref<64x1152xf32, #tpu.memory_space<vmem>>, vector<8x16xf32>
    tpu.vector_store %arg26[%c56_96, %c32_97], %89 {strides = array<i32>} : memref<64x1152xf32, #tpu.memory_space<vmem>>, vector<8x16xf32>,
    %c18 = arith.constant 18 : index
    %c0_98 = arith.constant 0 : index
    %91 = tpu.strided_load %arg25[%c18, %c0_98] {strides = array<i32: 2, 1>} : memref<328x128xf32, #tpu.memory_space<vmem>>, vector<8x16xf32>
    %c0_99 = arith.constant 0 : index
    %c48_100 = arith.constant 48 : index
    %92 = vector.load %arg26[%c0_99, %c48_100] : memref<64x1152xf32, #tpu.memory_space<vmem>>, vector<8x16xf32>
    tpu.vector_store %arg26[%c0_99, %c48_100], %91 {strides = array<i32>} : memref<64x1152xf32, #tpu.memory_space<vmem>>, vector<8x16xf32>,
    %c54 = arith.constant 54 : index
    %c0_101 = arith.constant 0 : index
    %93 = tpu.strided_load %arg25[%c54, %c0_101] {strides = array<i32: 2, 1>} : memref<328x128xf32, #tpu.memory_space<vmem>>, vector<8x16xf32>
    %c8_102 = arith.constant 8 : index
    %c48_103 = arith.constant 48 : index
    %94 = vector.load %arg26[%c8_102, %c48_103] : memref<64x1152xf32, #tpu.memory_space<vmem>>, vector<8x16xf32>
    tpu.vector_store %arg26[%c8_102, %c48_103], %93 {strides = array<i32>} : memref<64x1152xf32, #tpu.memory_space<vmem>>, vector<8x16xf32>,
    %c90 = arith.constant 90 : index
    %c0_104 = arith.constant 0 : index
    %95 = tpu.strided_load %arg25[%c90, %c0_104] {strides = array<i32: 2, 1>} : memref<328x128xf32, #tpu.memory_space<vmem>>, vector<8x16xf32>
    %c16_105 = arith.constant 16 : index
    %c48_106 = arith.constant 48 : index
    %96 = vector.load %arg26[%c16_105, %c48_106] : memref<64x1152xf32, #tpu.memory_space<vmem>>, vector<8x16xf32>
    tpu.vector_store %arg26[%c16_105, %c48_106], %95 {strides = array<i32>} : memref<64x1152xf32, #tpu.memory_space<vmem>>, vector<8x16xf32>,
    %c126 = arith.constant 126 : index
    %c0_107 = arith.constant 0 : index
    %97 = tpu.strided_load %arg25[%c126, %c0_107] {strides = array<i32: 2, 1>} : memref<328x128xf32, #tpu.memory_space<vmem>>, vector<8x16xf32>
    %c24_108 = arith.constant 24 : index
    %c48_109 = arith.constant 48 : index
    %98 = vector.load %arg26[%c24_108, %c48_109] : memref<64x1152xf32, #tpu.memory_space<vmem>>, vector<8x16xf32>
    tpu.vector_store %arg26[%c24_108, %c48_109], %97 {strides = array<i32>} : memref<64x1152xf32, #tpu.memory_space<vmem>>, vector<8x16xf32>,
    %c162 = arith.constant 162 : index
    %c0_110 = arith.constant 0 : index
    %99 = tpu.strided_load %arg25[%c162, %c0_110] {strides = array<i32: 2, 1>} : memref<328x128xf32, #tpu.memory_space<vmem>>, vector<8x16xf32>
    %c32_111 = arith.constant 32 : index
    %c48_112 = arith.constant 48 : index
    %100 = vector.load %arg26[%c32_111, %c48_112] : memref<64x1152xf32, #tpu.memory_space<vmem>>, vector<8x16xf32>
    tpu.vector_store %arg26[%c32_111, %c48_112], %99 {strides = array<i32>} : memref<64x1152xf32, #tpu.memory_space<vmem>>, vector<8x16xf32>,
    %c198 = arith.constant 198 : index
    %c0_113 = arith.constant 0 : index
    %101 = tpu.strided_load %arg25[%c198, %c0_113] {strides = array<i32: 2, 1>} : memref<328x128xf32, #tpu.memory_space<vmem>>, vector<8x16xf32>
    %c40_114 = arith.constant 40 : index
    %c48_115 = arith.constant 48 : index
    %102 = vector.load %arg26[%c40_114, %c48_115] : memref<64x1152xf32, #tpu.memory_space<vmem>>, vector<8x16xf32>
    tpu.vector_store %arg26[%c40_114, %c48_115], %101 {strides = array<i32>} : memref<64x1152xf32, #tpu.memory_space<vmem>>, vector<8x16xf32>,
    %c234 = arith.constant 234 : index
    %c0_116 = arith.constant 0 : index
    %103 = tpu.strided_load %arg25[%c234, %c0_116] {strides = array<i32: 2, 1>} : memref<328x128xf32, #tpu.memory_space<vmem>>, vector<8x16xf32>
    %c48_117 = arith.constant 48 : index
    %c48_118 = arith.constant 48 : index
    %104 = vector.load %arg26[%c48_117, %c48_118] : memref<64x1152xf32, #tpu.memory_space<vmem>>, vector<8x16xf32>
    tpu.vector_store %arg26[%c48_117, %c48_118], %103 {strides = array<i32>} : memref<64x1152xf32, #tpu.memory_space<vmem>>, vector<8x16xf32>,
    %c270 = arith.constant 270 : index
    %c0_119 = arith.constant 0 : index
    %105 = tpu.strided_load %arg25[%c270, %c0_119] {strides = array<i32: 2, 1>} : memref<328x128xf32, #tpu.memory_space<vmem>>, vector<8x16xf32>
    %c56_120 = arith.constant 56 : index
    %c48_121 = arith.constant 48 : index
    %106 = vector.load %arg26[%c56_120, %c48_121] : memref<64x1152xf32, #tpu.memory_space<vmem>>, vector<8x16xf32>
    tpu.vector_store %arg26[%c56_120, %c48_121], %105 {strides = array<i32>} : memref<64x1152xf32, #tpu.memory_space<vmem>>, vector<8x16xf32>,
    %c19_122 = arith.constant 19 : index
    %c0_123 = arith.constant 0 : index
    %107 = tpu.strided_load %arg25[%c19_122, %c0_123] {strides = array<i32: 2, 1>} : memref<328x128xf32, #tpu.memory_space<vmem>>, vector<8x16xf32>
    %c0_124 = arith.constant 0 : index
    %c64 = arith.constant 64 : index
    %108 = vector.load %arg26[%c0_124, %c64] : memref<64x1152xf32, #tpu.memory_space<vmem>>, vector<8x16xf32>
    tpu.vector_store %arg26[%c0_124, %c64], %107 {strides = array<i32>} : memref<64x1152xf32, #tpu.memory_space<vmem>>, vector<8x16xf32>,
    %c55_125 = arith.constant 55 : index
    %c0_126 = arith.constant 0 : index
    %109 = tpu.strided_load %arg25[%c55_125, %c0_126] {strides = array<i32: 2, 1>} : memref<328x128xf32, #tpu.memory_space<vmem>>, vector<8x16xf32>
    %c8_127 = arith.constant 8 : index
    %c64_128 = arith.constant 64 : index
    %110 = vector.load %arg26[%c8_127, %c64_128] : memref<64x1152xf32, #tpu.memory_space<vmem>>, vector<8x16xf32>
    tpu.vector_store %arg26[%c8_127, %c64_128], %109 {strides = array<i32>} : memref<64x1152xf32, #tpu.memory_space<vmem>>, vector<8x16xf32>,
    %c91_129 = arith.constant 91 : index
    %c0_130 = arith.constant 0 : index
    %111 = tpu.strided_load %arg25[%c91_129, %c0_130] {strides = array<i32: 2, 1>} : memref<328x128xf32, #tpu.memory_space<vmem>>, vector<8x16xf32>
    %c16_131 = arith.constant 16 : index
    %c64_132 = arith.constant 64 : index
    %112 = vector.load %arg26[%c16_131, %c64_132] : memref<64x1152xf32, #tpu.memory_space<vmem>>, vector<8x16xf32>
    tpu.vector_store %arg26[%c16_131, %c64_132], %111 {strides = array<i32>} : memref<64x1152xf32, #tpu.memory_space<vmem>>, vector<8x16xf32>,
    %c127_133 = arith.constant 127 : index
    %c0_134 = arith.constant 0 : index
    %113 = tpu.strided_load %arg25[%c127_133, %c0_134] {strides = array<i32: 2, 1>} : memref<328x128xf32, #tpu.memory_space<vmem>>, vector<8x16xf32>
    %c24_135 = arith.constant 24 : index
    %c64_136 = arith.constant 64 : index
    %114 = vector.load %arg26[%c24_135, %c64_136] : memref<64x1152xf32, #tpu.memory_space<vmem>>, vector<8x16xf32>
    tpu.vector_store %arg26[%c24_135, %c64_136], %113 {strides = array<i32>} : memref<64x1152xf32, #tpu.memory_space<vmem>>, vector<8x16xf32>,
    %c163_137 = arith.constant 163 : index
    %c0_138 = arith.constant 0 : index
    %115 = tpu.strided_load %arg25[%c163_137, %c0_138] {strides = array<i32: 2, 1>} : memref<328x128xf32, #tpu.memory_space<vmem>>, vector<8x16xf32>
    %c32_139 = arith.constant 32 : index
    %c64_140 = arith.constant 64 : index
    %116 = vector.load %arg26[%c32_139, %c64_140] : memref<64x1152xf32, #tpu.memory_space<vmem>>, vector<8x16xf32>
    tpu.vector_store %arg26[%c32_139, %c64_140], %115 {strides = array<i32>} : memref<64x1152xf32, #tpu.memory_space<vmem>>, vector<8x16xf32>,
    %c199_141 = arith.constant 199 : index
    %c0_142 = arith.constant 0 : index
    %117 = tpu.strided_load %arg25[%c199_141, %c0_142] {strides = array<i32: 2, 1>} : memref<328x128xf32, #tpu.memory_space<vmem>>, vector<8x16xf32>
    %c40_143 = arith.constant 40 : index
    %c64_144 = arith.constant 64 : index
    %118 = vector.load %arg26[%c40_143, %c64_144] : memref<64x1152xf32, #tpu.memory_space<vmem>>, vector<8x16xf32>
    tpu.vector_store %arg26[%c40_143, %c64_144], %117 {strides = array<i32>} : memref<64x1152xf32, #tpu.memory_space<vmem>>, vector<8x16xf32>,
    %c235_145 = arith.constant 235 : index
    %c0_146 = arith.constant 0 : index
    %119 = tpu.strided_load %arg25[%c235_145, %c0_146] {strides = array<i32: 2, 1>} : memref<328x128xf32, #tpu.memory_space<vmem>>, vector<8x16xf32>
    %c48_147 = arith.constant 48 : index
    %c64_148 = arith.constant 64 : index
    %120 = vector.load %arg26[%c48_147, %c64_148] : memref<64x1152xf32, #tpu.memory_space<vmem>>, vector<8x16xf32>
    tpu.vector_store %arg26[%c48_147, %c64_148], %119 {strides = array<i32>} : memref<64x1152xf32, #tpu.memory_space<vmem>>, vector<8x16xf32>,
    %c271_149 = arith.constant 271 : index
    %c0_150 = arith.constant 0 : index
    %121 = tpu.strided_load %arg25[%c271_149, %c0_150] {strides = array<i32: 2, 1>} : memref<328x128xf32, #tpu.memory_space<vmem>>, vector<8x16xf32>
    %c56_151 = arith.constant 56 : index
    %c64_152 = arith.constant 64 : index
    %122 = vector.load %arg26[%c56_151, %c64_152] : memref<64x1152xf32, #tpu.memory_space<vmem>>, vector<8x16xf32>
    tpu.vector_store %arg26[%c56_151, %c64_152], %121 {strides = array<i32>} : memref<64x1152xf32, #tpu.memory_space<vmem>>, vector<8x16xf32>,
    %c20 = arith.constant 20 : index
    %c0_153 = arith.constant 0 : index
    %123 = tpu.strided_load %arg25[%c20, %c0_153] {strides = array<i32: 2, 1>} : memref<328x128xf32, #tpu.memory_space<vmem>>, vector<8x16xf32>
    %c0_154 = arith.constant 0 : index
    %c80 = arith.constant 80 : index
    %124 = vector.load %arg26[%c0_154, %c80] : memref<64x1152xf32, #tpu.memory_space<vmem>>, vector<8x16xf32>
    tpu.vector_store %arg26[%c0_154, %c80], %123 {strides = array<i32>} : memref<64x1152xf32, #tpu.memory_space<vmem>>, vector<8x16xf32>,
    %c56_155 = arith.constant 56 : index
    %c0_156 = arith.constant 0 : index
    %125 = tpu.strided_load %arg25[%c56_155, %c0_156] {strides = array<i32: 2, 1>} : memref<328x128xf32, #tpu.memory_space<vmem>>, vector<8x16xf32>
    %c8_157 = arith.constant 8 : index
    %c80_158 = arith.constant 80 : index
    %126 = vector.load %arg26[%c8_157, %c80_158] : memref<64x1152xf32, #tpu.memory_space<vmem>>, vector<8x16xf32>
    tpu.vector_store %arg26[%c8_157, %c80_158], %125 {strides = array<i32>} : memref<64x1152xf32, #tpu.memory_space<vmem>>, vector<8x16xf32>,
    %c92 = arith.constant 92 : index
    %c0_159 = arith.constant 0 : index
    %127 = tpu.strided_load %arg25[%c92, %c0_159] {strides = array<i32: 2, 1>} : memref<328x128xf32, #tpu.memory_space<vmem>>, vector<8x16xf32>
    %c16_160 = arith.constant 16 : index
    %c80_161 = arith.constant 80 : index
    %128 = vector.load %arg26[%c16_160, %c80_161] : memref<64x1152xf32, #tpu.memory_space<vmem>>, vector<8x16xf32>
    tpu.vector_store %arg26[%c16_160, %c80_161], %127 {strides = array<i32>} : memref<64x1152xf32, #tpu.memory_space<vmem>>, vector<8x16xf32>,
    %c128 = arith.constant 128 : index
    %c0_162 = arith.constant 0 : index
    %129 = tpu.strided_load %arg25[%c128, %c0_162] {strides = array<i32: 2, 1>} : memref<328x128xf32, #tpu.memory_space<vmem>>, vector<8x16xf32>
    %c24_163 = arith.constant 24 : index
    %c80_164 = arith.constant 80 : index
    %130 = vector.load %arg26[%c24_163, %c80_164] : memref<64x1152xf32, #tpu.memory_space<vmem>>, vector<8x16xf32>
    tpu.vector_store %arg26[%c24_163, %c80_164], %129 {strides = array<i32>} : memref<64x1152xf32, #tpu.memory_space<vmem>>, vector<8x16xf32>,
    %c164 = arith.constant 164 : index
    %c0_165 = arith.constant 0 : index
    %131 = tpu.strided_load %arg25[%c164, %c0_165] {strides = array<i32: 2, 1>} : memref<328x128xf32, #tpu.memory_space<vmem>>, vector<8x16xf32>
    %c32_166 = arith.constant 32 : index
    %c80_167 = arith.constant 80 : index
    %132 = vector.load %arg26[%c32_166, %c80_167] : memref<64x1152xf32, #tpu.memory_space<vmem>>, vector<8x16xf32>
    tpu.vector_store %arg26[%c32_166, %c80_167], %131 {strides = array<i32>} : memref<64x1152xf32, #tpu.memory_space<vmem>>, vector<8x16xf32>,
    %c200 = arith.constant 200 : index
    %c0_168 = arith.constant 0 : index
    %133 = tpu.strided_load %arg25[%c200, %c0_168] {strides = array<i32: 2, 1>} : memref<328x128xf32, #tpu.memory_space<vmem>>, vector<8x16xf32>
    %c40_169 = arith.constant 40 : index
    %c80_170 = arith.constant 80 : index
    %134 = vector.load %arg26[%c40_169, %c80_170] : memref<64x1152xf32, #tpu.memory_space<vmem>>, vector<8x16xf32>
    tpu.vector_store %arg26[%c40_169, %c80_170], %133 {strides = array<i32>} : memref<64x1152xf32, #tpu.memory_space<vmem>>, vector<8x16xf32>,
    %c236 = arith.constant 236 : index
    %c0_171 = arith.constant 0 : index
    %135 = tpu.strided_load %arg25[%c236, %c0_171] {strides = array<i32: 2, 1>} : memref<328x128xf32, #tpu.memory_space<vmem>>, vector<8x16xf32>
    %c48_172 = arith.constant 48 : index
    %c80_173 = arith.constant 80 : index
    %136 = vector.load %arg26[%c48_172, %c80_173] : memref<64x1152xf32, #tpu.memory_space<vmem>>, vector<8x16xf32>
    tpu.vector_store %arg26[%c48_172, %c80_173], %135 {strides = array<i32>} : memref<64x1152xf32, #tpu.memory_space<vmem>>, vector<8x16xf32>,
    %c272 = arith.constant 272 : index
    %c0_174 = arith.constant 0 : index
    %137 = tpu.strided_load %arg25[%c272, %c0_174] {strides = array<i32: 2, 1>} : memref<328x128xf32, #tpu.memory_space<vmem>>, vector<8x16xf32>
    %c56_175 = arith.constant 56 : index
    %c80_176 = arith.constant 80 : index
    %138 = vector.load %arg26[%c56_175, %c80_176] : memref<64x1152xf32, #tpu.memory_space<vmem>>, vector<8x16xf32>
    tpu.vector_store %arg26[%c56_175, %c80_176], %137 {strides = array<i32>} : memref<64x1152xf32, #tpu.memory_space<vmem>>, vector<8x16xf32>,
    %c36_177 = arith.constant 36 : index
    %c0_178 = arith.constant 0 : index
    %139 = tpu.strided_load %arg25[%c36_177, %c0_178] {strides = array<i32: 2, 1>} : memref<328x128xf32, #tpu.memory_space<vmem>>, vector<8x16xf32>
    %c0_179 = arith.constant 0 : index
    %c96 = arith.constant 96 : index
    %140 = vector.load %arg26[%c0_179, %c96] : memref<64x1152xf32, #tpu.memory_space<vmem>>, vector<8x16xf32>
    tpu.vector_store %arg26[%c0_179, %c96], %139 {strides = array<i32>} : memref<64x1152xf32, #tpu.memory_space<vmem>>, vector<8x16xf32>,
    %c72_180 = arith.constant 72 : index
    %c0_181 = arith.constant 0 : index
    %141 = tpu.strided_load %arg25[%c72_180, %c0_181] {strides = array<i32: 2, 1>} : memref<328x128xf32, #tpu.memory_space<vmem>>, vector<8x16xf32>
    %c8_182 = arith.constant 8 : index
    %c96_183 = arith.constant 96 : index
    %142 = vector.load %arg26[%c8_182, %c96_183] : memref<64x1152xf32, #tpu.memory_space<vmem>>, vector<8x16xf32>
    tpu.vector_store %arg26[%c8_182, %c96_183], %141 {strides = array<i32>} : memref<64x1152xf32, #tpu.memory_space<vmem>>, vector<8x16xf32>,
    %c108_184 = arith.constant 108 : index
    %c0_185 = arith.constant 0 : index
    %143 = tpu.strided_load %arg25[%c108_184, %c0_185] {strides = array<i32: 2, 1>} : memref<328x128xf32, #tpu.memory_space<vmem>>, vector<8x16xf32>
    %c16_186 = arith.constant 16 : index
    %c96_187 = arith.constant 96 : index
    %144 = vector.load %arg26[%c16_186, %c96_187] : memref<64x1152xf32, #tpu.memory_space<vmem>>, vector<8x16xf32>
    tpu.vector_store %arg26[%c16_186, %c96_187], %143 {strides = array<i32>} : memref<64x1152xf32, #tpu.memory_space<vmem>>, vector<8x16xf32>,
    %c144_188 = arith.constant 144 : index
    %c0_189 = arith.constant 0 : index
    %145 = tpu.strided_load %arg25[%c144_188, %c0_189] {strides = array<i32: 2, 1>} : memref<328x128xf32, #tpu.memory_space<vmem>>, vector<8x16xf32>
    %c24_190 = arith.constant 24 : index
    %c96_191 = arith.constant 96 : index
    %146 = vector.load %arg26[%c24_190, %c96_191] : memref<64x1152xf32, #tpu.memory_space<vmem>>, vector<8x16xf32>
    tpu.vector_store %arg26[%c24_190, %c96_191], %145 {strides = array<i32>} : memref<64x1152xf32, #tpu.memory_space<vmem>>, vector<8x16xf32>,
    %c180_192 = arith.constant 180 : index
    %c0_193 = arith.constant 0 : index
    %147 = tpu.strided_load %arg25[%c180_192, %c0_193] {strides = array<i32: 2, 1>} : memref<328x128xf32, #tpu.memory_space<vmem>>, vector<8x16xf32>
    %c32_194 = arith.constant 32 : index
    %c96_195 = arith.constant 96 : index
    %148 = vector.load %arg26[%c32_194, %c96_195] : memref<64x1152xf32, #tpu.memory_space<vmem>>, vector<8x16xf32>
    tpu.vector_store %arg26[%c32_194, %c96_195], %147 {strides = array<i32>} : memref<64x1152xf32, #tpu.memory_space<vmem>>, vector<8x16xf32>,
    %c216_196 = arith.constant 216 : index
    %c0_197 = arith.constant 0 : index
    %149 = tpu.strided_load %arg25[%c216_196, %c0_197] {strides = array<i32: 2, 1>} : memref<328x128xf32, #tpu.memory_space<vmem>>, vector<8x16xf32>
    %c40_198 = arith.constant 40 : index
    %c96_199 = arith.constant 96 : index
    %150 = vector.load %arg26[%c40_198, %c96_199] : memref<64x1152xf32, #tpu.memory_space<vmem>>, vector<8x16xf32>
    tpu.vector_store %arg26[%c40_198, %c96_199], %149 {strides = array<i32>} : memref<64x1152xf32, #tpu.memory_space<vmem>>, vector<8x16xf32>,
    %c252_200 = arith.constant 252 : index
    %c0_201 = arith.constant 0 : index
    %151 = tpu.strided_load %arg25[%c252_200, %c0_201] {strides = array<i32: 2, 1>} : memref<328x128xf32, #tpu.memory_space<vmem>>, vector<8x16xf32>
    %c48_202 = arith.constant 48 : index
    %c96_203 = arith.constant 96 : index
    %152 = vector.load %arg26[%c48_202, %c96_203] : memref<64x1152xf32, #tpu.memory_space<vmem>>, vector<8x16xf32>
    tpu.vector_store %arg26[%c48_202, %c96_203], %151 {strides = array<i32>} : memref<64x1152xf32, #tpu.memory_space<vmem>>, vector<8x16xf32>,
    %c288 = arith.constant 288 : index
    %c0_204 = arith.constant 0 : index
    %153 = tpu.strided_load %arg25[%c288, %c0_204] {strides = array<i32: 2, 1>} : memref<328x128xf32, #tpu.memory_space<vmem>>, vector<8x16xf32>
    %c56_205 = arith.constant 56 : index
    %c96_206 = arith.constant 96 : index
    %154 = vector.load %arg26[%c56_205, %c96_206] : memref<64x1152xf32, #tpu.memory_space<vmem>>, vector<8x16xf32>
    tpu.vector_store %arg26[%c56_205, %c96_206], %153 {strides = array<i32>} : memref<64x1152xf32, #tpu.memory_space<vmem>>, vector<8x16xf32>,
    %c37_207 = arith.constant 37 : index
    %c0_208 = arith.constant 0 : index
    %155 = tpu.strided_load %arg25[%c37_207, %c0_208] {strides = array<i32: 2, 1>} : memref<328x128xf32, #tpu.memory_space<vmem>>, vector<8x16xf32>
    %c0_209 = arith.constant 0 : index
    %c112 = arith.constant 112 : index
    %156 = vector.load %arg26[%c0_209, %c112] : memref<64x1152xf32, #tpu.memory_space<vmem>>, vector<8x16xf32>
    tpu.vector_store %arg26[%c0_209, %c112], %155 {strides = array<i32>} : memref<64x1152xf32, #tpu.memory_space<vmem>>, vector<8x16xf32>,
    %c73_210 = arith.constant 73 : index
    %c0_211 = arith.constant 0 : index
    %157 = tpu.strided_load %arg25[%c73_210, %c0_211] {strides = array<i32: 2, 1>} : memref<328x128xf32, #tpu.memory_space<vmem>>, vector<8x16xf32>
    %c8_212 = arith.constant 8 : index
    %c112_213 = arith.constant 112 : index
    %158 = vector.load %arg26[%c8_212, %c112_213] : memref<64x1152xf32, #tpu.memory_space<vmem>>, vector<8x16xf32>
    tpu.vector_store %arg26[%c8_212, %c112_213], %157 {strides = array<i32>} : memref<64x1152xf32, #tpu.memory_space<vmem>>, vector<8x16xf32>,
    %c109_214 = arith.constant 109 : index
    %c0_215 = arith.constant 0 : index
    %159 = tpu.strided_load %arg25[%c109_214, %c0_215] {strides = array<i32: 2, 1>} : memref<328x128xf32, #tpu.memory_space<vmem>>, vector<8x16xf32>
    %c16_216 = arith.constant 16 : index
    %c112_217 = arith.constant 112 : index
    %160 = vector.load %arg26[%c16_216, %c112_217] : memref<64x1152xf32, #tpu.memory_space<vmem>>, vector<8x16xf32>
    tpu.vector_store %arg26[%c16_216, %c112_217], %159 {strides = array<i32>} : memref<64x1152xf32, #tpu.memory_space<vmem>>, vector<8x16xf32>,
    %c145_218 = arith.constant 145 : index
    %c0_219 = arith.constant 0 : index
    %161 = tpu.strided_load %arg25[%c145_218, %c0_219] {strides = array<i32: 2, 1>} : memref<328x128xf32, #tpu.memory_space<vmem>>, vector<8x16xf32>
    %c24_220 = arith.constant 24 : index
    %c112_221 = arith.constant 112 : index
    %162 = vector.load %arg26[%c24_220, %c112_221] : memref<64x1152xf32, #tpu.memory_space<vmem>>, vector<8x16xf32>
    tpu.vector_store %arg26[%c24_220, %c112_221], %161 {strides = array<i32>} : memref<64x1152xf32, #tpu.memory_space<vmem>>, vector<8x16xf32>,
    %c181_222 = arith.constant 181 : index
    %c0_223 = arith.constant 0 : index
    %163 = tpu.strided_load %arg25[%c181_222, %c0_223] {strides = array<i32: 2, 1>} : memref<328x128xf32, #tpu.memory_space<vmem>>, vector<8x16xf32>
    %c32_224 = arith.constant 32 : index
    %c112_225 = arith.constant 112 : index
    %164 = vector.load %arg26[%c32_224, %c112_225] : memref<64x1152xf32, #tpu.memory_space<vmem>>, vector<8x16xf32>
    tpu.vector_store %arg26[%c32_224, %c112_225], %163 {strides = array<i32>} : memref<64x1152xf32, #tpu.memory_space<vmem>>, vector<8x16xf32>,
    %c217_226 = arith.constant 217 : index
    %c0_227 = arith.constant 0 : index
    %165 = tpu.strided_load %arg25[%c217_226, %c0_227] {strides = array<i32: 2, 1>} : memref<328x128xf32, #tpu.memory_space<vmem>>, vector<8x16xf32>
    %c40_228 = arith.constant 40 : index
    %c112_229 = arith.constant 112 : index
    %166 = vector.load %arg26[%c40_228, %c112_229] : memref<64x1152xf32, #tpu.memory_space<vmem>>, vector<8x16xf32>
    tpu.vector_store %arg26[%c40_228, %c112_229], %165 {strides = array<i32>} : memref<64x1152xf32, #tpu.memory_space<vmem>>, vector<8x16xf32>,
    %c253_230 = arith.constant 253 : index
    %c0_231 = arith.constant 0 : index
    %167 = tpu.strided_load %arg25[%c253_230, %c0_231] {strides = array<i32: 2, 1>} : memref<328x128xf32, #tpu.memory_space<vmem>>, vector<8x16xf32>
    %c48_232 = arith.constant 48 : index
    %c112_233 = arith.constant 112 : index
    %168 = vector.load %arg26[%c48_232, %c112_233] : memref<64x1152xf32, #tpu.memory_space<vmem>>, vector<8x16xf32>
    tpu.vector_store %arg26[%c48_232, %c112_233], %167 {strides = array<i32>} : memref<64x1152xf32, #tpu.memory_space<vmem>>, vector<8x16xf32>,
    %c289_234 = arith.constant 289 : index
    %c0_235 = arith.constant 0 : index
    %169 = tpu.strided_load %arg25[%c289_234, %c0_235] {strides = array<i32: 2, 1>} : memref<328x128xf32, #tpu.memory_space<vmem>>, vector<8x16xf32>
    %c56_236 = arith.constant 56 : index
    %c112_237 = arith.constant 112 : index
    %170 = vector.load %arg26[%c56_236, %c112_237] : memref<64x1152xf32, #tpu.memory_space<vmem>>, vector<8x16xf32>
    tpu.vector_store %arg26[%c56_236, %c112_237], %169 {strides = array<i32>} : memref<64x1152xf32, #tpu.memory_space<vmem>>, vector<8x16xf32>,
    %c38_238 = arith.constant 38 : index
    %c0_239 = arith.constant 0 : index
    %171 = tpu.strided_load %arg25[%c38_238, %c0_239] {strides = array<i32: 2, 1>} : memref<328x128xf32, #tpu.memory_space<vmem>>, vector<8x16xf32>
    %c0_240 = arith.constant 0 : index
    %c128_241 = arith.constant 128 : index
    %172 = vector.load %arg26[%c0_240, %c128_241] : memref<64x1152xf32, #tpu.memory_space<vmem>>, vector<8x16xf32>
    tpu.vector_store %arg26[%c0_240, %c128_241], %171 {strides = array<i32>} : memref<64x1152xf32, #tpu.memory_space<vmem>>, vector<8x16xf32>,
    %c74_242 = arith.constant 74 : index
    %c0_243 = arith.constant 0 : index
    %173 = tpu.strided_load %arg25[%c74_242, %c0_243] {strides = array<i32: 2, 1>} : memref<328x128xf32, #tpu.memory_space<vmem>>, vector<8x16xf32>
    %c8_244 = arith.constant 8 : index
    %c128_245 = arith.constant 128 : index
    %174 = vector.load %arg26[%c8_244, %c128_245] : memref<64x1152xf32, #tpu.memory_space<vmem>>, vector<8x16xf32>
    tpu.vector_store %arg26[%c8_244, %c128_245], %173 {strides = array<i32>} : memref<64x1152xf32, #tpu.memory_space<vmem>>, vector<8x16xf32>,
    %c110_246 = arith.constant 110 : index
    %c0_247 = arith.constant 0 : index
    %175 = tpu.strided_load %arg25[%c110_246, %c0_247] {strides = array<i32: 2, 1>} : memref<328x128xf32, #tpu.memory_space<vmem>>, vector<8x16xf32>
    %c16_248 = arith.constant 16 : index
    %c128_249 = arith.constant 128 : index
    %176 = vector.load %arg26[%c16_248, %c128_249] : memref<64x1152xf32, #tpu.memory_space<vmem>>, vector<8x16xf32>
    tpu.vector_store %arg26[%c16_248, %c128_249], %175 {strides = array<i32>} : memref<64x1152xf32, #tpu.memory_space<vmem>>, vector<8x16xf32>,
    %c146_250 = arith.constant 146 : index
    %c0_251 = arith.constant 0 : index
    %177 = tpu.strided_load %arg25[%c146_250, %c0_251] {strides = array<i32: 2, 1>} : memref<328x128xf32, #tpu.memory_space<vmem>>, vector<8x16xf32>
    %c24_252 = arith.constant 24 : index
    %c128_253 = arith.constant 128 : index
    %178 = vector.load %arg26[%c24_252, %c128_253] : memref<64x1152xf32, #tpu.memory_space<vmem>>, vector<8x16xf32>
    tpu.vector_store %arg26[%c24_252, %c128_253], %177 {strides = array<i32>} : memref<64x1152xf32, #tpu.memory_space<vmem>>, vector<8x16xf32>,
    %c182_254 = arith.constant 182 : index
    %c0_255 = arith.constant 0 : index
    %179 = tpu.strided_load %arg25[%c182_254, %c0_255] {strides = array<i32: 2, 1>} : memref<328x128xf32, #tpu.memory_space<vmem>>, vector<8x16xf32>
    %c32_256 = arith.constant 32 : index
    %c128_257 = arith.constant 128 : index
    %180 = vector.load %arg26[%c32_256, %c128_257] : memref<64x1152xf32, #tpu.memory_space<vmem>>, vector<8x16xf32>
    tpu.vector_store %arg26[%c32_256, %c128_257], %179 {strides = array<i32>} : memref<64x1152xf32, #tpu.memory_space<vmem>>, vector<8x16xf32>,
    %c218_258 = arith.constant 218 : index
    %c0_259 = arith.constant 0 : index
    %181 = tpu.strided_load %arg25[%c218_258, %c0_259] {strides = array<i32: 2, 1>} : memref<328x128xf32, #tpu.memory_space<vmem>>, vector<8x16xf32>
    %c40_260 = arith.constant 40 : index
    %c128_261 = arith.constant 128 : index
    %182 = vector.load %arg26[%c40_260, %c128_261] : memref<64x1152xf32, #tpu.memory_space<vmem>>, vector<8x16xf32>
    tpu.vector_store %arg26[%c40_260, %c128_261], %181 {strides = array<i32>} : memref<64x1152xf32, #tpu.memory_space<vmem>>, vector<8x16xf32>,
    %c254_262 = arith.constant 254 : index
    %c0_263 = arith.constant 0 : index
    %183 = tpu.strided_load %arg25[%c254_262, %c0_263] {strides = array<i32: 2, 1>} : memref<328x128xf32, #tpu.memory_space<vmem>>, vector<8x16xf32>
    %c48_264 = arith.constant 48 : index
    %c128_265 = arith.constant 128 : index
    %184 = vector.load %arg26[%c48_264, %c128_265] : memref<64x1152xf32, #tpu.memory_space<vmem>>, vector<8x16xf32>
    tpu.vector_store %arg26[%c48_264, %c128_265], %183 {strides = array<i32>} : memref<64x1152xf32, #tpu.memory_space<vmem>>, vector<8x16xf32>,
    %c290 = arith.constant 290 : index
    %c0_266 = arith.constant 0 : index
    %185 = tpu.strided_load %arg25[%c290, %c0_266] {strides = array<i32: 2, 1>} : memref<328x128xf32, #tpu.memory_space<vmem>>, vector<8x16xf32>
    %c56_267 = arith.constant 56 : index
    %c128_268 = arith.constant 128 : index
    %186 = vector.load %arg26[%c56_267, %c128_268] : memref<64x1152xf32, #tpu.memory_space<vmem>>, vector<8x16xf32>
    tpu.vector_store %arg26[%c56_267, %c128_268], %185 {strides = array<i32>} : memref<64x1152xf32, #tpu.memory_space<vmem>>, vector<8x16xf32>,
    %c0_269 = arith.constant 0 : index
    %c0_270 = arith.constant 0 : index
    %187 = vector.load %arg26[%c0_269, %c0_270] : memref<64x1152xf32, #tpu.memory_space<vmem>>, vector<64x144xf32>
    %188 = arith.truncf %187 : vector<64x144xf32> to vector<64x144xbf16>
    %c0_271 = arith.constant 0 : index
    %c0_272 = arith.constant 0 : index
    %189 = vector.load %arg4[%c0_271, %c0_272] : memref<144x32xbf16, #tpu.memory_space<vmem>>, vector<144x32xbf16>
    %cst_273 = arith.constant dense<0.000000e+00> : vector<64x32xf32>
    %190 = tpu.matmul %188, %189, %cst_273 {dimension_numbers = #tpu.dot_dimension_numbers<[1], [0], [0], [1], [0, 0, 1, 1], [], []>} : vector<64x144xbf16>, vector<144x32xbf16>, vector<64x32xf32> -> vector<64x32xf32>
    %c0_274 = arith.constant 0 : index
    %c0_275 = arith.constant 0 : index
    %191 = vector.load %arg5[%c0_274, %c0_275] : memref<1x32xf32, #tpu.memory_space<vmem>>, vector<1x32xf32>
    %192 = vector.broadcast %191 : vector<1x32xf32> to vector<64x32xf32>
    %193 = arith.addf %190, %192 : vector<64x32xf32>
    %cst_276 = arith.constant 0.000000e+00 : f32
    %194 = vector.broadcast %cst_276 : f32 to vector<64x32xf32>
    %195 = arith.maximumf %193, %194 : vector<64x32xf32>
    %cst_277 = arith.constant 0.000000e+00 : f32
    %196 = vector.broadcast %cst_277 : f32 to vector<100x32xf32>
    %c0_278 = arith.constant 0 : index
    %c0_279 = arith.constant 0 : index
    %197 = vector.load %arg25[%c0_278, %c0_279] : memref<328x128xf32, #tpu.memory_space<vmem>>, vector<100x32xf32>
    tpu.vector_store %arg25[%c0_278, %c0_279], %196 {strides = array<i32>} : memref<328x128xf32, #tpu.memory_space<vmem>>, vector<100x32xf32>,
    %198 = vector.extract_strided_slice %195 {offsets = [0, 0], sizes = [8, 32], strides = [1, 1]} : vector<64x32xf32> to vector<8x32xf32>
    %c11 = arith.constant 11 : index
    %c0_280 = arith.constant 0 : index
    %199 = vector.load %arg25[%c11, %c0_280] : memref<328x128xf32, #tpu.memory_space<vmem>>, vector<8x32xf32>
    tpu.vector_store %arg25[%c11, %c0_280], %198 {strides = array<i32>} : memref<328x128xf32, #tpu.memory_space<vmem>>, vector<8x32xf32>,
    %200 = vector.extract_strided_slice %195 {offsets = [8, 0], sizes = [8, 32], strides = [1, 1]} : vector<64x32xf32> to vector<8x32xf32>
    %c21 = arith.constant 21 : index
    %c0_281 = arith.constant 0 : index
    %201 = vector.load %arg25[%c21, %c0_281] : memref<328x128xf32, #tpu.memory_space<vmem>>, vector<8x32xf32>
    tpu.vector_store %arg25[%c21, %c0_281], %200 {strides = array<i32>} : memref<328x128xf32, #tpu.memory_space<vmem>>, vector<8x32xf32>,
    %202 = vector.extract_strided_slice %195 {offsets = [16, 0], sizes = [8, 32], strides = [1, 1]} : vector<64x32xf32> to vector<8x32xf32>
    %c31 = arith.constant 31 : index
    %c0_282 = arith.constant 0 : index
    %203 = vector.load %arg25[%c31, %c0_282] : memref<328x128xf32, #tpu.memory_space<vmem>>, vector<8x32xf32>
    tpu.vector_store %arg25[%c31, %c0_282], %202 {strides = array<i32>} : memref<328x128xf32, #tpu.memory_space<vmem>>, vector<8x32xf32>,
    %204 = vector.extract_strided_slice %195 {offsets = [24, 0], sizes = [8, 32], strides = [1, 1]} : vector<64x32xf32> to vector<8x32xf32>
    %c41 = arith.constant 41 : index
    %c0_283 = arith.constant 0 : index
    %205 = vector.load %arg25[%c41, %c0_283] : memref<328x128xf32, #tpu.memory_space<vmem>>, vector<8x32xf32>
    tpu.vector_store %arg25[%c41, %c0_283], %204 {strides = array<i32>} : memref<328x128xf32, #tpu.memory_space<vmem>>, vector<8x32xf32>,
    %206 = vector.extract_strided_slice %195 {offsets = [32, 0], sizes = [8, 32], strides = [1, 1]} : vector<64x32xf32> to vector<8x32xf32>
    %c51 = arith.constant 51 : index
    %c0_284 = arith.constant 0 : index
    %207 = vector.load %arg25[%c51, %c0_284] : memref<328x128xf32, #tpu.memory_space<vmem>>, vector<8x32xf32>
    tpu.vector_store %arg25[%c51, %c0_284], %206 {strides = array<i32>} : memref<328x128xf32, #tpu.memory_space<vmem>>, vector<8x32xf32>,
    %208 = vector.extract_strided_slice %195 {offsets = [40, 0], sizes = [8, 32], strides = [1, 1]} : vector<64x32xf32> to vector<8x32xf32>
    %c61 = arith.constant 61 : index
    %c0_285 = arith.constant 0 : index
    %209 = vector.load %arg25[%c61, %c0_285] : memref<328x128xf32, #tpu.memory_space<vmem>>, vector<8x32xf32>
    tpu.vector_store %arg25[%c61, %c0_285], %208 {strides = array<i32>} : memref<328x128xf32, #tpu.memory_space<vmem>>, vector<8x32xf32>,
    %210 = vector.extract_strided_slice %195 {offsets = [48, 0], sizes = [8, 32], strides = [1, 1]} : vector<64x32xf32> to vector<8x32xf32>
    %c71 = arith.constant 71 : index
    %c0_286 = arith.constant 0 : index
    %211 = vector.load %arg25[%c71, %c0_286] : memref<328x128xf32, #tpu.memory_space<vmem>>, vector<8x32xf32>
    tpu.vector_store %arg25[%c71, %c0_286], %210 {strides = array<i32>} : memref<328x128xf32, #tpu.memory_space<vmem>>, vector<8x32xf32>,
    %212 = vector.extract_strided_slice %195 {offsets = [56, 0], sizes = [8, 32], strides = [1, 1]} : vector<64x32xf32> to vector<8x32xf32>
    %c81 = arith.constant 81 : index
    %c0_287 = arith.constant 0 : index
    %213 = vector.load %arg25[%c81, %c0_287] : memref<328x128xf32, #tpu.memory_space<vmem>>, vector<8x32xf32>
    tpu.vector_store %arg25[%c81, %c0_287], %212 {strides = array<i32>} : memref<328x128xf32, #tpu.memory_space<vmem>>, vector<8x32xf32>,
    %c0_288 = arith.constant 0 : index
    %c0_289 = arith.constant 0 : index
    %214 = tpu.strided_load %arg25[%c0_288, %c0_289] {strides = array<i32: 2, 1>} : memref<328x128xf32, #tpu.memory_space<vmem>>, vector<4x32xf32>
    %c0_290 = arith.constant 0 : index
    %c0_291 = arith.constant 0 : index
    %215 = vector.load %arg26[%c0_290, %c0_291] : memref<64x1152xf32, #tpu.memory_space<vmem>>, vector<4x32xf32>
    tpu.vector_store %arg26[%c0_290, %c0_291], %214 {strides = array<i32>} : memref<64x1152xf32, #tpu.memory_space<vmem>>, vector<4x32xf32>,
    %c20_292 = arith.constant 20 : index
    %c0_293 = arith.constant 0 : index
    %216 = tpu.strided_load %arg25[%c20_292, %c0_293] {strides = array<i32: 2, 1>} : memref<328x128xf32, #tpu.memory_space<vmem>>, vector<4x32xf32>
    %c4 = arith.constant 4 : index
    %c0_294 = arith.constant 0 : index
    %217 = vector.load %arg26[%c4, %c0_294] : memref<64x1152xf32, #tpu.memory_space<vmem>>, vector<4x32xf32>
    tpu.vector_store %arg26[%c4, %c0_294], %216 {strides = array<i32>} : memref<64x1152xf32, #tpu.memory_space<vmem>>, vector<4x32xf32>,
    %c40_295 = arith.constant 40 : index
    %c0_296 = arith.constant 0 : index
    %218 = tpu.strided_load %arg25[%c40_295, %c0_296] {strides = array<i32: 2, 1>} : memref<328x128xf32, #tpu.memory_space<vmem>>, vector<4x32xf32>
    %c8_297 = arith.constant 8 : index
    %c0_298 = arith.constant 0 : index
    %219 = vector.load %arg26[%c8_297, %c0_298] : memref<64x1152xf32, #tpu.memory_space<vmem>>, vector<4x32xf32>
    tpu.vector_store %arg26[%c8_297, %c0_298], %218 {strides = array<i32>} : memref<64x1152xf32, #tpu.memory_space<vmem>>, vector<4x32xf32>,
    %c60 = arith.constant 60 : index
    %c0_299 = arith.constant 0 : index
    %220 = tpu.strided_load %arg25[%c60, %c0_299] {strides = array<i32: 2, 1>} : memref<328x128xf32, #tpu.memory_space<vmem>>, vector<4x32xf32>
    %c12 = arith.constant 12 : index
    %c0_300 = arith.constant 0 : index
    %221 = vector.load %arg26[%c12, %c0_300] : memref<64x1152xf32, #tpu.memory_space<vmem>>, vector<4x32xf32>
    tpu.vector_store %arg26[%c12, %c0_300], %220 {strides = array<i32>} : memref<64x1152xf32, #tpu.memory_space<vmem>>, vector<4x32xf32>,
    %c1_301 = arith.constant 1 : index
    %c0_302 = arith.constant 0 : index
    %222 = tpu.strided_load %arg25[%c1_301, %c0_302] {strides = array<i32: 2, 1>} : memref<328x128xf32, #tpu.memory_space<vmem>>, vector<4x32xf32>
    %c0_303 = arith.constant 0 : index
    %c32_304 = arith.constant 32 : index
    %223 = vector.load %arg26[%c0_303, %c32_304] : memref<64x1152xf32, #tpu.memory_space<vmem>>, vector<4x32xf32>
    tpu.vector_store %arg26[%c0_303, %c32_304], %222 {strides = array<i32>} : memref<64x1152xf32, #tpu.memory_space<vmem>>, vector<4x32xf32>,
    %c21_305 = arith.constant 21 : index
    %c0_306 = arith.constant 0 : index
    %224 = tpu.strided_load %arg25[%c21_305, %c0_306] {strides = array<i32: 2, 1>} : memref<328x128xf32, #tpu.memory_space<vmem>>, vector<4x32xf32>
    %c4_307 = arith.constant 4 : index
    %c32_308 = arith.constant 32 : index
    %225 = vector.load %arg26[%c4_307, %c32_308] : memref<64x1152xf32, #tpu.memory_space<vmem>>, vector<4x32xf32>
    tpu.vector_store %arg26[%c4_307, %c32_308], %224 {strides = array<i32>} : memref<64x1152xf32, #tpu.memory_space<vmem>>, vector<4x32xf32>,
    %c41_309 = arith.constant 41 : index
    %c0_310 = arith.constant 0 : index
    %226 = tpu.strided_load %arg25[%c41_309, %c0_310] {strides = array<i32: 2, 1>} : memref<328x128xf32, #tpu.memory_space<vmem>>, vector<4x32xf32>
    %c8_311 = arith.constant 8 : index
    %c32_312 = arith.constant 32 : index
    %227 = vector.load %arg26[%c8_311, %c32_312] : memref<64x1152xf32, #tpu.memory_space<vmem>>, vector<4x32xf32>
    tpu.vector_store %arg26[%c8_311, %c32_312], %226 {strides = array<i32>} : memref<64x1152xf32, #tpu.memory_space<vmem>>, vector<4x32xf32>,
    %c61_313 = arith.constant 61 : index
    %c0_314 = arith.constant 0 : index
    %228 = tpu.strided_load %arg25[%c61_313, %c0_314] {strides = array<i32: 2, 1>} : memref<328x128xf32, #tpu.memory_space<vmem>>, vector<4x32xf32>
    %c12_315 = arith.constant 12 : index
    %c32_316 = arith.constant 32 : index
    %229 = vector.load %arg26[%c12_315, %c32_316] : memref<64x1152xf32, #tpu.memory_space<vmem>>, vector<4x32xf32>
    tpu.vector_store %arg26[%c12_315, %c32_316], %228 {strides = array<i32>} : memref<64x1152xf32, #tpu.memory_space<vmem>>, vector<4x32xf32>,
    %c2_317 = arith.constant 2 : index
    %c0_318 = arith.constant 0 : index
    %230 = tpu.strided_load %arg25[%c2_317, %c0_318] {strides = array<i32: 2, 1>} : memref<328x128xf32, #tpu.memory_space<vmem>>, vector<4x32xf32>
    %c0_319 = arith.constant 0 : index
    %c64_320 = arith.constant 64 : index
    %231 = vector.load %arg26[%c0_319, %c64_320] : memref<64x1152xf32, #tpu.memory_space<vmem>>, vector<4x32xf32>
    tpu.vector_store %arg26[%c0_319, %c64_320], %230 {strides = array<i32>} : memref<64x1152xf32, #tpu.memory_space<vmem>>, vector<4x32xf32>,
    %c22 = arith.constant 22 : index
    %c0_321 = arith.constant 0 : index
    %232 = tpu.strided_load %arg25[%c22, %c0_321] {strides = array<i32: 2, 1>} : memref<328x128xf32, #tpu.memory_space<vmem>>, vector<4x32xf32>
    %c4_322 = arith.constant 4 : index
    %c64_323 = arith.constant 64 : index
    %233 = vector.load %arg26[%c4_322, %c64_323] : memref<64x1152xf32, #tpu.memory_space<vmem>>, vector<4x32xf32>
    tpu.vector_store %arg26[%c4_322, %c64_323], %232 {strides = array<i32>} : memref<64x1152xf32, #tpu.memory_space<vmem>>, vector<4x32xf32>,
    %c42 = arith.constant 42 : index
    %c0_324 = arith.constant 0 : index
    %234 = tpu.strided_load %arg25[%c42, %c0_324] {strides = array<i32: 2, 1>} : memref<328x128xf32, #tpu.memory_space<vmem>>, vector<4x32xf32>
    %c8_325 = arith.constant 8 : index
    %c64_326 = arith.constant 64 : index
    %235 = vector.load %arg26[%c8_325, %c64_326] : memref<64x1152xf32, #tpu.memory_space<vmem>>, vector<4x32xf32>
    tpu.vector_store %arg26[%c8_325, %c64_326], %234 {strides = array<i32>} : memref<64x1152xf32, #tpu.memory_space<vmem>>, vector<4x32xf32>,
    %c62 = arith.constant 62 : index
    %c0_327 = arith.constant 0 : index
    %236 = tpu.strided_load %arg25[%c62, %c0_327] {strides = array<i32: 2, 1>} : memref<328x128xf32, #tpu.memory_space<vmem>>, vector<4x32xf32>
    %c12_328 = arith.constant 12 : index
    %c64_329 = arith.constant 64 : index
    %237 = vector.load %arg26[%c12_328, %c64_329] : memref<64x1152xf32, #tpu.memory_space<vmem>>, vector<4x32xf32>
    tpu.vector_store %arg26[%c12_328, %c64_329], %236 {strides = array<i32>} : memref<64x1152xf32, #tpu.memory_space<vmem>>, vector<4x32xf32>,
    %c10 = arith.constant 10 : index
    %c0_330 = arith.constant 0 : index
    %238 = tpu.strided_load %arg25[%c10, %c0_330] {strides = array<i32: 2, 1>} : memref<328x128xf32, #tpu.memory_space<vmem>>, vector<4x32xf32>
    %c0_331 = arith.constant 0 : index
    %c96_332 = arith.constant 96 : index
    %239 = vector.load %arg26[%c0_331, %c96_332] : memref<64x1152xf32, #tpu.memory_space<vmem>>, vector<4x32xf32>
    tpu.vector_store %arg26[%c0_331, %c96_332], %238 {strides = array<i32>} : memref<64x1152xf32, #tpu.memory_space<vmem>>, vector<4x32xf32>,
    %c30 = arith.constant 30 : index
    %c0_333 = arith.constant 0 : index
    %240 = tpu.strided_load %arg25[%c30, %c0_333] {strides = array<i32: 2, 1>} : memref<328x128xf32, #tpu.memory_space<vmem>>, vector<4x32xf32>
    %c4_334 = arith.constant 4 : index
    %c96_335 = arith.constant 96 : index
    %241 = vector.load %arg26[%c4_334, %c96_335] : memref<64x1152xf32, #tpu.memory_space<vmem>>, vector<4x32xf32>
    tpu.vector_store %arg26[%c4_334, %c96_335], %240 {strides = array<i32>} : memref<64x1152xf32, #tpu.memory_space<vmem>>, vector<4x32xf32>,
    %c50 = arith.constant 50 : index
    %c0_336 = arith.constant 0 : index
    %242 = tpu.strided_load %arg25[%c50, %c0_336] {strides = array<i32: 2, 1>} : memref<328x128xf32, #tpu.memory_space<vmem>>, vector<4x32xf32>
    %c8_337 = arith.constant 8 : index
    %c96_338 = arith.constant 96 : index
    %243 = vector.load %arg26[%c8_337, %c96_338] : memref<64x1152xf32, #tpu.memory_space<vmem>>, vector<4x32xf32>
    tpu.vector_store %arg26[%c8_337, %c96_338], %242 {strides = array<i32>} : memref<64x1152xf32, #tpu.memory_space<vmem>>, vector<4x32xf32>,
    %c70 = arith.constant 70 : index
    %c0_339 = arith.constant 0 : index
    %244 = tpu.strided_load %arg25[%c70, %c0_339] {strides = array<i32: 2, 1>} : memref<328x128xf32, #tpu.memory_space<vmem>>, vector<4x32xf32>
    %c12_340 = arith.constant 12 : index
    %c96_341 = arith.constant 96 : index
    %245 = vector.load %arg26[%c12_340, %c96_341] : memref<64x1152xf32, #tpu.memory_space<vmem>>, vector<4x32xf32>
    tpu.vector_store %arg26[%c12_340, %c96_341], %244 {strides = array<i32>} : memref<64x1152xf32, #tpu.memory_space<vmem>>, vector<4x32xf32>,
    %c11_342 = arith.constant 11 : index
    %c0_343 = arith.constant 0 : index
    %246 = tpu.strided_load %arg25[%c11_342, %c0_343] {strides = array<i32: 2, 1>} : memref<328x128xf32, #tpu.memory_space<vmem>>, vector<4x32xf32>
    %c0_344 = arith.constant 0 : index
    %c128_345 = arith.constant 128 : index
    %247 = vector.load %arg26[%c0_344, %c128_345] : memref<64x1152xf32, #tpu.memory_space<vmem>>, vector<4x32xf32>
    tpu.vector_store %arg26[%c0_344, %c128_345], %246 {strides = array<i32>} : memref<64x1152xf32, #tpu.memory_space<vmem>>, vector<4x32xf32>,
    %c31_346 = arith.constant 31 : index
    %c0_347 = arith.constant 0 : index
    %248 = tpu.strided_load %arg25[%c31_346, %c0_347] {strides = array<i32: 2, 1>} : memref<328x128xf32, #tpu.memory_space<vmem>>, vector<4x32xf32>
    %c4_348 = arith.constant 4 : index
    %c128_349 = arith.constant 128 : index
    %249 = vector.load %arg26[%c4_348, %c128_349] : memref<64x1152xf32, #tpu.memory_space<vmem>>, vector<4x32xf32>
    tpu.vector_store %arg26[%c4_348, %c128_349], %248 {strides = array<i32>} : memref<64x1152xf32, #tpu.memory_space<vmem>>, vector<4x32xf32>,
    %c51_350 = arith.constant 51 : index
    %c0_351 = arith.constant 0 : index
    %250 = tpu.strided_load %arg25[%c51_350, %c0_351] {strides = array<i32: 2, 1>} : memref<328x128xf32, #tpu.memory_space<vmem>>, vector<4x32xf32>
    %c8_352 = arith.constant 8 : index
    %c128_353 = arith.constant 128 : index
    %251 = vector.load %arg26[%c8_352, %c128_353] : memref<64x1152xf32, #tpu.memory_space<vmem>>, vector<4x32xf32>
    tpu.vector_store %arg26[%c8_352, %c128_353], %250 {strides = array<i32>} : memref<64x1152xf32, #tpu.memory_space<vmem>>, vector<4x32xf32>,
    %c71_354 = arith.constant 71 : index
    %c0_355 = arith.constant 0 : index
    %252 = tpu.strided_load %arg25[%c71_354, %c0_355] {strides = array<i32: 2, 1>} : memref<328x128xf32, #tpu.memory_space<vmem>>, vector<4x32xf32>
    %c12_356 = arith.constant 12 : index
    %c128_357 = arith.constant 128 : index
    %253 = vector.load %arg26[%c12_356, %c128_357] : memref<64x1152xf32, #tpu.memory_space<vmem>>, vector<4x32xf32>
    tpu.vector_store %arg26[%c12_356, %c128_357], %252 {strides = array<i32>} : memref<64x1152xf32, #tpu.memory_space<vmem>>, vector<4x32xf32>,
    %c12_358 = arith.constant 12 : index
    %c0_359 = arith.constant 0 : index
    %254 = tpu.strided_load %arg25[%c12_358, %c0_359] {strides = array<i32: 2, 1>} : memref<328x128xf32, #tpu.memory_space<vmem>>, vector<4x32xf32>
    %c0_360 = arith.constant 0 : index
    %c160 = arith.constant 160 : index
    %255 = vector.load %arg26[%c0_360, %c160] : memref<64x1152xf32, #tpu.memory_space<vmem>>, vector<4x32xf32>
    tpu.vector_store %arg26[%c0_360, %c160], %254 {strides = array<i32>} : memref<64x1152xf32, #tpu.memory_space<vmem>>, vector<4x32xf32>,
    %c32_361 = arith.constant 32 : index
    %c0_362 = arith.constant 0 : index
    %256 = tpu.strided_load %arg25[%c32_361, %c0_362] {strides = array<i32: 2, 1>} : memref<328x128xf32, #tpu.memory_space<vmem>>, vector<4x32xf32>
    %c4_363 = arith.constant 4 : index
    %c160_364 = arith.constant 160 : index
    %257 = vector.load %arg26[%c4_363, %c160_364] : memref<64x1152xf32, #tpu.memory_space<vmem>>, vector<4x32xf32>
    tpu.vector_store %arg26[%c4_363, %c160_364], %256 {strides = array<i32>} : memref<64x1152xf32, #tpu.memory_space<vmem>>, vector<4x32xf32>,
    %c52 = arith.constant 52 : index
    %c0_365 = arith.constant 0 : index
    %258 = tpu.strided_load %arg25[%c52, %c0_365] {strides = array<i32: 2, 1>} : memref<328x128xf32, #tpu.memory_space<vmem>>, vector<4x32xf32>
    %c8_366 = arith.constant 8 : index
    %c160_367 = arith.constant 160 : index
    %259 = vector.load %arg26[%c8_366, %c160_367] : memref<64x1152xf32, #tpu.memory_space<vmem>>, vector<4x32xf32>
    tpu.vector_store %arg26[%c8_366, %c160_367], %258 {strides = array<i32>} : memref<64x1152xf32, #tpu.memory_space<vmem>>, vector<4x32xf32>,
    %c72_368 = arith.constant 72 : index
    %c0_369 = arith.constant 0 : index
    %260 = tpu.strided_load %arg25[%c72_368, %c0_369] {strides = array<i32: 2, 1>} : memref<328x128xf32, #tpu.memory_space<vmem>>, vector<4x32xf32>
    %c12_370 = arith.constant 12 : index
    %c160_371 = arith.constant 160 : index
    %261 = vector.load %arg26[%c12_370, %c160_371] : memref<64x1152xf32, #tpu.memory_space<vmem>>, vector<4x32xf32>
    tpu.vector_store %arg26[%c12_370, %c160_371], %260 {strides = array<i32>} : memref<64x1152xf32, #tpu.memory_space<vmem>>, vector<4x32xf32>,
    %c20_372 = arith.constant 20 : index
    %c0_373 = arith.constant 0 : index
    %262 = tpu.strided_load %arg25[%c20_372, %c0_373] {strides = array<i32: 2, 1>} : memref<328x128xf32, #tpu.memory_space<vmem>>, vector<4x32xf32>
    %c0_374 = arith.constant 0 : index
    %c192 = arith.constant 192 : index
    %263 = vector.load %arg26[%c0_374, %c192] : memref<64x1152xf32, #tpu.memory_space<vmem>>, vector<4x32xf32>
    tpu.vector_store %arg26[%c0_374, %c192], %262 {strides = array<i32>} : memref<64x1152xf32, #tpu.memory_space<vmem>>, vector<4x32xf32>,
    %c40_375 = arith.constant 40 : index
    %c0_376 = arith.constant 0 : index
    %264 = tpu.strided_load %arg25[%c40_375, %c0_376] {strides = array<i32: 2, 1>} : memref<328x128xf32, #tpu.memory_space<vmem>>, vector<4x32xf32>
    %c4_377 = arith.constant 4 : index
    %c192_378 = arith.constant 192 : index
    %265 = vector.load %arg26[%c4_377, %c192_378] : memref<64x1152xf32, #tpu.memory_space<vmem>>, vector<4x32xf32>
    tpu.vector_store %arg26[%c4_377, %c192_378], %264 {strides = array<i32>} : memref<64x1152xf32, #tpu.memory_space<vmem>>, vector<4x32xf32>,
    %c60_379 = arith.constant 60 : index
    %c0_380 = arith.constant 0 : index
    %266 = tpu.strided_load %arg25[%c60_379, %c0_380] {strides = array<i32: 2, 1>} : memref<328x128xf32, #tpu.memory_space<vmem>>, vector<4x32xf32>
    %c8_381 = arith.constant 8 : index
    %c192_382 = arith.constant 192 : index
    %267 = vector.load %arg26[%c8_381, %c192_382] : memref<64x1152xf32, #tpu.memory_space<vmem>>, vector<4x32xf32>
    tpu.vector_store %arg26[%c8_381, %c192_382], %266 {strides = array<i32>} : memref<64x1152xf32, #tpu.memory_space<vmem>>, vector<4x32xf32>,
    %c80_383 = arith.constant 80 : index
    %c0_384 = arith.constant 0 : index
    %268 = tpu.strided_load %arg25[%c80_383, %c0_384] {strides = array<i32: 2, 1>} : memref<328x128xf32, #tpu.memory_space<vmem>>, vector<4x32xf32>
    %c12_385 = arith.constant 12 : index
    %c192_386 = arith.constant 192 : index
    %269 = vector.load %arg26[%c12_385, %c192_386] : memref<64x1152xf32, #tpu.memory_space<vmem>>, vector<4x32xf32>
    tpu.vector_store %arg26[%c12_385, %c192_386], %268 {strides = array<i32>} : memref<64x1152xf32, #tpu.memory_space<vmem>>, vector<4x32xf32>,
    %c21_387 = arith.constant 21 : index
    %c0_388 = arith.constant 0 : index
    %270 = tpu.strided_load %arg25[%c21_387, %c0_388] {strides = array<i32: 2, 1>} : memref<328x128xf32, #tpu.memory_space<vmem>>, vector<4x32xf32>
    %c0_389 = arith.constant 0 : index
    %c224 = arith.constant 224 : index
    %271 = vector.load %arg26[%c0_389, %c224] : memref<64x1152xf32, #tpu.memory_space<vmem>>, vector<4x32xf32>
    tpu.vector_store %arg26[%c0_389, %c224], %270 {strides = array<i32>} : memref<64x1152xf32, #tpu.memory_space<vmem>>, vector<4x32xf32>,
    %c41_390 = arith.constant 41 : index
    %c0_391 = arith.constant 0 : index
    %272 = tpu.strided_load %arg25[%c41_390, %c0_391] {strides = array<i32: 2, 1>} : memref<328x128xf32, #tpu.memory_space<vmem>>, vector<4x32xf32>
    %c4_392 = arith.constant 4 : index
    %c224_393 = arith.constant 224 : index
    %273 = vector.load %arg26[%c4_392, %c224_393] : memref<64x1152xf32, #tpu.memory_space<vmem>>, vector<4x32xf32>
    tpu.vector_store %arg26[%c4_392, %c224_393], %272 {strides = array<i32>} : memref<64x1152xf32, #tpu.memory_space<vmem>>, vector<4x32xf32>,
    %c61_394 = arith.constant 61 : index
    %c0_395 = arith.constant 0 : index
    %274 = tpu.strided_load %arg25[%c61_394, %c0_395] {strides = array<i32: 2, 1>} : memref<328x128xf32, #tpu.memory_space<vmem>>, vector<4x32xf32>
    %c8_396 = arith.constant 8 : index
    %c224_397 = arith.constant 224 : index
    %275 = vector.load %arg26[%c8_396, %c224_397] : memref<64x1152xf32, #tpu.memory_space<vmem>>, vector<4x32xf32>
    tpu.vector_store %arg26[%c8_396, %c224_397], %274 {strides = array<i32>} : memref<64x1152xf32, #tpu.memory_space<vmem>>, vector<4x32xf32>,
    %c81_398 = arith.constant 81 : index
    %c0_399 = arith.constant 0 : index
    %276 = tpu.strided_load %arg25[%c81_398, %c0_399] {strides = array<i32: 2, 1>} : memref<328x128xf32, #tpu.memory_space<vmem>>, vector<4x32xf32>
    %c12_400 = arith.constant 12 : index
    %c224_401 = arith.constant 224 : index
    %277 = vector.load %arg26[%c12_400, %c224_401] : memref<64x1152xf32, #tpu.memory_space<vmem>>, vector<4x32xf32>
    tpu.vector_store %arg26[%c12_400, %c224_401], %276 {strides = array<i32>} : memref<64x1152xf32, #tpu.memory_space<vmem>>, vector<4x32xf32>,
    %c22_402 = arith.constant 22 : index
    %c0_403 = arith.constant 0 : index
    %278 = tpu.strided_load %arg25[%c22_402, %c0_403] {strides = array<i32: 2, 1>} : memref<328x128xf32, #tpu.memory_space<vmem>>, vector<4x32xf32>
    %c0_404 = arith.constant 0 : index
    %c256 = arith.constant 256 : index
    %279 = vector.load %arg26[%c0_404, %c256] : memref<64x1152xf32, #tpu.memory_space<vmem>>, vector<4x32xf32>
    tpu.vector_store %arg26[%c0_404, %c256], %278 {strides = array<i32>} : memref<64x1152xf32, #tpu.memory_space<vmem>>, vector<4x32xf32>,
    %c42_405 = arith.constant 42 : index
    %c0_406 = arith.constant 0 : index
    %280 = tpu.strided_load %arg25[%c42_405, %c0_406] {strides = array<i32: 2, 1>} : memref<328x128xf32, #tpu.memory_space<vmem>>, vector<4x32xf32>
    %c4_407 = arith.constant 4 : index
    %c256_408 = arith.constant 256 : index
    %281 = vector.load %arg26[%c4_407, %c256_408] : memref<64x1152xf32, #tpu.memory_space<vmem>>, vector<4x32xf32>
    tpu.vector_store %arg26[%c4_407, %c256_408], %280 {strides = array<i32>} : memref<64x1152xf32, #tpu.memory_space<vmem>>, vector<4x32xf32>,
    %c62_409 = arith.constant 62 : index
    %c0_410 = arith.constant 0 : index
    %282 = tpu.strided_load %arg25[%c62_409, %c0_410] {strides = array<i32: 2, 1>} : memref<328x128xf32, #tpu.memory_space<vmem>>, vector<4x32xf32>
    %c8_411 = arith.constant 8 : index
    %c256_412 = arith.constant 256 : index
    %283 = vector.load %arg26[%c8_411, %c256_412] : memref<64x1152xf32, #tpu.memory_space<vmem>>, vector<4x32xf32>
    tpu.vector_store %arg26[%c8_411, %c256_412], %282 {strides = array<i32>} : memref<64x1152xf32, #tpu.memory_space<vmem>>, vector<4x32xf32>,
    %c82 = arith.constant 82 : index
    %c0_413 = arith.constant 0 : index
    %284 = tpu.strided_load %arg25[%c82, %c0_413] {strides = array<i32: 2, 1>} : memref<328x128xf32, #tpu.memory_space<vmem>>, vector<4x32xf32>
    %c12_414 = arith.constant 12 : index
    %c256_415 = arith.constant 256 : index
    %285 = vector.load %arg26[%c12_414, %c256_415] : memref<64x1152xf32, #tpu.memory_space<vmem>>, vector<4x32xf32>
    tpu.vector_store %arg26[%c12_414, %c256_415], %284 {strides = array<i32>} : memref<64x1152xf32, #tpu.memory_space<vmem>>, vector<4x32xf32>,
    %c0_416 = arith.constant 0 : index
    %c0_417 = arith.constant 0 : index
    %286 = vector.load %arg26[%c0_416, %c0_417] : memref<64x1152xf32, #tpu.memory_space<vmem>>, vector<16x288xf32>
    %287 = arith.truncf %286 : vector<16x288xf32> to vector<16x288xbf16>
    %c0_418 = arith.constant 0 : index
    %c0_419 = arith.constant 0 : index
    %288 = vector.load %arg6[%c0_418, %c0_419] : memref<288x64xbf16, #tpu.memory_space<vmem>>, vector<288x64xbf16>
    %cst_420 = arith.constant dense<0.000000e+00> : vector<16x64xf32>
    %289 = tpu.matmul %287, %288, %cst_420 {dimension_numbers = #tpu.dot_dimension_numbers<[1], [0], [0], [1], [0, 0, 1, 1], [], []>} : vector<16x288xbf16>, vector<288x64xbf16>, vector<16x64xf32> -> vector<16x64xf32>
    %c0_421 = arith.constant 0 : index
    %c0_422 = arith.constant 0 : index
    %290 = vector.load %arg7[%c0_421, %c0_422] : memref<1x64xf32, #tpu.memory_space<vmem>>, vector<1x64xf32>
    %291 = vector.broadcast %290 : vector<1x64xf32> to vector<16x64xf32>
    %292 = arith.addf %289, %291 : vector<16x64xf32>
    %cst_423 = arith.constant 0.000000e+00 : f32
    %293 = vector.broadcast %cst_423 : f32 to vector<16x64xf32>
    %294 = arith.maximumf %292, %293 : vector<16x64xf32>
    %cst_424 = arith.constant 0.000000e+00 : f32
    %295 = vector.broadcast %cst_424 : f32 to vector<36x64xf32>
    %c0_425 = arith.constant 0 : index
    %c0_426 = arith.constant 0 : index
    %296 = vector.load %arg25[%c0_425, %c0_426] : memref<328x128xf32, #tpu.memory_space<vmem>>, vector<36x64xf32>
    tpu.vector_store %arg25[%c0_425, %c0_426], %295 {strides = array<i32>} : memref<328x128xf32, #tpu.memory_space<vmem>>, vector<36x64xf32>,
    %297 = vector.extract_strided_slice %294 {offsets = [0, 0], sizes = [4, 64], strides = [1, 1]} : vector<16x64xf32> to vector<4x64xf32>
    %c7 = arith.constant 7 : index
    %c0_427 = arith.constant 0 : index
    %298 = vector.load %arg25[%c7, %c0_427] : memref<328x128xf32, #tpu.memory_space<vmem>>, vector<4x64xf32>
    tpu.vector_store %arg25[%c7, %c0_427], %297 {strides = array<i32>} : memref<328x128xf32, #tpu.memory_space<vmem>>, vector<4x64xf32>,
    %299 = vector.extract_strided_slice %294 {offsets = [4, 0], sizes = [4, 64], strides = [1, 1]} : vector<16x64xf32> to vector<4x64xf32>
    %c13 = arith.constant 13 : index
    %c0_428 = arith.constant 0 : index
    %300 = vector.load %arg25[%c13, %c0_428] : memref<328x128xf32, #tpu.memory_space<vmem>>, vector<4x64xf32>
    tpu.vector_store %arg25[%c13, %c0_428], %299 {strides = array<i32>} : memref<328x128xf32, #tpu.memory_space<vmem>>, vector<4x64xf32>,
    %301 = vector.extract_strided_slice %294 {offsets = [8, 0], sizes = [4, 64], strides = [1, 1]} : vector<16x64xf32> to vector<4x64xf32>
    %c19_429 = arith.constant 19 : index
    %c0_430 = arith.constant 0 : index
    %302 = vector.load %arg25[%c19_429, %c0_430] : memref<328x128xf32, #tpu.memory_space<vmem>>, vector<4x64xf32>
    tpu.vector_store %arg25[%c19_429, %c0_430], %301 {strides = array<i32>} : memref<328x128xf32, #tpu.memory_space<vmem>>, vector<4x64xf32>,
    %303 = vector.extract_strided_slice %294 {offsets = [12, 0], sizes = [4, 64], strides = [1, 1]} : vector<16x64xf32> to vector<4x64xf32>
    %c25 = arith.constant 25 : index
    %c0_431 = arith.constant 0 : index
    %304 = vector.load %arg25[%c25, %c0_431] : memref<328x128xf32, #tpu.memory_space<vmem>>, vector<4x64xf32>
    tpu.vector_store %arg25[%c25, %c0_431], %303 {strides = array<i32>} : memref<328x128xf32, #tpu.memory_space<vmem>>, vector<4x64xf32>,
    %c0_432 = arith.constant 0 : index
    %c0_433 = arith.constant 0 : index
    %305 = vector.load %arg25[%c0_432, %c0_433] : memref<328x128xf32, #tpu.memory_space<vmem>>, vector<4x64xf32>
    %c0_434 = arith.constant 0 : index
    %c0_435 = arith.constant 0 : index
    %306 = vector.load %arg26[%c0_434, %c0_435] : memref<64x1152xf32, #tpu.memory_space<vmem>>, vector<4x64xf32>
    tpu.vector_store %arg26[%c0_434, %c0_435], %305 {strides = array<i32>} : memref<64x1152xf32, #tpu.memory_space<vmem>>, vector<4x64xf32>,
    %c6 = arith.constant 6 : index
    %c0_436 = arith.constant 0 : index
    %307 = vector.load %arg25[%c6, %c0_436] : memref<328x128xf32, #tpu.memory_space<vmem>>, vector<4x64xf32>
    %c4_437 = arith.constant 4 : index
    %c0_438 = arith.constant 0 : index
    %308 = vector.load %arg26[%c4_437, %c0_438] : memref<64x1152xf32, #tpu.memory_space<vmem>>, vector<4x64xf32>
    tpu.vector_store %arg26[%c4_437, %c0_438], %307 {strides = array<i32>} : memref<64x1152xf32, #tpu.memory_space<vmem>>, vector<4x64xf32>,
    %c12_439 = arith.constant 12 : index
    %c0_440 = arith.constant 0 : index
    %309 = vector.load %arg25[%c12_439, %c0_440] : memref<328x128xf32, #tpu.memory_space<vmem>>, vector<4x64xf32>
    %c8_441 = arith.constant 8 : index
    %c0_442 = arith.constant 0 : index
    %310 = vector.load %arg26[%c8_441, %c0_442] : memref<64x1152xf32, #tpu.memory_space<vmem>>, vector<4x64xf32>
    tpu.vector_store %arg26[%c8_441, %c0_442], %309 {strides = array<i32>} : memref<64x1152xf32, #tpu.memory_space<vmem>>, vector<4x64xf32>,
    %c18_443 = arith.constant 18 : index
    %c0_444 = arith.constant 0 : index
    %311 = vector.load %arg25[%c18_443, %c0_444] : memref<328x128xf32, #tpu.memory_space<vmem>>, vector<4x64xf32>
    %c12_445 = arith.constant 12 : index
    %c0_446 = arith.constant 0 : index
    %312 = vector.load %arg26[%c12_445, %c0_446] : memref<64x1152xf32, #tpu.memory_space<vmem>>, vector<4x64xf32>
    tpu.vector_store %arg26[%c12_445, %c0_446], %311 {strides = array<i32>} : memref<64x1152xf32, #tpu.memory_space<vmem>>, vector<4x64xf32>,
    %c1_447 = arith.constant 1 : index
    %c0_448 = arith.constant 0 : index
    %313 = vector.load %arg25[%c1_447, %c0_448] : memref<328x128xf32, #tpu.memory_space<vmem>>, vector<4x64xf32>
    %c0_449 = arith.constant 0 : index
    %c64_450 = arith.constant 64 : index
    %314 = vector.load %arg26[%c0_449, %c64_450] : memref<64x1152xf32, #tpu.memory_space<vmem>>, vector<4x64xf32>
    tpu.vector_store %arg26[%c0_449, %c64_450], %313 {strides = array<i32>} : memref<64x1152xf32, #tpu.memory_space<vmem>>, vector<4x64xf32>,
    %c7_451 = arith.constant 7 : index
    %c0_452 = arith.constant 0 : index
    %315 = vector.load %arg25[%c7_451, %c0_452] : memref<328x128xf32, #tpu.memory_space<vmem>>, vector<4x64xf32>
    %c4_453 = arith.constant 4 : index
    %c64_454 = arith.constant 64 : index
    %316 = vector.load %arg26[%c4_453, %c64_454] : memref<64x1152xf32, #tpu.memory_space<vmem>>, vector<4x64xf32>
    tpu.vector_store %arg26[%c4_453, %c64_454], %315 {strides = array<i32>} : memref<64x1152xf32, #tpu.memory_space<vmem>>, vector<4x64xf32>,
    %c13_455 = arith.constant 13 : index
    %c0_456 = arith.constant 0 : index
    %317 = vector.load %arg25[%c13_455, %c0_456] : memref<328x128xf32, #tpu.memory_space<vmem>>, vector<4x64xf32>
    %c8_457 = arith.constant 8 : index
    %c64_458 = arith.constant 64 : index
    %318 = vector.load %arg26[%c8_457, %c64_458] : memref<64x1152xf32, #tpu.memory_space<vmem>>, vector<4x64xf32>
    tpu.vector_store %arg26[%c8_457, %c64_458], %317 {strides = array<i32>} : memref<64x1152xf32, #tpu.memory_space<vmem>>, vector<4x64xf32>,
    %c19_459 = arith.constant 19 : index
    %c0_460 = arith.constant 0 : index
    %319 = vector.load %arg25[%c19_459, %c0_460] : memref<328x128xf32, #tpu.memory_space<vmem>>, vector<4x64xf32>
    %c12_461 = arith.constant 12 : index
    %c64_462 = arith.constant 64 : index
    %320 = vector.load %arg26[%c12_461, %c64_462] : memref<64x1152xf32, #tpu.memory_space<vmem>>, vector<4x64xf32>
    tpu.vector_store %arg26[%c12_461, %c64_462], %319 {strides = array<i32>} : memref<64x1152xf32, #tpu.memory_space<vmem>>, vector<4x64xf32>,
    %c2_463 = arith.constant 2 : index
    %c0_464 = arith.constant 0 : index
    %321 = vector.load %arg25[%c2_463, %c0_464] : memref<328x128xf32, #tpu.memory_space<vmem>>, vector<4x64xf32>
    %c0_465 = arith.constant 0 : index
    %c128_466 = arith.constant 128 : index
    %322 = vector.load %arg26[%c0_465, %c128_466] : memref<64x1152xf32, #tpu.memory_space<vmem>>, vector<4x64xf32>
    tpu.vector_store %arg26[%c0_465, %c128_466], %321 {strides = array<i32>} : memref<64x1152xf32, #tpu.memory_space<vmem>>, vector<4x64xf32>,
    %c8_467 = arith.constant 8 : index
    %c0_468 = arith.constant 0 : index
    %323 = vector.load %arg25[%c8_467, %c0_468] : memref<328x128xf32, #tpu.memory_space<vmem>>, vector<4x64xf32>
    %c4_469 = arith.constant 4 : index
    %c128_470 = arith.constant 128 : index
    %324 = vector.load %arg26[%c4_469, %c128_470] : memref<64x1152xf32, #tpu.memory_space<vmem>>, vector<4x64xf32>
    tpu.vector_store %arg26[%c4_469, %c128_470], %323 {strides = array<i32>} : memref<64x1152xf32, #tpu.memory_space<vmem>>, vector<4x64xf32>,
    %c14 = arith.constant 14 : index
    %c0_471 = arith.constant 0 : index
    %325 = vector.load %arg25[%c14, %c0_471] : memref<328x128xf32, #tpu.memory_space<vmem>>, vector<4x64xf32>
    %c8_472 = arith.constant 8 : index
    %c128_473 = arith.constant 128 : index
    %326 = vector.load %arg26[%c8_472, %c128_473] : memref<64x1152xf32, #tpu.memory_space<vmem>>, vector<4x64xf32>
    tpu.vector_store %arg26[%c8_472, %c128_473], %325 {strides = array<i32>} : memref<64x1152xf32, #tpu.memory_space<vmem>>, vector<4x64xf32>,
    %c20_474 = arith.constant 20 : index
    %c0_475 = arith.constant 0 : index
    %327 = vector.load %arg25[%c20_474, %c0_475] : memref<328x128xf32, #tpu.memory_space<vmem>>, vector<4x64xf32>
    %c12_476 = arith.constant 12 : index
    %c128_477 = arith.constant 128 : index
    %328 = vector.load %arg26[%c12_476, %c128_477] : memref<64x1152xf32, #tpu.memory_space<vmem>>, vector<4x64xf32>
    tpu.vector_store %arg26[%c12_476, %c128_477], %327 {strides = array<i32>} : memref<64x1152xf32, #tpu.memory_space<vmem>>, vector<4x64xf32>,
    %c6_478 = arith.constant 6 : index
    %c0_479 = arith.constant 0 : index
    %329 = vector.load %arg25[%c6_478, %c0_479] : memref<328x128xf32, #tpu.memory_space<vmem>>, vector<4x64xf32>
    %c0_480 = arith.constant 0 : index
    %c192_481 = arith.constant 192 : index
    %330 = vector.load %arg26[%c0_480, %c192_481] : memref<64x1152xf32, #tpu.memory_space<vmem>>, vector<4x64xf32>
    tpu.vector_store %arg26[%c0_480, %c192_481], %329 {strides = array<i32>} : memref<64x1152xf32, #tpu.memory_space<vmem>>, vector<4x64xf32>,
    %c12_482 = arith.constant 12 : index
    %c0_483 = arith.constant 0 : index
    %331 = vector.load %arg25[%c12_482, %c0_483] : memref<328x128xf32, #tpu.memory_space<vmem>>, vector<4x64xf32>
    %c4_484 = arith.constant 4 : index
    %c192_485 = arith.constant 192 : index
    %332 = vector.load %arg26[%c4_484, %c192_485] : memref<64x1152xf32, #tpu.memory_space<vmem>>, vector<4x64xf32>
    tpu.vector_store %arg26[%c4_484, %c192_485], %331 {strides = array<i32>} : memref<64x1152xf32, #tpu.memory_space<vmem>>, vector<4x64xf32>,
    %c18_486 = arith.constant 18 : index
    %c0_487 = arith.constant 0 : index
    %333 = vector.load %arg25[%c18_486, %c0_487] : memref<328x128xf32, #tpu.memory_space<vmem>>, vector<4x64xf32>
    %c8_488 = arith.constant 8 : index
    %c192_489 = arith.constant 192 : index
    %334 = vector.load %arg26[%c8_488, %c192_489] : memref<64x1152xf32, #tpu.memory_space<vmem>>, vector<4x64xf32>
    tpu.vector_store %arg26[%c8_488, %c192_489], %333 {strides = array<i32>} : memref<64x1152xf32, #tpu.memory_space<vmem>>, vector<4x64xf32>,
    %c24_490 = arith.constant 24 : index
    %c0_491 = arith.constant 0 : index
    %335 = vector.load %arg25[%c24_490, %c0_491] : memref<328x128xf32, #tpu.memory_space<vmem>>, vector<4x64xf32>
    %c12_492 = arith.constant 12 : index
    %c192_493 = arith.constant 192 : index
    %336 = vector.load %arg26[%c12_492, %c192_493] : memref<64x1152xf32, #tpu.memory_space<vmem>>, vector<4x64xf32>
    tpu.vector_store %arg26[%c12_492, %c192_493], %335 {strides = array<i32>} : memref<64x1152xf32, #tpu.memory_space<vmem>>, vector<4x64xf32>,
    %c7_494 = arith.constant 7 : index
    %c0_495 = arith.constant 0 : index
    %337 = vector.load %arg25[%c7_494, %c0_495] : memref<328x128xf32, #tpu.memory_space<vmem>>, vector<4x64xf32>
    %c0_496 = arith.constant 0 : index
    %c256_497 = arith.constant 256 : index
    %338 = vector.load %arg26[%c0_496, %c256_497] : memref<64x1152xf32, #tpu.memory_space<vmem>>, vector<4x64xf32>
    tpu.vector_store %arg26[%c0_496, %c256_497], %337 {strides = array<i32>} : memref<64x1152xf32, #tpu.memory_space<vmem>>, vector<4x64xf32>,
    %c13_498 = arith.constant 13 : index
    %c0_499 = arith.constant 0 : index
    %339 = vector.load %arg25[%c13_498, %c0_499] : memref<328x128xf32, #tpu.memory_space<vmem>>, vector<4x64xf32>
    %c4_500 = arith.constant 4 : index
    %c256_501 = arith.constant 256 : index
    %340 = vector.load %arg26[%c4_500, %c256_501] : memref<64x1152xf32, #tpu.memory_space<vmem>>, vector<4x64xf32>
    tpu.vector_store %arg26[%c4_500, %c256_501], %339 {strides = array<i32>} : memref<64x1152xf32, #tpu.memory_space<vmem>>, vector<4x64xf32>,
    %c19_502 = arith.constant 19 : index
    %c0_503 = arith.constant 0 : index
    %341 = vector.load %arg25[%c19_502, %c0_503] : memref<328x128xf32, #tpu.memory_space<vmem>>, vector<4x64xf32>
    %c8_504 = arith.constant 8 : index
    %c256_505 = arith.constant 256 : index
    %342 = vector.load %arg26[%c8_504, %c256_505] : memref<64x1152xf32, #tpu.memory_space<vmem>>, vector<4x64xf32>
    tpu.vector_store %arg26[%c8_504, %c256_505], %341 {strides = array<i32>} : memref<64x1152xf32, #tpu.memory_space<vmem>>, vector<4x64xf32>,
    %c25_506 = arith.constant 25 : index
    %c0_507 = arith.constant 0 : index
    %343 = vector.load %arg25[%c25_506, %c0_507] : memref<328x128xf32, #tpu.memory_space<vmem>>, vector<4x64xf32>
    %c12_508 = arith.constant 12 : index
    %c256_509 = arith.constant 256 : index
    %344 = vector.load %arg26[%c12_508, %c256_509] : memref<64x1152xf32, #tpu.memory_space<vmem>>, vector<4x64xf32>
    tpu.vector_store %arg26[%c12_508, %c256_509], %343 {strides = array<i32>} : memref<64x1152xf32, #tpu.memory_space<vmem>>, vector<4x64xf32>,
    %c8_510 = arith.constant 8 : index
    %c0_511 = arith.constant 0 : index
    %345 = vector.load %arg25[%c8_510, %c0_511] : memref<328x128xf32, #tpu.memory_space<vmem>>, vector<4x64xf32>
    %c0_512 = arith.constant 0 : index
    %c320 = arith.constant 320 : index
    %346 = vector.load %arg26[%c0_512, %c320] : memref<64x1152xf32, #tpu.memory_space<vmem>>, vector<4x64xf32>
    tpu.vector_store %arg26[%c0_512, %c320], %345 {strides = array<i32>} : memref<64x1152xf32, #tpu.memory_space<vmem>>, vector<4x64xf32>,
    %c14_513 = arith.constant 14 : index
    %c0_514 = arith.constant 0 : index
    %347 = vector.load %arg25[%c14_513, %c0_514] : memref<328x128xf32, #tpu.memory_space<vmem>>, vector<4x64xf32>
    %c4_515 = arith.constant 4 : index
    %c320_516 = arith.constant 320 : index
    %348 = vector.load %arg26[%c4_515, %c320_516] : memref<64x1152xf32, #tpu.memory_space<vmem>>, vector<4x64xf32>
    tpu.vector_store %arg26[%c4_515, %c320_516], %347 {strides = array<i32>} : memref<64x1152xf32, #tpu.memory_space<vmem>>, vector<4x64xf32>,
    %c20_517 = arith.constant 20 : index
    %c0_518 = arith.constant 0 : index
    %349 = vector.load %arg25[%c20_517, %c0_518] : memref<328x128xf32, #tpu.memory_space<vmem>>, vector<4x64xf32>
    %c8_519 = arith.constant 8 : index
    %c320_520 = arith.constant 320 : index
    %350 = vector.load %arg26[%c8_519, %c320_520] : memref<64x1152xf32, #tpu.memory_space<vmem>>, vector<4x64xf32>
    tpu.vector_store %arg26[%c8_519, %c320_520], %349 {strides = array<i32>} : memref<64x1152xf32, #tpu.memory_space<vmem>>, vector<4x64xf32>,
    %c26 = arith.constant 26 : index
    %c0_521 = arith.constant 0 : index
    %351 = vector.load %arg25[%c26, %c0_521] : memref<328x128xf32, #tpu.memory_space<vmem>>, vector<4x64xf32>
    %c12_522 = arith.constant 12 : index
    %c320_523 = arith.constant 320 : index
    %352 = vector.load %arg26[%c12_522, %c320_523] : memref<64x1152xf32, #tpu.memory_space<vmem>>, vector<4x64xf32>
    tpu.vector_store %arg26[%c12_522, %c320_523], %351 {strides = array<i32>} : memref<64x1152xf32, #tpu.memory_space<vmem>>, vector<4x64xf32>,
    %c12_524 = arith.constant 12 : index
    %c0_525 = arith.constant 0 : index
    %353 = vector.load %arg25[%c12_524, %c0_525] : memref<328x128xf32, #tpu.memory_space<vmem>>, vector<4x64xf32>
    %c0_526 = arith.constant 0 : index
    %c384 = arith.constant 384 : index
    %354 = vector.load %arg26[%c0_526, %c384] : memref<64x1152xf32, #tpu.memory_space<vmem>>, vector<4x64xf32>
    tpu.vector_store %arg26[%c0_526, %c384], %353 {strides = array<i32>} : memref<64x1152xf32, #tpu.memory_space<vmem>>, vector<4x64xf32>,
    %c18_527 = arith.constant 18 : index
    %c0_528 = arith.constant 0 : index
    %355 = vector.load %arg25[%c18_527, %c0_528] : memref<328x128xf32, #tpu.memory_space<vmem>>, vector<4x64xf32>
    %c4_529 = arith.constant 4 : index
    %c384_530 = arith.constant 384 : index
    %356 = vector.load %arg26[%c4_529, %c384_530] : memref<64x1152xf32, #tpu.memory_space<vmem>>, vector<4x64xf32>
    tpu.vector_store %arg26[%c4_529, %c384_530], %355 {strides = array<i32>} : memref<64x1152xf32, #tpu.memory_space<vmem>>, vector<4x64xf32>,
    %c24_531 = arith.constant 24 : index
    %c0_532 = arith.constant 0 : index
    %357 = vector.load %arg25[%c24_531, %c0_532] : memref<328x128xf32, #tpu.memory_space<vmem>>, vector<4x64xf32>
    %c8_533 = arith.constant 8 : index
    %c384_534 = arith.constant 384 : index
    %358 = vector.load %arg26[%c8_533, %c384_534] : memref<64x1152xf32, #tpu.memory_space<vmem>>, vector<4x64xf32>
    tpu.vector_store %arg26[%c8_533, %c384_534], %357 {strides = array<i32>} : memref<64x1152xf32, #tpu.memory_space<vmem>>, vector<4x64xf32>,
    %c30_535 = arith.constant 30 : index
    %c0_536 = arith.constant 0 : index
    %359 = vector.load %arg25[%c30_535, %c0_536] : memref<328x128xf32, #tpu.memory_space<vmem>>, vector<4x64xf32>
    %c12_537 = arith.constant 12 : index
    %c384_538 = arith.constant 384 : index
    %360 = vector.load %arg26[%c12_537, %c384_538] : memref<64x1152xf32, #tpu.memory_space<vmem>>, vector<4x64xf32>
    tpu.vector_store %arg26[%c12_537, %c384_538], %359 {strides = array<i32>} : memref<64x1152xf32, #tpu.memory_space<vmem>>, vector<4x64xf32>,
    %c13_539 = arith.constant 13 : index
    %c0_540 = arith.constant 0 : index
    %361 = vector.load %arg25[%c13_539, %c0_540] : memref<328x128xf32, #tpu.memory_space<vmem>>, vector<4x64xf32>
    %c0_541 = arith.constant 0 : index
    %c448 = arith.constant 448 : index
    %362 = vector.load %arg26[%c0_541, %c448] : memref<64x1152xf32, #tpu.memory_space<vmem>>, vector<4x64xf32>
    tpu.vector_store %arg26[%c0_541, %c448], %361 {strides = array<i32>} : memref<64x1152xf32, #tpu.memory_space<vmem>>, vector<4x64xf32>,
    %c19_542 = arith.constant 19 : index
    %c0_543 = arith.constant 0 : index
    %363 = vector.load %arg25[%c19_542, %c0_543] : memref<328x128xf32, #tpu.memory_space<vmem>>, vector<4x64xf32>
    %c4_544 = arith.constant 4 : index
    %c448_545 = arith.constant 448 : index
    %364 = vector.load %arg26[%c4_544, %c448_545] : memref<64x1152xf32, #tpu.memory_space<vmem>>, vector<4x64xf32>
    tpu.vector_store %arg26[%c4_544, %c448_545], %363 {strides = array<i32>} : memref<64x1152xf32, #tpu.memory_space<vmem>>, vector<4x64xf32>,
    %c25_546 = arith.constant 25 : index
    %c0_547 = arith.constant 0 : index
    %365 = vector.load %arg25[%c25_546, %c0_547] : memref<328x128xf32, #tpu.memory_space<vmem>>, vector<4x64xf32>
    %c8_548 = arith.constant 8 : index
    %c448_549 = arith.constant 448 : index
    %366 = vector.load %arg26[%c8_548, %c448_549] : memref<64x1152xf32, #tpu.memory_space<vmem>>, vector<4x64xf32>
    tpu.vector_store %arg26[%c8_548, %c448_549], %365 {strides = array<i32>} : memref<64x1152xf32, #tpu.memory_space<vmem>>, vector<4x64xf32>,
    %c31_550 = arith.constant 31 : index
    %c0_551 = arith.constant 0 : index
    %367 = vector.load %arg25[%c31_550, %c0_551] : memref<328x128xf32, #tpu.memory_space<vmem>>, vector<4x64xf32>
    %c12_552 = arith.constant 12 : index
    %c448_553 = arith.constant 448 : index
    %368 = vector.load %arg26[%c12_552, %c448_553] : memref<64x1152xf32, #tpu.memory_space<vmem>>, vector<4x64xf32>
    tpu.vector_store %arg26[%c12_552, %c448_553], %367 {strides = array<i32>} : memref<64x1152xf32, #tpu.memory_space<vmem>>, vector<4x64xf32>,
    %c14_554 = arith.constant 14 : index
    %c0_555 = arith.constant 0 : index
    %369 = vector.load %arg25[%c14_554, %c0_555] : memref<328x128xf32, #tpu.memory_space<vmem>>, vector<4x64xf32>
    %c0_556 = arith.constant 0 : index
    %c512 = arith.constant 512 : index
    %370 = vector.load %arg26[%c0_556, %c512] : memref<64x1152xf32, #tpu.memory_space<vmem>>, vector<4x64xf32>
    tpu.vector_store %arg26[%c0_556, %c512], %369 {strides = array<i32>} : memref<64x1152xf32, #tpu.memory_space<vmem>>, vector<4x64xf32>,
    %c20_557 = arith.constant 20 : index
    %c0_558 = arith.constant 0 : index
    %371 = vector.load %arg25[%c20_557, %c0_558] : memref<328x128xf32, #tpu.memory_space<vmem>>, vector<4x64xf32>
    %c4_559 = arith.constant 4 : index
    %c512_560 = arith.constant 512 : index
    %372 = vector.load %arg26[%c4_559, %c512_560] : memref<64x1152xf32, #tpu.memory_space<vmem>>, vector<4x64xf32>
    tpu.vector_store %arg26[%c4_559, %c512_560], %371 {strides = array<i32>} : memref<64x1152xf32, #tpu.memory_space<vmem>>, vector<4x64xf32>,
    %c26_561 = arith.constant 26 : index
    %c0_562 = arith.constant 0 : index
    %373 = vector.load %arg25[%c26_561, %c0_562] : memref<328x128xf32, #tpu.memory_space<vmem>>, vector<4x64xf32>
    %c8_563 = arith.constant 8 : index
    %c512_564 = arith.constant 512 : index
    %374 = vector.load %arg26[%c8_563, %c512_564] : memref<64x1152xf32, #tpu.memory_space<vmem>>, vector<4x64xf32>
    tpu.vector_store %arg26[%c8_563, %c512_564], %373 {strides = array<i32>} : memref<64x1152xf32, #tpu.memory_space<vmem>>, vector<4x64xf32>,
    %c32_565 = arith.constant 32 : index
    %c0_566 = arith.constant 0 : index
    %375 = vector.load %arg25[%c32_565, %c0_566] : memref<328x128xf32, #tpu.memory_space<vmem>>, vector<4x64xf32>
    %c12_567 = arith.constant 12 : index
    %c512_568 = arith.constant 512 : index
    %376 = vector.load %arg26[%c12_567, %c512_568] : memref<64x1152xf32, #tpu.memory_space<vmem>>, vector<4x64xf32>
    tpu.vector_store %arg26[%c12_567, %c512_568], %375 {strides = array<i32>} : memref<64x1152xf32, #tpu.memory_space<vmem>>, vector<4x64xf32>,
    %c0_569 = arith.constant 0 : index
    %c0_570 = arith.constant 0 : index
    %377 = vector.load %arg26[%c0_569, %c0_570] : memref<64x1152xf32, #tpu.memory_space<vmem>>, vector<16x576xf32>
    %378 = arith.truncf %377 : vector<16x576xf32> to vector<16x576xbf16>
    %c0_571 = arith.constant 0 : index
    %c0_572 = arith.constant 0 : index
    %379 = vector.load %arg8[%c0_571, %c0_572] : memref<576x64xbf16, #tpu.memory_space<vmem>>, vector<576x64xbf16>
    %cst_573 = arith.constant dense<0.000000e+00> : vector<16x64xf32>
    %380 = tpu.matmul %378, %379, %cst_573 {dimension_numbers = #tpu.dot_dimension_numbers<[1], [0], [0], [1], [0, 0, 1, 1], [], []>} : vector<16x576xbf16>, vector<576x64xbf16>, vector<16x64xf32> -> vector<16x64xf32>
    %c0_574 = arith.constant 0 : index
    %c0_575 = arith.constant 0 : index
    %381 = vector.load %arg9[%c0_574, %c0_575] : memref<1x64xf32, #tpu.memory_space<vmem>>, vector<1x64xf32>
    %382 = vector.broadcast %381 : vector<1x64xf32> to vector<16x64xf32>
    %383 = arith.addf %380, %382 : vector<16x64xf32>
    %cst_576 = arith.constant 0.000000e+00 : f32
    %384 = vector.broadcast %cst_576 : f32 to vector<16x64xf32>
    %385 = arith.maximumf %383, %384 : vector<16x64xf32>
    %cst_577 = arith.constant 0.000000e+00 : f32
    %386 = vector.broadcast %cst_577 : f32 to vector<36x64xf32>
    %c0_578 = arith.constant 0 : index
    %c0_579 = arith.constant 0 : index
    %387 = vector.load %arg25[%c0_578, %c0_579] : memref<328x128xf32, #tpu.memory_space<vmem>>, vector<36x64xf32>
    tpu.vector_store %arg25[%c0_578, %c0_579], %386 {strides = array<i32>} : memref<328x128xf32, #tpu.memory_space<vmem>>, vector<36x64xf32>,
    %388 = vector.extract_strided_slice %385 {offsets = [0, 0], sizes = [4, 64], strides = [1, 1]} : vector<16x64xf32> to vector<4x64xf32>
    %c7_580 = arith.constant 7 : index
    %c0_581 = arith.constant 0 : index
    %389 = vector.load %arg25[%c7_580, %c0_581] : memref<328x128xf32, #tpu.memory_space<vmem>>, vector<4x64xf32>
    tpu.vector_store %arg25[%c7_580, %c0_581], %388 {strides = array<i32>} : memref<328x128xf32, #tpu.memory_space<vmem>>, vector<4x64xf32>,
    %390 = vector.extract_strided_slice %385 {offsets = [4, 0], sizes = [4, 64], strides = [1, 1]} : vector<16x64xf32> to vector<4x64xf32>
    %c13_582 = arith.constant 13 : index
    %c0_583 = arith.constant 0 : index
    %391 = vector.load %arg25[%c13_582, %c0_583] : memref<328x128xf32, #tpu.memory_space<vmem>>, vector<4x64xf32>
    tpu.vector_store %arg25[%c13_582, %c0_583], %390 {strides = array<i32>} : memref<328x128xf32, #tpu.memory_space<vmem>>, vector<4x64xf32>,
    %392 = vector.extract_strided_slice %385 {offsets = [8, 0], sizes = [4, 64], strides = [1, 1]} : vector<16x64xf32> to vector<4x64xf32>
    %c19_584 = arith.constant 19 : index
    %c0_585 = arith.constant 0 : index
    %393 = vector.load %arg25[%c19_584, %c0_585] : memref<328x128xf32, #tpu.memory_space<vmem>>, vector<4x64xf32>
    tpu.vector_store %arg25[%c19_584, %c0_585], %392 {strides = array<i32>} : memref<328x128xf32, #tpu.memory_space<vmem>>, vector<4x64xf32>,
    %394 = vector.extract_strided_slice %385 {offsets = [12, 0], sizes = [4, 64], strides = [1, 1]} : vector<16x64xf32> to vector<4x64xf32>
    %c25_586 = arith.constant 25 : index
    %c0_587 = arith.constant 0 : index
    %395 = vector.load %arg25[%c25_586, %c0_587] : memref<328x128xf32, #tpu.memory_space<vmem>>, vector<4x64xf32>
    tpu.vector_store %arg25[%c25_586, %c0_587], %394 {strides = array<i32>} : memref<328x128xf32, #tpu.memory_space<vmem>>, vector<4x64xf32>,
    %c0_588 = arith.constant 0 : index
    %c0_589 = arith.constant 0 : index
    %396 = tpu.strided_load %arg25[%c0_588, %c0_589] {strides = array<i32: 2, 1>} : memref<328x128xf32, #tpu.memory_space<vmem>>, vector<2x64xf32>
    %c0_590 = arith.constant 0 : index
    %c0_591 = arith.constant 0 : index
    %397 = vector.load %arg26[%c0_590, %c0_591] : memref<64x1152xf32, #tpu.memory_space<vmem>>, vector<2x64xf32>
    tpu.vector_store %arg26[%c0_590, %c0_591], %396 {strides = array<i32>} : memref<64x1152xf32, #tpu.memory_space<vmem>>, vector<2x64xf32>,
    %c12_592 = arith.constant 12 : index
    %c0_593 = arith.constant 0 : index
    %398 = tpu.strided_load %arg25[%c12_592, %c0_593] {strides = array<i32: 2, 1>} : memref<328x128xf32, #tpu.memory_space<vmem>>, vector<2x64xf32>
    %c2_594 = arith.constant 2 : index
    %c0_595 = arith.constant 0 : index
    %399 = vector.load %arg26[%c2_594, %c0_595] : memref<64x1152xf32, #tpu.memory_space<vmem>>, vector<2x64xf32>
    tpu.vector_store %arg26[%c2_594, %c0_595], %398 {strides = array<i32>} : memref<64x1152xf32, #tpu.memory_space<vmem>>, vector<2x64xf32>,
    %c1_596 = arith.constant 1 : index
    %c0_597 = arith.constant 0 : index
    %400 = tpu.strided_load %arg25[%c1_596, %c0_597] {strides = array<i32: 2, 1>} : memref<328x128xf32, #tpu.memory_space<vmem>>, vector<2x64xf32>
    %c0_598 = arith.constant 0 : index
    %c64_599 = arith.constant 64 : index
    %401 = vector.load %arg26[%c0_598, %c64_599] : memref<64x1152xf32, #tpu.memory_space<vmem>>, vector<2x64xf32>
    tpu.vector_store %arg26[%c0_598, %c64_599], %400 {strides = array<i32>} : memref<64x1152xf32, #tpu.memory_space<vmem>>, vector<2x64xf32>,
    %c13_600 = arith.constant 13 : index
    %c0_601 = arith.constant 0 : index
    %402 = tpu.strided_load %arg25[%c13_600, %c0_601] {strides = array<i32: 2, 1>} : memref<328x128xf32, #tpu.memory_space<vmem>>, vector<2x64xf32>
    %c2_602 = arith.constant 2 : index
    %c64_603 = arith.constant 64 : index
    %403 = vector.load %arg26[%c2_602, %c64_603] : memref<64x1152xf32, #tpu.memory_space<vmem>>, vector<2x64xf32>
    tpu.vector_store %arg26[%c2_602, %c64_603], %402 {strides = array<i32>} : memref<64x1152xf32, #tpu.memory_space<vmem>>, vector<2x64xf32>,
    %c2_604 = arith.constant 2 : index
    %c0_605 = arith.constant 0 : index
    %404 = tpu.strided_load %arg25[%c2_604, %c0_605] {strides = array<i32: 2, 1>} : memref<328x128xf32, #tpu.memory_space<vmem>>, vector<2x64xf32>
    %c0_606 = arith.constant 0 : index
    %c128_607 = arith.constant 128 : index
    %405 = vector.load %arg26[%c0_606, %c128_607] : memref<64x1152xf32, #tpu.memory_space<vmem>>, vector<2x64xf32>
    tpu.vector_store %arg26[%c0_606, %c128_607], %404 {strides = array<i32>} : memref<64x1152xf32, #tpu.memory_space<vmem>>, vector<2x64xf32>,
    %c14_608 = arith.constant 14 : index
    %c0_609 = arith.constant 0 : index
    %406 = tpu.strided_load %arg25[%c14_608, %c0_609] {strides = array<i32: 2, 1>} : memref<328x128xf32, #tpu.memory_space<vmem>>, vector<2x64xf32>
    %c2_610 = arith.constant 2 : index
    %c128_611 = arith.constant 128 : index
    %407 = vector.load %arg26[%c2_610, %c128_611] : memref<64x1152xf32, #tpu.memory_space<vmem>>, vector<2x64xf32>
    tpu.vector_store %arg26[%c2_610, %c128_611], %406 {strides = array<i32>} : memref<64x1152xf32, #tpu.memory_space<vmem>>, vector<2x64xf32>,
    %c6_612 = arith.constant 6 : index
    %c0_613 = arith.constant 0 : index
    %408 = tpu.strided_load %arg25[%c6_612, %c0_613] {strides = array<i32: 2, 1>} : memref<328x128xf32, #tpu.memory_space<vmem>>, vector<2x64xf32>
    %c0_614 = arith.constant 0 : index
    %c192_615 = arith.constant 192 : index
    %409 = vector.load %arg26[%c0_614, %c192_615] : memref<64x1152xf32, #tpu.memory_space<vmem>>, vector<2x64xf32>
    tpu.vector_store %arg26[%c0_614, %c192_615], %408 {strides = array<i32>} : memref<64x1152xf32, #tpu.memory_space<vmem>>, vector<2x64xf32>,
    %c18_616 = arith.constant 18 : index
    %c0_617 = arith.constant 0 : index
    %410 = tpu.strided_load %arg25[%c18_616, %c0_617] {strides = array<i32: 2, 1>} : memref<328x128xf32, #tpu.memory_space<vmem>>, vector<2x64xf32>
    %c2_618 = arith.constant 2 : index
    %c192_619 = arith.constant 192 : index
    %411 = vector.load %arg26[%c2_618, %c192_619] : memref<64x1152xf32, #tpu.memory_space<vmem>>, vector<2x64xf32>
    tpu.vector_store %arg26[%c2_618, %c192_619], %410 {strides = array<i32>} : memref<64x1152xf32, #tpu.memory_space<vmem>>, vector<2x64xf32>,
    %c7_620 = arith.constant 7 : index
    %c0_621 = arith.constant 0 : index
    %412 = tpu.strided_load %arg25[%c7_620, %c0_621] {strides = array<i32: 2, 1>} : memref<328x128xf32, #tpu.memory_space<vmem>>, vector<2x64xf32>
    %c0_622 = arith.constant 0 : index
    %c256_623 = arith.constant 256 : index
    %413 = vector.load %arg26[%c0_622, %c256_623] : memref<64x1152xf32, #tpu.memory_space<vmem>>, vector<2x64xf32>
    tpu.vector_store %arg26[%c0_622, %c256_623], %412 {strides = array<i32>} : memref<64x1152xf32, #tpu.memory_space<vmem>>, vector<2x64xf32>,
    %c19_624 = arith.constant 19 : index
    %c0_625 = arith.constant 0 : index
    %414 = tpu.strided_load %arg25[%c19_624, %c0_625] {strides = array<i32: 2, 1>} : memref<328x128xf32, #tpu.memory_space<vmem>>, vector<2x64xf32>
    %c2_626 = arith.constant 2 : index
    %c256_627 = arith.constant 256 : index
    %415 = vector.load %arg26[%c2_626, %c256_627] : memref<64x1152xf32, #tpu.memory_space<vmem>>, vector<2x64xf32>
    tpu.vector_store %arg26[%c2_626, %c256_627], %414 {strides = array<i32>} : memref<64x1152xf32, #tpu.memory_space<vmem>>, vector<2x64xf32>,
    %c8_628 = arith.constant 8 : index
    %c0_629 = arith.constant 0 : index
    %416 = tpu.strided_load %arg25[%c8_628, %c0_629] {strides = array<i32: 2, 1>} : memref<328x128xf32, #tpu.memory_space<vmem>>, vector<2x64xf32>
    %c0_630 = arith.constant 0 : index
    %c320_631 = arith.constant 320 : index
    %417 = vector.load %arg26[%c0_630, %c320_631] : memref<64x1152xf32, #tpu.memory_space<vmem>>, vector<2x64xf32>
    tpu.vector_store %arg26[%c0_630, %c320_631], %416 {strides = array<i32>} : memref<64x1152xf32, #tpu.memory_space<vmem>>, vector<2x64xf32>,
    %c20_632 = arith.constant 20 : index
    %c0_633 = arith.constant 0 : index
    %418 = tpu.strided_load %arg25[%c20_632, %c0_633] {strides = array<i32: 2, 1>} : memref<328x128xf32, #tpu.memory_space<vmem>>, vector<2x64xf32>
    %c2_634 = arith.constant 2 : index
    %c320_635 = arith.constant 320 : index
    %419 = vector.load %arg26[%c2_634, %c320_635] : memref<64x1152xf32, #tpu.memory_space<vmem>>, vector<2x64xf32>
    tpu.vector_store %arg26[%c2_634, %c320_635], %418 {strides = array<i32>} : memref<64x1152xf32, #tpu.memory_space<vmem>>, vector<2x64xf32>,
    %c12_636 = arith.constant 12 : index
    %c0_637 = arith.constant 0 : index
    %420 = tpu.strided_load %arg25[%c12_636, %c0_637] {strides = array<i32: 2, 1>} : memref<328x128xf32, #tpu.memory_space<vmem>>, vector<2x64xf32>
    %c0_638 = arith.constant 0 : index
    %c384_639 = arith.constant 384 : index
    %421 = vector.load %arg26[%c0_638, %c384_639] : memref<64x1152xf32, #tpu.memory_space<vmem>>, vector<2x64xf32>
    tpu.vector_store %arg26[%c0_638, %c384_639], %420 {strides = array<i32>} : memref<64x1152xf32, #tpu.memory_space<vmem>>, vector<2x64xf32>,
    %c24_640 = arith.constant 24 : index
    %c0_641 = arith.constant 0 : index
    %422 = tpu.strided_load %arg25[%c24_640, %c0_641] {strides = array<i32: 2, 1>} : memref<328x128xf32, #tpu.memory_space<vmem>>, vector<2x64xf32>
    %c2_642 = arith.constant 2 : index
    %c384_643 = arith.constant 384 : index
    %423 = vector.load %arg26[%c2_642, %c384_643] : memref<64x1152xf32, #tpu.memory_space<vmem>>, vector<2x64xf32>
    tpu.vector_store %arg26[%c2_642, %c384_643], %422 {strides = array<i32>} : memref<64x1152xf32, #tpu.memory_space<vmem>>, vector<2x64xf32>,
    %c13_644 = arith.constant 13 : index
    %c0_645 = arith.constant 0 : index
    %424 = tpu.strided_load %arg25[%c13_644, %c0_645] {strides = array<i32: 2, 1>} : memref<328x128xf32, #tpu.memory_space<vmem>>, vector<2x64xf32>
    %c0_646 = arith.constant 0 : index
    %c448_647 = arith.constant 448 : index
    %425 = vector.load %arg26[%c0_646, %c448_647] : memref<64x1152xf32, #tpu.memory_space<vmem>>, vector<2x64xf32>
    tpu.vector_store %arg26[%c0_646, %c448_647], %424 {strides = array<i32>} : memref<64x1152xf32, #tpu.memory_space<vmem>>, vector<2x64xf32>,
    %c25_648 = arith.constant 25 : index
    %c0_649 = arith.constant 0 : index
    %426 = tpu.strided_load %arg25[%c25_648, %c0_649] {strides = array<i32: 2, 1>} : memref<328x128xf32, #tpu.memory_space<vmem>>, vector<2x64xf32>
    %c2_650 = arith.constant 2 : index
    %c448_651 = arith.constant 448 : index
    %427 = vector.load %arg26[%c2_650, %c448_651] : memref<64x1152xf32, #tpu.memory_space<vmem>>, vector<2x64xf32>
    tpu.vector_store %arg26[%c2_650, %c448_651], %426 {strides = array<i32>} : memref<64x1152xf32, #tpu.memory_space<vmem>>, vector<2x64xf32>,
    %c14_652 = arith.constant 14 : index
    %c0_653 = arith.constant 0 : index
    %428 = tpu.strided_load %arg25[%c14_652, %c0_653] {strides = array<i32: 2, 1>} : memref<328x128xf32, #tpu.memory_space<vmem>>, vector<2x64xf32>
    %c0_654 = arith.constant 0 : index
    %c512_655 = arith.constant 512 : index
    %429 = vector.load %arg26[%c0_654, %c512_655] : memref<64x1152xf32, #tpu.memory_space<vmem>>, vector<2x64xf32>
    tpu.vector_store %arg26[%c0_654, %c512_655], %428 {strides = array<i32>} : memref<64x1152xf32, #tpu.memory_space<vmem>>, vector<2x64xf32>,
    %c26_656 = arith.constant 26 : index
    %c0_657 = arith.constant 0 : index
    %430 = tpu.strided_load %arg25[%c26_656, %c0_657] {strides = array<i32: 2, 1>} : memref<328x128xf32, #tpu.memory_space<vmem>>, vector<2x64xf32>
    %c2_658 = arith.constant 2 : index
    %c512_659 = arith.constant 512 : index
    %431 = vector.load %arg26[%c2_658, %c512_659] : memref<64x1152xf32, #tpu.memory_space<vmem>>, vector<2x64xf32>
    tpu.vector_store %arg26[%c2_658, %c512_659], %430 {strides = array<i32>} : memref<64x1152xf32, #tpu.memory_space<vmem>>, vector<2x64xf32>,
    %c0_660 = arith.constant 0 : index
    %c0_661 = arith.constant 0 : index
    %432 = vector.load %arg26[%c0_660, %c0_661] : memref<64x1152xf32, #tpu.memory_space<vmem>>, vector<4x576xf32>
    %433 = arith.truncf %432 : vector<4x576xf32> to vector<4x576xbf16>
    %c0_662 = arith.constant 0 : index
    %c0_663 = arith.constant 0 : index
    %434 = vector.load %arg10[%c0_662, %c0_663] : memref<576x128xbf16, #tpu.memory_space<vmem>>, vector<576x128xbf16>
    %cst_664 = arith.constant dense<0.000000e+00> : vector<4x128xf32>
    %435 = tpu.matmul %433, %434, %cst_664 {dimension_numbers = #tpu.dot_dimension_numbers<[1], [0], [0], [1], [0, 0, 1, 1], [], []>} : vector<4x576xbf16>, vector<576x128xbf16>, vector<4x128xf32> -> vector<4x128xf32>
    %c0_665 = arith.constant 0 : index
    %c0_666 = arith.constant 0 : index
    %436 = vector.load %arg11[%c0_665, %c0_666] : memref<1x128xf32, #tpu.memory_space<vmem>>, vector<1x128xf32>
    %437 = vector.broadcast %436 : vector<1x128xf32> to vector<4x128xf32>
    %438 = arith.addf %435, %437 : vector<4x128xf32>
    %cst_667 = arith.constant 0.000000e+00 : f32
    %439 = vector.broadcast %cst_667 : f32 to vector<4x128xf32>
    %440 = arith.maximumf %438, %439 : vector<4x128xf32>
    %cst_668 = arith.constant 0.000000e+00 : f32
    %441 = vector.broadcast %cst_668 : f32 to vector<16x128xf32>
    %c0_669 = arith.constant 0 : index
    %c0_670 = arith.constant 0 : index
    %442 = vector.load %arg25[%c0_669, %c0_670] : memref<328x128xf32, #tpu.memory_space<vmem>>, vector<16x128xf32>
    tpu.vector_store %arg25[%c0_669, %c0_670], %441 {strides = array<i32>} : memref<328x128xf32, #tpu.memory_space<vmem>>, vector<16x128xf32>,
    %443 = vector.extract_strided_slice %440 {offsets = [0, 0], sizes = [2, 128], strides = [1, 1]} : vector<4x128xf32> to vector<2x128xf32>
    %c5 = arith.constant 5 : index
    %c0_671 = arith.constant 0 : index
    %444 = vector.load %arg25[%c5, %c0_671] : memref<328x128xf32, #tpu.memory_space<vmem>>, vector<2x128xf32>
    tpu.vector_store %arg25[%c5, %c0_671], %443 {strides = array<i32>} : memref<328x128xf32, #tpu.memory_space<vmem>>, vector<2x128xf32>,
    %445 = vector.extract_strided_slice %440 {offsets = [2, 0], sizes = [2, 128], strides = [1, 1]} : vector<4x128xf32> to vector<2x128xf32>
    %c9 = arith.constant 9 : index
    %c0_672 = arith.constant 0 : index
    %446 = vector.load %arg25[%c9, %c0_672] : memref<328x128xf32, #tpu.memory_space<vmem>>, vector<2x128xf32>
    tpu.vector_store %arg25[%c9, %c0_672], %445 {strides = array<i32>} : memref<328x128xf32, #tpu.memory_space<vmem>>, vector<2x128xf32>,
    %c0_673 = arith.constant 0 : index
    %c0_674 = arith.constant 0 : index
    %447 = vector.load %arg25[%c0_673, %c0_674] : memref<328x128xf32, #tpu.memory_space<vmem>>, vector<2x128xf32>
    %c0_675 = arith.constant 0 : index
    %c0_676 = arith.constant 0 : index
    %448 = vector.load %arg26[%c0_675, %c0_676] : memref<64x1152xf32, #tpu.memory_space<vmem>>, vector<2x128xf32>
    tpu.vector_store %arg26[%c0_675, %c0_676], %447 {strides = array<i32>} : memref<64x1152xf32, #tpu.memory_space<vmem>>, vector<2x128xf32>,
    %c4_677 = arith.constant 4 : index
    %c0_678 = arith.constant 0 : index
    %449 = vector.load %arg25[%c4_677, %c0_678] : memref<328x128xf32, #tpu.memory_space<vmem>>, vector<2x128xf32>
    %c2_679 = arith.constant 2 : index
    %c0_680 = arith.constant 0 : index
    %450 = vector.load %arg26[%c2_679, %c0_680] : memref<64x1152xf32, #tpu.memory_space<vmem>>, vector<2x128xf32>
    tpu.vector_store %arg26[%c2_679, %c0_680], %449 {strides = array<i32>} : memref<64x1152xf32, #tpu.memory_space<vmem>>, vector<2x128xf32>,
    %c1_681 = arith.constant 1 : index
    %c0_682 = arith.constant 0 : index
    %451 = vector.load %arg25[%c1_681, %c0_682] : memref<328x128xf32, #tpu.memory_space<vmem>>, vector<2x128xf32>
    %c0_683 = arith.constant 0 : index
    %c128_684 = arith.constant 128 : index
    %452 = vector.load %arg26[%c0_683, %c128_684] : memref<64x1152xf32, #tpu.memory_space<vmem>>, vector<2x128xf32>
    tpu.vector_store %arg26[%c0_683, %c128_684], %451 {strides = array<i32>} : memref<64x1152xf32, #tpu.memory_space<vmem>>, vector<2x128xf32>,
    %c5_685 = arith.constant 5 : index
    %c0_686 = arith.constant 0 : index
    %453 = vector.load %arg25[%c5_685, %c0_686] : memref<328x128xf32, #tpu.memory_space<vmem>>, vector<2x128xf32>
    %c2_687 = arith.constant 2 : index
    %c128_688 = arith.constant 128 : index
    %454 = vector.load %arg26[%c2_687, %c128_688] : memref<64x1152xf32, #tpu.memory_space<vmem>>, vector<2x128xf32>
    tpu.vector_store %arg26[%c2_687, %c128_688], %453 {strides = array<i32>} : memref<64x1152xf32, #tpu.memory_space<vmem>>, vector<2x128xf32>,
    %c2_689 = arith.constant 2 : index
    %c0_690 = arith.constant 0 : index
    %455 = vector.load %arg25[%c2_689, %c0_690] : memref<328x128xf32, #tpu.memory_space<vmem>>, vector<2x128xf32>
    %c0_691 = arith.constant 0 : index
    %c256_692 = arith.constant 256 : index
    %456 = vector.load %arg26[%c0_691, %c256_692] : memref<64x1152xf32, #tpu.memory_space<vmem>>, vector<2x128xf32>
    tpu.vector_store %arg26[%c0_691, %c256_692], %455 {strides = array<i32>} : memref<64x1152xf32, #tpu.memory_space<vmem>>, vector<2x128xf32>,
    %c6_693 = arith.constant 6 : index
    %c0_694 = arith.constant 0 : index
    %457 = vector.load %arg25[%c6_693, %c0_694] : memref<328x128xf32, #tpu.memory_space<vmem>>, vector<2x128xf32>
    %c2_695 = arith.constant 2 : index
    %c256_696 = arith.constant 256 : index
    %458 = vector.load %arg26[%c2_695, %c256_696] : memref<64x1152xf32, #tpu.memory_space<vmem>>, vector<2x128xf32>
    tpu.vector_store %arg26[%c2_695, %c256_696], %457 {strides = array<i32>} : memref<64x1152xf32, #tpu.memory_space<vmem>>, vector<2x128xf32>,
    %c4_697 = arith.constant 4 : index
    %c0_698 = arith.constant 0 : index
    %459 = vector.load %arg25[%c4_697, %c0_698] : memref<328x128xf32, #tpu.memory_space<vmem>>, vector<2x128xf32>
    %c0_699 = arith.constant 0 : index
    %c384_700 = arith.constant 384 : index
    %460 = vector.load %arg26[%c0_699, %c384_700] : memref<64x1152xf32, #tpu.memory_space<vmem>>, vector<2x128xf32>
    tpu.vector_store %arg26[%c0_699, %c384_700], %459 {strides = array<i32>} : memref<64x1152xf32, #tpu.memory_space<vmem>>, vector<2x128xf32>,
    %c8_701 = arith.constant 8 : index
    %c0_702 = arith.constant 0 : index
    %461 = vector.load %arg25[%c8_701, %c0_702] : memref<328x128xf32, #tpu.memory_space<vmem>>, vector<2x128xf32>
    %c2_703 = arith.constant 2 : index
    %c384_704 = arith.constant 384 : index
    %462 = vector.load %arg26[%c2_703, %c384_704] : memref<64x1152xf32, #tpu.memory_space<vmem>>, vector<2x128xf32>
    tpu.vector_store %arg26[%c2_703, %c384_704], %461 {strides = array<i32>} : memref<64x1152xf32, #tpu.memory_space<vmem>>, vector<2x128xf32>,
    %c5_705 = arith.constant 5 : index
    %c0_706 = arith.constant 0 : index
    %463 = vector.load %arg25[%c5_705, %c0_706] : memref<328x128xf32, #tpu.memory_space<vmem>>, vector<2x128xf32>
    %c0_707 = arith.constant 0 : index
    %c512_708 = arith.constant 512 : index
    %464 = vector.load %arg26[%c0_707, %c512_708] : memref<64x1152xf32, #tpu.memory_space<vmem>>, vector<2x128xf32>
    tpu.vector_store %arg26[%c0_707, %c512_708], %463 {strides = array<i32>} : memref<64x1152xf32, #tpu.memory_space<vmem>>, vector<2x128xf32>,
    %c9_709 = arith.constant 9 : index
    %c0_710 = arith.constant 0 : index
    %465 = vector.load %arg25[%c9_709, %c0_710] : memref<328x128xf32, #tpu.memory_space<vmem>>, vector<2x128xf32>
    %c2_711 = arith.constant 2 : index
    %c512_712 = arith.constant 512 : index
    %466 = vector.load %arg26[%c2_711, %c512_712] : memref<64x1152xf32, #tpu.memory_space<vmem>>, vector<2x128xf32>
    tpu.vector_store %arg26[%c2_711, %c512_712], %465 {strides = array<i32>} : memref<64x1152xf32, #tpu.memory_space<vmem>>, vector<2x128xf32>,
    %c6_713 = arith.constant 6 : index
    %c0_714 = arith.constant 0 : index
    %467 = vector.load %arg25[%c6_713, %c0_714] : memref<328x128xf32, #tpu.memory_space<vmem>>, vector<2x128xf32>
    %c0_715 = arith.constant 0 : index
    %c640 = arith.constant 640 : index
    %468 = vector.load %arg26[%c0_715, %c640] : memref<64x1152xf32, #tpu.memory_space<vmem>>, vector<2x128xf32>
    tpu.vector_store %arg26[%c0_715, %c640], %467 {strides = array<i32>} : memref<64x1152xf32, #tpu.memory_space<vmem>>, vector<2x128xf32>,
    %c10_716 = arith.constant 10 : index
    %c0_717 = arith.constant 0 : index
    %469 = vector.load %arg25[%c10_716, %c0_717] : memref<328x128xf32, #tpu.memory_space<vmem>>, vector<2x128xf32>
    %c2_718 = arith.constant 2 : index
    %c640_719 = arith.constant 640 : index
    %470 = vector.load %arg26[%c2_718, %c640_719] : memref<64x1152xf32, #tpu.memory_space<vmem>>, vector<2x128xf32>
    tpu.vector_store %arg26[%c2_718, %c640_719], %469 {strides = array<i32>} : memref<64x1152xf32, #tpu.memory_space<vmem>>, vector<2x128xf32>,
    %c8_720 = arith.constant 8 : index
    %c0_721 = arith.constant 0 : index
    %471 = vector.load %arg25[%c8_720, %c0_721] : memref<328x128xf32, #tpu.memory_space<vmem>>, vector<2x128xf32>
    %c0_722 = arith.constant 0 : index
    %c768 = arith.constant 768 : index
    %472 = vector.load %arg26[%c0_722, %c768] : memref<64x1152xf32, #tpu.memory_space<vmem>>, vector<2x128xf32>
    tpu.vector_store %arg26[%c0_722, %c768], %471 {strides = array<i32>} : memref<64x1152xf32, #tpu.memory_space<vmem>>, vector<2x128xf32>,
    %c12_723 = arith.constant 12 : index
    %c0_724 = arith.constant 0 : index
    %473 = vector.load %arg25[%c12_723, %c0_724] : memref<328x128xf32, #tpu.memory_space<vmem>>, vector<2x128xf32>
    %c2_725 = arith.constant 2 : index
    %c768_726 = arith.constant 768 : index
    %474 = vector.load %arg26[%c2_725, %c768_726] : memref<64x1152xf32, #tpu.memory_space<vmem>>, vector<2x128xf32>
    tpu.vector_store %arg26[%c2_725, %c768_726], %473 {strides = array<i32>} : memref<64x1152xf32, #tpu.memory_space<vmem>>, vector<2x128xf32>,
    %c9_727 = arith.constant 9 : index
    %c0_728 = arith.constant 0 : index
    %475 = vector.load %arg25[%c9_727, %c0_728] : memref<328x128xf32, #tpu.memory_space<vmem>>, vector<2x128xf32>
    %c0_729 = arith.constant 0 : index
    %c896 = arith.constant 896 : index
    %476 = vector.load %arg26[%c0_729, %c896] : memref<64x1152xf32, #tpu.memory_space<vmem>>, vector<2x128xf32>
    tpu.vector_store %arg26[%c0_729, %c896], %475 {strides = array<i32>} : memref<64x1152xf32, #tpu.memory_space<vmem>>, vector<2x128xf32>,
    %c13_730 = arith.constant 13 : index
    %c0_731 = arith.constant 0 : index
    %477 = vector.load %arg25[%c13_730, %c0_731] : memref<328x128xf32, #tpu.memory_space<vmem>>, vector<2x128xf32>
    %c2_732 = arith.constant 2 : index
    %c896_733 = arith.constant 896 : index
    %478 = vector.load %arg26[%c2_732, %c896_733] : memref<64x1152xf32, #tpu.memory_space<vmem>>, vector<2x128xf32>
    tpu.vector_store %arg26[%c2_732, %c896_733], %477 {strides = array<i32>} : memref<64x1152xf32, #tpu.memory_space<vmem>>, vector<2x128xf32>,
    %c10_734 = arith.constant 10 : index
    %c0_735 = arith.constant 0 : index
    %479 = vector.load %arg25[%c10_734, %c0_735] : memref<328x128xf32, #tpu.memory_space<vmem>>, vector<2x128xf32>
    %c0_736 = arith.constant 0 : index
    %c1024 = arith.constant 1024 : index
    %480 = vector.load %arg26[%c0_736, %c1024] : memref<64x1152xf32, #tpu.memory_space<vmem>>, vector<2x128xf32>
    tpu.vector_store %arg26[%c0_736, %c1024], %479 {strides = array<i32>} : memref<64x1152xf32, #tpu.memory_space<vmem>>, vector<2x128xf32>,
    %c14_737 = arith.constant 14 : index
    %c0_738 = arith.constant 0 : index
    %481 = vector.load %arg25[%c14_737, %c0_738] : memref<328x128xf32, #tpu.memory_space<vmem>>, vector<2x128xf32>
    %c2_739 = arith.constant 2 : index
    %c1024_740 = arith.constant 1024 : index
    %482 = vector.load %arg26[%c2_739, %c1024_740] : memref<64x1152xf32, #tpu.memory_space<vmem>>, vector<2x128xf32>
    tpu.vector_store %arg26[%c2_739, %c1024_740], %481 {strides = array<i32>} : memref<64x1152xf32, #tpu.memory_space<vmem>>, vector<2x128xf32>,
    %c0_741 = arith.constant 0 : index
    %c0_742 = arith.constant 0 : index
    %483 = vector.load %arg26[%c0_741, %c0_742] : memref<64x1152xf32, #tpu.memory_space<vmem>>, vector<4x1152xf32>
    %484 = arith.truncf %483 : vector<4x1152xf32> to vector<4x1152xbf16>
    %c0_743 = arith.constant 0 : index
    %c0_744 = arith.constant 0 : index
    %485 = vector.load %arg12[%c0_743, %c0_744] : memref<1152x128xbf16, #tpu.memory_space<vmem>>, vector<1152x128xbf16>
    %cst_745 = arith.constant dense<0.000000e+00> : vector<4x128xf32>
    %486 = tpu.matmul %484, %485, %cst_745 {dimension_numbers = #tpu.dot_dimension_numbers<[1], [0], [0], [1], [0, 0, 1, 1], [], []>} : vector<4x1152xbf16>, vector<1152x128xbf16>, vector<4x128xf32> -> vector<4x128xf32>
    %c0_746 = arith.constant 0 : index
    %c0_747 = arith.constant 0 : index
    %487 = vector.load %arg13[%c0_746, %c0_747] : memref<1x128xf32, #tpu.memory_space<vmem>>, vector<1x128xf32>
    %488 = vector.broadcast %487 : vector<1x128xf32> to vector<4x128xf32>
    %489 = arith.addf %486, %488 : vector<4x128xf32>
    %cst_748 = arith.constant 0.000000e+00 : f32
    %490 = vector.broadcast %cst_748 : f32 to vector<4x128xf32>
    %491 = arith.maximumf %489, %490 : vector<4x128xf32>
    %492 = vector.extract_strided_slice %491 {offsets = [0, 0], sizes = [1, 128], strides = [1, 1]} : vector<4x128xf32> to vector<1x128xf32>
    %493 = vector.extract_strided_slice %491 {offsets = [1, 0], sizes = [1, 128], strides = [1, 1]} : vector<4x128xf32> to vector<1x128xf32>
    %494 = vector.extract_strided_slice %491 {offsets = [2, 0], sizes = [1, 128], strides = [1, 1]} : vector<4x128xf32> to vector<1x128xf32>
    %495 = vector.extract_strided_slice %491 {offsets = [3, 0], sizes = [1, 128], strides = [1, 1]} : vector<4x128xf32> to vector<1x128xf32>
    %496 = tpu.concatenate %492, %493, %494, %495 in 1 : vector<1x128xf32>, vector<1x128xf32>, vector<1x128xf32>, vector<1x128xf32> -> vector<1x512xf32>
    %497 = arith.truncf %496 : vector<1x512xf32> to vector<1x512xbf16>
    %c0_749 = arith.constant 0 : index
    %c0_750 = arith.constant 0 : index
    %498 = vector.load %arg14[%c0_749, %c0_750] : memref<512x256xbf16, #tpu.memory_space<vmem>>, vector<512x256xbf16>
    %cst_751 = arith.constant dense<0.000000e+00> : vector<1x256xf32>
    %499 = tpu.matmul %497, %498, %cst_751 {dimension_numbers = #tpu.dot_dimension_numbers<[1], [0], [0], [1], [0, 0, 1, 1], [], []>} : vector<1x512xbf16>, vector<512x256xbf16>, vector<1x256xf32> -> vector<1x256xf32>
    %c0_752 = arith.constant 0 : index
    %c0_753 = arith.constant 0 : index
    %500 = vector.load %arg15[%c0_752, %c0_753] : memref<1x256xf32, #tpu.memory_space<vmem>>, vector<1x256xf32>
    %501 = arith.addf %499, %500 : vector<1x256xf32>
    %cst_754 = arith.constant 0.000000e+00 : f32
    %502 = vector.broadcast %cst_754 : f32 to vector<1x256xf32>
    %503 = arith.maximumf %501, %502 : vector<1x256xf32>
    %504 = arith.truncf %503 : vector<1x256xf32> to vector<1x256xbf16>
    %c0_755 = arith.constant 0 : index
    %c0_756 = arith.constant 0 : index
    %505 = vector.load %arg16[%c0_755, %c0_756] : memref<256x256xbf16, #tpu.memory_space<vmem>>, vector<256x256xbf16>
    %cst_757 = arith.constant dense<0.000000e+00> : vector<1x256xf32>
    %506 = tpu.matmul %504, %505, %cst_757 {dimension_numbers = #tpu.dot_dimension_numbers<[1], [0], [0], [1], [0, 0, 1, 1], [], []>} : vector<1x256xbf16>, vector<256x256xbf16>, vector<1x256xf32> -> vector<1x256xf32>
    %c0_758 = arith.constant 0 : index
    %c0_759 = arith.constant 0 : index
    %507 = vector.load %arg17[%c0_758, %c0_759] : memref<1x256xf32, #tpu.memory_space<vmem>>, vector<1x256xf32>
    %508 = arith.addf %506, %507 : vector<1x256xf32>
    %cst_760 = arith.constant 0.000000e+00 : f32
    %509 = vector.broadcast %cst_760 : f32 to vector<1x256xf32>
    %510 = arith.maximumf %508, %509 : vector<1x256xf32>
    %511 = arith.truncf %510 : vector<1x256xf32> to vector<1x256xbf16>
    %c0_761 = arith.constant 0 : index
    %c0_762 = arith.constant 0 : index
    %512 = vector.load %arg18[%c0_761, %c0_762] : memref<256x512xbf16, #tpu.memory_space<vmem>>, vector<256x512xbf16>
    %cst_763 = arith.constant dense<0.000000e+00> : vector<1x512xf32>
    %513 = tpu.matmul %511, %512, %cst_763 {dimension_numbers = #tpu.dot_dimension_numbers<[1], [0], [0], [1], [0, 0, 1, 1], [], []>} : vector<1x256xbf16>, vector<256x512xbf16>, vector<1x512xf32> -> vector<1x512xf32>
    %c0_764 = arith.constant 0 : index
    %c0_765 = arith.constant 0 : index
    %514 = vector.load %arg19[%c0_764, %c0_765] : memref<1x512xf32, #tpu.memory_space<vmem>>, vector<1x512xf32>
    %515 = arith.addf %513, %514 : vector<1x512xf32>
    %cst_766 = arith.constant 0.000000e+00 : f32
    %516 = vector.broadcast %cst_766 : f32 to vector<1x512xf32>
    %517 = arith.maximumf %515, %516 : vector<1x512xf32>
    %518 = arith.truncf %517 : vector<1x512xf32> to vector<1x512xbf16>
    %c0_767 = arith.constant 0 : index
    %c0_768 = arith.constant 0 : index
    %519 = vector.load %arg20[%c0_767, %c0_768] : memref<512x512xbf16, #tpu.memory_space<vmem>>, vector<512x512xbf16>
    %cst_769 = arith.constant dense<0.000000e+00> : vector<1x512xf32>
    %520 = tpu.matmul %518, %519, %cst_769 {dimension_numbers = #tpu.dot_dimension_numbers<[1], [0], [0], [1], [0, 0, 1, 1], [], []>} : vector<1x512xbf16>, vector<512x512xbf16>, vector<1x512xf32> -> vector<1x512xf32>
    %c0_770 = arith.constant 0 : index
    %c0_771 = arith.constant 0 : index
    %521 = vector.load %arg21[%c0_770, %c0_771] : memref<1x512xf32, #tpu.memory_space<vmem>>, vector<1x512xf32>
    %522 = arith.addf %520, %521 : vector<1x512xf32>
    %cst_772 = arith.constant 0.000000e+00 : f32
    %523 = vector.broadcast %cst_772 : f32 to vector<1x512xf32>
    %524 = arith.maximumf %522, %523 : vector<1x512xf32>
    %cst_773 = arith.constant 0.000000e+00 : f32
    %525 = vector.broadcast %cst_773 : f32 to vector<7x512xf32>
    %526 = tpu.concatenate %524, %525 in 0 : vector<1x512xf32>, vector<7x512xf32> -> vector<8x512xf32>
    %527 = arith.truncf %526 : vector<8x512xf32> to vector<8x512xbf16>
    %c0_774 = arith.constant 0 : index
    %c0_775 = arith.constant 0 : index
    %528 = vector.load %arg22[%c0_774, %c0_775] : memref<512x128xbf16, #tpu.memory_space<vmem>>, vector<512x128xbf16>
    %cst_776 = arith.constant dense<0.000000e+00> : vector<8x128xf32>
    %529 = tpu.matmul %527, %528, %cst_776 {dimension_numbers = #tpu.dot_dimension_numbers<[1], [0], [0], [1], [0, 0, 1, 1], [], []>} : vector<8x512xbf16>, vector<512x128xbf16>, vector<8x128xf32> -> vector<8x128xf32>
    %c0_777 = arith.constant 0 : index
    %c0_778 = arith.constant 0 : index
    %530 = vector.load %arg23[%c0_777, %c0_778] : memref<1x128xf32, #tpu.memory_space<vmem>>, vector<1x128xf32>
    %531 = vector.broadcast %530 : vector<1x128xf32> to vector<8x128xf32>
    %532 = arith.addf %529, %531 : vector<8x128xf32>
    %c0_779 = arith.constant 0 : index
    %c0_780 = arith.constant 0 : index
    %533 = vector.load %arg24[%c0_779, %c0_780] : memref<8x128xf32, #tpu.memory_space<vmem>>, vector<8x128xf32>
    tpu.vector_store %arg24[%c0_779, %c0_780], %532 {strides = array<i32>} : memref<8x128xf32, #tpu.memory_space<vmem>>, vector<8x128xf32>,
    return
  }
  func.func @transform_0(%arg0: i32) -> (i32, i32) {
    %c0_i32 = arith.constant 0 : i32
    %c0_i32_0 = arith.constant 0 : i32
    return %arg0, %c0_i32 : i32, i32
  }
  func.func @transform_1(%arg0: i32) -> (i32, i32) {
    %c0_i32 = arith.constant 0 : i32
    %c0_i32_0 = arith.constant 0 : i32
    %c0_i32_1 = arith.constant 0 : i32
    return %c0_i32, %c0_i32_0 : i32, i32
  }
  func.func @transform_2(%arg0: i32) -> (i32, i32) {
    %c0_i32 = arith.constant 0 : i32
    %c0_i32_0 = arith.constant 0 : i32
    %c0_i32_1 = arith.constant 0 : i32
    return %c0_i32, %c0_i32_0 : i32, i32
  }
  func.func @transform_3(%arg0: i32) -> (i32, i32) {
    %c0_i32 = arith.constant 0 : i32
    %c0_i32_0 = arith.constant 0 : i32
    %c0_i32_1 = arith.constant 0 : i32
    return %c0_i32, %c0_i32_0 : i32, i32
  }
  func.func @transform_4(%arg0: i32) -> (i32, i32) {
    %c0_i32 = arith.constant 0 : i32
    %c0_i32_0 = arith.constant 0 : i32
    %c0_i32_1 = arith.constant 0 : i32
    return %c0_i32, %c0_i32_0 : i32, i32
  }
  func.func @transform_5(%arg0: i32) -> (i32, i32) {
    %c0_i32 = arith.constant 0 : i32
    %c0_i32_0 = arith.constant 0 : i32
    %c0_i32_1 = arith.constant 0 : i32
    return %c0_i32, %c0_i32_0 : i32, i32
  }
  func.func @transform_6(%arg0: i32) -> (i32, i32) {
    %c0_i32 = arith.constant 0 : i32
    %c0_i32_0 = arith.constant 0 : i32
    %c0_i32_1 = arith.constant 0 : i32
    return %c0_i32, %c0_i32_0 : i32, i32
  }
  func.func @transform_7(%arg0: i32) -> (i32, i32) {
    %c0_i32 = arith.constant 0 : i32
    %c0_i32_0 = arith.constant 0 : i32
    %c0_i32_1 = arith.constant 0 : i32
    return %c0_i32, %c0_i32_0 : i32, i32
  }
  func.func @transform_8(%arg0: i32) -> (i32, i32) {
    %c0_i32 = arith.constant 0 : i32
    %c0_i32_0 = arith.constant 0 : i32
    %c0_i32_1 = arith.constant 0 : i32
    return %c0_i32, %c0_i32_0 : i32, i32
  }
  func.func @transform_9(%arg0: i32) -> (i32, i32) {
    %c0_i32 = arith.constant 0 : i32
    %c0_i32_0 = arith.constant 0 : i32
    %c0_i32_1 = arith.constant 0 : i32
    return %c0_i32, %c0_i32_0 : i32, i32
  }
  func.func @transform_10(%arg0: i32) -> (i32, i32) {
    %c0_i32 = arith.constant 0 : i32
    %c0_i32_0 = arith.constant 0 : i32
    %c0_i32_1 = arith.constant 0 : i32
    return %c0_i32, %c0_i32_0 : i32, i32
  }
  func.func @transform_11(%arg0: i32) -> (i32, i32) {
    %c0_i32 = arith.constant 0 : i32
    %c0_i32_0 = arith.constant 0 : i32
    %c0_i32_1 = arith.constant 0 : i32
    return %c0_i32, %c0_i32_0 : i32, i32
  }
  func.func @transform_12(%arg0: i32) -> (i32, i32) {
    %c0_i32 = arith.constant 0 : i32
    %c0_i32_0 = arith.constant 0 : i32
    %c0_i32_1 = arith.constant 0 : i32
    return %c0_i32, %c0_i32_0 : i32, i32
  }
  func.func @transform_13(%arg0: i32) -> (i32, i32) {
    %c0_i32 = arith.constant 0 : i32
    %c0_i32_0 = arith.constant 0 : i32
    %c0_i32_1 = arith.constant 0 : i32
    return %c0_i32, %c0_i32_0 : i32, i32
  }
  func.func @transform_14(%arg0: i32) -> (i32, i32) {
    %c0_i32 = arith.constant 0 : i32
    %c0_i32_0 = arith.constant 0 : i32
    %c0_i32_1 = arith.constant 0 : i32
    return %c0_i32, %c0_i32_0 : i32, i32
  }
  func.func @transform_15(%arg0: i32) -> (i32, i32) {
    %c0_i32 = arith.constant 0 : i32
    %c0_i32_0 = arith.constant 0 : i32
    %c0_i32_1 = arith.constant 0 : i32
    return %c0_i32, %c0_i32_0 : i32, i32
  }
  func.func @transform_16(%arg0: i32) -> (i32, i32) {
    %c0_i32 = arith.constant 0 : i32
    %c0_i32_0 = arith.constant 0 : i32
    %c0_i32_1 = arith.constant 0 : i32
    return %c0_i32, %c0_i32_0 : i32, i32
  }
  func.func @transform_17(%arg0: i32) -> (i32, i32) {
    %c0_i32 = arith.constant 0 : i32
    %c0_i32_0 = arith.constant 0 : i32
    %c0_i32_1 = arith.constant 0 : i32
    return %c0_i32, %c0_i32_0 : i32, i32
  }
  func.func @transform_18(%arg0: i32) -> (i32, i32) {
    %c0_i32 = arith.constant 0 : i32
    %c0_i32_0 = arith.constant 0 : i32
    %c0_i32_1 = arith.constant 0 : i32
    return %c0_i32, %c0_i32_0 : i32, i32
  }
  func.func @transform_19(%arg0: i32) -> (i32, i32) {
    %c0_i32 = arith.constant 0 : i32
    %c0_i32_0 = arith.constant 0 : i32
    %c0_i32_1 = arith.constant 0 : i32
    return %c0_i32, %c0_i32_0 : i32, i32
  }
  func.func @transform_20(%arg0: i32) -> (i32, i32) {
    %c0_i32 = arith.constant 0 : i32
    %c0_i32_0 = arith.constant 0 : i32
    %c0_i32_1 = arith.constant 0 : i32
    return %c0_i32, %c0_i32_0 : i32, i32
  }
  func.func @transform_21(%arg0: i32) -> (i32, i32) {
    %c0_i32 = arith.constant 0 : i32
    %c0_i32_0 = arith.constant 0 : i32
    %c0_i32_1 = arith.constant 0 : i32
    return %c0_i32, %c0_i32_0 : i32, i32
  }
  func.func @transform_22(%arg0: i32) -> (i32, i32) {
    %c0_i32 = arith.constant 0 : i32
    %c0_i32_0 = arith.constant 0 : i32
    %c0_i32_1 = arith.constant 0 : i32
    return %c0_i32, %c0_i32_0 : i32, i32
  }
  func.func @transform_23(%arg0: i32) -> (i32, i32) {
    %c0_i32 = arith.constant 0 : i32
    %c0_i32_0 = arith.constant 0 : i32
    return %arg0, %c0_i32 : i32, i32
  }
}

</mosaic_0001>

<llo_original>
// kernel: nas_forward.1
$region0: #{nas_forward.1}
  #allocation0 [shape = 'u32[]', space=smem, size = 0x4, offset = 0x4, fixed_abs, tag = 'smem constant byte address 0x4 - core index']
  #allocation1 [shape = 'u32[72,128]{1,0:T(1,128)}', space=vmem, size = 0x9000, scoped, tag = 'internal scratch']
  #allocation2 [shape = 'f32[328,128]{1,0:T(8,128)}', space=vmem, size = 0x29000, scoped, tag = 'scratch operand']
  #allocation3 [shape = 'f32[64,1152]{1,0:T(8,128)}', space=vmem, size = 0x48000, scoped, tag = 'scratch operand']
  %s0 = inlined_call_operand.vmem [shape: f32[512,27], index: 0, kind: input, shape index: {}]
  %s1 = inlined_call_operand.vmem [shape: bf16[27,16], index: 1, kind: input, shape index: {}]
  %s2 = inlined_call_operand.vmem [shape: f32[1,16], index: 2, kind: input, shape index: {}]
  %s3 = inlined_call_operand.vmem [shape: bf16[144,32], index: 3, kind: input, shape index: {}]
  %s4 = inlined_call_operand.vmem [shape: f32[1,32], index: 4, kind: input, shape index: {}]
  %s5 = inlined_call_operand.vmem [shape: bf16[288,64], index: 5, kind: input, shape index: {}]
  %s6 = inlined_call_operand.vmem [shape: f32[1,64], index: 6, kind: input, shape index: {}]
  %s7 = inlined_call_operand.vmem [shape: bf16[576,64], index: 7, kind: input, shape index: {}]
  %s8 = inlined_call_operand.vmem [shape: f32[1,64], index: 8, kind: input, shape index: {}]
  %s9 = inlined_call_operand.vmem [shape: bf16[576,128], index: 9, kind: input, shape index: {}]
  %s10 = inlined_call_operand.vmem [shape: f32[1,128], index: 10, kind: input, shape index: {}]
  %s11 = inlined_call_operand.vmem [shape: bf16[1152,128], index: 11, kind: input, shape index: {}]
  %s12 = inlined_call_operand.vmem [shape: f32[1,128], index: 12, kind: input, shape index: {}]
  %s13 = inlined_call_operand.vmem [shape: bf16[512,256], index: 13, kind: input, shape index: {}]
  %s14 = inlined_call_operand.vmem [shape: f32[1,256], index: 14, kind: input, shape index: {}]
  %s15 = inlined_call_operand.vmem [shape: bf16[256,256], index: 15, kind: input, shape index: {}]
  %s16 = inlined_call_operand.vmem [shape: f32[1,256], index: 16, kind: input, shape index: {}]
  %s17 = inlined_call_operand.vmem [shape: bf16[256,512], index: 17, kind: input, shape index: {}]
  %s18 = inlined_call_operand.vmem [shape: f32[1,512], index: 18, kind: input, shape index: {}]
  %s19 = inlined_call_operand.vmem [shape: bf16[512,512], index: 19, kind: input, shape index: {}]
  %s20 = inlined_call_operand.vmem [shape: f32[1,512], index: 20, kind: input, shape index: {}]
  %s21 = inlined_call_operand.vmem [shape: bf16[512,128], index: 21, kind: input, shape index: {}]
  %s22 = inlined_call_operand.vmem [shape: f32[1,128], index: 22, kind: input, shape index: {}]
  %s23 = inlined_call_operand.vmem [shape: f32[16,128], index: 23, kind: output, shape index: {}]
  %s24 = sld [smem:[#allocation0]]
  $region125: #{nas_forward.1} parent=0
    _
  %s26 = ssub.s32 1, %s24
  %s27 = scalar_select 0, %s26, %s24
  loop: start=0, step=1, limit=4
  $region2: #{nas_forward.1} parent=0 // loop_pre_header
    _
  $region3: #{nas_forward.1} parent=0 // loop_header
    %s29 = sphi 0, %s33
    %p30 = scmp.ge.s32.totalorder %s29, 4
    %s39 = sphi 0, %s41
    %s42 = sphi 0, %s39
    %s43 = sphi 0, %s42
    %s59 = sphi 0, %s43
    %s63 = sphi 0, %s63
    %s65 = sphi 0, %s63
    %s66 = sphi 0, %s65
    %s80 = sphi 0, %s66
    %s84 = sphi 0, %s84
    %s86 = sphi 0, %s84
    %s87 = sphi 0, %s86
    %s101 = sphi 0, %s87
    %s105 = sphi 0, %s105
    %s107 = sphi 0, %s105
    %s108 = sphi 0, %s107
    %s122 = sphi 0, %s108
    %s126 = sphi 0, %s126
    %s128 = sphi 0, %s126
    %s129 = sphi 0, %s128
    %s143 = sphi 0, %s129
    %s147 = sphi 0, %s147
    %s149 = sphi 0, %s147
    %s150 = sphi 0, %s149
    %s164 = sphi 0, %s150
    %s168 = sphi 0, %s168
    %s170 = sphi 0, %s168
    %s171 = sphi 0, %s170
    %s185 = sphi 0, %s171
    %s189 = sphi 0, %s189
    %s191 = sphi 0, %s189
    %s192 = sphi 0, %s191
    %s206 = sphi 0, %s192
    %s210 = sphi 0, %s210
    %s212 = sphi 0, %s210
    %s213 = sphi 0, %s212
    %s227 = sphi 0, %s213
    %s231 = sphi 0, %s231
    %s233 = sphi 0, %s231
    %s234 = sphi 0, %s233
    %s248 = sphi 0, %s234
    %s252 = sphi 0, %s252
    %s254 = sphi 0, %s252
    %s255 = sphi 0, %s254
    %s269 = sphi 0, %s255
    %s273 = sphi 0, %s273
    %s275 = sphi 0, %s273
    %s276 = sphi 0, %s275
    %s290 = sphi 0, %s276
    %s294 = sphi 0, %s294
    %s296 = sphi 0, %s294
    %s297 = sphi 0, %s296
    %s311 = sphi 0, %s297
    %s315 = sphi 0, %s315
    %s317 = sphi 0, %s315
    %s318 = sphi 0, %s317
    %s332 = sphi 0, %s318
    %s336 = sphi 0, %s336
    %s338 = sphi 0, %s336
    %s339 = sphi 0, %s338
    %s353 = sphi 0, %s339
    %s357 = sphi 0, %s357
    %s359 = sphi 0, %s357
    %s360 = sphi 0, %s359
    %s374 = sphi 0, %s360
    %s378 = sphi 0, %s378
    %s380 = sphi 0, %s378
    %s381 = sphi 0, %s380
    %s395 = sphi 0, %s381
    %s399 = sphi 0, %s399
    %s401 = sphi 0, %s399
    %s402 = sphi 0, %s401
    %s416 = sphi 0, %s402
    %s420 = sphi 0, %s420
    %s422 = sphi 0, %s420
    %s423 = sphi 0, %s422
    %s437 = sphi 0, %s423
    %s441 = sphi 0, %s441
    %s443 = sphi 0, %s441
    %s444 = sphi 0, %s443
    %s458 = sphi 0, %s444
    %s462 = sphi 0, %s462
    %s464 = sphi 0, %s462
    %s465 = sphi 0, %s464
    %s479 = sphi 0, %s465
    %s483 = sphi 0, %s483
    %s485 = sphi 0, %s483
    %s486 = sphi 0, %s485
    %s500 = sphi 0, %s486
    %s504 = sphi 0, %s504
    %s506 = sphi 0, %s504
    %s507 = sphi 0, %s506
    %s521 = sphi 0, %s507
    %s527 = sphi 0, %s529
    %s530 = sphi 0, %s527
    %s531 = sphi 0, %s530
    %s547 = sphi 0, %s531
  $region4: #{nas_forward.1} parent=0 // loop_header_branch
    %32 = sbr.rel (%p30) target = $region8
  $region5: #{nas_forward.1} parent=0 // loop_body
    %s34 = ssub.s32 %s29, 1
    %s35 = ssub.s32 %s29, 2
    %s36 = sadd.s32 %s29, 1
    %s37 = ssub.s32 %s29, %s36
    %p38 = scmp.eq.s32.totalorder %s37, 0
    %s40 = sadd.s32 %s39, 1
    %s41 = scalar_select %p38, %s39, %s40
    %p44 = pneg %p38
    %p45 = scmp.eq.s32.totalorder %s29, 1
    %p46 = por %p44, %p45
    %p47 = scmp.ne.s32.totalorder %s39, %s42
    %p48 = scmp.eq.s32.totalorder %s29, 0
    %p49 = por %p47, %p48
    %p50 = scmp.ne.s32.totalorder %s39, %s42
    %p51 = scmp.eq.s32.totalorder %s34, 1
    %p52 = por %p50, %p51
    %p53 = scmp.ne.s32.totalorder %s42, %s43
    %p54 = scmp.eq.s32.totalorder %s34, 0
    %p55 = por %p53, %p54
    %p56 = scmp.ne.s32.totalorder %s42, %s43
    %p57 = scmp.eq.s32.totalorder %s35, 1
    %p58 = por %p56, %p57
    %p60 = scmp.ne.s32.totalorder %s43, %s59
    %p61 = scmp.eq.s32.totalorder %s35, 0
    %p62 = por %p60, %p61
    %s64 = sadd.s32 %s63, 1
    %p67 = scmp.eq.s32.totalorder %s29, 1
    %p68 = scmp.ne.s32.totalorder %s63, %s65
    %p69 = scmp.eq.s32.totalorder %s29, 0
    %p70 = por %p68, %p69
    %p71 = scmp.ne.s32.totalorder %s63, %s65
    %p72 = scmp.eq.s32.totalorder %s34, 1
    %p73 = por %p71, %p72
    %p74 = scmp.ne.s32.totalorder %s65, %s66
    %p75 = scmp.eq.s32.totalorder %s34, 0
    %p76 = por %p74, %p75
    %p77 = scmp.ne.s32.totalorder %s65, %s66
    %p78 = scmp.eq.s32.totalorder %s35, 1
    %p79 = por %p77, %p78
    %p81 = scmp.ne.s32.totalorder %s66, %s80
    %p82 = scmp.eq.s32.totalorder %s35, 0
    %p83 = por %p81, %p82
    %s85 = sadd.s32 %s84, 1
    %p88 = scmp.eq.s32.totalorder %s29, 1
    %p89 = scmp.ne.s32.totalorder %s84, %s86
    %p90 = scmp.eq.s32.totalorder %s29, 0
    %p91 = por %p89, %p90
    %p92 = scmp.ne.s32.totalorder %s84, %s86
    %p93 = scmp.eq.s32.totalorder %s34, 1
    %p94 = por %p92, %p93
    %p95 = scmp.ne.s32.totalorder %s86, %s87
    %p96 = scmp.eq.s32.totalorder %s34, 0
    %p97 = por %p95, %p96
    %p98 = scmp.ne.s32.totalorder %s86, %s87
    %p99 = scmp.eq.s32.totalorder %s35, 1
    %p100 = por %p98, %p99
    %p102 = scmp.ne.s32.totalorder %s87, %s101
    %p103 = scmp.eq.s32.totalorder %s35, 0
    %p104 = por %p102, %p103
    %s106 = sadd.s32 %s105, 1
    %p109 = scmp.eq.s32.totalorder %s29, 1
    %p110 = scmp.ne.s32.totalorder %s105, %s107
    %p111 = scmp.eq.s32.totalorder %s29, 0
    %p112 = por %p110, %p111
    %p113 = scmp.ne.s32.totalorder %s105, %s107
    %p114 = scmp.eq.s32.totalorder %s34, 1
    %p115 = por %p113, %p114
    %p116 = scmp.ne.s32.totalorder %s107, %s108
    %p117 = scmp.eq.s32.totalorder %s34, 0
    %p118 = por %p116, %p117
    %p119 = scmp.ne.s32.totalorder %s107, %s108
    %p120 = scmp.eq.s32.totalorder %s35, 1
    %p121 = por %p119, %p120
    %p123 = scmp.ne.s32.totalorder %s108, %s122
    %p124 = scmp.eq.s32.totalorder %s35, 0
    %p125 = por %p123, %p124
    %s127 = sadd.s32 %s126, 1
    %p130 = scmp.eq.s32.totalorder %s29, 1
    %p131 = scmp.ne.s32.totalorder %s126, %s128
    %p132 = scmp.eq.s32.totalorder %s29, 0
    %p133 = por %p131, %p132
    %p134 = scmp.ne.s32.totalorder %s126, %s128
    %p135 = scmp.eq.s32.totalorder %s34, 1
    %p136 = por %p134, %p135
    %p137 = scmp.ne.s32.totalorder %s128, %s129
    %p138 = scmp.eq.s32.totalorder %s34, 0
    %p139 = por %p137, %p138
    %p140 = scmp.ne.s32.totalorder %s128, %s129
    %p141 = scmp.eq.s32.totalorder %s35, 1
    %p142 = por %p140, %p141
    %p144 = scmp.ne.s32.totalorder %s129, %s143
    %p145 = scmp.eq.s32.totalorder %s35, 0
    %p146 = por %p144, %p145
    %s148 = sadd.s32 %s147, 1
    %p151 = scmp.eq.s32.totalorder %s29, 1
    %p152 = scmp.ne.s32.totalorder %s147, %s149
    %p153 = scmp.eq.s32.totalorder %s29, 0
    %p154 = por %p152, %p153
    %p155 = scmp.ne.s32.totalorder %s147, %s149
    %p156 = scmp.eq.s32.totalorder %s34, 1
    %p157 = por %p155, %p156
    %p158 = scmp.ne.s32.totalorder %s149, %s150
    %p159 = scmp.eq.s32.totalorder %s34, 0
    %p160 = por %p158, %p159
    %p161 = scmp.ne.s32.totalorder %s149, %s150
    %p162 = scmp.eq.s32.totalorder %s35, 1
    %p163 = por %p161, %p162
    %p165 = scmp.ne.s32.totalorder %s150, %s164
    %p166 = scmp.eq.s32.totalorder %s35, 0
    %p167 = por %p165, %p166
    %s169 = sadd.s32 %s168, 1
    %p172 = scmp.eq.s32.totalorder %s29, 1
    %p173 = scmp.ne.s32.totalorder %s168, %s170
    %p174 = scmp.eq.s32.totalorder %s29, 0
    %p175 = por %p173, %p174
    %p176 = scmp.ne.s32.totalorder %s168, %s170
    %p177 = scmp.eq.s32.totalorder %s34, 1
    %p178 = por %p176, %p177
    %p179 = scmp.ne.s32.totalorder %s170, %s171
    %p180 = scmp.eq.s32.totalorder %s34, 0
    %p181 = por %p179, %p180
    %p182 = scmp.ne.s32.totalorder %s170, %s171
    %p183 = scmp.eq.s32.totalorder %s35, 1
    %p184 = por %p182, %p183
    %p186 = scmp.ne.s32.totalorder %s171, %s185
    %p187 = scmp.eq.s32.totalorder %s35, 0
    %p188 = por %p186, %p187
    %s190 = sadd.s32 %s189, 1
    %p193 = scmp.eq.s32.totalorder %s29, 1
    %p194 = scmp.ne.s32.totalorder %s189, %s191
    %p195 = scmp.eq.s32.totalorder %s29, 0
    %p196 = por %p194, %p195
    %p197 = scmp.ne.s32.totalorder %s189, %s191
    %p198 = scmp.eq.s32.totalorder %s34, 1
    %p199 = por %p197, %p198
    %p200 = scmp.ne.s32.totalorder %s191, %s192
    %p201 = scmp.eq.s32.totalorder %s34, 0
    %p202 = por %p200, %p201
    %p203 = scmp.ne.s32.totalorder %s191, %s192
    %p204 = scmp.eq.s32.totalorder %s35, 1
    %p205 = por %p203, %p204
    %p207 = scmp.ne.s32.totalorder %s192, %s206
    %p208 = scmp.eq.s32.totalorder %s35, 0
    %p209 = por %p207, %p208
    %s211 = sadd.s32 %s210, 1
    %p214 = scmp.eq.s32.totalorder %s29, 1
    %p215 = scmp.ne.s32.totalorder %s210, %s212
    %p216 = scmp.eq.s32.totalorder %s29, 0
    %p217 = por %p215, %p216
    %p218 = scmp.ne.s32.totalorder %s210, %s212
    %p219 = scmp.eq.s32.totalorder %s34, 1
    %p220 = por %p218, %p219
    %p221 = scmp.ne.s32.totalorder %s212, %s213
    %p222 = scmp.eq.s32.totalorder %s34, 0
    %p223 = por %p221, %p222
    %p224 = scmp.ne.s32.totalorder %s212, %s213
    %p225 = scmp.eq.s32.totalorder %s35, 1
    %p226 = por %p224, %p225
    %p228 = scmp.ne.s32.totalorder %s213, %s227
    %p229 = scmp.eq.s32.totalorder %s35, 0
    %p230 = por %p228, %p229
    %s232 = sadd.s32 %s231, 1
    %p235 = scmp.eq.s32.totalorder %s29, 1
    %p236 = scmp.ne.s32.totalorder %s231, %s233
    %p237 = scmp.eq.s32.totalorder %s29, 0
    %p238 = por %p236, %p237
    %p239 = scmp.ne.s32.totalorder %s231, %s233
    %p240 = scmp.eq.s32.totalorder %s34, 1
    %p241 = por %p239, %p240
    %p242 = scmp.ne.s32.totalorder %s233, %s234
    %p243 = scmp.eq.s32.totalorder %s34, 0
    %p244 = por %p242, %p243
    %p245 = scmp.ne.s32.totalorder %s233, %s234
    %p246 = scmp.eq.s32.totalorder %s35, 1
    %p247 = por %p245, %p246
    %p249 = scmp.ne.s32.totalorder %s234, %s248
    %p250 = scmp.eq.s32.totalorder %s35, 0
    %p251 = por %p249, %p250
    %s253 = sadd.s32 %s252, 1
    %p256 = scmp.eq.s32.totalorder %s29, 1
    %p257 = scmp.ne.s32.totalorder %s252, %s254
    %p258 = scmp.eq.s32.totalorder %s29, 0
    %p259 = por %p257, %p258
    %p260 = scmp.ne.s32.totalorder %s252, %s254
    %p261 = scmp.eq.s32.totalorder %s34, 1
    %p262 = por %p260, %p261
    %p263 = scmp.ne.s32.totalorder %s254, %s255
    %p264 = scmp.eq.s32.totalorder %s34, 0
    %p265 = por %p263, %p264
    %p266 = scmp.ne.s32.totalorder %s254, %s255
    %p267 = scmp.eq.s32.totalorder %s35, 1
    %p268 = por %p266, %p267
    %p270 = scmp.ne.s32.totalorder %s255, %s269
    %p271 = scmp.eq.s32.totalorder %s35, 0
    %p272 = por %p270, %p271
    %s274 = sadd.s32 %s273, 1
    %p277 = scmp.eq.s32.totalorder %s29, 1
    %p278 = scmp.ne.s32.totalorder %s273, %s275
    %p279 = scmp.eq.s32.totalorder %s29, 0
    %p280 = por %p278, %p279
    %p281 = scmp.ne.s32.totalorder %s273, %s275
    %p282 = scmp.eq.s32.totalorder %s34, 1
    %p283 = por %p281, %p282
    %p284 = scmp.ne.s32.totalorder %s275, %s276
    %p285 = scmp.eq.s32.totalorder %s34, 0
    %p286 = por %p284, %p285
    %p287 = scmp.ne.s32.totalorder %s275, %s276
    %p288 = scmp.eq.s32.totalorder %s35, 1
    %p289 = por %p287, %p288
    %p291 = scmp.ne.s32.totalorder %s276, %s290
    %p292 = scmp.eq.s32.totalorder %s35, 0
    %p293 = por %p291, %p292
    %s295 = sadd.s32 %s294, 1
    %p298 = scmp.eq.s32.totalorder %s29, 1
    %p299 = scmp.ne.s32.totalorder %s294, %s296
    %p300 = scmp.eq.s32.totalorder %s29, 0
    %p301 = por %p299, %p300
    %p302 = scmp.ne.s32.totalorder %s294, %s296
    %p303 = scmp.eq.s32.totalorder %s34, 1
    %p304 = por %p302, %p303
    %p305 = scmp.ne.s32.totalorder %s296, %s297
    %p306 = scmp.eq.s32.totalorder %s34, 0
    %p307 = por %p305, %p306
    %p308 = scmp.ne.s32.totalorder %s296, %s297
    %p309 = scmp.eq.s32.totalorder %s35, 1
    %p310 = por %p308, %p309
    %p312 = scmp.ne.s32.totalorder %s297, %s311
    %p313 = scmp.eq.s32.totalorder %s35, 0
    %p314 = por %p312, %p313
    %s316 = sadd.s32 %s315, 1
    %p319 = scmp.eq.s32.totalorder %s29, 1
    %p320 = scmp.ne.s32.totalorder %s315, %s317
    %p321 = scmp.eq.s32.totalorder %s29, 0
    %p322 = por %p320, %p321
    %p323 = scmp.ne.s32.totalorder %s315, %s317
    %p324 = scmp.eq.s32.totalorder %s34, 1
    %p325 = por %p323, %p324
    %p326 = scmp.ne.s32.totalorder %s317, %s318
    %p327 = scmp.eq.s32.totalorder %s34, 0
    %p328 = por %p326, %p327
    %p329 = scmp.ne.s32.totalorder %s317, %s318
    %p330 = scmp.eq.s32.totalorder %s35, 1
    %p331 = por %p329, %p330
    %p333 = scmp.ne.s32.totalorder %s318, %s332
    %p334 = scmp.eq.s32.totalorder %s35, 0
    %p335 = por %p333, %p334
    %s337 = sadd.s32 %s336, 1
    %p340 = scmp.eq.s32.totalorder %s29, 1
    %p341 = scmp.ne.s32.totalorder %s336, %s338
    %p342 = scmp.eq.s32.totalorder %s29, 0
    %p343 = por %p341, %p342
    %p344 = scmp.ne.s32.totalorder %s336, %s338
    %p345 = scmp.eq.s32.totalorder %s34, 1
    %p346 = por %p344, %p345
    %p347 = scmp.ne.s32.totalorder %s338, %s339
    %p348 = scmp.eq.s32.totalorder %s34, 0
    %p349 = por %p347, %p348
    %p350 = scmp.ne.s32.totalorder %s338, %s339
    %p351 = scmp.eq.s32.totalorder %s35, 1
    %p352 = por %p350, %p351
    %p354 = scmp.ne.s32.totalorder %s339, %s353
    %p355 = scmp.eq.s32.totalorder %s35, 0
    %p356 = por %p354, %p355
    %s358 = sadd.s32 %s357, 1
    %p361 = scmp.eq.s32.totalorder %s29, 1
    %p362 = scmp.ne.s32.totalorder %s357, %s359
    %p363 = scmp.eq.s32.totalorder %s29, 0
    %p364 = por %p362, %p363
    %p365 = scmp.ne.s32.totalorder %s357, %s359
    %p366 = scmp.eq.s32.totalorder %s34, 1
    %p367 = por %p365, %p366
    %p368 = scmp.ne.s32.totalorder %s359, %s360
    %p369 = scmp.eq.s32.totalorder %s34, 0
    %p370 = por %p368, %p369
    %p371 = scmp.ne.s32.totalorder %s359, %s360
    %p372 = scmp.eq.s32.totalorder %s35, 1
    %p373 = por %p371, %p372
    %p375 = scmp.ne.s32.totalorder %s360, %s374
    %p376 = scmp.eq.s32.totalorder %s35, 0
    %p377 = por %p375, %p376
    %s379 = sadd.s32 %s378, 1
    %p382 = scmp.eq.s32.totalorder %s29, 1
    %p383 = scmp.ne.s32.totalorder %s378, %s380
    %p384 = scmp.eq.s32.totalorder %s29, 0
    %p385 = por %p383, %p384
    %p386 = scmp.ne.s32.totalorder %s378, %s380
    %p387 = scmp.eq.s32.totalorder %s34, 1
    %p388 = por %p386, %p387
    %p389 = scmp.ne.s32.totalorder %s380, %s381
    %p390 = scmp.eq.s32.totalorder %s34, 0
    %p391 = por %p389, %p390
    %p392 = scmp.ne.s32.totalorder %s380, %s381
    %p393 = scmp.eq.s32.totalorder %s35, 1
    %p394 = por %p392, %p393
    %p396 = scmp.ne.s32.totalorder %s381, %s395
    %p397 = scmp.eq.s32.totalorder %s35, 0
    %p398 = por %p396, %p397
    %s400 = sadd.s32 %s399, 1
    %p403 = scmp.eq.s32.totalorder %s29, 1
    %p404 = scmp.ne.s32.totalorder %s399, %s401
    %p405 = scmp.eq.s32.totalorder %s29, 0
    %p406 = por %p404, %p405
    %p407 = scmp.ne.s32.totalorder %s399, %s401
    %p408 = scmp.eq.s32.totalorder %s34, 1
    %p409 = por %p407, %p408
    %p410 = scmp.ne.s32.totalorder %s401, %s402
    %p411 = scmp.eq.s32.totalorder %s34, 0
    %p412 = por %p410, %p411
    %p413 = scmp.ne.s32.totalorder %s401, %s402
    %p414 = scmp.eq.s32.totalorder %s35, 1
    %p415 = por %p413, %p414
    %p417 = scmp.ne.s32.totalorder %s402, %s416
    %p418 = scmp.eq.s32.totalorder %s35, 0
    %p419 = por %p417, %p418
    %s421 = sadd.s32 %s420, 1
    %p424 = scmp.eq.s32.totalorder %s29, 1
    %p425 = scmp.ne.s32.totalorder %s420, %s422
    %p426 = scmp.eq.s32.totalorder %s29, 0
    %p427 = por %p425, %p426
    %p428 = scmp.ne.s32.totalorder %s420, %s422
    %p429 = scmp.eq.s32.totalorder %s34, 1
    %p430 = por %p428, %p429
    %p431 = scmp.ne.s32.totalorder %s422, %s423
    %p432 = scmp.eq.s32.totalorder %s34, 0
    %p433 = por %p431, %p432
    %p434 = scmp.ne.s32.totalorder %s422, %s423
    %p435 = scmp.eq.s32.totalorder %s35, 1
    %p436 = por %p434, %p435
    %p438 = scmp.ne.s32.totalorder %s423, %s437
    %p439 = scmp.eq.s32.totalorder %s35, 0
    %p440 = por %p438, %p439
    %s442 = sadd.s32 %s441, 1
    %p445 = scmp.eq.s32.totalorder %s29, 1
    %p446 = scmp.ne.s32.totalorder %s441, %s443
    %p447 = scmp.eq.s32.totalorder %s29, 0
    %p448 = por %p446, %p447
    %p449 = scmp.ne.s32.totalorder %s441, %s443
    %p450 = scmp.eq.s32.totalorder %s34, 1
    %p451 = por %p449, %p450
    %p452 = scmp.ne.s32.totalorder %s443, %s444
    %p453 = scmp.eq.s32.totalorder %s34, 0
    %p454 = por %p452, %p453
    %p455 = scmp.ne.s32.totalorder %s443, %s444
    %p456 = scmp.eq.s32.totalorder %s35, 1
    %p457 = por %p455, %p456
    %p459 = scmp.ne.s32.totalorder %s444, %s458
    %p460 = scmp.eq.s32.totalorder %s35, 0
    %p461 = por %p459, %p460
    %s463 = sadd.s32 %s462, 1
    %p466 = scmp.eq.s32.totalorder %s29, 1
    %p467 = scmp.ne.s32.totalorder %s462, %s464
    %p468 = scmp.eq.s32.totalorder %s29, 0
    %p469 = por %p467, %p468
    %p470 = scmp.ne.s32.totalorder %s462, %s464
    %p471 = scmp.eq.s32.totalorder %s34, 1
    %p472 = por %p470, %p471
    %p473 = scmp.ne.s32.totalorder %s464, %s465
    %p474 = scmp.eq.s32.totalorder %s34, 0
    %p475 = por %p473, %p474
    %p476 = scmp.ne.s32.totalorder %s464, %s465
    %p477 = scmp.eq.s32.totalorder %s35, 1
    %p478 = por %p476, %p477
    %p480 = scmp.ne.s32.totalorder %s465, %s479
    %p481 = scmp.eq.s32.totalorder %s35, 0
    %p482 = por %p480, %p481
    %s484 = sadd.s32 %s483, 1
    %p487 = scmp.eq.s32.totalorder %s29, 1
    %p488 = scmp.ne.s32.totalorder %s483, %s485
    %p489 = scmp.eq.s32.totalorder %s29, 0
    %p490 = por %p488, %p489
    %p491 = scmp.ne.s32.totalorder %s483, %s485
    %p492 = scmp.eq.s32.totalorder %s34, 1
    %p493 = por %p491, %p492
    %p494 = scmp.ne.s32.totalorder %s485, %s486
    %p495 = scmp.eq.s32.totalorder %s34, 0
    %p496 = por %p494, %p495
    %p497 = scmp.ne.s32.totalorder %s485, %s486
    %p498 = scmp.eq.s32.totalorder %s35, 1
    %p499 = por %p497, %p498
    %p501 = scmp.ne.s32.totalorder %s486, %s500
    %p502 = scmp.eq.s32.totalorder %s35, 0
    %p503 = por %p501, %p502
    %s505 = sadd.s32 %s504, 1
    %p508 = scmp.eq.s32.totalorder %s29, 1
    %p509 = scmp.ne.s32.totalorder %s504, %s506
    %p510 = scmp.eq.s32.totalorder %s29, 0
    %p511 = por %p509, %p510
    %p512 = scmp.ne.s32.totalorder %s504, %s506
    %p513 = scmp.eq.s32.totalorder %s34, 1
    %p514 = por %p512, %p513
    %p515 = scmp.ne.s32.totalorder %s506, %s507
    %p516 = scmp.eq.s32.totalorder %s34, 0
    %p517 = por %p515, %p516
    %p518 = scmp.ne.s32.totalorder %s506, %s507
    %p519 = scmp.eq.s32.totalorder %s35, 1
    %p520 = por %p518, %p519
    %p522 = scmp.ne.s32.totalorder %s507, %s521
    %p523 = scmp.eq.s32.totalorder %s35, 0
    %p524 = por %p522, %p523
    %s525 = ssub.s32 %s29, %s36
    %p526 = scmp.eq.s32.totalorder %s525, 0
    %s528 = sadd.s32 %s527, 1
    %s529 = scalar_select %p526, %s527, %s528
    %p532 = pneg %p526
    %p533 = scmp.eq.s32.totalorder %s29, 1
    %p534 = por %p532, %p533
    %p535 = scmp.ne.s32.totalorder %s527, %s530
    %p536 = scmp.eq.s32.totalorder %s29, 0
    %p537 = por %p535, %p536
    %p538 = scmp.ne.s32.totalorder %s527, %s530
    %p539 = scmp.eq.s32.totalorder %s34, 1
    %p540 = por %p538, %p539
    %p541 = scmp.ne.s32.totalorder %s530, %s531
    %p542 = scmp.eq.s32.totalorder %s34, 0
    %p543 = por %p541, %p542
    %p544 = scmp.ne.s32.totalorder %s530, %s531
    %p545 = scmp.eq.s32.totalorder %s35, 1
    %p546 = por %p544, %p545
    %p548 = scmp.ne.s32.totalorder %s531, %s547
    %p549 = scmp.eq.s32.totalorder %s35, 0
    %p550 = por %p548, %p549
    %p551 = scmp.le.s32.totalorder 1, %s29
    %p552 = scmp.lt.s32.totalorder %s29, 3
    %p553 = pnand %p551, %p552
    %p554 = pneg %p553
    // Predicated region
    $region9: #{nas_forward.1} parent=5 // pred_check
      _
    $region10: #{nas_forward.1} parent=5 // pred_check_branch
      %556 = sbr.rel (%p553) target = $region12
    $region11: #{nas_forward.1} parent=5 // pred_region
      %s557 = ssub.s32 %s29, 1
      // Predicated region
      $region13: #{nas_forward.1} parent=11 // pred_check
        %p558 = pneg %p76
      $region14: #{nas_forward.1} parent=11 // pred_check_branch
        %560 = sbr.rel (%p558) target = $region16
      $region15: #{nas_forward.1} parent=11 // pred_region
        _
      $region16: #{nas_forward.1} parent=11 // pred_fallthru
        _
      // Predicated region
      $region17: #{nas_forward.1} parent=11 // pred_check
        %p561 = pneg %p97
      $region18: #{nas_forward.1} parent=11 // pred_check_branch
        %563 = sbr.rel (%p561) target = $region20
      $region19: #{nas_forward.1} parent=11 // pred_region
        _
      $region20: #{nas_forward.1} parent=11 // pred_fallthru
        _
      // Predicated region
      $region21: #{nas_forward.1} parent=11 // pred_check
        %p564 = pneg %p118
      $region22: #{nas_forward.1} parent=11 // pred_check_branch
        %566 = sbr.rel (%p564) target = $region24
      $region23: #{nas_forward.1} parent=11 // pred_region
        _
      $region24: #{nas_forward.1} parent=11 // pred_fallthru
        _
      // Predicated region
      $region25: #{nas_forward.1} parent=11 // pred_check
        %p567 = pneg %p139
      $region26: #{nas_forward.1} parent=11 // pred_check_branch
        %569 = sbr.rel (%p567) target = $region28
      $region27: #{nas_forward.1} parent=11 // pred_region
        _
      $region28: #{nas_forward.1} parent=11 // pred_fallthru
        _
      // Predicated region
      $region29: #{nas_forward.1} parent=11 // pred_check
        %p570 = pneg %p160
      $region30: #{nas_forward.1} parent=11 // pred_check_branch
        %572 = sbr.rel (%p570) target = $region32
      $region31: #{nas_forward.1} parent=11 // pred_region
        _
      $region32: #{nas_forward.1} parent=11 // pred_fallthru
        _
      // Predicated region
      $region33: #{nas_forward.1} parent=11 // pred_check
        %p573 = pneg %p181
      $region34: #{nas_forward.1} parent=11 // pred_check_branch
        %575 = sbr.rel (%p573) target = $region36
      $region35: #{nas_forward.1} parent=11 // pred_region
        _
      $region36: #{nas_forward.1} parent=11 // pred_fallthru
        _
      // Predicated region
      $region37: #{nas_forward.1} parent=11 // pred_check
        %p576 = pneg %p202
      $region38: #{nas_forward.1} parent=11 // pred_check_branch
        %578 = sbr.rel (%p576) target = $region40
      $region39: #{nas_forward.1} parent=11 // pred_region
        _
      $region40: #{nas_forward.1} parent=11 // pred_fallthru
        _
      // Predicated region
      $region41: #{nas_forward.1} parent=11 // pred_check
        %p579 = pneg %p223
      $region42: #{nas_forward.1} parent=11 // pred_check_branch
        %581 = sbr.rel (%p579) target = $region44
      $region43: #{nas_forward.1} parent=11 // pred_region
        _
      $region44: #{nas_forward.1} parent=11 // pred_fallthru
        _
      // Predicated region
      $region45: #{nas_forward.1} parent=11 // pred_check
        %p582 = pneg %p244
      $region46: #{nas_forward.1} parent=11 // pred_check_branch
        %584 = sbr.rel (%p582) target = $region48
      $region47: #{nas_forward.1} parent=11 // pred_region
        _
      $region48: #{nas_forward.1} parent=11 // pred_fallthru
        _
      // Predicated region
      $region49: #{nas_forward.1} parent=11 // pred_check
        %p585 = pneg %p265
      $region50: #{nas_forward.1} parent=11 // pred_check_branch
        %587 = sbr.rel (%p585) target = $region52
      $region51: #{nas_forward.1} parent=11 // pred_region
        _
      $region52: #{nas_forward.1} parent=11 // pred_fallthru
        _
      // Predicated region
      $region53: #{nas_forward.1} parent=11 // pred_check
        %p588 = pneg %p286
      $region54: #{nas_forward.1} parent=11 // pred_check_branch
        %590 = sbr.rel (%p588) target = $region56
      $region55: #{nas_forward.1} parent=11 // pred_region
        _
      $region56: #{nas_forward.1} parent=11 // pred_fallthru
        _
      // Predicated region
      $region57: #{nas_forward.1} parent=11 // pred_check
        %p591 = pneg %p307
      $region58: #{nas_forward.1} parent=11 // pred_check_branch
        %593 = sbr.rel (%p591) target = $region60
      $region59: #{nas_forward.1} parent=11 // pred_region
        _
      $region60: #{nas_forward.1} parent=11 // pred_fallthru
        _
      // Predicated region
      $region61: #{nas_forward.1} parent=11 // pred_check
        %p594 = pneg %p328
      $region62: #{nas_forward.1} parent=11 // pred_check_branch
        %596 = sbr.rel (%p594) target = $region64
      $region63: #{nas_forward.1} parent=11 // pred_region
        _
      $region64: #{nas_forward.1} parent=11 // pred_fallthru
        _
      // Predicated region
      $region65: #{nas_forward.1} parent=11 // pred_check
        %p597 = pneg %p349
      $region66: #{nas_forward.1} parent=11 // pred_check_branch
        %599 = sbr.rel (%p597) target = $region68
      $region67: #{nas_forward.1} parent=11 // pred_region
        _
      $region68: #{nas_forward.1} parent=11 // pred_fallthru
        _
      // Predicated region
      $region69: #{nas_forward.1} parent=11 // pred_check
        %p600 = pneg %p370
      $region70: #{nas_forward.1} parent=11 // pred_check_branch
        %602 = sbr.rel (%p600) target = $region72
      $region71: #{nas_forward.1} parent=11 // pred_region
        _
      $region72: #{nas_forward.1} parent=11 // pred_fallthru
        _
      // Predicated region
      $region73: #{nas_forward.1} parent=11 // pred_check
        %p603 = pneg %p391
      $region74: #{nas_forward.1} parent=11 // pred_check_branch
        %605 = sbr.rel (%p603) target = $region76
      $region75: #{nas_forward.1} parent=11 // pred_region
        _
      $region76: #{nas_forward.1} parent=11 // pred_fallthru
        _
      // Predicated region
      $region77: #{nas_forward.1} parent=11 // pred_check
        %p606 = pneg %p412
      $region78: #{nas_forward.1} parent=11 // pred_check_branch
        %608 = sbr.rel (%p606) target = $region80
      $region79: #{nas_forward.1} parent=11 // pred_region
        _
      $region80: #{nas_forward.1} parent=11 // pred_fallthru
        _
      // Predicated region
      $region81: #{nas_forward.1} parent=11 // pred_check
        %p609 = pneg %p433
      $region82: #{nas_forward.1} parent=11 // pred_check_branch
        %611 = sbr.rel (%p609) target = $region84
      $region83: #{nas_forward.1} parent=11 // pred_region
        _
      $region84: #{nas_forward.1} parent=11 // pred_fallthru
        _
      // Predicated region
      $region85: #{nas_forward.1} parent=11 // pred_check
        %p612 = pneg %p454
      $region86: #{nas_forward.1} parent=11 // pred_check_branch
        %614 = sbr.rel (%p612) target = $region88
      $region87: #{nas_forward.1} parent=11 // pred_region
        _
      $region88: #{nas_forward.1} parent=11 // pred_fallthru
        _
      // Predicated region
      $region89: #{nas_forward.1} parent=11 // pred_check
        %p615 = pneg %p475
      $region90: #{nas_forward.1} parent=11 // pred_check_branch
        %617 = sbr.rel (%p615) target = $region92
      $region91: #{nas_forward.1} parent=11 // pred_region
        _
      $region92: #{nas_forward.1} parent=11 // pred_fallthru
        _
      // Predicated region
      $region93: #{nas_forward.1} parent=11 // pred_check
        %p618 = pneg %p496
      $region94: #{nas_forward.1} parent=11 // pred_check_branch
        %620 = sbr.rel (%p618) target = $region96
      $region95: #{nas_forward.1} parent=11 // pred_region
        _
      $region96: #{nas_forward.1} parent=11 // pred_fallthru
        _
      // Predicated region
      $region97: #{nas_forward.1} parent=11 // pred_check
        %p621 = pneg %p517
      $region98: #{nas_forward.1} parent=11 // pred_check_branch
        %623 = sbr.rel (%p621) target = $region100
      $region99: #{nas_forward.1} parent=11 // pred_region
        _
      $region100: #{nas_forward.1} parent=11 // pred_fallthru
        _
    $region12: #{nas_forward.1} parent=5 // pred_fallthru
      _
    %p624 = scmp.lt.s32.totalorder %s29, 2
    // Predicated region
    $region101: #{nas_forward.1} parent=5 // pred_check
      %p625 = pneg %p624
    $region102: #{nas_forward.1} parent=5 // pred_check_branch
      %627 = sbr.rel (%p625) target = $region104
    $region103: #{nas_forward.1} parent=5 // pred_region
      // Predicated region
      $region105: #{nas_forward.1} parent=103 // pred_check
        %p628 = pneg %p49
      $region106: #{nas_forward.1} parent=103 // pred_check_branch
        %630 = sbr.rel (%p628) target = $region108
      $region107: #{nas_forward.1} parent=103 // pred_region
        %s631 = smul.u32 32, %s29
        %p632 = scmp.lt.s32.totalorder %s631, 63
        %s633 = scalar_select %p632, %s631, 63
        %s634 = smul.addr %s633, 8
        %s635 = scalar_lea.vmem %s0, %s634
        %s636 = smul.u32 32, %s29
      $region108: #{nas_forward.1} parent=103 // pred_fallthru
        _
    $region104: #{nas_forward.1} parent=5 // pred_fallthru
      _
    %p637 = scmp.le.s32.totalorder 1, %s29
    %p638 = scmp.lt.s32.totalorder %s29, 3
    %p639 = pnand %p637, %p638
    %p640 = pneg %p639
    // Predicated region
    $region109: #{nas_forward.1} parent=5 // pred_check
      _
    $region110: #{nas_forward.1} parent=5 // pred_check_branch
      %642 = sbr.rel (%p639) target = $region112
    $region111: #{nas_forward.1} parent=5 // pred_region
      %s643 = ssub.s32 %s29, 1
      %s644 = smul.u32 32, %s34
      %p645 = scmp.lt.s32.totalorder %s644, 63
      %s646 = scalar_select %p645, %s644, 63
      %s647 = smul.addr %s646, 8
      %s648 = scalar_lea.vmem %s0, %s647
      %p649 = pneg %p55
      %p650 = pneg %p52
      %p651 = pneg %p76
      %p652 = pneg %p73
      %p653 = pneg %p97
      %p654 = pneg %p94
      %p655 = pneg %p118
      %p656 = pneg %p115
      %p657 = pneg %p139
      %p658 = pneg %p136
      %p659 = pneg %p160
      %p660 = pneg %p157
      %p661 = pneg %p181
      %p662 = pneg %p178
      %p663 = pneg %p202
      %p664 = pneg %p199
      %p665 = pneg %p223
      %p666 = pneg %p220
      %p667 = pneg %p244
      %p668 = pneg %p241
      %p669 = pneg %p265
      %p670 = pneg %p262
      %p671 = pneg %p286
      %p672 = pneg %p283
      %p673 = pneg %p307
      %p674 = pneg %p304
      %p675 = pneg %p328
      %p676 = pneg %p325
      %p677 = pneg %p349
      %p678 = pneg %p346
      %p679 = pneg %p370
      %p680 = pneg %p367
      %p681 = pneg %p391
      %p682 = pneg %p388
      %p683 = pneg %p412
      %p684 = pneg %p409
      %p685 = pneg %p433
      %p686 = pneg %p430
      %p687 = pneg %p454
      %p688 = pneg %p451
      %p689 = pneg %p475
      %p690 = pneg %p472
      %p691 = pneg %p496
      %p692 = pneg %p493
      %p693 = pneg %p517
      %p694 = pneg %p514
      %p695 = pneg %p543
      %p696 = pneg %p540
      %p697 = scmp.lt.s32.totalorder %s34, 1
      %s698 = scalar_select %p697, %s34, 1
      %s699 = smul.addr %s698, 8
      %s700 = scalar_lea.vmem %s23, %s699
      %s701 = smul.u32 32, %s34
      %p702 = scmp.lt.s32.totalorder %s701, 63
      %s703 = scalar_select %p702, %s701, 63
      %s704 = smul.addr %s703, 8
      %s705 = scalar_lea.vmem %s0, %s704
      %s706 = smul.u32 32, %s34
      %p707 = scmp.lt.s32.totalorder %s34, 1
      %s708 = scalar_select %p707, %s34, 1
      %s709 = smul.addr %s708, 8
      %s710 = scalar_lea.vmem %s23, %s709
      %v712 = vld [vmem:[%s705] sm:$0xff]
      %v713 = vld [vmem:[%s705 + $0x8] sm:$0xff]
      %v714 = vld [vmem:[%s705 + $0x10] sm:$0xff]
      %v715 = vld [vmem:[%s705 + $0x18] sm:$0xff]
      %v716 = vld [vmem:[%s705 + $0x20] sm:$0xff]
      %v717 = vld [vmem:[%s705 + $0x28] sm:$0xff]
      %v718 = vld [vmem:[%s705 + $0x30] sm:$0xff]
      %v719 = vld [vmem:[%s705 + $0x38] sm:$0xff]
      %v720 = vld [vmem:[%s705 + $0x40] sm:$0xff]
      %v721 = vld [vmem:[%s705 + $0x48] sm:$0xff]
      %v722 = vld [vmem:[%s705 + $0x50] sm:$0xff]
      %v723 = vld [vmem:[%s705 + $0x58] sm:$0xff]
      %v724 = vld [vmem:[%s705 + $0x60] sm:$0xff]
      %v725 = vld [vmem:[%s705 + $0x68] sm:$0xff]
      %v726 = vld [vmem:[%s705 + $0x70] sm:$0xff]
      %v727 = vld [vmem:[%s705 + $0x78] sm:$0xff]
      %v728 = vld [vmem:[%s705 + $0x80] sm:$0xff]
      %v729 = vld [vmem:[%s705 + $0x88] sm:$0xff]
      %v730 = vld [vmem:[%s705 + $0x90] sm:$0xff]
      %v731 = vld [vmem:[%s705 + $0x98] sm:$0xff]
      %v732 = vld [vmem:[%s705 + $0xa0] sm:$0xff]
      %v733 = vld [vmem:[%s705 + $0xa8] sm:$0xff]
      %v734 = vld [vmem:[%s705 + $0xb0] sm:$0xff]
      %v735 = vld [vmem:[%s705 + $0xb8] sm:$0xff]
      %v736 = vld [vmem:[%s705 + $0xc0] sm:$0xff]
      %v737 = vld [vmem:[%s705 + $0xc8] sm:$0xff]
      %v738 = vld [vmem:[%s705 + $0xd0] sm:$0xff]
      %v739 = vld [vmem:[%s705 + $0xd8] sm:$0xff]
      %v740 = vld [vmem:[%s705 + $0xe0] sm:$0xff]
      %v741 = vld [vmem:[%s705 + $0xe8] sm:$0xff]
      %v742 = vld [vmem:[%s705 + $0xf0] sm:$0xff]
      %v743 = vld [vmem:[%s705 + $0xf8] sm:$0xff]
      %v744 = vpack.c.bf16 %v713, %v712
      %v745 = vpack.c.bf16 %v715, %v714
      %v746 = vpack.c.bf16 %v717, %v716
      %v747 = vpack.c.bf16 %v719, %v718
      %v748 = vpack.c.bf16 %v721, %v720
      %v749 = vpack.c.bf16 %v723, %v722
      %v750 = vpack.c.bf16 %v725, %v724
      %v751 = vpack.c.bf16 %v727, %v726
      %v752 = vpack.c.bf16 %v729, %v728
      %v753 = vpack.c.bf16 %v731, %v730
      %v754 = vpack.c.bf16 %v733, %v732
      %v755 = vpack.c.bf16 %v735, %v734
      %v756 = vpack.c.bf16 %v737, %v736
      %v757 = vpack.c.bf16 %v739, %v738
      %v758 = vpack.c.bf16 %v741, %v740
      %v759 = vpack.c.bf16 %v743, %v742
      %v760 = vld [vmem:[%s1] sm:$0xf]
      %v761 = vld [vmem:[%s1 + $0x4] sm:$0xf]
      %v762 = vld [vmem:[%s1 + $0x8] sm:$0xf]
      %v763 = vld [vmem:[%s1 + $0xc] sm:$0x3]
      %v764 = vld [vmem:[%s2] sm:$0x1]
      %v766 = vperm.slane %v764, 0
      %v772 = vunpack.c.l.b16 %v760
      %v773 = vunpack.c.l.b16 %v761
      %v774 = vunpack.c.l.b16 %v762
      %v775 = vunpack.c.l.b16 %v763
      %v776 = vpack.c.b16 %v773, %v772
      %v777 = vpack.c.b16 %v775, %v774
      %vm779 = vcmask 220160
      %v781 = vsel %vm779, %v744, 0
      %v784 = vsel %vm779, %v745, 0
      %v787 = vsel %vm779, %v746, 0
      %v790 = vsel %vm779, %v747, 0
      %v793 = vsel %vm779, %v748, 0
      %v796 = vsel %vm779, %v749, 0
      %v799 = vsel %vm779, %v750, 0
      %v802 = vsel %vm779, %v751, 0
      %v805 = vsel %vm779, %v752, 0
      %v808 = vsel %vm779, %v753, 0
      %v811 = vsel %vm779, %v754, 0
      %v814 = vsel %vm779, %v755, 0
      %v817 = vsel %vm779, %v756, 0
      %v820 = vsel %vm779, %v757, 0
      %v823 = vsel %vm779, %v758, 0
      %v826 = vsel %vm779, %v759, 0
      %vm828 = vcmask 1044480
      %vm829 = vcmask 1045504
      %v830 = vsel %vm828, 4294967295, 65535
      %v831 = vsel %vm829, %v830, 0
      %v833 = vand.u32 %v777, %v831
      %835 = vmatpush.bf16.msra.mxu0 0
      %836 = vmatpush.bf16.msra.mxu0 0
      %837 = vmatpush.bf16.msra.mxu0 0
      %838 = vmatpush.bf16.msra.mxu0 0
      %839 = vmatpush.bf16.msra.mxu0 0
      %840 = vmatpush.bf16.msra.mxu0 0
      %841 = vmatpush.bf16.msra.mxu0 %v833
      %842 = vmatpush.bf16.msra.mxu0 %v776
      %843 = vmatmul.bf16.gmra.mxu0 %v781
      %v844 = vpop.f32.mrf.mxu0
      %v845 = vadd.f32 %v766, %v844
      %v846 = vpop.f32.mrf.mxu0
      %v847 = vadd.f32 %v766, %v846
      %848 = vmatmul.bf16.gmra.mxu0 %v784
      %v849 = vpop.f32.mrf.mxu0
      %v850 = vadd.f32 %v766, %v849
      %v851 = vpop.f32.mrf.mxu0
      %v852 = vadd.f32 %v766, %v851
      %853 = vmatmul.bf16.gmra.mxu0 %v787
      %v854 = vpop.f32.mrf.mxu0
      %v855 = vadd.f32 %v766, %v854
      %v856 = vpop.f32.mrf.mxu0
      %v857 = vadd.f32 %v766, %v856
      %858 = vmatmul.bf16.gmra.mxu0 %v790
      %v859 = vpop.f32.mrf.mxu0
      %v860 = vadd.f32 %v766, %v859
      %v861 = vpop.f32.mrf.mxu0
      %v862 = vadd.f32 %v766, %v861
      %863 = vmatmul.bf16.gmra.mxu0 %v793
      %v864 = vpop.f32.mrf.mxu0
      %v865 = vadd.f32 %v766, %v864
      %v866 = vpop.f32.mrf.mxu0
      %v867 = vadd.f32 %v766, %v866
      %868 = vmatmul.bf16.gmra.mxu0 %v796
      %v869 = vpop.f32.mrf.mxu0
      %v870 = vadd.f32 %v766, %v869
      %v871 = vpop.f32.mrf.mxu0
      %v872 = vadd.f32 %v766, %v871
      %873 = vmatmul.bf16.gmra.mxu0 %v799
      %v874 = vpop.f32.mrf.mxu0
      %v875 = vadd.f32 %v766, %v874
      %v876 = vpop.f32.mrf.mxu0
      %v877 = vadd.f32 %v766, %v876
      %878 = vmatmul.bf16.gmra.mxu0 %v802
      %v879 = vpop.f32.mrf.mxu0
      %v880 = vadd.f32 %v766, %v879
      %v881 = vpop.f32.mrf.mxu0
      %v882 = vadd.f32 %v766, %v881
      %883 = vmatmul.bf16.gmra.mxu0 %v805
      %v884 = vpop.f32.mrf.mxu0
      %v885 = vadd.f32 %v766, %v884
      %v886 = vpop.f32.mrf.mxu0
      %v887 = vadd.f32 %v766, %v886
      %888 = vmatmul.bf16.gmra.mxu0 %v808
      %v889 = vpop.f32.mrf.mxu0
      %v890 = vadd.f32 %v766, %v889
      %v891 = vpop.f32.mrf.mxu0
      %v892 = vadd.f32 %v766, %v891
      %893 = vmatmul.bf16.gmra.mxu0 %v811
      %v894 = vpop.f32.mrf.mxu0
      %v895 = vadd.f32 %v766, %v894
      %v896 = vpop.f32.mrf.mxu0
      %v897 = vadd.f32 %v766, %v896
      %898 = vmatmul.bf16.gmra.mxu0 %v814
      %v899 = vpop.f32.mrf.mxu0
      %v900 = vadd.f32 %v766, %v899
      %v901 = vpop.f32.mrf.mxu0
      %v902 = vadd.f32 %v766, %v901
      %903 = vmatmul.bf16.gmra.mxu0 %v817
      %v904 = vpop.f32.mrf.mxu0
      %v905 = vadd.f32 %v766, %v904
      %v906 = vpop.f32.mrf.mxu0
      %v907 = vadd.f32 %v766, %v906
      %908 = vmatmul.bf16.gmra.mxu0 %v820
      %v909 = vpop.f32.mrf.mxu0
      %v910 = vadd.f32 %v766, %v909
      %v911 = vpop.f32.mrf.mxu0
      %v912 = vadd.f32 %v766, %v911
      %913 = vmatmul.bf16.gmra.mxu0 %v823
      %v914 = vpop.f32.mrf.mxu0
      %v915 = vadd.f32 %v766, %v914
      %v916 = vpop.f32.mrf.mxu0
      %v917 = vadd.f32 %v766, %v916
      %918 = vmatmul.bf16.gmra.mxu0 %v826
      %v919 = vpop.f32.mrf.mxu0
      %v920 = vadd.f32 %v766, %v919
      %v921 = vpop.f32.mrf.mxu0
      %v922 = vadd.f32 %v766, %v921
      %923 = vdwg.mxu0
      %v924 = vmax.f32 %v845, 0.0
      %v925 = vmax.f32 %v847, 0.0
      %v926 = vmax.f32 %v850, 0.0
      %v927 = vmax.f32 %v852, 0.0
      %v928 = vmax.f32 %v855, 0.0
      %v929 = vmax.f32 %v857, 0.0
      %v930 = vmax.f32 %v860, 0.0
      %v931 = vmax.f32 %v862, 0.0
      %v932 = vmax.f32 %v865, 0.0
      %v933 = vmax.f32 %v867, 0.0
      %v934 = vmax.f32 %v870, 0.0
      %v935 = vmax.f32 %v872, 0.0
      %v936 = vmax.f32 %v875, 0.0
      %v937 = vmax.f32 %v877, 0.0
      %v938 = vmax.f32 %v880, 0.0
      %v939 = vmax.f32 %v882, 0.0
      %v940 = vmax.f32 %v885, 0.0
      %v941 = vmax.f32 %v887, 0.0
      %v942 = vmax.f32 %v890, 0.0
      %v943 = vmax.f32 %v892, 0.0
      %v944 = vmax.f32 %v895, 0.0
      %v945 = vmax.f32 %v897, 0.0
      %v946 = vmax.f32 %v900, 0.0
      %v947 = vmax.f32 %v902, 0.0
      %v948 = vmax.f32 %v905, 0.0
      %v949 = vmax.f32 %v907, 0.0
      %v950 = vmax.f32 %v910, 0.0
      %v951 = vmax.f32 %v912, 0.0
      %v952 = vmax.f32 %v915, 0.0
      %v953 = vmax.f32 %v917, 0.0
      %v954 = vmax.f32 %v920, 0.0
      %v955 = vmax.f32 %v922, 0.0
      %vm956 = vcmask 130048
      %957 = vst.msk [vmem:[#allocation2] sm:$0xff] %vm956, 0.0
      %958 = vst.msk [vmem:[#allocation2 + $0x8] sm:$0xff] %vm956, 0.0
      %959 = vst.msk [vmem:[#allocation2 + $0x10] sm:$0xff] %vm956, 0.0
      %960 = vst.msk [vmem:[#allocation2 + $0x18] sm:$0xff] %vm956, 0.0
      %961 = vst.msk [vmem:[#allocation2 + $0x20] sm:$0xff] %vm956, 0.0
      %962 = vst.msk [vmem:[#allocation2 + $0x28] sm:$0xff] %vm956, 0.0
      %963 = vst.msk [vmem:[#allocation2 + $0x30] sm:$0xff] %vm956, 0.0
      %964 = vst.msk [vmem:[#allocation2 + $0x38] sm:$0xff] %vm956, 0.0
      %965 = vst.msk [vmem:[#allocation2 + $0x40] sm:$0xff] %vm956, 0.0
      %966 = vst.msk [vmem:[#allocation2 + $0x48] sm:$0xff] %vm956, 0.0
      %967 = vst.msk [vmem:[#allocation2 + $0x50] sm:$0xff] %vm956, 0.0
      %968 = vst.msk [vmem:[#allocation2 + $0x58] sm:$0xff] %vm956, 0.0
      %969 = vst.msk [vmem:[#allocation2 + $0x60] sm:$0xff] %vm956, 0.0
      %970 = vst.msk [vmem:[#allocation2 + $0x68] sm:$0xff] %vm956, 0.0
      %971 = vst.msk [vmem:[#allocation2 + $0x70] sm:$0xff] %vm956, 0.0
      %972 = vst.msk [vmem:[#allocation2 + $0x78] sm:$0xff] %vm956, 0.0
      %973 = vst.msk [vmem:[#allocation2 + $0x80] sm:$0xff] %vm956, 0.0
      %974 = vst.msk [vmem:[#allocation2 + $0x88] sm:$0xff] %vm956, 0.0
      %975 = vst.msk [vmem:[#allocation2 + $0x90] sm:$0xff] %vm956, 0.0
      %976 = vst.msk [vmem:[#allocation2 + $0x98] sm:$0xff] %vm956, 0.0
      %977 = vst.msk [vmem:[#allocation2 + $0xa0] sm:$0xff] %vm956, 0.0
      %978 = vst.msk [vmem:[#allocation2 + $0xa8] sm:$0xff] %vm956, 0.0
      %979 = vst.msk [vmem:[#allocation2 + $0xb0] sm:$0xff] %vm956, 0.0
      %980 = vst.msk [vmem:[#allocation2 + $0xb8] sm:$0xff] %vm956, 0.0
      %981 = vst.msk [vmem:[#allocation2 + $0xc0] sm:$0xff] %vm956, 0.0
      %982 = vst.msk [vmem:[#allocation2 + $0xc8] sm:$0xff] %vm956, 0.0
      %983 = vst.msk [vmem:[#allocation2 + $0xd0] sm:$0xff] %vm956, 0.0
      %984 = vst.msk [vmem:[#allocation2 + $0xd8] sm:$0xff] %vm956, 0.0
      %985 = vst.msk [vmem:[#allocation2 + $0xe0] sm:$0xff] %vm956, 0.0
      %986 = vst.msk [vmem:[#allocation2 + $0xe8] sm:$0xff] %vm956, 0.0
      %987 = vst.msk [vmem:[#allocation2 + $0xf0] sm:$0xff] %vm956, 0.0
      %988 = vst.msk [vmem:[#allocation2 + $0xf8] sm:$0xff] %vm956, 0.0
      %989 = vst.msk [vmem:[#allocation2 + $0x100] sm:$0xff] %vm956, 0.0
      %990 = vst.msk [vmem:[#allocation2 + $0x108] sm:$0xff] %vm956, 0.0
      %991 = vst.msk [vmem:[#allocation2 + $0x110] sm:$0xff] %vm956, 0.0
      %992 = vst.msk [vmem:[#allocation2 + $0x118] sm:$0xff] %vm956, 0.0
      %993 = vst.msk [vmem:[#allocation2 + $0x120] sm:$0xff] %vm956, 0.0
      %994 = vst.msk [vmem:[#allocation2 + $0x128] sm:$0xff] %vm956, 0.0
      %995 = vst.msk [vmem:[#allocation2 + $0x130] sm:$0xff] %vm956, 0.0
      %996 = vst.msk [vmem:[#allocation2 + $0x138] sm:$0xff] %vm956, 0.0
      %vm997 = vcmask 125952
      %998 = vst.msk [vmem:[#allocation2 + $0x140] sm:$0xf] %vm997, 0.0
      %999 = vst.msk [vmem:[#allocation2 + $0x13] sm:$0xff] %vm956, %v924
      %1000 = vst.msk [vmem:[#allocation2 + $0x1b] sm:$0xff] %vm956, %v925
      %1001 = vst.msk [vmem:[#allocation2 + $0x25] sm:$0xff] %vm956, %v926
      %1002 = vst.msk [vmem:[#allocation2 + $0x2d] sm:$0xff] %vm956, %v927
      %1003 = vst.msk [vmem:[#allocation2 + $0x37] sm:$0xff] %vm956, %v928
      %1004 = vst.msk [vmem:[#allocation2 + $0x3f] sm:$0xff] %vm956, %v929
      %1005 = vst.msk [vmem:[#allocation2 + $0x49] sm:$0xff] %vm956, %v930
      %1006 = vst.msk [vmem:[#allocation2 + $0x51] sm:$0xff] %vm956, %v931
      %1007 = vst.msk [vmem:[#allocation2 + $0x5b] sm:$0xff] %vm956, %v932
      %1008 = vst.msk [vmem:[#allocation2 + $0x63] sm:$0xff] %vm956, %v933
      %1009 = vst.msk [vmem:[#allocation2 + $0x6d] sm:$0xff] %vm956, %v934
      %1010 = vst.msk [vmem:[#allocation2 + $0x75] sm:$0xff] %vm956, %v935
      %1011 = vst.msk [vmem:[#allocation2 + $0x7f] sm:$0xff] %vm956, %v936
      %1012 = vst.msk [vmem:[#allocation2 + $0x87] sm:$0xff] %vm956, %v937
      %1013 = vst.msk [vmem:[#allocation2 + $0x91] sm:$0xff] %vm956, %v938
      %1014 = vst.msk [vmem:[#allocation2 + $0x99] sm:$0xff] %vm956, %v939
      %1015 = vst.msk [vmem:[#allocation2 + $0xa3] sm:$0xff] %vm956, %v940
      %1016 = vst.msk [vmem:[#allocation2 + $0xab] sm:$0xff] %vm956, %v941
      %1017 = vst.msk [vmem:[#allocation2 + $0xb5] sm:$0xff] %vm956, %v942
      %1018 = vst.msk [vmem:[#allocation2 + $0xbd] sm:$0xff] %vm956, %v943
      %1019 = vst.msk [vmem:[#allocation2 + $0xc7] sm:$0xff] %vm956, %v944
      %1020 = vst.msk [vmem:[#allocation2 + $0xcf] sm:$0xff] %vm956, %v945
      %1021 = vst.msk [vmem:[#allocation2 + $0xd9] sm:$0xff] %vm956, %v946
      %1022 = vst.msk [vmem:[#allocation2 + $0xe1] sm:$0xff] %vm956, %v947
      %1023 = vst.msk [vmem:[#allocation2 + $0xeb] sm:$0xff] %vm956, %v948
      %1024 = vst.msk [vmem:[#allocation2 + $0xf3] sm:$0xff] %vm956, %v949
      %1025 = vst.msk [vmem:[#allocation2 + $0xfd] sm:$0xff] %vm956, %v950
      %1026 = vst.msk [vmem:[#allocation2 + $0x105] sm:$0xff] %vm956, %v951
      %1027 = vst.msk [vmem:[#allocation2 + $0x10f] sm:$0xff] %vm956, %v952
      %1028 = vst.msk [vmem:[#allocation2 + $0x117] sm:$0xff] %vm956, %v953
      %1029 = vst.msk [vmem:[#allocation2 + $0x121] sm:$0xff] %vm956, %v954
      %1030 = vst.msk [vmem:[#allocation2 + $0x129] sm:$0xff] %vm956, %v955
      %v1031 = vld [vmem:[#allocation2] ss:$2 sm:$0xff]
      %1032 = vst.msk [vmem:[#allocation3] sm:$0xff] %vm956, %v1031
      %s1033 = scalar_lea.vmem [#allocation2], 36
      %v1034 = vld [vmem:[%s1033] ss:$2 sm:$0xff]
      %1035 = vst.msk [vmem:[#allocation3 + $0x48] sm:$0xff] %vm956, %v1034
      %s1036 = scalar_lea.vmem [#allocation2], 72
      %v1037 = vld [vmem:[%s1036] ss:$2 sm:$0xff]
      %1038 = vst.msk [vmem:[#allocation3 + $0x90] sm:$0xff] %vm956, %v1037
      %s1039 = scalar_lea.vmem [#allocation2], 108
      %v1040 = vld [vmem:[%s1039] ss:$2 sm:$0xff]
      %1041 = vst.msk [vmem:[#allocation3 + $0xd8] sm:$0xff] %vm956, %v1040
      %s1042 = scalar_lea.vmem [#allocation2], 144
      %v1043 = vld [vmem:[%s1042] ss:$2 sm:$0xff]
      %1044 = vst.msk [vmem:[#allocation3 + $0x120] sm:$0xff] %vm956, %v1043
      %s1045 = scalar_lea.vmem [#allocation2], 180
      %v1046 = vld [vmem:[%s1045] ss:$2 sm:$0xff]
      %1047 = vst.msk [vmem:[#allocation3 + $0x168] sm:$0xff] %vm956, %v1046
      %s1048 = scalar_lea.vmem [#allocation2], 216
      %v1049 = vld [vmem:[%s1048] ss:$2 sm:$0xff]
      %1050 = vst.msk [vmem:[#allocation3 + $0x1b0] sm:$0xff] %vm956, %v1049
      %s1051 = scalar_lea.vmem [#allocation2], 252
      %v1052 = vld [vmem:[%s1051] ss:$2 sm:$0xff]
      %1053 = vst.msk [vmem:[#allocation3 + $0x1f8] sm:$0xff] %vm956, %v1052
      %s1054 = scalar_lea.vmem [#allocation2], 1
      %v1055 = vld [vmem:[%s1054] ss:$2 sm:$0xff]
      %1057 = vrot.lane.b32.xlu0 %v1055, 16
      %v1058 = vpop.permute.xlu0 %1057
      %vm1060 = vcmask 261248
      %1061 = vst.msk [vmem:[#allocation3] sm:$0xff] %vm1060, %v1058
      %s1062 = scalar_lea.vmem [#allocation2], 37
      %v1063 = vld [vmem:[%s1062] ss:$2 sm:$0xff]
      %1065 = vrot.lane.b32.xlu0 %v1063, 16
      %v1066 = vpop.permute.xlu0 %1065
      %1068 = vst.msk [vmem:[#allocation3 + $0x48] sm:$0xff] %vm1060, %v1066
      %s1069 = scalar_lea.vmem [#allocation2], 73
      %v1070 = vld [vmem:[%s1069] ss:$2 sm:$0xff]
      %1072 = vrot.lane.b32.xlu0 %v1070, 16
      %v1073 = vpop.permute.xlu0 %1072
      %1075 = vst.msk [vmem:[#allocation3 + $0x90] sm:$0xff] %vm1060, %v1073
      %s1076 = scalar_lea.vmem [#allocation2], 109
      %v1077 = vld [vmem:[%s1076] ss:$2 sm:$0xff]
      %1079 = vrot.lane.b32.xlu0 %v1077, 16
      %v1080 = vpop.permute.xlu0 %1079
      %1082 = vst.msk [vmem:[#allocation3 + $0xd8] sm:$0xff] %vm1060, %v1080
      %s1083 = scalar_lea.vmem [#allocation2], 145
      %v1084 = vld [vmem:[%s1083] ss:$2 sm:$0xff]
      %1086 = vrot.lane.b32.xlu0 %v1084, 16
      %v1087 = vpop.permute.xlu0 %1086
      %1089 = vst.msk [vmem:[#allocation3 + $0x120] sm:$0xff] %vm1060, %v1087
      %s1090 = scalar_lea.vmem [#allocation2], 181
      %v1091 = vld [vmem:[%s1090] ss:$2 sm:$0xff]
      %1093 = vrot.lane.b32.xlu0 %v1091, 16
      %v1094 = vpop.permute.xlu0 %1093
      %1096 = vst.msk [vmem:[#allocation3 + $0x168] sm:$0xff] %vm1060, %v1094
      %s1097 = scalar_lea.vmem [#allocation2], 217
      %v1098 = vld [vmem:[%s1097] ss:$2 sm:$0xff]
      %1100 = vrot.lane.b32.xlu0 %v1098, 16
      %v1101 = vpop.permute.xlu0 %1100
      %1103 = vst.msk [vmem:[#allocation3 + $0x1b0] sm:$0xff] %vm1060, %v1101
      %s1104 = scalar_lea.vmem [#allocation2], 253
      %v1105 = vld [vmem:[%s1104] ss:$2 sm:$0xff]
      %1107 = vrot.lane.b32.xlu0 %v1105, 16
      %v1108 = vpop.permute.xlu0 %1107
      %1110 = vst.msk [vmem:[#allocation3 + $0x1f8] sm:$0xff] %vm1060, %v1108
      %s1111 = scalar_lea.vmem [#allocation2], 2
      %v1112 = vld [vmem:[%s1111] ss:$2 sm:$0xff]
      %1114 = vrot.lane.b32.xlu0 %v1112, 32
      %v1115 = vpop.permute.xlu0 %1114
      %vm1117 = vcmask 392448
      %1118 = vst.msk [vmem:[#allocation3] sm:$0xff] %vm1117, %v1115
      %s1119 = scalar_lea.vmem [#allocation2], 38
      %v1120 = vld [vmem:[%s1119] ss:$2 sm:$0xff]
      %1122 = vrot.lane.b32.xlu0 %v1120, 32
      %v1123 = vpop.permute.xlu0 %1122
      %1125 = vst.msk [vmem:[#allocation3 + $0x48] sm:$0xff] %vm1117, %v1123
      %s1126 = scalar_lea.vmem [#allocation2], 74
      %v1127 = vld [vmem:[%s1126] ss:$2 sm:$0xff]
      %1129 = vrot.lane.b32.xlu0 %v1127, 32
      %v1130 = vpop.permute.xlu0 %1129
      %1132 = vst.msk [vmem:[#allocation3 + $0x90] sm:$0xff] %vm1117, %v1130
      %s1133 = scalar_lea.vmem [#allocation2], 110
      %v1134 = vld [vmem:[%s1133] ss:$2 sm:$0xff]
      %1136 = vrot.lane.b32.xlu0 %v1134, 32
      %v1137 = vpop.permute.xlu0 %1136
      %1139 = vst.msk [vmem:[#allocation3 + $0xd8] sm:$0xff] %vm1117, %v1137
      %s1140 = scalar_lea.vmem [#allocation2], 146
      %v1141 = vld [vmem:[%s1140] ss:$2 sm:$0xff]
      %1143 = vrot.lane.b32.xlu0 %v1141, 32
      %v1144 = vpop.permute.xlu0 %1143
      %1146 = vst.msk [vmem:[#allocation3 + $0x120] sm:$0xff] %vm1117, %v1144
      %s1147 = scalar_lea.vmem [#allocation2], 182
      %v1148 = vld [vmem:[%s1147] ss:$2 sm:$0xff]
      %1150 = vrot.lane.b32.xlu0 %v1148, 32
      %v1151 = vpop.permute.xlu0 %1150
      %1153 = vst.msk [vmem:[#allocation3 + $0x168] sm:$0xff] %vm1117, %v1151
      %s1154 = scalar_lea.vmem [#allocation2], 218
      %v1155 = vld [vmem:[%s1154] ss:$2 sm:$0xff]
      %1157 = vrot.lane.b32.xlu0 %v1155, 32
      %v1158 = vpop.permute.xlu0 %1157
      %1160 = vst.msk [vmem:[#allocation3 + $0x1b0] sm:$0xff] %vm1117, %v1158
      %s1161 = scalar_lea.vmem [#allocation2], 254
      %v1162 = vld [vmem:[%s1161] ss:$2 sm:$0xff]
      %1164 = vrot.lane.b32.xlu0 %v1162, 32
      %v1165 = vpop.permute.xlu0 %1164
      %1167 = vst.msk [vmem:[#allocation3 + $0x1f8] sm:$0xff] %vm1117, %v1165
      %s1168 = scalar_lea.vmem [#allocation2], 18
      %v1169 = vld [vmem:[%s1168] ss:$2 sm:$0xff]
      %1171 = vrot.lane.b32.xlu0 %v1169, 48
      %v1172 = vpop.permute.xlu0 %1171
      %vm1174 = vcmask 523648
      %1175 = vst.msk [vmem:[#allocation3] sm:$0xff] %vm1174, %v1172
      %s1176 = scalar_lea.vmem [#allocation2], 54
      %v1177 = vld [vmem:[%s1176] ss:$2 sm:$0xff]
      %1179 = vrot.lane.b32.xlu0 %v1177, 48
      %v1180 = vpop.permute.xlu0 %1179
      %1182 = vst.msk [vmem:[#allocation3 + $0x48] sm:$0xff] %vm1174, %v1180
      %s1183 = scalar_lea.vmem [#allocation2], 90
      %v1184 = vld [vmem:[%s1183] ss:$2 sm:$0xff]
      %1186 = vrot.lane.b32.xlu0 %v1184, 48
      %v1187 = vpop.permute.xlu0 %1186
      %1189 = vst.msk [vmem:[#allocation3 + $0x90] sm:$0xff] %vm1174, %v1187
      %s1190 = scalar_lea.vmem [#allocation2], 126
      %v1191 = vld [vmem:[%s1190] ss:$2 sm:$0xff]
      %1193 = vrot.lane.b32.xlu0 %v1191, 48
      %v1194 = vpop.permute.xlu0 %1193
      %1196 = vst.msk [vmem:[#allocation3 + $0xd8] sm:$0xff] %vm1174, %v1194
      %s1197 = scalar_lea.vmem [#allocation2], 162
      %v1198 = vld [vmem:[%s1197] ss:$2 sm:$0xff]
      %1200 = vrot.lane.b32.xlu0 %v1198, 48
      %v1201 = vpop.permute.xlu0 %1200
      %1203 = vst.msk [vmem:[#allocation3 + $0x120] sm:$0xff] %vm1174, %v1201
      %s1204 = scalar_lea.vmem [#allocation2], 198
      %v1205 = vld [vmem:[%s1204] ss:$2 sm:$0xff]
      %1207 = vrot.lane.b32.xlu0 %v1205, 48
      %v1208 = vpop.permute.xlu0 %1207
      %1210 = vst.msk [vmem:[#allocation3 + $0x168] sm:$0xff] %vm1174, %v1208
      %s1211 = scalar_lea.vmem [#allocation2], 234
      %v1212 = vld [vmem:[%s1211] ss:$2 sm:$0xff]
      %1214 = vrot.lane.b32.xlu0 %v1212, 48
      %v1215 = vpop.permute.xlu0 %1214
      %1217 = vst.msk [vmem:[#allocation3 + $0x1b0] sm:$0xff] %vm1174, %v1215
      %s1218 = scalar_lea.vmem [#allocation2], 270
      %v1219 = vld [vmem:[%s1218] ss:$2 sm:$0xff]
      %1221 = vrot.lane.b32.xlu0 %v1219, 48
      %v1222 = vpop.permute.xlu0 %1221
      %1224 = vst.msk [vmem:[#allocation3 + $0x1f8] sm:$0xff] %vm1174, %v1222
      %s1225 = scalar_lea.vmem [#allocation2], 19
      %v1226 = vld [vmem:[%s1225] ss:$2 sm:$0xff]
      %1228 = vrot.lane.b32.xlu0 %v1226, 64
      %v1229 = vpop.permute.xlu0 %1228
      %vm1231 = vcmask 654848
      %1232 = vst.msk [vmem:[#allocation3] sm:$0xff] %vm1231, %v1229
      %s1233 = scalar_lea.vmem [#allocation2], 55
      %v1234 = vld [vmem:[%s1233] ss:$2 sm:$0xff]
      %1236 = vrot.lane.b32.xlu0 %v1234, 64
      %v1237 = vpop.permute.xlu0 %1236
      %1239 = vst.msk [vmem:[#allocation3 + $0x48] sm:$0xff] %vm1231, %v1237
      %s1240 = scalar_lea.vmem [#allocation2], 91
      %v1241 = vld [vmem:[%s1240] ss:$2 sm:$0xff]
      %1243 = vrot.lane.b32.xlu0 %v1241, 64
      %v1244 = vpop.permute.xlu0 %1243
      %1246 = vst.msk [vmem:[#allocation3 + $0x90] sm:$0xff] %vm1231, %v1244
      %s1247 = scalar_lea.vmem [#allocation2], 127
      %v1248 = vld [vmem:[%s1247] ss:$2 sm:$0xff]
      %1250 = vrot.lane.b32.xlu0 %v1248, 64
      %v1251 = vpop.permute.xlu0 %1250
      %1253 = vst.msk [vmem:[#allocation3 + $0xd8] sm:$0xff] %vm1231, %v1251
      %s1254 = scalar_lea.vmem [#allocation2], 163
      %v1255 = vld [vmem:[%s1254] ss:$2 sm:$0xff]
      %1257 = vrot.lane.b32.xlu0 %v1255, 64
      %v1258 = vpop.permute.xlu0 %1257
      %1260 = vst.msk [vmem:[#allocation3 + $0x120] sm:$0xff] %vm1231, %v1258
      %s1261 = scalar_lea.vmem [#allocation2], 199
      %v1262 = vld [vmem:[%s1261] ss:$2 sm:$0xff]
      %1264 = vrot.lane.b32.xlu0 %v1262, 64
      %v1265 = vpop.permute.xlu0 %1264
      %1267 = vst.msk [vmem:[#allocation3 + $0x168] sm:$0xff] %vm1231, %v1265
      %s1268 = scalar_lea.vmem [#allocation2], 235
      %v1269 = vld [vmem:[%s1268] ss:$2 sm:$0xff]
      %1271 = vrot.lane.b32.xlu0 %v1269, 64
      %v1272 = vpop.permute.xlu0 %1271
      %1274 = vst.msk [vmem:[#allocation3 + $0x1b0] sm:$0xff] %vm1231, %v1272
      %s1275 = scalar_lea.vmem [#allocation2], 271
      %v1276 = vld [vmem:[%s1275] ss:$2 sm:$0xff]
      %1278 = vrot.lane.b32.xlu0 %v1276, 64
      %v1279 = vpop.permute.xlu0 %1278
      %1281 = vst.msk [vmem:[#allocation3 + $0x1f8] sm:$0xff] %vm1231, %v1279
      %s1282 = scalar_lea.vmem [#allocation2], 20
      %v1283 = vld [vmem:[%s1282] ss:$2 sm:$0xff]
      %1285 = vrot.lane.b32.xlu0 %v1283, 80
      %v1286 = vpop.permute.xlu0 %1285
      %vm1288 = vcmask 786048
      %1289 = vst.msk [vmem:[#allocation3] sm:$0xff] %vm1288, %v1286
      %s1290 = scalar_lea.vmem [#allocation2], 56
      %v1291 = vld [vmem:[%s1290] ss:$2 sm:$0xff]
      %1293 = vrot.lane.b32.xlu0 %v1291, 80
      %v1294 = vpop.permute.xlu0 %1293
      %1296 = vst.msk [vmem:[#allocation3 + $0x48] sm:$0xff] %vm1288, %v1294
      %s1297 = scalar_lea.vmem [#allocation2], 92
      %v1298 = vld [vmem:[%s1297] ss:$2 sm:$0xff]
      %1300 = vrot.lane.b32.xlu0 %v1298, 80
      %v1301 = vpop.permute.xlu0 %1300
      %1303 = vst.msk [vmem:[#allocation3 + $0x90] sm:$0xff] %vm1288, %v1301
      %s1304 = scalar_lea.vmem [#allocation2], 128
      %v1305 = vld [vmem:[%s1304] ss:$2 sm:$0xff]
      %1307 = vrot.lane.b32.xlu0 %v1305, 80
      %v1308 = vpop.permute.xlu0 %1307
      %1310 = vst.msk [vmem:[#allocation3 + $0xd8] sm:$0xff] %vm1288, %v1308
      %s1311 = scalar_lea.vmem [#allocation2], 164
      %v1312 = vld [vmem:[%s1311] ss:$2 sm:$0xff]
      %1314 = vrot.lane.b32.xlu0 %v1312, 80
      %v1315 = vpop.permute.xlu0 %1314
      %1317 = vst.msk [vmem:[#allocation3 + $0x120] sm:$0xff] %vm1288, %v1315
      %s1318 = scalar_lea.vmem [#allocation2], 200
      %v1319 = vld [vmem:[%s1318] ss:$2 sm:$0xff]
      %1321 = vrot.lane.b32.xlu0 %v1319, 80
      %v1322 = vpop.permute.xlu0 %1321
      %1324 = vst.msk [vmem:[#allocation3 + $0x168] sm:$0xff] %vm1288, %v1322
      %s1325 = scalar_lea.vmem [#allocation2], 236
      %v1326 = vld [vmem:[%s1325] ss:$2 sm:$0xff]
      %1328 = vrot.lane.b32.xlu0 %v1326, 80
      %v1329 = vpop.permute.xlu0 %1328
      %1331 = vst.msk [vmem:[#allocation3 + $0x1b0] sm:$0xff] %vm1288, %v1329
      %s1332 = scalar_lea.vmem [#allocation2], 272
      %v1333 = vld [vmem:[%s1332] ss:$2 sm:$0xff]
      %1335 = vrot.lane.b32.xlu0 %v1333, 80
      %v1336 = vpop.permute.xlu0 %1335
      %1338 = vst.msk [vmem:[#allocation3 + $0x1f8] sm:$0xff] %vm1288, %v1336
      %v1339 = vld [vmem:[%s1033] ss:$2 sm:$0xff]
      %1341 = vrot.lane.b32.xlu0 %v1339, 96
      %v1342 = vpop.permute.xlu0 %1341
      %vm1344 = vcmask 917248
      %1345 = vst.msk [vmem:[#allocation3] sm:$0xff] %vm1344, %v1342
      %v1346 = vld [vmem:[%s1036] ss:$2 sm:$0xff]
      %1348 = vrot.lane.b32.xlu0 %v1346, 96
      %v1349 = vpop.permute.xlu0 %1348
      %1351 = vst.msk [vmem:[#allocation3 + $0x48] sm:$0xff] %vm1344, %v1349
      %v1352 = vld [vmem:[%s1039] ss:$2 sm:$0xff]
      %1354 = vrot.lane.b32.xlu0 %v1352, 96
      %v1355 = vpop.permute.xlu0 %1354
      %1357 = vst.msk [vmem:[#allocation3 + $0x90] sm:$0xff] %vm1344, %v1355
      %v1358 = vld [vmem:[%s1042] ss:$2 sm:$0xff]
      %1360 = vrot.lane.b32.xlu0 %v1358, 96
      %v1361 = vpop.permute.xlu0 %1360
      %1363 = vst.msk [vmem:[#allocation3 + $0xd8] sm:$0xff] %vm1344, %v1361
      %v1364 = vld [vmem:[%s1045] ss:$2 sm:$0xff]
      %1366 = vrot.lane.b32.xlu0 %v1364, 96
      %v1367 = vpop.permute.xlu0 %1366
      %1369 = vst.msk [vmem:[#allocation3 + $0x120] sm:$0xff] %vm1344, %v1367
      %v1370 = vld [vmem:[%s1048] ss:$2 sm:$0xff]
      %1372 = vrot.lane.b32.xlu0 %v1370, 96
      %v1373 = vpop.permute.xlu0 %1372
      %1375 = vst.msk [vmem:[#allocation3 + $0x168] sm:$0xff] %vm1344, %v1373
      %v1376 = vld [vmem:[%s1051] ss:$2 sm:$0xff]
      %1378 = vrot.lane.b32.xlu0 %v1376, 96
      %v1379 = vpop.permute.xlu0 %1378
      %1381 = vst.msk [vmem:[#allocation3 + $0x1b0] sm:$0xff] %vm1344, %v1379
      %s1382 = scalar_lea.vmem [#allocation2], 288
      %v1383 = vld [vmem:[%s1382] ss:$2 sm:$0xff]
      %1385 = vrot.lane.b32.xlu0 %v1383, 96
      %v1386 = vpop.permute.xlu0 %1385
      %1388 = vst.msk [vmem:[#allocation3 + $0x1f8] sm:$0xff] %vm1344, %v1386
      %v1389 = vld [vmem:[%s1062] ss:$2 sm:$0xff]
      %1391 = vrot.lane.b32.xlu0 %v1389, 112
      %v1392 = vpop.permute.xlu0 %1391
      %vm1394 = vcmask 1048448
      %1395 = vst.msk [vmem:[#allocation3] sm:$0xff] %vm1394, %v1392
      %v1396 = vld [vmem:[%s1069] ss:$2 sm:$0xff]
      %1398 = vrot.lane.b32.xlu0 %v1396, 112
      %v1399 = vpop.permute.xlu0 %1398
      %1401 = vst.msk [vmem:[#allocation3 + $0x48] sm:$0xff] %vm1394, %v1399
      %v1402 = vld [vmem:[%s1076] ss:$2 sm:$0xff]
      %1404 = vrot.lane.b32.xlu0 %v1402, 112
      %v1405 = vpop.permute.xlu0 %1404
      %1407 = vst.msk [vmem:[#allocation3 + $0x90] sm:$0xff] %vm1394, %v1405
      %v1408 = vld [vmem:[%s1083] ss:$2 sm:$0xff]
      %1410 = vrot.lane.b32.xlu0 %v1408, 112
      %v1411 = vpop.permute.xlu0 %1410
      %1413 = vst.msk [vmem:[#allocation3 + $0xd8] sm:$0xff] %vm1394, %v1411
      %v1414 = vld [vmem:[%s1090] ss:$2 sm:$0xff]
      %1416 = vrot.lane.b32.xlu0 %v1414, 112
      %v1417 = vpop.permute.xlu0 %1416
      %1419 = vst.msk [vmem:[#allocation3 + $0x120] sm:$0xff] %vm1394, %v1417
      %v1420 = vld [vmem:[%s1097] ss:$2 sm:$0xff]
      %1422 = vrot.lane.b32.xlu0 %v1420, 112
      %v1423 = vpop.permute.xlu0 %1422
      %1425 = vst.msk [vmem:[#allocation3 + $0x168] sm:$0xff] %vm1394, %v1423
      %v1426 = vld [vmem:[%s1104] ss:$2 sm:$0xff]
      %1428 = vrot.lane.b32.xlu0 %v1426, 112
      %v1429 = vpop.permute.xlu0 %1428
      %1431 = vst.msk [vmem:[#allocation3 + $0x1b0] sm:$0xff] %vm1394, %v1429
      %s1432 = scalar_lea.vmem [#allocation2], 289
      %v1433 = vld [vmem:[%s1432] ss:$2 sm:$0xff]
      %1435 = vrot.lane.b32.xlu0 %v1433, 112
      %v1436 = vpop.permute.xlu0 %1435
      %1438 = vst.msk [vmem:[#allocation3 + $0x1f8] sm:$0xff] %vm1394, %v1436
      %v1439 = vld [vmem:[%s1119] ss:$2 sm:$0xff]
      %1440 = vst.msk [vmem:[#allocation3 + $0x8] sm:$0xff] %vm956, %v1439
      %v1441 = vld [vmem:[%s1126] ss:$2 sm:$0xff]
      %1442 = vst.msk [vmem:[#allocation3 + $0x50] sm:$0xff] %vm956, %v1441
      %v1443 = vld [vmem:[%s1133] ss:$2 sm:$0xff]
      %1444 = vst.msk [vmem:[#allocation3 + $0x98] sm:$0xff] %vm956, %v1443
      %v1445 = vld [vmem:[%s1140] ss:$2 sm:$0xff]
      %1446 = vst.msk [vmem:[#allocation3 + $0xe0] sm:$0xff] %vm956, %v1445
      %v1447 = vld [vmem:[%s1147] ss:$2 sm:$0xff]
      %1448 = vst.msk [vmem:[#allocation3 + $0x128] sm:$0xff] %vm956, %v1447
      %v1449 = vld [vmem:[%s1154] ss:$2 sm:$0xff]
      %1450 = vst.msk [vmem:[#allocation3 + $0x170] sm:$0xff] %vm956, %v1449
      %v1451 = vld [vmem:[%s1161] ss:$2 sm:$0xff]
      %1452 = vst.msk [vmem:[#allocation3 + $0x1b8] sm:$0xff] %vm956, %v1451
      %s1453 = scalar_lea.vmem [#allocation2], 290
      %v1454 = vld [vmem:[%s1453] ss:$2 sm:$0xff]
      %1455 = vst.msk [vmem:[#allocation3 + $0x200] sm:$0xff] %vm956, %v1454
      %v1456 = vld [vmem:[#allocation3] sm:$0xff]
      %v1457 = vld [vmem:[#allocation3 + $0x8] sm:$0xff]
      %v1458 = vld [vmem:[#allocation3 + $0x48] sm:$0xff]
      %v1459 = vld [vmem:[#allocation3 + $0x50] sm:$0xff]
      %v1460 = vld [vmem:[#allocation3 + $0x90] sm:$0xff]
      %v1461 = vld [vmem:[#allocation3 + $0x98] sm:$0xff]
      %v1462 = vld [vmem:[#allocation3 + $0xd8] sm:$0xff]
      %v1463 = vld [vmem:[#allocation3 + $0xe0] sm:$0xff]
      %v1464 = vld [vmem:[#allocation3 + $0x120] sm:$0xff]
      %v1465 = vld [vmem:[#allocation3 + $0x128] sm:$0xff]
      %v1466 = vld [vmem:[#allocation3 + $0x168] sm:$0xff]
      %v1467 = vld [vmem:[#allocation3 + $0x170] sm:$0xff]
      %v1468 = vld [vmem:[#allocation3 + $0x1b0] sm:$0xff]
      %v1469 = vld [vmem:[#allocation3 + $0x1b8] sm:$0xff]
      %v1470 = vld [vmem:[#allocation3 + $0x1f8] sm:$0xff]
      %v1471 = vld [vmem:[#allocation3 + $0x200] sm:$0xff]
      %v1472 = vpack.c.bf16 %v1458, %v1456
      %v1473 = vpack.c.bf16 %v1459, %v1457
      %v1474 = vpack.c.bf16 %v1462, %v1460
      %v1475 = vpack.c.bf16 %v1463, %v1461
      %v1476 = vpack.c.bf16 %v1466, %v1464
      %v1477 = vpack.c.bf16 %v1467, %v1465
      %v1478 = vpack.c.bf16 %v1470, %v1468
      %v1479 = vpack.c.bf16 %v1471, %v1469
      %v1480 = vld [vmem:[%s3] sm:$0xf]
      %v1481 = vld [vmem:[%s3 + $0x4] sm:$0xf]
      %v1482 = vld [vmem:[%s3 + $0x8] sm:$0xf]
      %v1483 = vld [vmem:[%s3 + $0xc] sm:$0xf]
      %v1484 = vld [vmem:[%s3 + $0x10] sm:$0xf]
      %v1485 = vld [vmem:[%s3 + $0x14] sm:$0xf]
      %v1486 = vld [vmem:[%s3 + $0x18] sm:$0xf]
      %v1487 = vld [vmem:[%s3 + $0x1c] sm:$0xf]
      %v1488 = vld [vmem:[%s3 + $0x20] sm:$0xf]
      %v1489 = vld [vmem:[%s3 + $0x24] sm:$0xf]
      %v1490 = vld [vmem:[%s3 + $0x28] sm:$0xf]
      %v1491 = vld [vmem:[%s3 + $0x2c] sm:$0xf]
      %v1492 = vld [vmem:[%s3 + $0x30] sm:$0xf]
      %v1493 = vld [vmem:[%s3 + $0x34] sm:$0xf]
      %v1494 = vld [vmem:[%s3 + $0x38] sm:$0xf]
      %v1495 = vld [vmem:[%s3 + $0x3c] sm:$0xf]
      %v1496 = vld [vmem:[%s3 + $0x40] sm:$0xf]
      %v1497 = vld [vmem:[%s3 + $0x44] sm:$0xf]
      %v1498 = vld [vmem:[%s4] sm:$0x1]
      %v1500 = vperm.slane %v1498, 0
      %v1520 = vunpack.c.l.b16 %v1480
      %v1521 = vunpack.c.l.b16 %v1481
      %v1522 = vunpack.c.l.b16 %v1482
      %v1523 = vunpack.c.l.b16 %v1483
      %v1524 = vunpack.c.l.b16 %v1484
      %v1525 = vunpack.c.l.b16 %v1485
      %v1526 = vunpack.c.l.b16 %v1486
      %v1527 = vunpack.c.l.b16 %v1487
      %v1528 = vunpack.c.l.b16 %v1488
      %v1529 = vunpack.c.l.b16 %v1489
      %v1530 = vunpack.c.l.b16 %v1490
      %v1531 = vunpack.c.l.b16 %v1491
      %v1532 = vunpack.c.l.b16 %v1492
      %v1533 = vunpack.c.l.b16 %v1493
      %v1534 = vunpack.c.l.b16 %v1494
      %v1535 = vunpack.c.l.b16 %v1495
      %v1536 = vunpack.c.l.b16 %v1496
      %v1537 = vunpack.c.l.b16 %v1497
      %v1538 = vpack.c.b16 %v1521, %v1520
      %v1539 = vpack.c.b16 %v1523, %v1522
      %v1540 = vpack.c.b16 %v1525, %v1524
      %v1541 = vpack.c.b16 %v1527, %v1526
      %v1542 = vpack.c.b16 %v1529, %v1528
      %v1543 = vpack.c.b16 %v1531, %v1530
      %v1544 = vpack.c.b16 %v1533, %v1532
      %v1545 = vpack.c.b16 %v1535, %v1534
      %v1546 = vpack.c.b16 %v1537, %v1536
      %v1557 = vsel %vm956, %v1473, 0
      %v1560 = vsel %vm956, %v1475, 0
      %v1563 = vsel %vm956, %v1477, 0
      %v1566 = vsel %vm956, %v1479, 0
      %1568 = vmatpush.bf16.msra.mxu0 %v1545
      %1569 = vmatpush.bf16.msra.mxu0 %v1544
      %1570 = vmatpush.bf16.msra.mxu0 %v1543
      %1571 = vmatpush.bf16.msra.mxu0 %v1542
      %1572 = vmatpush.bf16.msra.mxu0 %v1541
      %1573 = vmatpush.bf16.msra.mxu0 %v1540
      %1574 = vmatpush.bf16.msra.mxu0 %v1539
      %1575 = vmatpush.bf16.msra.mxu0 %v1538
      %1576 = vmatmul.bf16.gmra.mxu0 %v1472
      %v1577 = vpop.f32.mrf.mxu0
      %v1578 = vadd.f32 %v1500, %v1577
      %v1579 = vpop.f32.mrf.mxu0
      %v1580 = vadd.f32 %v1500, %v1579
      %1581 = vmatmul.bf16.gmra.mxu0 %v1474
      %v1582 = vpop.f32.mrf.mxu0
      %v1583 = vadd.f32 %v1500, %v1582
      %v1584 = vpop.f32.mrf.mxu0
      %v1585 = vadd.f32 %v1500, %v1584
      %1586 = vmatmul.bf16.gmra.mxu0 %v1476
      %v1587 = vpop.f32.mrf.mxu0
      %v1588 = vadd.f32 %v1500, %v1587
      %v1589 = vpop.f32.mrf.mxu0
      %v1590 = vadd.f32 %v1500, %v1589
      %1591 = vmatmul.bf16.gmra.mxu0 %v1478
      %v1592 = vpop.f32.mrf.mxu0
      %v1593 = vadd.f32 %v1500, %v1592
      %v1594 = vpop.f32.mrf.mxu0
      %v1595 = vadd.f32 %v1500, %v1594
      %1596 = vdwg.mxu0
      %1597 = vmatpush.bf16.msra.mxu0 0
      %1598 = vmatpush.bf16.msra.mxu0 0
      %1599 = vmatpush.bf16.msra.mxu0 0
      %1600 = vmatpush.bf16.msra.mxu0 0
      %1601 = vmatpush.bf16.msra.mxu0 0
      %1602 = vmatpush.bf16.msra.mxu0 0
      %1603 = vmatpush.bf16.msra.mxu0 0
      %1604 = vmatpush.bf16.msra.mxu0 %v1546
      %1605 = vmatmul.bf16.gmra.mxu0 %v1557
      %v1606 = vpop.f32.mrf.mxu0
      %v1607 = vadd.f32 %v1578, %v1606
      %v1608 = vpop.f32.mrf.mxu0
      %v1609 = vadd.f32 %v1580, %v1608
      %1610 = vmatmul.bf16.gmra.mxu0 %v1560
      %v1611 = vpop.f32.mrf.mxu0
      %v1612 = vadd.f32 %v1583, %v1611
      %v1613 = vpop.f32.mrf.mxu0
      %v1614 = vadd.f32 %v1585, %v1613
      %1615 = vmatmul.bf16.gmra.mxu0 %v1563
      %v1616 = vpop.f32.mrf.mxu0
      %v1617 = vadd.f32 %v1588, %v1616
      %v1618 = vpop.f32.mrf.mxu0
      %v1619 = vadd.f32 %v1590, %v1618
      %1620 = vmatmul.bf16.gmra.mxu0 %v1566
      %v1621 = vpop.f32.mrf.mxu0
      %v1622 = vadd.f32 %v1593, %v1621
      %v1623 = vpop.f32.mrf.mxu0
      %v1624 = vadd.f32 %v1595, %v1623
      %1625 = vdwg.mxu0
      %v1626 = vmax.f32 %v1607, 0.0
      %v1627 = vmax.f32 %v1609, 0.0
      %v1628 = vmax.f32 %v1612, 0.0
      %v1629 = vmax.f32 %v1614, 0.0
      %v1630 = vmax.f32 %v1617, 0.0
      %v1631 = vmax.f32 %v1619, 0.0
      %v1632 = vmax.f32 %v1622, 0.0
      %v1633 = vmax.f32 %v1624, 0.0
      %vm1634 = vcmask 261120
      %1635 = vst.msk [vmem:[#allocation2] sm:$0xff] %vm1634, 0.0
      %1636 = vst.msk [vmem:[#allocation2 + $0x8] sm:$0xff] %vm1634, 0.0
      %1637 = vst.msk [vmem:[#allocation2 + $0x10] sm:$0xff] %vm1634, 0.0
      %1638 = vst.msk [vmem:[#allocation2 + $0x18] sm:$0xff] %vm1634, 0.0
      %1639 = vst.msk [vmem:[#allocation2 + $0x20] sm:$0xff] %vm1634, 0.0
      %1640 = vst.msk [vmem:[#allocation2 + $0x28] sm:$0xff] %vm1634, 0.0
      %1641 = vst.msk [vmem:[#allocation2 + $0x30] sm:$0xff] %vm1634, 0.0
      %1642 = vst.msk [vmem:[#allocation2 + $0x38] sm:$0xff] %vm1634, 0.0
      %1643 = vst.msk [vmem:[#allocation2 + $0x40] sm:$0xff] %vm1634, 0.0
      %1644 = vst.msk [vmem:[#allocation2 + $0x48] sm:$0xff] %vm1634, 0.0
      %1645 = vst.msk [vmem:[#allocation2 + $0x50] sm:$0xff] %vm1634, 0.0
      %1646 = vst.msk [vmem:[#allocation2 + $0x58] sm:$0xff] %vm1634, 0.0
      %vm1647 = vcmask 257024
      %1648 = vst.msk [vmem:[#allocation2 + $0x60] sm:$0xf] %vm1647, 0.0
      %1649 = vst.msk [vmem:[#allocation2 + $0xb] sm:$0xff] %vm1634, %v1626
      %1650 = vst.msk [vmem:[#allocation2 + $0x15] sm:$0xff] %vm1634, %v1627
      %1651 = vst.msk [vmem:[#allocation2 + $0x1f] sm:$0xff] %vm1634, %v1628
      %1652 = vst.msk [vmem:[#allocation2 + $0x29] sm:$0xff] %vm1634, %v1629
      %1653 = vst.msk [vmem:[#allocation2 + $0x33] sm:$0xff] %vm1634, %v1630
      %1654 = vst.msk [vmem:[#allocation2 + $0x3d] sm:$0xff] %vm1634, %v1631
      %1655 = vst.msk [vmem:[#allocation2 + $0x47] sm:$0xff] %vm1634, %v1632
      %1656 = vst.msk [vmem:[#allocation2 + $0x51] sm:$0xff] %vm1634, %v1633
      %v1657 = vld [vmem:[#allocation2] ss:$2 sm:$0xf]
      %1658 = vst.msk [vmem:[#allocation3] sm:$0xf] %vm1647, %v1657
      %v1659 = vld [vmem:[%s1282] ss:$2 sm:$0xf]
      %v1661 = vrot.slane %v1659, 4
      %vm1663 = vcmask 261124
      %1664 = vst.msk [vmem:[#allocation3] sm:$0xf0] %vm1663, %v1661
      %s1665 = scalar_lea.vmem [#allocation2], 40
      %v1666 = vld [vmem:[%s1665] ss:$2 sm:$0xf]
      %1667 = vst.msk [vmem:[#allocation3 + $0x48] sm:$0xf] %vm1647, %v1666
      %s1668 = scalar_lea.vmem [#allocation2], 60
      %v1669 = vld [vmem:[%s1668] ss:$2 sm:$0xf]
      %v1671 = vrot.slane %v1669, 4
      %1673 = vst.msk [vmem:[#allocation3 + $0x48] sm:$0xf0] %vm1663, %v1671
      %v1674 = vld [vmem:[%s1054] ss:$2 sm:$0xf]
      %1676 = vrot.lane.b32.xlu0 %v1674, 32
      %v1677 = vpop.permute.xlu0 %1676
      %vm1679 = vcmask 519424
      %1680 = vst.msk [vmem:[#allocation3] sm:$0xf] %vm1679, %v1677
      %s1681 = scalar_lea.vmem [#allocation2], 21
      %v1682 = vld [vmem:[%s1681] ss:$2 sm:$0xf]
      %v1684 = vrot.slane %v1682, 4
      %1685 = vrot.lane.b32.xlu0 %v1684, 32
      %v1686 = vpop.permute.xlu0 %1685
      %vm1688 = vcmask 523524
      %1689 = vst.msk [vmem:[#allocation3] sm:$0xf0] %vm1688, %v1686
      %s1690 = scalar_lea.vmem [#allocation2], 41
      %v1691 = vld [vmem:[%s1690] ss:$2 sm:$0xf]
      %1693 = vrot.lane.b32.xlu0 %v1691, 32
      %v1694 = vpop.permute.xlu0 %1693
      %1696 = vst.msk [vmem:[#allocation3 + $0x48] sm:$0xf] %vm1679, %v1694
      %s1697 = scalar_lea.vmem [#allocation2], 61
      %v1698 = vld [vmem:[%s1697] ss:$2 sm:$0xf]
      %v1700 = vrot.slane %v1698, 4
      %1701 = vrot.lane.b32.xlu0 %v1700, 32
      %v1702 = vpop.permute.xlu0 %1701
      %1704 = vst.msk [vmem:[#allocation3 + $0x48] sm:$0xf0] %vm1688, %v1702
      %v1705 = vld [vmem:[%s1111] ss:$2 sm:$0xf]
      %1707 = vrot.lane.b32.xlu0 %v1705, 64
      %v1708 = vpop.permute.xlu0 %1707
      %vm1710 = vcmask 781824
      %1711 = vst.msk [vmem:[#allocation3] sm:$0xf] %vm1710, %v1708
      %s1712 = scalar_lea.vmem [#allocation2], 22
      %v1713 = vld [vmem:[%s1712] ss:$2 sm:$0xf]
      %v1715 = vrot.slane %v1713, 4
      %1716 = vrot.lane.b32.xlu0 %v1715, 64
      %v1717 = vpop.permute.xlu0 %1716
      %vm1719 = vcmask 785924
      %1720 = vst.msk [vmem:[#allocation3] sm:$0xf0] %vm1719, %v1717
      %s1721 = scalar_lea.vmem [#allocation2], 42
      %v1722 = vld [vmem:[%s1721] ss:$2 sm:$0xf]
      %1724 = vrot.lane.b32.xlu0 %v1722, 64
      %v1725 = vpop.permute.xlu0 %1724
      %1727 = vst.msk [vmem:[#allocation3 + $0x48] sm:$0xf] %vm1710, %v1725
      %s1728 = scalar_lea.vmem [#allocation2], 62
      %v1729 = vld [vmem:[%s1728] ss:$2 sm:$0xf]
      %v1731 = vrot.slane %v1729, 4
      %1732 = vrot.lane.b32.xlu0 %v1731, 64
      %v1733 = vpop.permute.xlu0 %1732
      %1735 = vst.msk [vmem:[#allocation3 + $0x48] sm:$0xf0] %vm1719, %v1733
      %s1736 = scalar_lea.vmem [#allocation2], 10
      %v1737 = vld [vmem:[%s1736] ss:$2 sm:$0xf]
      %1739 = vrot.lane.b32.xlu0 %v1737, 96
      %v1740 = vpop.permute.xlu0 %1739
      %vm1742 = vcmask 1044224
      %1743 = vst.msk [vmem:[#allocation3] sm:$0xf] %vm1742, %v1740
      %s1744 = scalar_lea.vmem [#allocation2], 30
      %v1745 = vld [vmem:[%s1744] ss:$2 sm:$0xf]
      %v1747 = vrot.slane %v1745, 4
      %1748 = vrot.lane.b32.xlu0 %v1747, 96
      %v1749 = vpop.permute.xlu0 %1748
      %vm1751 = vcmask 1048324
      %1752 = vst.msk [vmem:[#allocation3] sm:$0xf0] %vm1751, %v1749
      %s1753 = scalar_lea.vmem [#allocation2], 50
      %v1754 = vld [vmem:[%s1753] ss:$2 sm:$0xf]
      %1756 = vrot.lane.b32.xlu0 %v1754, 96
      %v1757 = vpop.permute.xlu0 %1756
      %1759 = vst.msk [vmem:[#allocation3 + $0x48] sm:$0xf] %vm1742, %v1757
      %s1760 = scalar_lea.vmem [#allocation2], 70
      %v1761 = vld [vmem:[%s1760] ss:$2 sm:$0xf]
      %v1763 = vrot.slane %v1761, 4
      %1764 = vrot.lane.b32.xlu0 %v1763, 96
      %v1765 = vpop.permute.xlu0 %1764
      %1767 = vst.msk [vmem:[#allocation3 + $0x48] sm:$0xf0] %vm1751, %v1765
      %s1768 = scalar_lea.vmem [#allocation2], 11
      %v1769 = vld [vmem:[%s1768] ss:$2 sm:$0xf]
      %1770 = vst.msk [vmem:[#allocation3 + $0x8] sm:$0xf] %vm1647, %v1769
      %s1771 = scalar_lea.vmem [#allocation2], 31
      %v1772 = vld [vmem:[%s1771] ss:$2 sm:$0xf]
      %v1774 = vrot.slane %v1772, 4
      %1776 = vst.msk [vmem:[#allocation3 + $0x8] sm:$0xf0] %vm1663, %v1774
      %s1777 = scalar_lea.vmem [#allocation2], 51
      %v1778 = vld [vmem:[%s1777] ss:$2 sm:$0xf]
      %1779 = vst.msk [vmem:[#allocation3 + $0x50] sm:$0xf] %vm1647, %v1778
      %s1780 = scalar_lea.vmem [#allocation2], 71
      %v1781 = vld [vmem:[%s1780] ss:$2 sm:$0xf]
      %v1783 = vrot.slane %v1781, 4
      %1785 = vst.msk [vmem:[#allocation3 + $0x50] sm:$0xf0] %vm1663, %v1783
      %s1786 = scalar_lea.vmem [#allocation2], 12
      %v1787 = vld [vmem:[%s1786] ss:$2 sm:$0xf]
      %1789 = vrot.lane.b32.xlu0 %v1787, 32
      %v1790 = vpop.permute.xlu0 %1789
      %1792 = vst.msk [vmem:[#allocation3 + $0x8] sm:$0xf] %vm1679, %v1790
      %s1793 = scalar_lea.vmem [#allocation2], 32
      %v1794 = vld [vmem:[%s1793] ss:$2 sm:$0xf]
      %v1796 = vrot.slane %v1794, 4
      %1797 = vrot.lane.b32.xlu0 %v1796, 32
      %v1798 = vpop.permute.xlu0 %1797
      %1800 = vst.msk [vmem:[#allocation3 + $0x8] sm:$0xf0] %vm1688, %v1798
      %s1801 = scalar_lea.vmem [#allocation2], 52
      %v1802 = vld [vmem:[%s1801] ss:$2 sm:$0xf]
      %1804 = vrot.lane.b32.xlu0 %v1802, 32
      %v1805 = vpop.permute.xlu0 %1804
      %1807 = vst.msk [vmem:[#allocation3 + $0x50] sm:$0xf] %vm1679, %v1805
      %v1808 = vld [vmem:[%s1036] ss:$2 sm:$0xf]
      %v1810 = vrot.slane %v1808, 4
      %1811 = vrot.lane.b32.xlu0 %v1810, 32
      %v1812 = vpop.permute.xlu0 %1811
      %1814 = vst.msk [vmem:[#allocation3 + $0x50] sm:$0xf0] %vm1688, %v1812
      %v1815 = vld [vmem:[%s1282] ss:$2 sm:$0xf]
      %1817 = vrot.lane.b32.xlu0 %v1815, 64
      %v1818 = vpop.permute.xlu0 %1817
      %1820 = vst.msk [vmem:[#allocation3 + $0x8] sm:$0xf] %vm1710, %v1818
      %v1821 = vld [vmem:[%s1665] ss:$2 sm:$0xf]
      %v1823 = vrot.slane %v1821, 4
      %1824 = vrot.lane.b32.xlu0 %v1823, 64
      %v1825 = vpop.permute.xlu0 %1824
      %1827 = vst.msk [vmem:[#allocation3 + $0x8] sm:$0xf0] %vm1719, %v1825
      %v1828 = vld [vmem:[%s1668] ss:$2 sm:$0xf]
      %1830 = vrot.lane.b32.xlu0 %v1828, 64
      %v1831 = vpop.permute.xlu0 %1830
      %1833 = vst.msk [vmem:[#allocation3 + $0x50] sm:$0xf] %vm1710, %v1831
      %s1834 = scalar_lea.vmem [#allocation2], 80
      %v1835 = vld [vmem:[%s1834] ss:$2 sm:$0xf]
      %v1837 = vrot.slane %v1835, 4
      %1838 = vrot.lane.b32.xlu0 %v1837, 64
      %v1839 = vpop.permute.xlu0 %1838
      %1841 = vst.msk [vmem:[#allocation3 + $0x50] sm:$0xf0] %vm1719, %v1839
      %v1842 = vld [vmem:[%s1681] ss:$2 sm:$0xf]
      %1844 = vrot.lane.b32.xlu0 %v1842, 96
      %v1845 = vpop.permute.xlu0 %1844
      %1847 = vst.msk [vmem:[#allocation3 + $0x8] sm:$0xf] %vm1742, %v1845
      %v1848 = vld [vmem:[%s1690] ss:$2 sm:$0xf]
      %v1850 = vrot.slane %v1848, 4
      %1851 = vrot.lane.b32.xlu0 %v1850, 96
      %v1852 = vpop.permute.xlu0 %1851
      %1854 = vst.msk [vmem:[#allocation3 + $0x8] sm:$0xf0] %vm1751, %v1852
      %v1855 = vld [vmem:[%s1697] ss:$2 sm:$0xf]
      %1857 = vrot.lane.b32.xlu0 %v1855, 96
      %v1858 = vpop.permute.xlu0 %1857
      %1860 = vst.msk [vmem:[#allocation3 + $0x50] sm:$0xf] %vm1742, %v1858
      %s1861 = scalar_lea.vmem [#allocation2], 81
      %v1862 = vld [vmem:[%s1861] ss:$2 sm:$0xf]
      %v1864 = vrot.slane %v1862, 4
      %1865 = vrot.lane.b32.xlu0 %v1864, 96
      %v1866 = vpop.permute.xlu0 %1865
      %1868 = vst.msk [vmem:[#allocation3 + $0x50] sm:$0xf0] %vm1751, %v1866
      %v1869 = vld [vmem:[%s1712] ss:$2 sm:$0xf]
      %1870 = vst.msk [vmem:[#allocation3 + $0x10] sm:$0xf] %vm1647, %v1869
      %v1871 = vld [vmem:[%s1721] ss:$2 sm:$0xf]
      %v1873 = vrot.slane %v1871, 4
      %1875 = vst.msk [vmem:[#allocation3 + $0x10] sm:$0xf0] %vm1663, %v1873
      %v1876 = vld [vmem:[%s1728] ss:$2 sm:$0xf]
      %1877 = vst.msk [vmem:[#allocation3 + $0x58] sm:$0xf] %vm1647, %v1876
      %s1878 = scalar_lea.vmem [#allocation2], 82
      %v1879 = vld [vmem:[%s1878] ss:$2 sm:$0xf]
      %v1881 = vrot.slane %v1879, 4
      %1883 = vst.msk [vmem:[#allocation3 + $0x58] sm:$0xf0] %vm1663, %v1881
      %v1884 = vld [vmem:[#allocation3] sm:$0xff]
      %v1885 = vld [vmem:[#allocation3 + $0x8] sm:$0xff]
      %v1886 = vld [vmem:[#allocation3 + $0x10] sm:$0xff]
      %v1887 = vld [vmem:[#allocation3 + $0x48] sm:$0xff]
      %v1888 = vld [vmem:[#allocation3 + $0x50] sm:$0xff]
      %v1889 = vld [vmem:[#allocation3 + $0x58] sm:$0xff]
      %v1890 = vpack.c.bf16 %v1887, %v1884
      %v1891 = vpack.c.bf16 %v1888, %v1885
      %v1892 = vpack.c.bf16 %v1889, %v1886
      %v1893 = vld [vmem:[%s5] sm:$0xf]
      %v1894 = vld [vmem:[%s5 + $0x4] sm:$0xf]
      %v1895 = vld [vmem:[%s5 + $0x8] sm:$0xf]
      %v1896 = vld [vmem:[%s5 + $0xc] sm:$0xf]
      %v1897 = vld [vmem:[%s5 + $0x10] sm:$0xf]
      %v1898 = vld [vmem:[%s5 + $0x14] sm:$0xf]
      %v1899 = vld [vmem:[%s5 + $0x18] sm:$0xf]
      %v1900 = vld [vmem:[%s5 + $0x1c] sm:$0xf]
      %v1901 = vld [vmem:[%s5 + $0x20] sm:$0xf]
      %v1902 = vld [vmem:[%s5 + $0x24] sm:$0xf]
      %v1903 = vld [vmem:[%s5 + $0x28] sm:$0xf]
      %v1904 = vld [vmem:[%s5 + $0x2c] sm:$0xf]
      %v1905 = vld [vmem:[%s5 + $0x30] sm:$0xf]
      %v1906 = vld [vmem:[%s5 + $0x34] sm:$0xf]
      %v1907 = vld [vmem:[%s5 + $0x38] sm:$0xf]
      %v1908 = vld [vmem:[%s5 + $0x3c] sm:$0xf]
      %v1909 = vld [vmem:[%s5 + $0x40] sm:$0xf]
      %v1910 = vld [vmem:[%s5 + $0x44] sm:$0xf]
      %v1911 = vld [vmem:[%s5 + $0x48] sm:$0xf]
      %v1912 = vld [vmem:[%s5 + $0x4c] sm:$0xf]
      %v1913 = vld [vmem:[%s5 + $0x50] sm:$0xf]
      %v1914 = vld [vmem:[%s5 + $0x54] sm:$0xf]
      %v1915 = vld [vmem:[%s5 + $0x58] sm:$0xf]
      %v1916 = vld [vmem:[%s5 + $0x5c] sm:$0xf]
      %v1917 = vld [vmem:[%s5 + $0x60] sm:$0xf]
      %v1918 = vld [vmem:[%s5 + $0x64] sm:$0xf]
      %v1919 = vld [vmem:[%s5 + $0x68] sm:$0xf]
      %v1920 = vld [vmem:[%s5 + $0x6c] sm:$0xf]
      %v1921 = vld [vmem:[%s5 + $0x70] sm:$0xf]
      %v1922 = vld [vmem:[%s5 + $0x74] sm:$0xf]
      %v1923 = vld [vmem:[%s5 + $0x78] sm:$0xf]
      %v1924 = vld [vmem:[%s5 + $0x7c] sm:$0xf]
      %v1925 = vld [vmem:[%s5 + $0x80] sm:$0xf]
      %v1926 = vld [vmem:[%s5 + $0x84] sm:$0xf]
      %v1927 = vld [vmem:[%s5 + $0x88] sm:$0xf]
      %v1928 = vld [vmem:[%s5 + $0x8c] sm:$0xf]
      %v1929 = vld [vmem:[%s6] sm:$0x1]
      %v1931 = vperm.slane %v1929, 0
      %v1969 = vunpack.c.l.b16 %v1893
      %v1970 = vunpack.c.l.b16 %v1894
      %v1971 = vunpack.c.l.b16 %v1895
      %v1972 = vunpack.c.l.b16 %v1896
      %v1973 = vunpack.c.l.b16 %v1897
      %v1974 = vunpack.c.l.b16 %v1898
      %v1975 = vunpack.c.l.b16 %v1899
      %v1976 = vunpack.c.l.b16 %v1900
      %v1977 = vunpack.c.l.b16 %v1901
      %v1978 = vunpack.c.l.b16 %v1902
      %v1979 = vunpack.c.l.b16 %v1903
      %v1980 = vunpack.c.l.b16 %v1904
      %v1981 = vunpack.c.l.b16 %v1905
      %v1982 = vunpack.c.l.b16 %v1906
      %v1983 = vunpack.c.l.b16 %v1907
      %v1984 = vunpack.c.l.b16 %v1908
      %v1985 = vunpack.c.l.b16 %v1909
      %v1986 = vunpack.c.l.b16 %v1910
      %v1987 = vunpack.c.l.b16 %v1911
      %v1988 = vunpack.c.l.b16 %v1912
      %v1989 = vunpack.c.l.b16 %v1913
      %v1990 = vunpack.c.l.b16 %v1914
      %v1991 = vunpack.c.l.b16 %v1915
      %v1992 = vunpack.c.l.b16 %v1916
      %v1993 = vunpack.c.l.b16 %v1917
      %v1994 = vunpack.c.l.b16 %v1918
      %v1995 = vunpack.c.l.b16 %v1919
      %v1996 = vunpack.c.l.b16 %v1920
      %v1997 = vunpack.c.l.b16 %v1921
      %v1998 = vunpack.c.l.b16 %v1922
      %v1999 = vunpack.c.l.b16 %v1923
      %v2000 = vunpack.c.l.b16 %v1924
      %v2001 = vunpack.c.l.b16 %v1925
      %v2002 = vunpack.c.l.b16 %v1926
      %v2003 = vunpack.c.l.b16 %v1927
      %v2004 = vunpack.c.l.b16 %v1928
      %v2005 = vpack.c.b16 %v1970, %v1969
      %v2006 = vpack.c.b16 %v1972, %v1971
      %v2007 = vpack.c.b16 %v1974, %v1973
      %v2008 = vpack.c.b16 %v1976, %v1975
      %v2009 = vpack.c.b16 %v1978, %v1977
      %v2010 = vpack.c.b16 %v1980, %v1979
      %v2011 = vpack.c.b16 %v1982, %v1981
      %v2012 = vpack.c.b16 %v1984, %v1983
      %v2013 = vpack.c.b16 %v1986, %v1985
      %v2014 = vpack.c.b16 %v1988, %v1987
      %v2015 = vpack.c.b16 %v1990, %v1989
      %v2016 = vpack.c.b16 %v1992, %v1991
      %v2017 = vpack.c.b16 %v1994, %v1993
      %v2018 = vpack.c.b16 %v1996, %v1995
      %v2019 = vpack.c.b16 %v1998, %v1997
      %v2020 = vpack.c.b16 %v2000, %v1999
      %v2021 = vpack.c.b16 %v2002, %v2001
      %v2022 = vpack.c.b16 %v2004, %v2003
      %v2042 = vsel %vm1634, %v1892, 0
      %2044 = vmatpush.bf16.msra.mxu0 %v2012
      %2045 = vmatpush.bf16.msra.mxu0 %v2011
      %2046 = vmatpush.bf16.msra.mxu0 %v2010
      %2047 = vmatpush.bf16.msra.mxu0 %v2009
      %2048 = vmatpush.bf16.msra.mxu0 %v2008
      %2049 = vmatpush.bf16.msra.mxu0 %v2007
      %2050 = vmatpush.bf16.msra.mxu0 %v2006
      %2051 = vmatpush.bf16.msra.mxu0 %v2005
      %2052 = vmatmul.bf16.gmra.mxu0 %v1890
      %v2053 = vpop.f32.mrf.mxu0
      %v2054 = vadd.f32 %v1931, %v2053
      %v2055 = vpop.f32.mrf.mxu0
      %v2056 = vadd.f32 %v1931, %v2055
      %2057 = vdwg.mxu0
      %2058 = vmatpush.bf16.msra.mxu0 %v2020
      %2059 = vmatpush.bf16.msra.mxu0 %v2019
      %2060 = vmatpush.bf16.msra.mxu0 %v2018
      %2061 = vmatpush.bf16.msra.mxu0 %v2017
      %2062 = vmatpush.bf16.msra.mxu0 %v2016
      %2063 = vmatpush.bf16.msra.mxu0 %v2015
      %2064 = vmatpush.bf16.msra.mxu0 %v2014
      %2065 = vmatpush.bf16.msra.mxu0 %v2013
      %2066 = vmatmul.bf16.gmra.mxu0 %v1891
      %v2067 = vpop.f32.mrf.mxu0
      %v2068 = vadd.f32 %v2054, %v2067
      %v2069 = vpop.f32.mrf.mxu0
      %v2070 = vadd.f32 %v2056, %v2069
      %2071 = vdwg.mxu0
      %2072 = vmatpush.bf16.msra.mxu0 0
      %2073 = vmatpush.bf16.msra.mxu0 0
      %2074 = vmatpush.bf16.msra.mxu0 0
      %2075 = vmatpush.bf16.msra.mxu0 0
      %2076 = vmatpush.bf16.msra.mxu0 0
      %2077 = vmatpush.bf16.msra.mxu0 0
      %2078 = vmatpush.bf16.msra.mxu0 %v2022
      %2079 = vmatpush.bf16.msra.mxu0 %v2021
      %2080 = vmatmul.bf16.gmra.mxu0 %v2042
      %v2081 = vpop.f32.mrf.mxu0
      %v2082 = vadd.f32 %v2068, %v2081
      %v2083 = vpop.f32.mrf.mxu0
      %v2084 = vadd.f32 %v2070, %v2083
      %2085 = vdwg.mxu0
      %v2086 = vmax.f32 %v2082, 0.0
      %v2087 = vmax.f32 %v2084, 0.0
      %vm2088 = vcmask 523264
      %2089 = vst.msk [vmem:[#allocation2] sm:$0xff] %vm2088, 0.0
      %2090 = vst.msk [vmem:[#allocation2 + $0x8] sm:$0xff] %vm2088, 0.0
      %2091 = vst.msk [vmem:[#allocation2 + $0x10] sm:$0xff] %vm2088, 0.0
      %2092 = vst.msk [vmem:[#allocation2 + $0x18] sm:$0xff] %vm2088, 0.0
      %vm2093 = vcmask 519168
      %2094 = vst.msk [vmem:[#allocation2 + $0x20] sm:$0xf] %vm2093, 0.0
      %2095 = vst.msk [vmem:[#allocation2 + $0x7] sm:$0xf] %vm2093, %v2086
      %vm2096 = vcmask 523268
      %2097 = vst.msk [vmem:[#allocation2 + $0x9] sm:$0xf0] %vm2096, %v2086
      %2098 = vst.msk [vmem:[#allocation2 + $0x13] sm:$0xf] %vm2093, %v2087
      %2099 = vst.msk [vmem:[#allocation2 + $0x15] sm:$0xf0] %vm2096, %v2087
      %v2100 = vld [vmem:[#allocation2] sm:$0xf]
      %2101 = vst.msk [vmem:[#allocation3] sm:$0xf] %vm2093, %v2100
      %v2102 = vld [vmem:[#allocation2 + $0x6] sm:$0xf]
      %v2104 = vrot.slane %v2102, 4
      %2106 = vst.msk [vmem:[#allocation3] sm:$0xf0] %vm2096, %v2104
      %v2107 = vld [vmem:[#allocation2 + $0xc] sm:$0xf]
      %2108 = vst.msk [vmem:[#allocation3 + $0x48] sm:$0xf] %vm2093, %v2107
      %v2109 = vld [vmem:[#allocation2 + $0x12] sm:$0xf]
      %v2111 = vrot.slane %v2109, 4
      %2113 = vst.msk [vmem:[#allocation3 + $0x48] sm:$0xf0] %vm2096, %v2111
      %v2114 = vld [vmem:[#allocation2 + $0x1] sm:$0xf]
      %2116 = vrot.lane.b32.xlu0 %v2114, 64
      %v2117 = vpop.permute.xlu0 %2116
      %vm2119 = vcmask 1043968
      %2120 = vst.msk [vmem:[#allocation3] sm:$0xf] %vm2119, %v2117
      %v2121 = vld [vmem:[#allocation2 + $0x7] sm:$0xf]
      %v2123 = vrot.slane %v2121, 4
      %2124 = vrot.lane.b32.xlu0 %v2123, 64
      %v2125 = vpop.permute.xlu0 %2124
      %vm2127 = vcmask 1048068
      %2128 = vst.msk [vmem:[#allocation3] sm:$0xf0] %vm2127, %v2125
      %v2129 = vld [vmem:[#allocation2 + $0xd] sm:$0xf]
      %2131 = vrot.lane.b32.xlu0 %v2129, 64
      %v2132 = vpop.permute.xlu0 %2131
      %2134 = vst.msk [vmem:[#allocation3 + $0x48] sm:$0xf] %vm2119, %v2132
      %v2135 = vld [vmem:[#allocation2 + $0x13] sm:$0xf]
      %v2137 = vrot.slane %v2135, 4
      %2138 = vrot.lane.b32.xlu0 %v2137, 64
      %v2139 = vpop.permute.xlu0 %2138
      %2141 = vst.msk [vmem:[#allocation3 + $0x48] sm:$0xf0] %vm2127, %v2139
      %v2142 = vld [vmem:[#allocation2 + $0x2] sm:$0xf]
      %2143 = vst.msk [vmem:[#allocation3 + $0x8] sm:$0xf] %vm2093, %v2142
      %v2144 = vld [vmem:[#allocation2 + $0x8] sm:$0xf]
      %v2146 = vrot.slane %v2144, 4
      %2148 = vst.msk [vmem:[#allocation3 + $0x8] sm:$0xf0] %vm2096, %v2146
      %v2149 = vld [vmem:[#allocation2 + $0xe] sm:$0xf]
      %2150 = vst.msk [vmem:[#allocation3 + $0x50] sm:$0xf] %vm2093, %v2149
      %v2151 = vld [vmem:[#allocation2 + $0x14] sm:$0xf]
      %v2153 = vrot.slane %v2151, 4
      %2155 = vst.msk [vmem:[#allocation3 + $0x50] sm:$0xf0] %vm2096, %v2153
      %v2156 = vld [vmem:[#allocation2 + $0x6] sm:$0xf]
      %2158 = vrot.lane.b32.xlu0 %v2156, 64
      %v2159 = vpop.permute.xlu0 %2158
      %2161 = vst.msk [vmem:[#allocation3 + $0x8] sm:$0xf] %vm2119, %v2159
      %v2162 = vld [vmem:[#allocation2 + $0xc] sm:$0xf]
      %v2164 = vrot.slane %v2162, 4
      %2165 = vrot.lane.b32.xlu0 %v2164, 64
      %v2166 = vpop.permute.xlu0 %2165
      %2168 = vst.msk [vmem:[#allocation3 + $0x8] sm:$0xf0] %vm2127, %v2166
      %v2169 = vld [vmem:[#allocation2 + $0x12] sm:$0xf]
      %2171 = vrot.lane.b32.xlu0 %v2169, 64
      %v2172 = vpop.permute.xlu0 %2171
      %2174 = vst.msk [vmem:[#allocation3 + $0x50] sm:$0xf] %vm2119, %v2172
      %v2175 = vld [vmem:[#allocation2 + $0x18] sm:$0xf]
      %v2177 = vrot.slane %v2175, 4
      %2178 = vrot.lane.b32.xlu0 %v2177, 64
      %v2179 = vpop.permute.xlu0 %2178
      %2181 = vst.msk [vmem:[#allocation3 + $0x50] sm:$0xf0] %vm2127, %v2179
      %v2182 = vld [vmem:[#allocation2 + $0x7] sm:$0xf]
      %2183 = vst.msk [vmem:[#allocation3 + $0x10] sm:$0xf] %vm2093, %v2182
      %v2184 = vld [vmem:[#allocation2 + $0xd] sm:$0xf]
      %v2186 = vrot.slane %v2184, 4
      %2188 = vst.msk [vmem:[#allocation3 + $0x10] sm:$0xf0] %vm2096, %v2186
      %v2189 = vld [vmem:[#allocation2 + $0x13] sm:$0xf]
      %2190 = vst.msk [vmem:[#allocation3 + $0x58] sm:$0xf] %vm2093, %v2189
      %v2191 = vld [vmem:[#allocation2 + $0x19] sm:$0xf]
      %v2193 = vrot.slane %v2191, 4
      %2195 = vst.msk [vmem:[#allocation3 + $0x58] sm:$0xf0] %vm2096, %v2193
      %v2196 = vld [vmem:[#allocation2 + $0x8] sm:$0xf]
      %2198 = vrot.lane.b32.xlu0 %v2196, 64
      %v2199 = vpop.permute.xlu0 %2198
      %2201 = vst.msk [vmem:[#allocation3 + $0x10] sm:$0xf] %vm2119, %v2199
      %v2202 = vld [vmem:[#allocation2 + $0xe] sm:$0xf]
      %v2204 = vrot.slane %v2202, 4
      %2205 = vrot.lane.b32.xlu0 %v2204, 64
      %v2206 = vpop.permute.xlu0 %2205
      %2208 = vst.msk [vmem:[#allocation3 + $0x10] sm:$0xf0] %vm2127, %v2206
      %v2209 = vld [vmem:[#allocation2 + $0x14] sm:$0xf]
      %2211 = vrot.lane.b32.xlu0 %v2209, 64
      %v2212 = vpop.permute.xlu0 %2211
      %2214 = vst.msk [vmem:[#allocation3 + $0x58] sm:$0xf] %vm2119, %v2212
      %v2215 = vld [vmem:[#allocation2 + $0x1a] sm:$0xf]
      %v2217 = vrot.slane %v2215, 4
      %2218 = vrot.lane.b32.xlu0 %v2217, 64
      %v2219 = vpop.permute.xlu0 %2218
      %2221 = vst.msk [vmem:[#allocation3 + $0x58] sm:$0xf0] %vm2127, %v2219
      %v2222 = vld [vmem:[#allocation2 + $0xc] sm:$0xf]
      %2223 = vst.msk [vmem:[#allocation3 + $0x18] sm:$0xf] %vm2093, %v2222
      %v2224 = vld [vmem:[#allocation2 + $0x12] sm:$0xf]
      %v2226 = vrot.slane %v2224, 4
      %2228 = vst.msk [vmem:[#allocation3 + $0x18] sm:$0xf0] %vm2096, %v2226
      %v2229 = vld [vmem:[#allocation2 + $0x18] sm:$0xf]
      %2230 = vst.msk [vmem:[#allocation3 + $0x60] sm:$0xf] %vm2093, %v2229
      %v2231 = vld [vmem:[#allocation2 + $0x1e] sm:$0xf]
      %v2233 = vrot.slane %v2231, 4
      %2235 = vst.msk [vmem:[#allocation3 + $0x60] sm:$0xf0] %vm2096, %v2233
      %v2236 = vld [vmem:[#allocation2 + $0xd] sm:$0xf]
      %2238 = vrot.lane.b32.xlu0 %v2236, 64
      %v2239 = vpop.permute.xlu0 %2238
      %2241 = vst.msk [vmem:[#allocation3 + $0x18] sm:$0xf] %vm2119, %v2239
      %v2242 = vld [vmem:[#allocation2 + $0x13] sm:$0xf]
      %v2244 = vrot.slane %v2242, 4
      %2245 = vrot.lane.b32.xlu0 %v2244, 64
      %v2246 = vpop.permute.xlu0 %2245
      %2248 = vst.msk [vmem:[#allocation3 + $0x18] sm:$0xf0] %vm2127, %v2246
      %v2249 = vld [vmem:[#allocation2 + $0x19] sm:$0xf]
      %2251 = vrot.lane.b32.xlu0 %v2249, 64
      %v2252 = vpop.permute.xlu0 %2251
      %2254 = vst.msk [vmem:[#allocation3 + $0x60] sm:$0xf] %vm2119, %v2252
      %v2255 = vld [vmem:[#allocation2 + $0x1f] sm:$0xf]
      %v2257 = vrot.slane %v2255, 4
      %2258 = vrot.lane.b32.xlu0 %v2257, 64
      %v2259 = vpop.permute.xlu0 %2258
      %2261 = vst.msk [vmem:[#allocation3 + $0x60] sm:$0xf0] %vm2127, %v2259
      %v2262 = vld [vmem:[#allocation2 + $0xe] sm:$0xf]
      %2263 = vst.msk [vmem:[#allocation3 + $0x20] sm:$0xf] %vm2093, %v2262
      %v2264 = vld [vmem:[#allocation2 + $0x14] sm:$0xf]
      %v2266 = vrot.slane %v2264, 4
      %2268 = vst.msk [vmem:[#allocation3 + $0x20] sm:$0xf0] %vm2096, %v2266
      %v2269 = vld [vmem:[#allocation2 + $0x1a] sm:$0xf]
      %2270 = vst.msk [vmem:[#allocation3 + $0x68] sm:$0xf] %vm2093, %v2269
      %v2271 = vld [vmem:[#allocation2 + $0x20] sm:$0xf]
      %v2273 = vrot.slane %v2271, 4
      %2275 = vst.msk [vmem:[#allocation3 + $0x68] sm:$0xf0] %vm2096, %v2273
      %v2276 = vld [vmem:[#allocation3] sm:$0xff]
      %v2277 = vld [vmem:[#allocation3 + $0x8] sm:$0xff]
      %v2278 = vld [vmem:[#allocation3 + $0x10] sm:$0xff]
      %v2279 = vld [vmem:[#allocation3 + $0x18] sm:$0xff]
      %v2280 = vld [vmem:[#allocation3 + $0x20] sm:$0xff]
      %v2281 = vld [vmem:[#allocation3 + $0x48] sm:$0xff]
      %v2282 = vld [vmem:[#allocation3 + $0x50] sm:$0xff]
      %v2283 = vld [vmem:[#allocation3 + $0x58] sm:$0xff]
      %v2284 = vld [vmem:[#allocation3 + $0x60] sm:$0xff]
      %v2285 = vld [vmem:[#allocation3 + $0x68] sm:$0xff]
      %v2286 = vpack.c.bf16 %v2281, %v2276
      %v2287 = vpack.c.bf16 %v2282, %v2277
      %v2288 = vpack.c.bf16 %v2283, %v2278
      %v2289 = vpack.c.bf16 %v2284, %v2279
      %v2290 = vpack.c.bf16 %v2285, %v2280
      %v2291 = vld [vmem:[%s7] sm:$0xf]
      %v2292 = vld [vmem:[%s7 + $0x4] sm:$0xf]
      %v2293 = vld [vmem:[%s7 + $0x8] sm:$0xf]
      %v2294 = vld [vmem:[%s7 + $0xc] sm:$0xf]
      %v2295 = vld [vmem:[%s7 + $0x10] sm:$0xf]
      %v2296 = vld [vmem:[%s7 + $0x14] sm:$0xf]
      %v2297 = vld [vmem:[%s7 + $0x18] sm:$0xf]
      %v2298 = vld [vmem:[%s7 + $0x1c] sm:$0xf]
      %v2299 = vld [vmem:[%s7 + $0x20] sm:$0xf]
      %v2300 = vld [vmem:[%s7 + $0x24] sm:$0xf]
      %v2301 = vld [vmem:[%s7 + $0x28] sm:$0xf]
      %v2302 = vld [vmem:[%s7 + $0x2c] sm:$0xf]
      %v2303 = vld [vmem:[%s7 + $0x30] sm:$0xf]
      %v2304 = vld [vmem:[%s7 + $0x34] sm:$0xf]
      %v2305 = vld [vmem:[%s7 + $0x38] sm:$0xf]
      %v2306 = vld [vmem:[%s7 + $0x3c] sm:$0xf]
      %v2307 = vld [vmem:[%s7 + $0x40] sm:$0xf]
      %v2308 = vld [vmem:[%s7 + $0x44] sm:$0xf]
      %v2309 = vld [vmem:[%s7 + $0x48] sm:$0xf]
      %v2310 = vld [vmem:[%s7 + $0x4c] sm:$0xf]
      %v2311 = vld [vmem:[%s7 + $0x50] sm:$0xf]
      %v2312 = vld [vmem:[%s7 + $0x54] sm:$0xf]
      %v2313 = vld [vmem:[%s7 + $0x58] sm:$0xf]
      %v2314 = vld [vmem:[%s7 + $0x5c] sm:$0xf]
      %v2315 = vld [vmem:[%s7 + $0x60] sm:$0xf]
      %v2316 = vld [vmem:[%s7 + $0x64] sm:$0xf]
      %v2317 = vld [vmem:[%s7 + $0x68] sm:$0xf]
      %v2318 = vld [vmem:[%s7 + $0x6c] sm:$0xf]
      %v2319 = vld [vmem:[%s7 + $0x70] sm:$0xf]
      %v2320 = vld [vmem:[%s7 + $0x74] sm:$0xf]
      %v2321 = vld [vmem:[%s7 + $0x78] sm:$0xf]
      %v2322 = vld [vmem:[%s7 + $0x7c] sm:$0xf]
      %v2323 = vld [vmem:[%s7 + $0x80] sm:$0xf]
      %v2324 = vld [vmem:[%s7 + $0x84] sm:$0xf]
      %v2325 = vld [vmem:[%s7 + $0x88] sm:$0xf]
      %v2326 = vld [vmem:[%s7 + $0x8c] sm:$0xf]
      %v2327 = vld [vmem:[%s7 + $0x90] sm:$0xf]
      %v2328 = vld [vmem:[%s7 + $0x94] sm:$0xf]
      %v2329 = vld [vmem:[%s7 + $0x98] sm:$0xf]
      %v2330 = vld [vmem:[%s7 + $0x9c] sm:$0xf]
      %v2331 = vld [vmem:[%s7 + $0xa0] sm:$0xf]
      %v2332 = vld [vmem:[%s7 + $0xa4] sm:$0xf]
      %v2333 = vld [vmem:[%s7 + $0xa8] sm:$0xf]
      %v2334 = vld [vmem:[%s7 + $0xac] sm:$0xf]
      %v2335 = vld [vmem:[%s7 + $0xb0] sm:$0xf]
      %v2336 = vld [vmem:[%s7 + $0xb4] sm:$0xf]
      %v2337 = vld [vmem:[%s7 + $0xb8] sm:$0xf]
      %v2338 = vld [vmem:[%s7 + $0xbc] sm:$0xf]
      %v2339 = vld [vmem:[%s7 + $0xc0] sm:$0xf]
      %v2340 = vld [vmem:[%s7 + $0xc4] sm:$0xf]
      %v2341 = vld [vmem:[%s7 + $0xc8] sm:$0xf]
      %v2342 = vld [vmem:[%s7 + $0xcc] sm:$0xf]
      %v2343 = vld [vmem:[%s7 + $0xd0] sm:$0xf]
      %v2344 = vld [vmem:[%s7 + $0xd4] sm:$0xf]
      %v2345 = vld [vmem:[%s7 + $0xd8] sm:$0xf]
      %v2346 = vld [vmem:[%s7 + $0xdc] sm:$0xf]
      %v2347 = vld [vmem:[%s7 + $0xe0] sm:$0xf]
      %v2348 = vld [vmem:[%s7 + $0xe4] sm:$0xf]
      %v2349 = vld [vmem:[%s7 + $0xe8] sm:$0xf]
      %v2350 = vld [vmem:[%s7 + $0xec] sm:$0xf]
      %v2351 = vld [vmem:[%s7 + $0xf0] sm:$0xf]
      %v2352 = vld [vmem:[%s7 + $0xf4] sm:$0xf]
      %v2353 = vld [vmem:[%s7 + $0xf8] sm:$0xf]
      %v2354 = vld [vmem:[%s7 + $0xfc] sm:$0xf]
      %v2355 = vld [vmem:[%s7 + $0x100] sm:$0xf]
      %v2356 = vld [vmem:[%s7 + $0x104] sm:$0xf]
      %v2357 = vld [vmem:[%s7 + $0x108] sm:$0xf]
      %v2358 = vld [vmem:[%s7 + $0x10c] sm:$0xf]
      %v2359 = vld [vmem:[%s7 + $0x110] sm:$0xf]
      %v2360 = vld [vmem:[%s7 + $0x114] sm:$0xf]
      %v2361 = vld [vmem:[%s7 + $0x118] sm:$0xf]
      %v2362 = vld [vmem:[%s7 + $0x11c] sm:$0xf]
      %v2363 = vld [vmem:[%s8] sm:$0x1]
      %v2365 = vperm.slane %v2363, 0
      %v2439 = vunpack.c.l.b16 %v2291
      %v2440 = vunpack.c.l.b16 %v2292
      %v2441 = vunpack.c.l.b16 %v2293
      %v2442 = vunpack.c.l.b16 %v2294
      %v2443 = vunpack.c.l.b16 %v2295
      %v2444 = vunpack.c.l.b16 %v2296
      %v2445 = vunpack.c.l.b16 %v2297
      %v2446 = vunpack.c.l.b16 %v2298
      %v2447 = vunpack.c.l.b16 %v2299
      %v2448 = vunpack.c.l.b16 %v2300
      %v2449 = vunpack.c.l.b16 %v2301
      %v2450 = vunpack.c.l.b16 %v2302
      %v2451 = vunpack.c.l.b16 %v2303
      %v2452 = vunpack.c.l.b16 %v2304
      %v2453 = vunpack.c.l.b16 %v2305
      %v2454 = vunpack.c.l.b16 %v2306
      %v2455 = vunpack.c.l.b16 %v2307
      %v2456 = vunpack.c.l.b16 %v2308
      %v2457 = vunpack.c.l.b16 %v2309
      %v2458 = vunpack.c.l.b16 %v2310
      %v2459 = vunpack.c.l.b16 %v2311
      %v2460 = vunpack.c.l.b16 %v2312
      %v2461 = vunpack.c.l.b16 %v2313
      %v2462 = vunpack.c.l.b16 %v2314
      %v2463 = vunpack.c.l.b16 %v2315
      %v2464 = vunpack.c.l.b16 %v2316
      %v2465 = vunpack.c.l.b16 %v2317
      %v2466 = vunpack.c.l.b16 %v2318
      %v2467 = vunpack.c.l.b16 %v2319
      %v2468 = vunpack.c.l.b16 %v2320
      %v2469 = vunpack.c.l.b16 %v2321
      %v2470 = vunpack.c.l.b16 %v2322
      %v2471 = vunpack.c.l.b16 %v2323
      %v2472 = vunpack.c.l.b16 %v2324
      %v2473 = vunpack.c.l.b16 %v2325
      %v2474 = vunpack.c.l.b16 %v2326
      %v2475 = vunpack.c.l.b16 %v2327
      %v2476 = vunpack.c.l.b16 %v2328
      %v2477 = vunpack.c.l.b16 %v2329
      %v2478 = vunpack.c.l.b16 %v2330
      %v2479 = vunpack.c.l.b16 %v2331
      %v2480 = vunpack.c.l.b16 %v2332
      %v2481 = vunpack.c.l.b16 %v2333
      %v2482 = vunpack.c.l.b16 %v2334
      %v2483 = vunpack.c.l.b16 %v2335
      %v2484 = vunpack.c.l.b16 %v2336
      %v2485 = vunpack.c.l.b16 %v2337
      %v2486 = vunpack.c.l.b16 %v2338
      %v2487 = vunpack.c.l.b16 %v2339
      %v2488 = vunpack.c.l.b16 %v2340
      %v2489 = vunpack.c.l.b16 %v2341
      %v2490 = vunpack.c.l.b16 %v2342
      %v2491 = vunpack.c.l.b16 %v2343
      %v2492 = vunpack.c.l.b16 %v2344
      %v2493 = vunpack.c.l.b16 %v2345
      %v2494 = vunpack.c.l.b16 %v2346
      %v2495 = vunpack.c.l.b16 %v2347
      %v2496 = vunpack.c.l.b16 %v2348
      %v2497 = vunpack.c.l.b16 %v2349
      %v2498 = vunpack.c.l.b16 %v2350
      %v2499 = vunpack.c.l.b16 %v2351
      %v2500 = vunpack.c.l.b16 %v2352
      %v2501 = vunpack.c.l.b16 %v2353
      %v2502 = vunpack.c.l.b16 %v2354
      %v2503 = vunpack.c.l.b16 %v2355
      %v2504 = vunpack.c.l.b16 %v2356
      %v2505 = vunpack.c.l.b16 %v2357
      %v2506 = vunpack.c.l.b16 %v2358
      %v2507 = vunpack.c.l.b16 %v2359
      %v2508 = vunpack.c.l.b16 %v2360
      %v2509 = vunpack.c.l.b16 %v2361
      %v2510 = vunpack.c.l.b16 %v2362
      %v2511 = vpack.c.b16 %v2440, %v2439
      %v2512 = vpack.c.b16 %v2442, %v2441
      %v2513 = vpack.c.b16 %v2444, %v2443
      %v2514 = vpack.c.b16 %v2446, %v2445
      %v2515 = vpack.c.b16 %v2448, %v2447
      %v2516 = vpack.c.b16 %v2450, %v2449
      %v2517 = vpack.c.b16 %v2452, %v2451
      %v2518 = vpack.c.b16 %v2454, %v2453
      %v2519 = vpack.c.b16 %v2456, %v2455
      %v2520 = vpack.c.b16 %v2458, %v2457
      %v2521 = vpack.c.b16 %v2460, %v2459
      %v2522 = vpack.c.b16 %v2462, %v2461
      %v2523 = vpack.c.b16 %v2464, %v2463
      %v2524 = vpack.c.b16 %v2466, %v2465
      %v2525 = vpack.c.b16 %v2468, %v2467
      %v2526 = vpack.c.b16 %v2470, %v2469
      %v2527 = vpack.c.b16 %v2472, %v2471
      %v2528 = vpack.c.b16 %v2474, %v2473
      %v2529 = vpack.c.b16 %v2476, %v2475
      %v2530 = vpack.c.b16 %v2478, %v2477
      %v2531 = vpack.c.b16 %v2480, %v2479
      %v2532 = vpack.c.b16 %v2482, %v2481
      %v2533 = vpack.c.b16 %v2484, %v2483
      %v2534 = vpack.c.b16 %v2486, %v2485
      %v2535 = vpack.c.b16 %v2488, %v2487
      %v2536 = vpack.c.b16 %v2490, %v2489
      %v2537 = vpack.c.b16 %v2492, %v2491
      %v2538 = vpack.c.b16 %v2494, %v2493
      %v2539 = vpack.c.b16 %v2496, %v2495
      %v2540 = vpack.c.b16 %v2498, %v2497
      %v2541 = vpack.c.b16 %v2500, %v2499
      %v2542 = vpack.c.b16 %v2502, %v2501
      %v2543 = vpack.c.b16 %v2504, %v2503
      %v2544 = vpack.c.b16 %v2506, %v2505
      %v2545 = vpack.c.b16 %v2508, %v2507
      %v2546 = vpack.c.b16 %v2510, %v2509
      %v2584 = vsel %vm2088, %v2290, 0
      %2586 = vmatpush.bf16.msra.mxu0 %v2518
      %2587 = vmatpush.bf16.msra.mxu0 %v2517
      %2588 = vmatpush.bf16.msra.mxu0 %v2516
      %2589 = vmatpush.bf16.msra.mxu0 %v2515
      %2590 = vmatpush.bf16.msra.mxu0 %v2514
      %2591 = vmatpush.bf16.msra.mxu0 %v2513
      %2592 = vmatpush.bf16.msra.mxu0 %v2512
      %2593 = vmatpush.bf16.msra.mxu0 %v2511
      %2594 = vmatmul.bf16.gmra.mxu0 %v2286
      %v2595 = vpop.f32.mrf.mxu0
      %v2596 = vadd.f32 %v2365, %v2595
      %v2597 = vpop.f32.mrf.mxu0
      %v2598 = vadd.f32 %v2365, %v2597
      %2599 = vdwg.mxu0
      %2600 = vmatpush.bf16.msra.mxu0 %v2526
      %2601 = vmatpush.bf16.msra.mxu0 %v2525
      %2602 = vmatpush.bf16.msra.mxu0 %v2524
      %2603 = vmatpush.bf16.msra.mxu0 %v2523
      %2604 = vmatpush.bf16.msra.mxu0 %v2522
      %2605 = vmatpush.bf16.msra.mxu0 %v2521
      %2606 = vmatpush.bf16.msra.mxu0 %v2520
      %2607 = vmatpush.bf16.msra.mxu0 %v2519
      %2608 = vmatmul.bf16.gmra.mxu0 %v2287
      %v2609 = vpop.f32.mrf.mxu0
      %v2610 = vadd.f32 %v2596, %v2609
      %v2611 = vpop.f32.mrf.mxu0
      %v2612 = vadd.f32 %v2598, %v2611
      %2613 = vdwg.mxu0
      %2614 = vmatpush.bf16.msra.mxu0 %v2534
      %2615 = vmatpush.bf16.msra.mxu0 %v2533
      %2616 = vmatpush.bf16.msra.mxu0 %v2532
      %2617 = vmatpush.bf16.msra.mxu0 %v2531
      %2618 = vmatpush.bf16.msra.mxu0 %v2530
      %2619 = vmatpush.bf16.msra.mxu0 %v2529
      %2620 = vmatpush.bf16.msra.mxu0 %v2528
      %2621 = vmatpush.bf16.msra.mxu0 %v2527
      %2622 = vmatmul.bf16.gmra.mxu0 %v2288
      %v2623 = vpop.f32.mrf.mxu0
      %v2624 = vadd.f32 %v2610, %v2623
      %v2625 = vpop.f32.mrf.mxu0
      %v2626 = vadd.f32 %v2612, %v2625
      %2627 = vdwg.mxu0
      %2628 = vmatpush.bf16.msra.mxu0 %v2542
      %2629 = vmatpush.bf16.msra.mxu0 %v2541
      %2630 = vmatpush.bf16.msra.mxu0 %v2540
      %2631 = vmatpush.bf16.msra.mxu0 %v2539
      %2632 = vmatpush.bf16.msra.mxu0 %v2538
      %2633 = vmatpush.bf16.msra.mxu0 %v2537
      %2634 = vmatpush.bf16.msra.mxu0 %v2536
      %2635 = vmatpush.bf16.msra.mxu0 %v2535
      %2636 = vmatmul.bf16.gmra.mxu0 %v2289
      %v2637 = vpop.f32.mrf.mxu0
      %v2638 = vadd.f32 %v2624, %v2637
      %v2639 = vpop.f32.mrf.mxu0
      %v2640 = vadd.f32 %v2626, %v2639
      %2641 = vdwg.mxu0
      %2642 = vmatpush.bf16.msra.mxu0 0
      %2643 = vmatpush.bf16.msra.mxu0 0
      %2644 = vmatpush.bf16.msra.mxu0 0
      %2645 = vmatpush.bf16.msra.mxu0 0
      %2646 = vmatpush.bf16.msra.mxu0 %v2546
      %2647 = vmatpush.bf16.msra.mxu0 %v2545
      %2648 = vmatpush.bf16.msra.mxu0 %v2544
      %2649 = vmatpush.bf16.msra.mxu0 %v2543
      %2650 = vmatmul.bf16.gmra.mxu0 %v2584
      %v2651 = vpop.f32.mrf.mxu0
      %v2652 = vadd.f32 %v2638, %v2651
      %v2653 = vpop.f32.mrf.mxu0
      %v2654 = vadd.f32 %v2640, %v2653
      %2655 = vdwg.mxu0
      %v2656 = vmax.f32 %v2652, 0.0
      %v2657 = vmax.f32 %v2654, 0.0
      %2658 = vst.msk [vmem:[#allocation2] sm:$0xff] %vm2088, 0.0
      %2659 = vst.msk [vmem:[#allocation2 + $0x8] sm:$0xff] %vm2088, 0.0
      %2660 = vst.msk [vmem:[#allocation2 + $0x10] sm:$0xff] %vm2088, 0.0
      %2661 = vst.msk [vmem:[#allocation2 + $0x18] sm:$0xff] %vm2088, 0.0
      %2662 = vst.msk [vmem:[#allocation2 + $0x20] sm:$0xf] %vm2093, 0.0
      %2663 = vst.msk [vmem:[#allocation2 + $0x7] sm:$0xf] %vm2093, %v2656
      %2664 = vst.msk [vmem:[#allocation2 + $0x9] sm:$0xf0] %vm2096, %v2656
      %2665 = vst.msk [vmem:[#allocation2 + $0x13] sm:$0xf] %vm2093, %v2657
      %2666 = vst.msk [vmem:[#allocation2 + $0x15] sm:$0xf0] %vm2096, %v2657
      %v2667 = vld [vmem:[#allocation2] ss:$2 sm:$0x3]
      %vm2668 = vcmask 517120
      %2669 = vst.msk [vmem:[#allocation3] sm:$0x3] %vm2668, %v2667
      %v2670 = vld [vmem:[%s1786] ss:$2 sm:$0x3]
      %v2672 = vrot.slane %v2670, 6
      %vm2674 = vcmask 519170
      %2675 = vst.msk [vmem:[#allocation3] sm:$0xc] %vm2674, %v2672
      %v2676 = vld [vmem:[%s1054] ss:$2 sm:$0x3]
      %2678 = vrot.lane.b32.xlu0 %v2676, 64
      %v2679 = vpop.permute.xlu0 %2678
      %vm2681 = vcmask 1041920
      %2682 = vst.msk [vmem:[#allocation3] sm:$0x3] %vm2681, %v2679
      %s2683 = scalar_lea.vmem [#allocation2], 13
      %v2684 = vld [vmem:[%s2683] ss:$2 sm:$0x3]
      %v2686 = vrot.slane %v2684, 6
      %2687 = vrot.lane.b32.xlu0 %v2686, 64
      %v2688 = vpop.permute.xlu0 %2687
      %vm2690 = vcmask 1043970
      %2691 = vst.msk [vmem:[#allocation3] sm:$0xc] %vm2690, %v2688
      %v2692 = vld [vmem:[%s1111] ss:$2 sm:$0x3]
      %2693 = vst.msk [vmem:[#allocation3 + $0x8] sm:$0x3] %vm2668, %v2692
      %s2694 = scalar_lea.vmem [#allocation2], 14
      %v2695 = vld [vmem:[%s2694] ss:$2 sm:$0x3]
      %v2697 = vrot.slane %v2695, 6
      %2699 = vst.msk [vmem:[#allocation3 + $0x8] sm:$0xc] %vm2674, %v2697
      %s2700 = scalar_lea.vmem [#allocation2], 6
      %v2701 = vld [vmem:[%s2700] ss:$2 sm:$0x3]
      %2703 = vrot.lane.b32.xlu0 %v2701, 64
      %v2704 = vpop.permute.xlu0 %2703
      %2706 = vst.msk [vmem:[#allocation3 + $0x8] sm:$0x3] %vm2681, %v2704
      %v2707 = vld [vmem:[%s1168] ss:$2 sm:$0x3]
      %v2709 = vrot.slane %v2707, 6
      %2710 = vrot.lane.b32.xlu0 %v2709, 64
      %v2711 = vpop.permute.xlu0 %2710
      %2713 = vst.msk [vmem:[#allocation3 + $0x8] sm:$0xc] %vm2690, %v2711
      %s2714 = scalar_lea.vmem [#allocation2], 7
      %v2715 = vld [vmem:[%s2714] ss:$2 sm:$0x3]
      %2716 = vst.msk [vmem:[#allocation3 + $0x10] sm:$0x3] %vm2668, %v2715
      %v2717 = vld [vmem:[%s1225] ss:$2 sm:$0x3]
      %v2719 = vrot.slane %v2717, 6
      %2721 = vst.msk [vmem:[#allocation3 + $0x10] sm:$0xc] %vm2674, %v2719
      %s2722 = scalar_lea.vmem [#allocation2], 8
      %v2723 = vld [vmem:[%s2722] ss:$2 sm:$0x3]
      %2725 = vrot.lane.b32.xlu0 %v2723, 64
      %v2726 = vpop.permute.xlu0 %2725
      %2728 = vst.msk [vmem:[#allocation3 + $0x10] sm:$0x3] %vm2681, %v2726
      %v2729 = vld [vmem:[%s1282] ss:$2 sm:$0x3]
      %v2731 = vrot.slane %v2729, 6
      %2732 = vrot.lane.b32.xlu0 %v2731, 64
      %v2733 = vpop.permute.xlu0 %2732
      %2735 = vst.msk [vmem:[#allocation3 + $0x10] sm:$0xc] %vm2690, %v2733
      %v2736 = vld [vmem:[%s1786] ss:$2 sm:$0x3]
      %2737 = vst.msk [vmem:[#allocation3 + $0x18] sm:$0x3] %vm2668, %v2736
      %s2738 = scalar_lea.vmem [#allocation2], 24
      %v2739 = vld [vmem:[%s2738] ss:$2 sm:$0x3]
      %v2741 = vrot.slane %v2739, 6
      %2743 = vst.msk [vmem:[#allocation3 + $0x18] sm:$0xc] %vm2674, %v2741
      %v2744 = vld [vmem:[%s2683] ss:$2 sm:$0x3]
      %2746 = vrot.lane.b32.xlu0 %v2744, 64
      %v2747 = vpop.permute.xlu0 %2746
      %2749 = vst.msk [vmem:[#allocation3 + $0x18] sm:$0x3] %vm2681, %v2747
      %s2750 = scalar_lea.vmem [#allocation2], 25
      %v2751 = vld [vmem:[%s2750] ss:$2 sm:$0x3]
      %v2753 = vrot.slane %v2751, 6
      %2754 = vrot.lane.b32.xlu0 %v2753, 64
      %v2755 = vpop.permute.xlu0 %2754
      %2757 = vst.msk [vmem:[#allocation3 + $0x18] sm:$0xc] %vm2690, %v2755
      %v2758 = vld [vmem:[%s2694] ss:$2 sm:$0x3]
      %2759 = vst.msk [vmem:[#allocation3 + $0x20] sm:$0x3] %vm2668, %v2758
      %s2760 = scalar_lea.vmem [#allocation2], 26
      %v2761 = vld [vmem:[%s2760] ss:$2 sm:$0x3]
      %v2763 = vrot.slane %v2761, 6
      %2765 = vst.msk [vmem:[#allocation3 + $0x20] sm:$0xc] %vm2674, %v2763
      %v2766 = vld [vmem:[#allocation3] sm:$0xf]
      %v2767 = vld [vmem:[#allocation3 + $0x8] sm:$0xf]
      %v2768 = vld [vmem:[#allocation3 + $0x10] sm:$0xf]
      %v2769 = vld [vmem:[#allocation3 + $0x18] sm:$0xf]
      %v2770 = vld [vmem:[#allocation3 + $0x20] sm:$0xf]
      %v2771 = vpack.c.bf16 %v2766, %v2766
      %v2772 = vpack.c.bf16 %v2767, %v2767
      %v2773 = vpack.c.bf16 %v2768, %v2768
      %v2774 = vpack.c.bf16 %v2769, %v2769
      %v2775 = vpack.c.bf16 %v2770, %v2770
      %v2776 = vld [vmem:[%s9] sm:$0xf]
      %v2777 = vld [vmem:[%s9 + $0x4] sm:$0xf]
      %v2778 = vld [vmem:[%s9 + $0x8] sm:$0xf]
      %v2779 = vld [vmem:[%s9 + $0xc] sm:$0xf]
      %v2780 = vld [vmem:[%s9 + $0x10] sm:$0xf]
      %v2781 = vld [vmem:[%s9 + $0x14] sm:$0xf]
      %v2782 = vld [vmem:[%s9 + $0x18] sm:$0xf]
      %v2783 = vld [vmem:[%s9 + $0x1c] sm:$0xf]
      %v2784 = vld [vmem:[%s9 + $0x20] sm:$0xf]
      %v2785 = vld [vmem:[%s9 + $0x24] sm:$0xf]
      %v2786 = vld [vmem:[%s9 + $0x28] sm:$0xf]
      %v2787 = vld [vmem:[%s9 + $0x2c] sm:$0xf]
      %v2788 = vld [vmem:[%s9 + $0x30] sm:$0xf]
      %v2789 = vld [vmem:[%s9 + $0x34] sm:$0xf]
      %v2790 = vld [vmem:[%s9 + $0x38] sm:$0xf]
      %v2791 = vld [vmem:[%s9 + $0x3c] sm:$0xf]
      %v2792 = vld [vmem:[%s9 + $0x40] sm:$0xf]
      %v2793 = vld [vmem:[%s9 + $0x44] sm:$0xf]
      %v2794 = vld [vmem:[%s9 + $0x48] sm:$0xf]
      %v2795 = vld [vmem:[%s9 + $0x4c] sm:$0xf]
      %v2796 = vld [vmem:[%s9 + $0x50] sm:$0xf]
      %v2797 = vld [vmem:[%s9 + $0x54] sm:$0xf]
      %v2798 = vld [vmem:[%s9 + $0x58] sm:$0xf]
      %v2799 = vld [vmem:[%s9 + $0x5c] sm:$0xf]
      %v2800 = vld [vmem:[%s9 + $0x60] sm:$0xf]
      %v2801 = vld [vmem:[%s9 + $0x64] sm:$0xf]
      %v2802 = vld [vmem:[%s9 + $0x68] sm:$0xf]
      %v2803 = vld [vmem:[%s9 + $0x6c] sm:$0xf]
      %v2804 = vld [vmem:[%s9 + $0x70] sm:$0xf]
      %v2805 = vld [vmem:[%s9 + $0x74] sm:$0xf]
      %v2806 = vld [vmem:[%s9 + $0x78] sm:$0xf]
      %v2807 = vld [vmem:[%s9 + $0x7c] sm:$0xf]
      %v2808 = vld [vmem:[%s9 + $0x80] sm:$0xf]
      %v2809 = vld [vmem:[%s9 + $0x84] sm:$0xf]
      %v2810 = vld [vmem:[%s9 + $0x88] sm:$0xf]
      %v2811 = vld [vmem:[%s9 + $0x8c] sm:$0xf]
      %v2812 = vld [vmem:[%s9 + $0x90] sm:$0xf]
      %v2813 = vld [vmem:[%s9 + $0x94] sm:$0xf]
      %v2814 = vld [vmem:[%s9 + $0x98] sm:$0xf]
      %v2815 = vld [vmem:[%s9 + $0x9c] sm:$0xf]
      %v2816 = vld [vmem:[%s9 + $0xa0] sm:$0xf]
      %v2817 = vld [vmem:[%s9 + $0xa4] sm:$0xf]
      %v2818 = vld [vmem:[%s9 + $0xa8] sm:$0xf]
      %v2819 = vld [vmem:[%s9 + $0xac] sm:$0xf]
      %v2820 = vld [vmem:[%s9 + $0xb0] sm:$0xf]
      %v2821 = vld [vmem:[%s9 + $0xb4] sm:$0xf]
      %v2822 = vld [vmem:[%s9 + $0xb8] sm:$0xf]
      %v2823 = vld [vmem:[%s9 + $0xbc] sm:$0xf]
      %v2824 = vld [vmem:[%s9 + $0xc0] sm:$0xf]
      %v2825 = vld [vmem:[%s9 + $0xc4] sm:$0xf]
      %v2826 = vld [vmem:[%s9 + $0xc8] sm:$0xf]
      %v2827 = vld [vmem:[%s9 + $0xcc] sm:$0xf]
      %v2828 = vld [vmem:[%s9 + $0xd0] sm:$0xf]
      %v2829 = vld [vmem:[%s9 + $0xd4] sm:$0xf]
      %v2830 = vld [vmem:[%s9 + $0xd8] sm:$0xf]
      %v2831 = vld [vmem:[%s9 + $0xdc] sm:$0xf]
      %v2832 = vld [vmem:[%s9 + $0xe0] sm:$0xf]
      %v2833 = vld [vmem:[%s9 + $0xe4] sm:$0xf]
      %v2834 = vld [vmem:[%s9 + $0xe8] sm:$0xf]
      %v2835 = vld [vmem:[%s9 + $0xec] sm:$0xf]
      %v2836 = vld [vmem:[%s9 + $0xf0] sm:$0xf]
      %v2837 = vld [vmem:[%s9 + $0xf4] sm:$0xf]
      %v2838 = vld [vmem:[%s9 + $0xf8] sm:$0xf]
      %v2839 = vld [vmem:[%s9 + $0xfc] sm:$0xf]
      %v2840 = vld [vmem:[%s9 + $0x100] sm:$0xf]
      %v2841 = vld [vmem:[%s9 + $0x104] sm:$0xf]
      %v2842 = vld [vmem:[%s9 + $0x108] sm:$0xf]
      %v2843 = vld [vmem:[%s9 + $0x10c] sm:$0xf]
      %v2844 = vld [vmem:[%s9 + $0x110] sm:$0xf]
      %v2845 = vld [vmem:[%s9 + $0x114] sm:$0xf]
      %v2846 = vld [vmem:[%s9 + $0x118] sm:$0xf]
      %v2847 = vld [vmem:[%s9 + $0x11c] sm:$0xf]
      %v2848 = vld [vmem:[%s10] sm:$0x1]
      %v2850 = vperm.slane %v2848, 0
      %v2924 = vunpack.c.l.b16 %v2776
      %v2925 = vunpack.c.l.b16 %v2777
      %v2926 = vunpack.c.l.b16 %v2778
      %v2927 = vunpack.c.l.b16 %v2779
      %v2928 = vunpack.c.l.b16 %v2780
      %v2929 = vunpack.c.l.b16 %v2781
      %v2930 = vunpack.c.l.b16 %v2782
      %v2931 = vunpack.c.l.b16 %v2783
      %v2932 = vunpack.c.l.b16 %v2784
      %v2933 = vunpack.c.l.b16 %v2785
      %v2934 = vunpack.c.l.b16 %v2786
      %v2935 = vunpack.c.l.b16 %v2787
      %v2936 = vunpack.c.l.b16 %v2788
      %v2937 = vunpack.c.l.b16 %v2789
      %v2938 = vunpack.c.l.b16 %v2790
      %v2939 = vunpack.c.l.b16 %v2791
      %v2940 = vunpack.c.l.b16 %v2792
      %v2941 = vunpack.c.l.b16 %v2793
      %v2942 = vunpack.c.l.b16 %v2794
      %v2943 = vunpack.c.l.b16 %v2795
      %v2944 = vunpack.c.l.b16 %v2796
      %v2945 = vunpack.c.l.b16 %v2797
      %v2946 = vunpack.c.l.b16 %v2798
      %v2947 = vunpack.c.l.b16 %v2799
      %v2948 = vunpack.c.l.b16 %v2800
      %v2949 = vunpack.c.l.b16 %v2801
      %v2950 = vunpack.c.l.b16 %v2802
      %v2951 = vunpack.c.l.b16 %v2803
      %v2952 = vunpack.c.l.b16 %v2804
      %v2953 = vunpack.c.l.b16 %v2805
      %v2954 = vunpack.c.l.b16 %v2806
      %v2955 = vunpack.c.l.b16 %v2807
      %v2956 = vunpack.c.l.b16 %v2808
      %v2957 = vunpack.c.l.b16 %v2809
      %v2958 = vunpack.c.l.b16 %v2810
      %v2959 = vunpack.c.l.b16 %v2811
      %v2960 = vunpack.c.l.b16 %v2812
      %v2961 = vunpack.c.l.b16 %v2813
      %v2962 = vunpack.c.l.b16 %v2814
      %v2963 = vunpack.c.l.b16 %v2815
      %v2964 = vunpack.c.l.b16 %v2816
      %v2965 = vunpack.c.l.b16 %v2817
      %v2966 = vunpack.c.l.b16 %v2818
      %v2967 = vunpack.c.l.b16 %v2819
      %v2968 = vunpack.c.l.b16 %v2820
      %v2969 = vunpack.c.l.b16 %v2821
      %v2970 = vunpack.c.l.b16 %v2822
      %v2971 = vunpack.c.l.b16 %v2823
      %v2972 = vunpack.c.l.b16 %v2824
      %v2973 = vunpack.c.l.b16 %v2825
      %v2974 = vunpack.c.l.b16 %v2826
      %v2975 = vunpack.c.l.b16 %v2827
      %v2976 = vunpack.c.l.b16 %v2828
      %v2977 = vunpack.c.l.b16 %v2829
      %v2978 = vunpack.c.l.b16 %v2830
      %v2979 = vunpack.c.l.b16 %v2831
      %v2980 = vunpack.c.l.b16 %v2832
      %v2981 = vunpack.c.l.b16 %v2833
      %v2982 = vunpack.c.l.b16 %v2834
      %v2983 = vunpack.c.l.b16 %v2835
      %v2984 = vunpack.c.l.b16 %v2836
      %v2985 = vunpack.c.l.b16 %v2837
      %v2986 = vunpack.c.l.b16 %v2838
      %v2987 = vunpack.c.l.b16 %v2839
      %v2988 = vunpack.c.l.b16 %v2840
      %v2989 = vunpack.c.l.b16 %v2841
      %v2990 = vunpack.c.l.b16 %v2842
      %v2991 = vunpack.c.l.b16 %v2843
      %v2992 = vunpack.c.l.b16 %v2844
      %v2993 = vunpack.c.l.b16 %v2845
      %v2994 = vunpack.c.l.b16 %v2846
      %v2995 = vunpack.c.l.b16 %v2847
      %v2996 = vpack.c.b16 %v2925, %v2924
      %v2997 = vpack.c.b16 %v2927, %v2926
      %v2998 = vpack.c.b16 %v2929, %v2928
      %v2999 = vpack.c.b16 %v2931, %v2930
      %v3000 = vpack.c.b16 %v2933, %v2932
      %v3001 = vpack.c.b16 %v2935, %v2934
      %v3002 = vpack.c.b16 %v2937, %v2936
      %v3003 = vpack.c.b16 %v2939, %v2938
      %v3004 = vpack.c.b16 %v2941, %v2940
      %v3005 = vpack.c.b16 %v2943, %v2942
      %v3006 = vpack.c.b16 %v2945, %v2944
      %v3007 = vpack.c.b16 %v2947, %v2946
      %v3008 = vpack.c.b16 %v2949, %v2948
      %v3009 = vpack.c.b16 %v2951, %v2950
      %v3010 = vpack.c.b16 %v2953, %v2952
      %v3011 = vpack.c.b16 %v2955, %v2954
      %v3012 = vpack.c.b16 %v2957, %v2956
      %v3013 = vpack.c.b16 %v2959, %v2958
      %v3014 = vpack.c.b16 %v2961, %v2960
      %v3015 = vpack.c.b16 %v2963, %v2962
      %v3016 = vpack.c.b16 %v2965, %v2964
      %v3017 = vpack.c.b16 %v2967, %v2966
      %v3018 = vpack.c.b16 %v2969, %v2968
      %v3019 = vpack.c.b16 %v2971, %v2970
      %v3020 = vpack.c.b16 %v2973, %v2972
      %v3021 = vpack.c.b16 %v2975, %v2974
      %v3022 = vpack.c.b16 %v2977, %v2976
      %v3023 = vpack.c.b16 %v2979, %v2978
      %v3024 = vpack.c.b16 %v2981, %v2980
      %v3025 = vpack.c.b16 %v2983, %v2982
      %v3026 = vpack.c.b16 %v2985, %v2984
      %v3027 = vpack.c.b16 %v2987, %v2986
      %v3028 = vpack.c.b16 %v2989, %v2988
      %v3029 = vpack.c.b16 %v2991, %v2990
      %v3030 = vpack.c.b16 %v2993, %v2992
      %v3031 = vpack.c.b16 %v2995, %v2994
      %v3069 = vsel %vm2088, %v2775, 0
      %3071 = vmatpush.bf16.msra.mxu0 %v3003
      %3072 = vmatpush.bf16.msra.mxu0 %v3002
      %3073 = vmatpush.bf16.msra.mxu0 %v3001
      %3074 = vmatpush.bf16.msra.mxu0 %v3000
      %3075 = vmatpush.bf16.msra.mxu0 %v2999
      %3076 = vmatpush.bf16.msra.mxu0 %v2998
      %3077 = vmatpush.bf16.msra.mxu0 %v2997
      %3078 = vmatpush.bf16.msra.mxu0 %v2996
      %3079 = vmatmul.bf16.gmra.mxu0 %v2771
      %v3080 = vpop.f32.mrf.mxu0
      %v3081 = vadd.f32 %v2850, %v3080
      %v3082 = vpop.f32.mrf.mxu0
      %3083 = vdwg.mxu0
      %3084 = vmatpush.bf16.msra.mxu0 %v3011
      %3085 = vmatpush.bf16.msra.mxu0 %v3010
      %3086 = vmatpush.bf16.msra.mxu0 %v3009
      %3087 = vmatpush.bf16.msra.mxu0 %v3008
      %3088 = vmatpush.bf16.msra.mxu0 %v3007
      %3089 = vmatpush.bf16.msra.mxu0 %v3006
      %3090 = vmatpush.bf16.msra.mxu0 %v3005
      %3091 = vmatpush.bf16.msra.mxu0 %v3004
      %3092 = vmatmul.bf16.gmra.mxu0 %v2772
      %v3093 = vpop.f32.mrf.mxu0
      %v3094 = vadd.f32 %v3081, %v3093
      %v3095 = vpop.f32.mrf.mxu0
      %3096 = vdwg.mxu0
      %3097 = vmatpush.bf16.msra.mxu0 %v3019
      %3098 = vmatpush.bf16.msra.mxu0 %v3018
      %3099 = vmatpush.bf16.msra.mxu0 %v3017
      %3100 = vmatpush.bf16.msra.mxu0 %v3016
      %3101 = vmatpush.bf16.msra.mxu0 %v3015
      %3102 = vmatpush.bf16.msra.mxu0 %v3014
      %3103 = vmatpush.bf16.msra.mxu0 %v3013
      %3104 = vmatpush.bf16.msra.mxu0 %v3012
      %3105 = vmatmul.bf16.gmra.mxu0 %v2773
      %v3106 = vpop.f32.mrf.mxu0
      %v3107 = vadd.f32 %v3094, %v3106
      %v3108 = vpop.f32.mrf.mxu0
      %3109 = vdwg.mxu0
      %3110 = vmatpush.bf16.msra.mxu0 %v3027
      %3111 = vmatpush.bf16.msra.mxu0 %v3026
      %3112 = vmatpush.bf16.msra.mxu0 %v3025
      %3113 = vmatpush.bf16.msra.mxu0 %v3024
      %3114 = vmatpush.bf16.msra.mxu0 %v3023
      %3115 = vmatpush.bf16.msra.mxu0 %v3022
      %3116 = vmatpush.bf16.msra.mxu0 %v3021
      %3117 = vmatpush.bf16.msra.mxu0 %v3020
      %3118 = vmatmul.bf16.gmra.mxu0 %v2774
      %v3119 = vpop.f32.mrf.mxu0
      %v3120 = vadd.f32 %v3107, %v3119
      %v3121 = vpop.f32.mrf.mxu0
      %3122 = vdwg.mxu0
      %3123 = vmatpush.bf16.msra.mxu0 0
      %3124 = vmatpush.bf16.msra.mxu0 0
      %3125 = vmatpush.bf16.msra.mxu0 0
      %3126 = vmatpush.bf16.msra.mxu0 0
      %3127 = vmatpush.bf16.msra.mxu0 %v3031
      %3128 = vmatpush.bf16.msra.mxu0 %v3030
      %3129 = vmatpush.bf16.msra.mxu0 %v3029
      %3130 = vmatpush.bf16.msra.mxu0 %v3028
      %3131 = vmatmul.bf16.gmra.mxu0 %v3069
      %v3132 = vpop.f32.mrf.mxu0
      %v3133 = vadd.f32 %v3120, %v3132
      %v3134 = vpop.f32.mrf.mxu0
      %3135 = vdwg.mxu0
      %v3136 = vmax.f32 %v3133, 0.0
      %3137 = vst [vmem:[#allocation2] sm:$0xff] 0.0
      %3138 = vst [vmem:[#allocation2 + $0x8] sm:$0xff] 0.0
      %3139 = vst [vmem:[#allocation2 + $0x5] sm:$0x3] %v3136
      %3140 = vst [vmem:[#allocation2 + $0x7] sm:$0xc] %v3136
      %v3141 = vld [vmem:[#allocation2] sm:$0x3]
      %3142 = vst [vmem:[#allocation3] sm:$0x3] %v3141
      %v3143 = vld [vmem:[#allocation2 + $0x4] sm:$0x3]
      %v3145 = vrot.slane %v3143, 6
      %3147 = vst [vmem:[#allocation3] sm:$0xc] %v3145
      %v3148 = vld [vmem:[#allocation2 + $0x1] sm:$0x3]
      %3149 = vst [vmem:[#allocation3 + $0x8] sm:$0x3] %v3148
      %v3150 = vld [vmem:[#allocation2 + $0x5] sm:$0x3]
      %v3152 = vrot.slane %v3150, 6
      %3154 = vst [vmem:[#allocation3 + $0x8] sm:$0xc] %v3152
      %v3155 = vld [vmem:[#allocation2 + $0x2] sm:$0x3]
      %3156 = vst [vmem:[#allocation3 + $0x10] sm:$0x3] %v3155
      %v3157 = vld [vmem:[#allocation2 + $0x6] sm:$0x3]
      %v3159 = vrot.slane %v3157, 6
      %3161 = vst [vmem:[#allocation3 + $0x10] sm:$0xc] %v3159
      %v3162 = vld [vmem:[#allocation2 + $0x4] sm:$0x3]
      %3163 = vst [vmem:[#allocation3 + $0x18] sm:$0x3] %v3162
      %v3164 = vld [vmem:[#allocation2 + $0x8] sm:$0x3]
      %v3166 = vrot.slane %v3164, 6
      %3168 = vst [vmem:[#allocation3 + $0x18] sm:$0xc] %v3166
      %v3169 = vld [vmem:[#allocation2 + $0x5] sm:$0x3]
      %3170 = vst [vmem:[#allocation3 + $0x20] sm:$0x3] %v3169
      %v3171 = vld [vmem:[#allocation2 + $0x9] sm:$0x3]
      %v3173 = vrot.slane %v3171, 6
      %3175 = vst [vmem:[#allocation3 + $0x20] sm:$0xc] %v3173
      %v3176 = vld [vmem:[#allocation2 + $0x6] sm:$0x3]
      %3177 = vst [vmem:[#allocation3 + $0x28] sm:$0x3] %v3176
      %v3178 = vld [vmem:[#allocation2 + $0xa] sm:$0x3]
      %v3180 = vrot.slane %v3178, 6
      %3182 = vst [vmem:[#allocation3 + $0x28] sm:$0xc] %v3180
      %v3183 = vld [vmem:[#allocation2 + $0x8] sm:$0x3]
      %3184 = vst [vmem:[#allocation3 + $0x30] sm:$0x3] %v3183
      %v3185 = vld [vmem:[#allocation2 + $0xc] sm:$0x3]
      %v3187 = vrot.slane %v3185, 6
      %3189 = vst [vmem:[#allocation3 + $0x30] sm:$0xc] %v3187
      %v3190 = vld [vmem:[#allocation2 + $0x9] sm:$0x3]
      %3191 = vst [vmem:[#allocation3 + $0x38] sm:$0x3] %v3190
      %v3192 = vld [vmem:[#allocation2 + $0xd] sm:$0x3]
      %v3194 = vrot.slane %v3192, 6
      %3196 = vst [vmem:[#allocation3 + $0x38] sm:$0xc] %v3194
      %v3197 = vld [vmem:[#allocation2 + $0xa] sm:$0x3]
      %3198 = vst [vmem:[#allocation3 + $0x40] sm:$0x3] %v3197
      %v3199 = vld [vmem:[#allocation2 + $0xe] sm:$0x3]
      %v3201 = vrot.slane %v3199, 6
      %3203 = vst [vmem:[#allocation3 + $0x40] sm:$0xc] %v3201
      %v3204 = vld [vmem:[#allocation3] sm:$0xf]
      %v3205 = vld [vmem:[#allocation3 + $0x8] sm:$0xf]
      %v3206 = vld [vmem:[#allocation3 + $0x10] sm:$0xf]
      %v3207 = vld [vmem:[#allocation3 + $0x18] sm:$0xf]
      %v3208 = vld [vmem:[#allocation3 + $0x20] sm:$0xf]
      %v3209 = vld [vmem:[#allocation3 + $0x28] sm:$0xf]
      %v3210 = vld [vmem:[#allocation3 + $0x30] sm:$0xf]
      %v3211 = vld [vmem:[#allocation3 + $0x38] sm:$0xf]
      %v3212 = vld [vmem:[#allocation3 + $0x40] sm:$0xf]
      %v3213 = vpack.c.bf16 %v3204, %v3204
      %v3214 = vpack.c.bf16 %v3205, %v3205
      %v3215 = vpack.c.bf16 %v3206, %v3206
      %v3216 = vpack.c.bf16 %v3207, %v3207
      %v3217 = vpack.c.bf16 %v3208, %v3208
      %v3218 = vpack.c.bf16 %v3209, %v3209
      %v3219 = vpack.c.bf16 %v3210, %v3210
      %v3220 = vpack.c.bf16 %v3211, %v3211
      %v3221 = vpack.c.bf16 %v3212, %v3212
      %v3222 = vld [vmem:[%s11] sm:$0xf]
      %v3223 = vld [vmem:[%s11 + $0x4] sm:$0xf]
      %v3224 = vld [vmem:[%s11 + $0x8] sm:$0xf]
      %v3225 = vld [vmem:[%s11 + $0xc] sm:$0xf]
      %v3226 = vld [vmem:[%s11 + $0x10] sm:$0xf]
      %v3227 = vld [vmem:[%s11 + $0x14] sm:$0xf]
      %v3228 = vld [vmem:[%s11 + $0x18] sm:$0xf]
      %v3229 = vld [vmem:[%s11 + $0x1c] sm:$0xf]
      %v3230 = vld [vmem:[%s11 + $0x20] sm:$0xf]
      %v3231 = vld [vmem:[%s11 + $0x24] sm:$0xf]
      %v3232 = vld [vmem:[%s11 + $0x28] sm:$0xf]
      %v3233 = vld [vmem:[%s11 + $0x2c] sm:$0xf]
      %v3234 = vld [vmem:[%s11 + $0x30] sm:$0xf]
      %v3235 = vld [vmem:[%s11 + $0x34] sm:$0xf]
      %v3236 = vld [vmem:[%s11 + $0x38] sm:$0xf]
      %v3237 = vld [vmem:[%s11 + $0x3c] sm:$0xf]
      %v3238 = vld [vmem:[%s11 + $0x40] sm:$0xf]
      %v3239 = vld [vmem:[%s11 + $0x44] sm:$0xf]
      %v3240 = vld [vmem:[%s11 + $0x48] sm:$0xf]
      %v3241 = vld [vmem:[%s11 + $0x4c] sm:$0xf]
      %v3242 = vld [vmem:[%s11 + $0x50] sm:$0xf]
      %v3243 = vld [vmem:[%s11 + $0x54] sm:$0xf]
      %v3244 = vld [vmem:[%s11 + $0x58] sm:$0xf]
      %v3245 = vld [vmem:[%s11 + $0x5c] sm:$0xf]
      %v3246 = vld [vmem:[%s11 + $0x60] sm:$0xf]
      %v3247 = vld [vmem:[%s11 + $0x64] sm:$0xf]
      %v3248 = vld [vmem:[%s11 + $0x68] sm:$0xf]
      %v3249 = vld [vmem:[%s11 + $0x6c] sm:$0xf]
      %v3250 = vld [vmem:[%s11 + $0x70] sm:$0xf]
      %v3251 = vld [vmem:[%s11 + $0x74] sm:$0xf]
      %v3252 = vld [vmem:[%s11 + $0x78] sm:$0xf]
      %v3253 = vld [vmem:[%s11 + $0x7c] sm:$0xf]
      %v3254 = vld [vmem:[%s11 + $0x80] sm:$0xf]
      %v3255 = vld [vmem:[%s11 + $0x84] sm:$0xf]
      %v3256 = vld [vmem:[%s11 + $0x88] sm:$0xf]
      %v3257 = vld [vmem:[%s11 + $0x8c] sm:$0xf]
      %v3258 = vld [vmem:[%s11 + $0x90] sm:$0xf]
      %v3259 = vld [vmem:[%s11 + $0x94] sm:$0xf]
      %v3260 = vld [vmem:[%s11 + $0x98] sm:$0xf]
      %v3261 = vld [vmem:[%s11 + $0x9c] sm:$0xf]
      %v3262 = vld [vmem:[%s11 + $0xa0] sm:$0xf]
      %v3263 = vld [vmem:[%s11 + $0xa4] sm:$0xf]
      %v3264 = vld [vmem:[%s11 + $0xa8] sm:$0xf]
      %v3265 = vld [vmem:[%s11 + $0xac] sm:$0xf]
      %v3266 = vld [vmem:[%s11 + $0xb0] sm:$0xf]
      %v3267 = vld [vmem:[%s11 + $0xb4] sm:$0xf]
      %v3268 = vld [vmem:[%s11 + $0xb8] sm:$0xf]
      %v3269 = vld [vmem:[%s11 + $0xbc] sm:$0xf]
      %v3270 = vld [vmem:[%s11 + $0xc0] sm:$0xf]
      %v3271 = vld [vmem:[%s11 + $0xc4] sm:$0xf]
      %v3272 = vld [vmem:[%s11 + $0xc8] sm:$0xf]
      %v3273 = vld [vmem:[%s11 + $0xcc] sm:$0xf]
      %v3274 = vld [vmem:[%s11 + $0xd0] sm:$0xf]
      %v3275 = vld [vmem:[%s11 + $0xd4] sm:$0xf]
      %v3276 = vld [vmem:[%s11 + $0xd8] sm:$0xf]
      %v3277 = vld [vmem:[%s11 + $0xdc] sm:$0xf]
      %v3278 = vld [vmem:[%s11 + $0xe0] sm:$0xf]
      %v3279 = vld [vmem:[%s11 + $0xe4] sm:$0xf]
      %v3280 = vld [vmem:[%s11 + $0xe8] sm:$0xf]
      %v3281 = vld [vmem:[%s11 + $0xec] sm:$0xf]
      %v3282 = vld [vmem:[%s11 + $0xf0] sm:$0xf]
      %v3283 = vld [vmem:[%s11 + $0xf4] sm:$0xf]
      %v3284 = vld [vmem:[%s11 + $0xf8] sm:$0xf]
      %v3285 = vld [vmem:[%s11 + $0xfc] sm:$0xf]
      %v3286 = vld [vmem:[%s11 + $0x100] sm:$0xf]
      %v3287 = vld [vmem:[%s11 + $0x104] sm:$0xf]
      %v3288 = vld [vmem:[%s11 + $0x108] sm:$0xf]
      %v3289 = vld [vmem:[%s11 + $0x10c] sm:$0xf]
      %v3290 = vld [vmem:[%s11 + $0x110] sm:$0xf]
      %v3291 = vld [vmem:[%s11 + $0x114] sm:$0xf]
      %v3292 = vld [vmem:[%s11 + $0x118] sm:$0xf]
      %v3293 = vld [vmem:[%s11 + $0x11c] sm:$0xf]
      %v3294 = vld [vmem:[%s11 + $0x120] sm:$0xf]
      %v3295 = vld [vmem:[%s11 + $0x124] sm:$0xf]
      %v3296 = vld [vmem:[%s11 + $0x128] sm:$0xf]
      %v3297 = vld [vmem:[%s11 + $0x12c] sm:$0xf]
      %v3298 = vld [vmem:[%s11 + $0x130] sm:$0xf]
      %v3299 = vld [vmem:[%s11 + $0x134] sm:$0xf]
      %v3300 = vld [vmem:[%s11 + $0x138] sm:$0xf]
      %v3301 = vld [vmem:[%s11 + $0x13c] sm:$0xf]
      %v3302 = vld [vmem:[%s11 + $0x140] sm:$0xf]
      %v3303 = vld [vmem:[%s11 + $0x144] sm:$0xf]
      %v3304 = vld [vmem:[%s11 + $0x148] sm:$0xf]
      %v3305 = vld [vmem:[%s11 + $0x14c] sm:$0xf]
      %v3306 = vld [vmem:[%s11 + $0x150] sm:$0xf]
      %v3307 = vld [vmem:[%s11 + $0x154] sm:$0xf]
      %v3308 = vld [vmem:[%s11 + $0x158] sm:$0xf]
      %v3309 = vld [vmem:[%s11 + $0x15c] sm:$0xf]
      %v3310 = vld [vmem:[%s11 + $0x160] sm:$0xf]
      %v3311 = vld [vmem:[%s11 + $0x164] sm:$0xf]
      %v3312 = vld [vmem:[%s11 + $0x168] sm:$0xf]
      %v3313 = vld [vmem:[%s11 + $0x16c] sm:$0xf]
      %v3314 = vld [vmem:[%s11 + $0x170] sm:$0xf]
      %v3315 = vld [vmem:[%s11 + $0x174] sm:$0xf]
      %v3316 = vld [vmem:[%s11 + $0x178] sm:$0xf]
      %v3317 = vld [vmem:[%s11 + $0x17c] sm:$0xf]
      %v3318 = vld [vmem:[%s11 + $0x180] sm:$0xf]
      %v3319 = vld [vmem:[%s11 + $0x184] sm:$0xf]
      %v3320 = vld [vmem:[%s11 + $0x188] sm:$0xf]
      %v3321 = vld [vmem:[%s11 + $0x18c] sm:$0xf]
      %v3322 = vld [vmem:[%s11 + $0x190] sm:$0xf]
      %v3323 = vld [vmem:[%s11 + $0x194] sm:$0xf]
      %v3324 = vld [vmem:[%s11 + $0x198] sm:$0xf]
      %v3325 = vld [vmem:[%s11 + $0x19c] sm:$0xf]
      %v3326 = vld [vmem:[%s11 + $0x1a0] sm:$0xf]
      %v3327 = vld [vmem:[%s11 + $0x1a4] sm:$0xf]
      %v3328 = vld [vmem:[%s11 + $0x1a8] sm:$0xf]
      %v3329 = vld [vmem:[%s11 + $0x1ac] sm:$0xf]
      %v3330 = vld [vmem:[%s11 + $0x1b0] sm:$0xf]
      %v3331 = vld [vmem:[%s11 + $0x1b4] sm:$0xf]
      %v3332 = vld [vmem:[%s11 + $0x1b8] sm:$0xf]
      %v3333 = vld [vmem:[%s11 + $0x1bc] sm:$0xf]
      %v3334 = vld [vmem:[%s11 + $0x1c0] sm:$0xf]
      %v3335 = vld [vmem:[%s11 + $0x1c4] sm:$0xf]
      %v3336 = vld [vmem:[%s11 + $0x1c8] sm:$0xf]
      %v3337 = vld [vmem:[%s11 + $0x1cc] sm:$0xf]
      %v3338 = vld [vmem:[%s11 + $0x1d0] sm:$0xf]
      %v3339 = vld [vmem:[%s11 + $0x1d4] sm:$0xf]
      %v3340 = vld [vmem:[%s11 + $0x1d8] sm:$0xf]
      %v3341 = vld [vmem:[%s11 + $0x1dc] sm:$0xf]
      %v3342 = vld [vmem:[%s11 + $0x1e0] sm:$0xf]
      %v3343 = vld [vmem:[%s11 + $0x1e4] sm:$0xf]
      %v3344 = vld [vmem:[%s11 + $0x1e8] sm:$0xf]
      %v3345 = vld [vmem:[%s11 + $0x1ec] sm:$0xf]
      %v3346 = vld [vmem:[%s11 + $0x1f0] sm:$0xf]
      %v3347 = vld [vmem:[%s11 + $0x1f4] sm:$0xf]
      %v3348 = vld [vmem:[%s11 + $0x1f8] sm:$0xf]
      %v3349 = vld [vmem:[%s11 + $0x1fc] sm:$0xf]
      %v3350 = vld [vmem:[%s11 + $0x200] sm:$0xf]
      %v3351 = vld [vmem:[%s11 + $0x204] sm:$0xf]
      %v3352 = vld [vmem:[%s11 + $0x208] sm:$0xf]
      %v3353 = vld [vmem:[%s11 + $0x20c] sm:$0xf]
      %v3354 = vld [vmem:[%s11 + $0x210] sm:$0xf]
      %v3355 = vld [vmem:[%s11 + $0x214] sm:$0xf]
      %v3356 = vld [vmem:[%s11 + $0x218] sm:$0xf]
      %v3357 = vld [vmem:[%s11 + $0x21c] sm:$0xf]
      %v3358 = vld [vmem:[%s11 + $0x220] sm:$0xf]
      %v3359 = vld [vmem:[%s11 + $0x224] sm:$0xf]
      %v3360 = vld [vmem:[%s11 + $0x228] sm:$0xf]
      %v3361 = vld [vmem:[%s11 + $0x22c] sm:$0xf]
      %v3362 = vld [vmem:[%s11 + $0x230] sm:$0xf]
      %v3363 = vld [vmem:[%s11 + $0x234] sm:$0xf]
      %v3364 = vld [vmem:[%s11 + $0x238] sm:$0xf]
      %v3365 = vld [vmem:[%s11 + $0x23c] sm:$0xf]
      %v3366 = vld [vmem:[%s12] sm:$0x1]
      %v3368 = vperm.slane %v3366, 0
      %v3514 = vunpack.c.l.b16 %v3222
      %v3515 = vunpack.c.l.b16 %v3223
      %v3516 = vunpack.c.l.b16 %v3224
      %v3517 = vunpack.c.l.b16 %v3225
      %v3518 = vunpack.c.l.b16 %v3226
      %v3519 = vunpack.c.l.b16 %v3227
      %v3520 = vunpack.c.l.b16 %v3228
      %v3521 = vunpack.c.l.b16 %v3229
      %v3522 = vunpack.c.l.b16 %v3230
      %v3523 = vunpack.c.l.b16 %v3231
      %v3524 = vunpack.c.l.b16 %v3232
      %v3525 = vunpack.c.l.b16 %v3233
      %v3526 = vunpack.c.l.b16 %v3234
      %v3527 = vunpack.c.l.b16 %v3235
      %v3528 = vunpack.c.l.b16 %v3236
      %v3529 = vunpack.c.l.b16 %v3237
      %v3530 = vunpack.c.l.b16 %v3238
      %v3531 = vunpack.c.l.b16 %v3239
      %v3532 = vunpack.c.l.b16 %v3240
      %v3533 = vunpack.c.l.b16 %v3241
      %v3534 = vunpack.c.l.b16 %v3242
      %v3535 = vunpack.c.l.b16 %v3243
      %v3536 = vunpack.c.l.b16 %v3244
      %v3537 = vunpack.c.l.b16 %v3245
      %v3538 = vunpack.c.l.b16 %v3246
      %v3539 = vunpack.c.l.b16 %v3247
      %v3540 = vunpack.c.l.b16 %v3248
      %v3541 = vunpack.c.l.b16 %v3249
      %v3542 = vunpack.c.l.b16 %v3250
      %v3543 = vunpack.c.l.b16 %v3251
      %v3544 = vunpack.c.l.b16 %v3252
      %v3545 = vunpack.c.l.b16 %v3253
      %v3546 = vunpack.c.l.b16 %v3254
      %v3547 = vunpack.c.l.b16 %v3255
      %v3548 = vunpack.c.l.b16 %v3256
      %v3549 = vunpack.c.l.b16 %v3257
      %v3550 = vunpack.c.l.b16 %v3258
      %v3551 = vunpack.c.l.b16 %v3259
      %v3552 = vunpack.c.l.b16 %v3260
      %v3553 = vunpack.c.l.b16 %v3261
      %v3554 = vunpack.c.l.b16 %v3262
      %v3555 = vunpack.c.l.b16 %v3263
      %v3556 = vunpack.c.l.b16 %v3264
      %v3557 = vunpack.c.l.b16 %v3265
      %v3558 = vunpack.c.l.b16 %v3266
      %v3559 = vunpack.c.l.b16 %v3267
      %v3560 = vunpack.c.l.b16 %v3268
      %v3561 = vunpack.c.l.b16 %v3269
      %v3562 = vunpack.c.l.b16 %v3270
      %v3563 = vunpack.c.l.b16 %v3271
      %v3564 = vunpack.c.l.b16 %v3272
      %v3565 = vunpack.c.l.b16 %v3273
      %v3566 = vunpack.c.l.b16 %v3274
      %v3567 = vunpack.c.l.b16 %v3275
      %v3568 = vunpack.c.l.b16 %v3276
      %v3569 = vunpack.c.l.b16 %v3277
      %v3570 = vunpack.c.l.b16 %v3278
      %v3571 = vunpack.c.l.b16 %v3279
      %v3572 = vunpack.c.l.b16 %v3280
      %v3573 = vunpack.c.l.b16 %v3281
      %v3574 = vunpack.c.l.b16 %v3282
      %v3575 = vunpack.c.l.b16 %v3283
      %v3576 = vunpack.c.l.b16 %v3284
      %v3577 = vunpack.c.l.b16 %v3285
      %v3578 = vunpack.c.l.b16 %v3286
      %v3579 = vunpack.c.l.b16 %v3287
      %v3580 = vunpack.c.l.b16 %v3288
      %v3581 = vunpack.c.l.b16 %v3289
      %v3582 = vunpack.c.l.b16 %v3290
      %v3583 = vunpack.c.l.b16 %v3291
      %v3584 = vunpack.c.l.b16 %v3292
      %v3585 = vunpack.c.l.b16 %v3293
      %v3586 = vunpack.c.l.b16 %v3294
      %v3587 = vunpack.c.l.b16 %v3295
      %v3588 = vunpack.c.l.b16 %v3296
      %v3589 = vunpack.c.l.b16 %v3297
      %v3590 = vunpack.c.l.b16 %v3298
      %v3591 = vunpack.c.l.b16 %v3299
      %v3592 = vunpack.c.l.b16 %v3300
      %v3593 = vunpack.c.l.b16 %v3301
      %v3594 = vunpack.c.l.b16 %v3302
      %v3595 = vunpack.c.l.b16 %v3303
      %v3596 = vunpack.c.l.b16 %v3304
      %v3597 = vunpack.c.l.b16 %v3305
      %v3598 = vunpack.c.l.b16 %v3306
      %v3599 = vunpack.c.l.b16 %v3307
      %v3600 = vunpack.c.l.b16 %v3308
      %v3601 = vunpack.c.l.b16 %v3309
      %v3602 = vunpack.c.l.b16 %v3310
      %v3603 = vunpack.c.l.b16 %v3311
      %v3604 = vunpack.c.l.b16 %v3312
      %v3605 = vunpack.c.l.b16 %v3313
      %v3606 = vunpack.c.l.b16 %v3314
      %v3607 = vunpack.c.l.b16 %v3315
      %v3608 = vunpack.c.l.b16 %v3316
      %v3609 = vunpack.c.l.b16 %v3317
      %v3610 = vunpack.c.l.b16 %v3318
      %v3611 = vunpack.c.l.b16 %v3319
      %v3612 = vunpack.c.l.b16 %v3320
      %v3613 = vunpack.c.l.b16 %v3321
      %v3614 = vunpack.c.l.b16 %v3322
      %v3615 = vunpack.c.l.b16 %v3323
      %v3616 = vunpack.c.l.b16 %v3324
      %v3617 = vunpack.c.l.b16 %v3325
      %v3618 = vunpack.c.l.b16 %v3326
      %v3619 = vunpack.c.l.b16 %v3327
      %v3620 = vunpack.c.l.b16 %v3328
      %v3621 = vunpack.c.l.b16 %v3329
      %v3622 = vunpack.c.l.b16 %v3330
      %v3623 = vunpack.c.l.b16 %v3331
      %v3624 = vunpack.c.l.b16 %v3332
      %v3625 = vunpack.c.l.b16 %v3333
      %v3626 = vunpack.c.l.b16 %v3334
      %v3627 = vunpack.c.l.b16 %v3335
      %v3628 = vunpack.c.l.b16 %v3336
      %v3629 = vunpack.c.l.b16 %v3337
      %v3630 = vunpack.c.l.b16 %v3338
      %v3631 = vunpack.c.l.b16 %v3339
      %v3632 = vunpack.c.l.b16 %v3340
      %v3633 = vunpack.c.l.b16 %v3341
      %v3634 = vunpack.c.l.b16 %v3342
      %v3635 = vunpack.c.l.b16 %v3343
      %v3636 = vunpack.c.l.b16 %v3344
      %v3637 = vunpack.c.l.b16 %v3345
      %v3638 = vunpack.c.l.b16 %v3346
      %v3639 = vunpack.c.l.b16 %v3347
      %v3640 = vunpack.c.l.b16 %v3348
      %v3641 = vunpack.c.l.b16 %v3349
      %v3642 = vunpack.c.l.b16 %v3350
      %v3643 = vunpack.c.l.b16 %v3351
      %v3644 = vunpack.c.l.b16 %v3352
      %v3645 = vunpack.c.l.b16 %v3353
      %v3646 = vunpack.c.l.b16 %v3354
      %v3647 = vunpack.c.l.b16 %v3355
      %v3648 = vunpack.c.l.b16 %v3356
      %v3649 = vunpack.c.l.b16 %v3357
      %v3650 = vunpack.c.l.b16 %v3358
      %v3651 = vunpack.c.l.b16 %v3359
      %v3652 = vunpack.c.l.b16 %v3360
      %v3653 = vunpack.c.l.b16 %v3361
      %v3654 = vunpack.c.l.b16 %v3362
      %v3655 = vunpack.c.l.b16 %v3363
      %v3656 = vunpack.c.l.b16 %v3364
      %v3657 = vunpack.c.l.b16 %v3365
      %v3658 = vpack.c.b16 %v3515, %v3514
      %v3659 = vpack.c.b16 %v3517, %v3516
      %v3660 = vpack.c.b16 %v3519, %v3518
      %v3661 = vpack.c.b16 %v3521, %v3520
      %v3662 = vpack.c.b16 %v3523, %v3522
      %v3663 = vpack.c.b16 %v3525, %v3524
      %v3664 = vpack.c.b16 %v3527, %v3526
      %v3665 = vpack.c.b16 %v3529, %v3528
      %v3666 = vpack.c.b16 %v3531, %v3530
      %v3667 = vpack.c.b16 %v3533, %v3532
      %v3668 = vpack.c.b16 %v3535, %v3534
      %v3669 = vpack.c.b16 %v3537, %v3536
      %v3670 = vpack.c.b16 %v3539, %v3538
      %v3671 = vpack.c.b16 %v3541, %v3540
      %v3672 = vpack.c.b16 %v3543, %v3542
      %v3673 = vpack.c.b16 %v3545, %v3544
      %v3674 = vpack.c.b16 %v3547, %v3546
      %v3675 = vpack.c.b16 %v3549, %v3548
      %v3676 = vpack.c.b16 %v3551, %v3550
      %v3677 = vpack.c.b16 %v3553, %v3552
      %v3678 = vpack.c.b16 %v3555, %v3554
      %v3679 = vpack.c.b16 %v3557, %v3556
      %v3680 = vpack.c.b16 %v3559, %v3558
      %v3681 = vpack.c.b16 %v3561, %v3560
      %v3682 = vpack.c.b16 %v3563, %v3562
      %v3683 = vpack.c.b16 %v3565, %v3564
      %v3684 = vpack.c.b16 %v3567, %v3566
      %v3685 = vpack.c.b16 %v3569, %v3568
      %v3686 = vpack.c.b16 %v3571, %v3570
      %v3687 = vpack.c.b16 %v3573, %v3572
      %v3688 = vpack.c.b16 %v3575, %v3574
      %v3689 = vpack.c.b16 %v3577, %v3576
      %v3690 = vpack.c.b16 %v3579, %v3578
      %v3691 = vpack.c.b16 %v3581, %v3580
      %v3692 = vpack.c.b16 %v3583, %v3582
      %v3693 = vpack.c.b16 %v3585, %v3584
      %v3694 = vpack.c.b16 %v3587, %v3586
      %v3695 = vpack.c.b16 %v3589, %v3588
      %v3696 = vpack.c.b16 %v3591, %v3590
      %v3697 = vpack.c.b16 %v3593, %v3592
      %v3698 = vpack.c.b16 %v3595, %v3594
      %v3699 = vpack.c.b16 %v3597, %v3596
      %v3700 = vpack.c.b16 %v3599, %v3598
      %v3701 = vpack.c.b16 %v3601, %v3600
      %v3702 = vpack.c.b16 %v3603, %v3602
      %v3703 = vpack.c.b16 %v3605, %v3604
      %v3704 = vpack.c.b16 %v3607, %v3606
      %v3705 = vpack.c.b16 %v3609, %v3608
      %v3706 = vpack.c.b16 %v3611, %v3610
      %v3707 = vpack.c.b16 %v3613, %v3612
      %v3708 = vpack.c.b16 %v3615, %v3614
      %v3709 = vpack.c.b16 %v3617, %v3616
      %v3710 = vpack.c.b16 %v3619, %v3618
      %v3711 = vpack.c.b16 %v3621, %v3620
      %v3712 = vpack.c.b16 %v3623, %v3622
      %v3713 = vpack.c.b16 %v3625, %v3624
      %v3714 = vpack.c.b16 %v3627, %v3626
      %v3715 = vpack.c.b16 %v3629, %v3628
      %v3716 = vpack.c.b16 %v3631, %v3630
      %v3717 = vpack.c.b16 %v3633, %v3632
      %v3718 = vpack.c.b16 %v3635, %v3634
      %v3719 = vpack.c.b16 %v3637, %v3636
      %v3720 = vpack.c.b16 %v3639, %v3638
      %v3721 = vpack.c.b16 %v3641, %v3640
      %v3722 = vpack.c.b16 %v3643, %v3642
      %v3723 = vpack.c.b16 %v3645, %v3644
      %v3724 = vpack.c.b16 %v3647, %v3646
      %v3725 = vpack.c.b16 %v3649, %v3648
      %v3726 = vpack.c.b16 %v3651, %v3650
      %v3727 = vpack.c.b16 %v3653, %v3652
      %v3728 = vpack.c.b16 %v3655, %v3654
      %v3729 = vpack.c.b16 %v3657, %v3656
      %3802 = vmatpush.bf16.msra.mxu0 %v3665
      %3803 = vmatpush.bf16.msra.mxu0 %v3664
      %3804 = vmatpush.bf16.msra.mxu0 %v3663
      %3805 = vmatpush.bf16.msra.mxu0 %v3662
      %3806 = vmatpush.bf16.msra.mxu0 %v3661
      %3807 = vmatpush.bf16.msra.mxu0 %v3660
      %3808 = vmatpush.bf16.msra.mxu0 %v3659
      %3809 = vmatpush.bf16.msra.mxu0 %v3658
      %3810 = vmatmul.bf16.gmra.mxu0 %v3213
      %v3811 = vpop.f32.mrf.mxu0
      %v3812 = vadd.f32 %v3368, %v3811
      %v3813 = vpop.f32.mrf.mxu0
      %3814 = vdwg.mxu0
      %3815 = vmatpush.bf16.msra.mxu0 %v3673
      %3816 = vmatpush.bf16.msra.mxu0 %v3672
      %3817 = vmatpush.bf16.msra.mxu0 %v3671
      %3818 = vmatpush.bf16.msra.mxu0 %v3670
      %3819 = vmatpush.bf16.msra.mxu0 %v3669
      %3820 = vmatpush.bf16.msra.mxu0 %v3668
      %3821 = vmatpush.bf16.msra.mxu0 %v3667
      %3822 = vmatpush.bf16.msra.mxu0 %v3666
      %3823 = vmatmul.bf16.gmra.mxu0 %v3214
      %v3824 = vpop.f32.mrf.mxu0
      %v3825 = vadd.f32 %v3812, %v3824
      %v3826 = vpop.f32.mrf.mxu0
      %3827 = vdwg.mxu0
      %3828 = vmatpush.bf16.msra.mxu0 %v3681
      %3829 = vmatpush.bf16.msra.mxu0 %v3680
      %3830 = vmatpush.bf16.msra.mxu0 %v3679
      %3831 = vmatpush.bf16.msra.mxu0 %v3678
      %3832 = vmatpush.bf16.msra.mxu0 %v3677
      %3833 = vmatpush.bf16.msra.mxu0 %v3676
      %3834 = vmatpush.bf16.msra.mxu0 %v3675
      %3835 = vmatpush.bf16.msra.mxu0 %v3674
      %3836 = vmatmul.bf16.gmra.mxu0 %v3215
      %v3837 = vpop.f32.mrf.mxu0
      %v3838 = vadd.f32 %v3825, %v3837
      %v3839 = vpop.f32.mrf.mxu0
      %3840 = vdwg.mxu0
      %3841 = vmatpush.bf16.msra.mxu0 %v3689
      %3842 = vmatpush.bf16.msra.mxu0 %v3688
      %3843 = vmatpush.bf16.msra.mxu0 %v3687
      %3844 = vmatpush.bf16.msra.mxu0 %v3686
      %3845 = vmatpush.bf16.msra.mxu0 %v3685
      %3846 = vmatpush.bf16.msra.mxu0 %v3684
      %3847 = vmatpush.bf16.msra.mxu0 %v3683
      %3848 = vmatpush.bf16.msra.mxu0 %v3682
      %3849 = vmatmul.bf16.gmra.mxu0 %v3216
      %v3850 = vpop.f32.mrf.mxu0
      %v3851 = vadd.f32 %v3838, %v3850
      %v3852 = vpop.f32.mrf.mxu0
      %3853 = vdwg.mxu0
      %3854 = vmatpush.bf16.msra.mxu0 %v3697
      %3855 = vmatpush.bf16.msra.mxu0 %v3696
      %3856 = vmatpush.bf16.msra.mxu0 %v3695
      %3857 = vmatpush.bf16.msra.mxu0 %v3694
      %3858 = vmatpush.bf16.msra.mxu0 %v3693
      %3859 = vmatpush.bf16.msra.mxu0 %v3692
      %3860 = vmatpush.bf16.msra.mxu0 %v3691
      %3861 = vmatpush.bf16.msra.mxu0 %v3690
      %3862 = vmatmul.bf16.gmra.mxu0 %v3217
      %v3863 = vpop.f32.mrf.mxu0
      %v3864 = vadd.f32 %v3851, %v3863
      %v3865 = vpop.f32.mrf.mxu0
      %3866 = vdwg.mxu0
      %3867 = vmatpush.bf16.msra.mxu0 %v3705
      %3868 = vmatpush.bf16.msra.mxu0 %v3704
      %3869 = vmatpush.bf16.msra.mxu0 %v3703
      %3870 = vmatpush.bf16.msra.mxu0 %v3702
      %3871 = vmatpush.bf16.msra.mxu0 %v3701
      %3872 = vmatpush.bf16.msra.mxu0 %v3700
      %3873 = vmatpush.bf16.msra.mxu0 %v3699
      %3874 = vmatpush.bf16.msra.mxu0 %v3698
      %3875 = vmatmul.bf16.gmra.mxu0 %v3218
      %v3876 = vpop.f32.mrf.mxu0
      %v3877 = vadd.f32 %v3864, %v3876
      %v3878 = vpop.f32.mrf.mxu0
      %3879 = vdwg.mxu0
      %3880 = vmatpush.bf16.msra.mxu0 %v3713
      %3881 = vmatpush.bf16.msra.mxu0 %v3712
      %3882 = vmatpush.bf16.msra.mxu0 %v3711
      %3883 = vmatpush.bf16.msra.mxu0 %v3710
      %3884 = vmatpush.bf16.msra.mxu0 %v3709
      %3885 = vmatpush.bf16.msra.mxu0 %v3708
      %3886 = vmatpush.bf16.msra.mxu0 %v3707
      %3887 = vmatpush.bf16.msra.mxu0 %v3706
      %3888 = vmatmul.bf16.gmra.mxu0 %v3219
      %v3889 = vpop.f32.mrf.mxu0
      %v3890 = vadd.f32 %v3877, %v3889
      %v3891 = vpop.f32.mrf.mxu0
      %3892 = vdwg.mxu0
      %3893 = vmatpush.bf16.msra.mxu0 %v3721
      %3894 = vmatpush.bf16.msra.mxu0 %v3720
      %3895 = vmatpush.bf16.msra.mxu0 %v3719
      %3896 = vmatpush.bf16.msra.mxu0 %v3718
      %3897 = vmatpush.bf16.msra.mxu0 %v3717
      %3898 = vmatpush.bf16.msra.mxu0 %v3716
      %3899 = vmatpush.bf16.msra.mxu0 %v3715
      %3900 = vmatpush.bf16.msra.mxu0 %v3714
      %3901 = vmatmul.bf16.gmra.mxu0 %v3220
      %v3902 = vpop.f32.mrf.mxu0
      %v3903 = vadd.f32 %v3890, %v3902
      %v3904 = vpop.f32.mrf.mxu0
      %3905 = vdwg.mxu0
      %3906 = vmatpush.bf16.msra.mxu0 %v3729
      %3907 = vmatpush.bf16.msra.mxu0 %v3728
      %3908 = vmatpush.bf16.msra.mxu0 %v3727
      %3909 = vmatpush.bf16.msra.mxu0 %v3726
      %3910 = vmatpush.bf16.msra.mxu0 %v3725
      %3911 = vmatpush.bf16.msra.mxu0 %v3724
      %3912 = vmatpush.bf16.msra.mxu0 %v3723
      %3913 = vmatpush.bf16.msra.mxu0 %v3722
      %3914 = vmatmul.bf16.gmra.mxu0 %v3221
      %v3915 = vpop.f32.mrf.mxu0
      %v3916 = vadd.f32 %v3903, %v3915
      %v3917 = vpop.f32.mrf.mxu0
      %3918 = vdwg.mxu0
      %v3919 = vmax.f32 %v3916, 0.0
      %v3921 = vrot.slane %v3919, 1
      %v3923 = vrot.slane %v3919, 2
      %v3925 = vrot.slane %v3919, 3
      %v3927 = vpack.c.bf16 %v3919, %v3919
      %v3928 = vpack.c.bf16 %v3921, %v3921
      %v3929 = vpack.c.bf16 %v3923, %v3923
      %v3930 = vpack.c.bf16 %v3925, %v3925
      %v3931 = vld [vmem:[%s13] sm:$0xff]
      %v3932 = vld [vmem:[%s13 + $0x8] sm:$0xff]
      %v3933 = vld [vmem:[%s13 + $0x10] sm:$0xff]
      %v3934 = vld [vmem:[%s13 + $0x18] sm:$0xff]
      %v3935 = vld [vmem:[%s13 + $0x20] sm:$0xff]
      %v3936 = vld [vmem:[%s13 + $0x28] sm:$0xff]
      %v3937 = vld [vmem:[%s13 + $0x30] sm:$0xff]
      %v3938 = vld [vmem:[%s13 + $0x38] sm:$0xff]
      %v3939 = vld [vmem:[%s13 + $0x40] sm:$0xff]
      %v3940 = vld [vmem:[%s13 + $0x48] sm:$0xff]
      %v3941 = vld [vmem:[%s13 + $0x50] sm:$0xff]
      %v3942 = vld [vmem:[%s13 + $0x58] sm:$0xff]
      %v3943 = vld [vmem:[%s13 + $0x60] sm:$0xff]
      %v3944 = vld [vmem:[%s13 + $0x68] sm:$0xff]
      %v3945 = vld [vmem:[%s13 + $0x70] sm:$0xff]
      %v3946 = vld [vmem:[%s13 + $0x78] sm:$0xff]
      %v3947 = vld [vmem:[%s13 + $0x80] sm:$0xff]
      %v3948 = vld [vmem:[%s13 + $0x88] sm:$0xff]
      %v3949 = vld [vmem:[%s13 + $0x90] sm:$0xff]
      %v3950 = vld [vmem:[%s13 + $0x98] sm:$0xff]
      %v3951 = vld [vmem:[%s13 + $0xa0] sm:$0xff]
      %v3952 = vld [vmem:[%s13 + $0xa8] sm:$0xff]
      %v3953 = vld [vmem:[%s13 + $0xb0] sm:$0xff]
      %v3954 = vld [vmem:[%s13 + $0xb8] sm:$0xff]
      %v3955 = vld [vmem:[%s13 + $0xc0] sm:$0xff]
      %v3956 = vld [vmem:[%s13 + $0xc8] sm:$0xff]
      %v3957 = vld [vmem:[%s13 + $0xd0] sm:$0xff]
      %v3958 = vld [vmem:[%s13 + $0xd8] sm:$0xff]
      %v3959 = vld [vmem:[%s13 + $0xe0] sm:$0xff]
      %v3960 = vld [vmem:[%s13 + $0xe8] sm:$0xff]
      %v3961 = vld [vmem:[%s13 + $0xf0] sm:$0xff]
      %v3962 = vld [vmem:[%s13 + $0xf8] sm:$0xff]
      %v3963 = vld [vmem:[%s13 + $0x100] sm:$0xff]
      %v3964 = vld [vmem:[%s13 + $0x108] sm:$0xff]
      %v3965 = vld [vmem:[%s13 + $0x110] sm:$0xff]
      %v3966 = vld [vmem:[%s13 + $0x118] sm:$0xff]
      %v3967 = vld [vmem:[%s13 + $0x120] sm:$0xff]
      %v3968 = vld [vmem:[%s13 + $0x128] sm:$0xff]
      %v3969 = vld [vmem:[%s13 + $0x130] sm:$0xff]
      %v3970 = vld [vmem:[%s13 + $0x138] sm:$0xff]
      %v3971 = vld [vmem:[%s13 + $0x140] sm:$0xff]
      %v3972 = vld [vmem:[%s13 + $0x148] sm:$0xff]
      %v3973 = vld [vmem:[%s13 + $0x150] sm:$0xff]
      %v3974 = vld [vmem:[%s13 + $0x158] sm:$0xff]
      %v3975 = vld [vmem:[%s13 + $0x160] sm:$0xff]
      %v3976 = vld [vmem:[%s13 + $0x168] sm:$0xff]
      %v3977 = vld [vmem:[%s13 + $0x170] sm:$0xff]
      %v3978 = vld [vmem:[%s13 + $0x178] sm:$0xff]
      %v3979 = vld [vmem:[%s13 + $0x180] sm:$0xff]
      %v3980 = vld [vmem:[%s13 + $0x188] sm:$0xff]
      %v3981 = vld [vmem:[%s13 + $0x190] sm:$0xff]
      %v3982 = vld [vmem:[%s13 + $0x198] sm:$0xff]
      %v3983 = vld [vmem:[%s13 + $0x1a0] sm:$0xff]
      %v3984 = vld [vmem:[%s13 + $0x1a8] sm:$0xff]
      %v3985 = vld [vmem:[%s13 + $0x1b0] sm:$0xff]
      %v3986 = vld [vmem:[%s13 + $0x1b8] sm:$0xff]
      %v3987 = vld [vmem:[%s13 + $0x1c0] sm:$0xff]
      %v3988 = vld [vmem:[%s13 + $0x1c8] sm:$0xff]
      %v3989 = vld [vmem:[%s13 + $0x1d0] sm:$0xff]
      %v3990 = vld [vmem:[%s13 + $0x1d8] sm:$0xff]
      %v3991 = vld [vmem:[%s13 + $0x1e0] sm:$0xff]
      %v3992 = vld [vmem:[%s13 + $0x1e8] sm:$0xff]
      %v3993 = vld [vmem:[%s13 + $0x1f0] sm:$0xff]
      %v3994 = vld [vmem:[%s13 + $0x1f8] sm:$0xff]
      %v3995 = vld [vmem:[%s14] sm:$0x3]
      %v4060 = vunpack.c.l.b16 %v3931
      %v4061 = vunpack.c.h.b16 %v3931
      %v4062 = vunpack.c.l.b16 %v3932
      %v4063 = vunpack.c.h.b16 %v3932
      %v4064 = vunpack.c.l.b16 %v3933
      %v4065 = vunpack.c.h.b16 %v3933
      %v4066 = vunpack.c.l.b16 %v3934
      %v4067 = vunpack.c.h.b16 %v3934
      %v4068 = vunpack.c.l.b16 %v3935
      %v4069 = vunpack.c.h.b16 %v3935
      %v4070 = vunpack.c.l.b16 %v3936
      %v4071 = vunpack.c.h.b16 %v3936
      %v4072 = vunpack.c.l.b16 %v3937
      %v4073 = vunpack.c.h.b16 %v3937
      %v4074 = vunpack.c.l.b16 %v3938
      %v4075 = vunpack.c.h.b16 %v3938
      %v4076 = vunpack.c.l.b16 %v3939
      %v4077 = vunpack.c.h.b16 %v3939
      %v4078 = vunpack.c.l.b16 %v3940
      %v4079 = vunpack.c.h.b16 %v3940
      %v4080 = vunpack.c.l.b16 %v3941
      %v4081 = vunpack.c.h.b16 %v3941
      %v4082 = vunpack.c.l.b16 %v3942
      %v4083 = vunpack.c.h.b16 %v3942
      %v4084 = vunpack.c.l.b16 %v3943
      %v4085 = vunpack.c.h.b16 %v3943
      %v4086 = vunpack.c.l.b16 %v3944
      %v4087 = vunpack.c.h.b16 %v3944
      %v4088 = vunpack.c.l.b16 %v3945
      %v4089 = vunpack.c.h.b16 %v3945
      %v4090 = vunpack.c.l.b16 %v3946
      %v4091 = vunpack.c.h.b16 %v3946
      %v4092 = vunpack.c.l.b16 %v3947
      %v4093 = vunpack.c.h.b16 %v3947
      %v4094 = vunpack.c.l.b16 %v3948
      %v4095 = vunpack.c.h.b16 %v3948
      %v4096 = vunpack.c.l.b16 %v3949
      %v4097 = vunpack.c.h.b16 %v3949
      %v4098 = vunpack.c.l.b16 %v3950
      %v4099 = vunpack.c.h.b16 %v3950
      %v4100 = vunpack.c.l.b16 %v3951
      %v4101 = vunpack.c.h.b16 %v3951
      %v4102 = vunpack.c.l.b16 %v3952
      %v4103 = vunpack.c.h.b16 %v3952
      %v4104 = vunpack.c.l.b16 %v3953
      %v4105 = vunpack.c.h.b16 %v3953
      %v4106 = vunpack.c.l.b16 %v3954
      %v4107 = vunpack.c.h.b16 %v3954
      %v4108 = vunpack.c.l.b16 %v3955
      %v4109 = vunpack.c.h.b16 %v3955
      %v4110 = vunpack.c.l.b16 %v3956
      %v4111 = vunpack.c.h.b16 %v3956
      %v4112 = vunpack.c.l.b16 %v3957
      %v4113 = vunpack.c.h.b16 %v3957
      %v4114 = vunpack.c.l.b16 %v3958
      %v4115 = vunpack.c.h.b16 %v3958
      %v4116 = vunpack.c.l.b16 %v3959
      %v4117 = vunpack.c.h.b16 %v3959
      %v4118 = vunpack.c.l.b16 %v3960
      %v4119 = vunpack.c.h.b16 %v3960
      %v4120 = vunpack.c.l.b16 %v3961
      %v4121 = vunpack.c.h.b16 %v3961
      %v4122 = vunpack.c.l.b16 %v3962
      %v4123 = vunpack.c.h.b16 %v3962
      %v4124 = vunpack.c.l.b16 %v3963
      %v4125 = vunpack.c.h.b16 %v3963
      %v4126 = vunpack.c.l.b16 %v3964
      %v4127 = vunpack.c.h.b16 %v3964
      %v4128 = vunpack.c.l.b16 %v3965
      %v4129 = vunpack.c.h.b16 %v3965
      %v4130 = vunpack.c.l.b16 %v3966
      %v4131 = vunpack.c.h.b16 %v3966
      %v4132 = vunpack.c.l.b16 %v3967
      %v4133 = vunpack.c.h.b16 %v3967
      %v4134 = vunpack.c.l.b16 %v3968
      %v4135 = vunpack.c.h.b16 %v3968
      %v4136 = vunpack.c.l.b16 %v3969
      %v4137 = vunpack.c.h.b16 %v3969
      %v4138 = vunpack.c.l.b16 %v3970
      %v4139 = vunpack.c.h.b16 %v3970
      %v4140 = vunpack.c.l.b16 %v3971
      %v4141 = vunpack.c.h.b16 %v3971
      %v4142 = vunpack.c.l.b16 %v3972
      %v4143 = vunpack.c.h.b16 %v3972
      %v4144 = vunpack.c.l.b16 %v3973
      %v4145 = vunpack.c.h.b16 %v3973
      %v4146 = vunpack.c.l.b16 %v3974
      %v4147 = vunpack.c.h.b16 %v3974
      %v4148 = vunpack.c.l.b16 %v3975
      %v4149 = vunpack.c.h.b16 %v3975
      %v4150 = vunpack.c.l.b16 %v3976
      %v4151 = vunpack.c.h.b16 %v3976
      %v4152 = vunpack.c.l.b16 %v3977
      %v4153 = vunpack.c.h.b16 %v3977
      %v4154 = vunpack.c.l.b16 %v3978
      %v4155 = vunpack.c.h.b16 %v3978
      %v4156 = vunpack.c.l.b16 %v3979
      %v4157 = vunpack.c.h.b16 %v3979
      %v4158 = vunpack.c.l.b16 %v3980
      %v4159 = vunpack.c.h.b16 %v3980
      %v4160 = vunpack.c.l.b16 %v3981
      %v4161 = vunpack.c.h.b16 %v3981
      %v4162 = vunpack.c.l.b16 %v3982
      %v4163 = vunpack.c.h.b16 %v3982
      %v4164 = vunpack.c.l.b16 %v3983
      %v4165 = vunpack.c.h.b16 %v3983
      %v4166 = vunpack.c.l.b16 %v3984
      %v4167 = vunpack.c.h.b16 %v3984
      %v4168 = vunpack.c.l.b16 %v3985
      %v4169 = vunpack.c.h.b16 %v3985
      %v4170 = vunpack.c.l.b16 %v3986
      %v4171 = vunpack.c.h.b16 %v3986
      %v4172 = vunpack.c.l.b16 %v3987
      %v4173 = vunpack.c.h.b16 %v3987
      %v4174 = vunpack.c.l.b16 %v3988
      %v4175 = vunpack.c.h.b16 %v3988
      %v4176 = vunpack.c.l.b16 %v3989
      %v4177 = vunpack.c.h.b16 %v3989
      %v4178 = vunpack.c.l.b16 %v3990
      %v4179 = vunpack.c.h.b16 %v3990
      %v4180 = vunpack.c.l.b16 %v3991
      %v4181 = vunpack.c.h.b16 %v3991
      %v4182 = vunpack.c.l.b16 %v3992
      %v4183 = vunpack.c.h.b16 %v3992
      %v4184 = vunpack.c.l.b16 %v3993
      %v4185 = vunpack.c.h.b16 %v3993
      %v4186 = vunpack.c.l.b16 %v3994
      %v4187 = vunpack.c.h.b16 %v3994
      %v4188 = vpack.c.b16 %v4062, %v4060
      %v4189 = vpack.c.b16 %v4063, %v4061
      %v4190 = vpack.c.b16 %v4066, %v4064
      %v4191 = vpack.c.b16 %v4067, %v4065
      %v4192 = vpack.c.b16 %v4070, %v4068
      %v4193 = vpack.c.b16 %v4071, %v4069
      %v4194 = vpack.c.b16 %v4074, %v4072
      %v4195 = vpack.c.b16 %v4075, %v4073
      %v4196 = vpack.c.b16 %v4078, %v4076
      %v4197 = vpack.c.b16 %v4079, %v4077
      %v4198 = vpack.c.b16 %v4082, %v4080
      %v4199 = vpack.c.b16 %v4083, %v4081
      %v4200 = vpack.c.b16 %v4086, %v4084
      %v4201 = vpack.c.b16 %v4087, %v4085
      %v4202 = vpack.c.b16 %v4090, %v4088
      %v4203 = vpack.c.b16 %v4091, %v4089
      %v4204 = vpack.c.b16 %v4094, %v4092
      %v4205 = vpack.c.b16 %v4095, %v4093
      %v4206 = vpack.c.b16 %v4098, %v4096
      %v4207 = vpack.c.b16 %v4099, %v4097
      %v4208 = vpack.c.b16 %v4102, %v4100
      %v4209 = vpack.c.b16 %v4103, %v4101
      %v4210 = vpack.c.b16 %v4106, %v4104
      %v4211 = vpack.c.b16 %v4107, %v4105
      %v4212 = vpack.c.b16 %v4110, %v4108
      %v4213 = vpack.c.b16 %v4111, %v4109
      %v4214 = vpack.c.b16 %v4114, %v4112
      %v4215 = vpack.c.b16 %v4115, %v4113
      %v4216 = vpack.c.b16 %v4118, %v4116
      %v4217 = vpack.c.b16 %v4119, %v4117
      %v4218 = vpack.c.b16 %v4122, %v4120
      %v4219 = vpack.c.b16 %v4123, %v4121
      %v4220 = vpack.c.b16 %v4126, %v4124
      %v4221 = vpack.c.b16 %v4127, %v4125
      %v4222 = vpack.c.b16 %v4130, %v4128
      %v4223 = vpack.c.b16 %v4131, %v4129
      %v4224 = vpack.c.b16 %v4134, %v4132
      %v4225 = vpack.c.b16 %v4135, %v4133
      %v4226 = vpack.c.b16 %v4138, %v4136
      %v4227 = vpack.c.b16 %v4139, %v4137
      %v4228 = vpack.c.b16 %v4142, %v4140
      %v4229 = vpack.c.b16 %v4143, %v4141
      %v4230 = vpack.c.b16 %v4146, %v4144
      %v4231 = vpack.c.b16 %v4147, %v4145
      %v4232 = vpack.c.b16 %v4150, %v4148
      %v4233 = vpack.c.b16 %v4151, %v4149
      %v4234 = vpack.c.b16 %v4154, %v4152
      %v4235 = vpack.c.b16 %v4155, %v4153
      %v4236 = vpack.c.b16 %v4158, %v4156
      %v4237 = vpack.c.b16 %v4159, %v4157
      %v4238 = vpack.c.b16 %v4162, %v4160
      %v4239 = vpack.c.b16 %v4163, %v4161
      %v4240 = vpack.c.b16 %v4166, %v4164
      %v4241 = vpack.c.b16 %v4167, %v4165
      %v4242 = vpack.c.b16 %v4170, %v4168
      %v4243 = vpack.c.b16 %v4171, %v4169
      %v4244 = vpack.c.b16 %v4174, %v4172
      %v4245 = vpack.c.b16 %v4175, %v4173
      %v4246 = vpack.c.b16 %v4178, %v4176
      %v4247 = vpack.c.b16 %v4179, %v4177
      %v4248 = vpack.c.b16 %v4182, %v4180
      %v4249 = vpack.c.b16 %v4183, %v4181
      %v4250 = vpack.c.b16 %v4186, %v4184
      %v4251 = vpack.c.b16 %v4187, %v4185
      %v4317 = vperm.slane %v3995, 0
      %v4318 = vperm.slane %v3995, 1
      %4321 = vmatpush.bf16.msra.mxu0 %v4202
      %4322 = vmatpush.bf16.msra.mxu0 %v4200
      %4323 = vmatpush.bf16.msra.mxu0 %v4198
      %4324 = vmatpush.bf16.msra.mxu0 %v4196
      %4325 = vmatpush.bf16.msra.mxu0 %v4194
      %4326 = vmatpush.bf16.msra.mxu0 %v4192
      %4327 = vmatpush.bf16.msra.mxu0 %v4190
      %4328 = vmatpush.bf16.msra.mxu0 %v4188
      %4329 = vmatmul.bf16.gmra.mxu0 %v3927
      %v4330 = vpop.f32.mrf.mxu0
      %v4331 = vadd.f32 %v4317, %v4330
      %v4332 = vpop.f32.mrf.mxu0
      %4333 = vdwg.mxu0
      %4334 = vmatpush.bf16.msra.mxu0 %v4218
      %4335 = vmatpush.bf16.msra.mxu0 %v4216
      %4336 = vmatpush.bf16.msra.mxu0 %v4214
      %4337 = vmatpush.bf16.msra.mxu0 %v4212
      %4338 = vmatpush.bf16.msra.mxu0 %v4210
      %4339 = vmatpush.bf16.msra.mxu0 %v4208
      %4340 = vmatpush.bf16.msra.mxu0 %v4206
      %4341 = vmatpush.bf16.msra.mxu0 %v4204
      %4342 = vmatmul.bf16.gmra.mxu0 %v3928
      %v4343 = vpop.f32.mrf.mxu0
      %v4344 = vadd.f32 %v4331, %v4343
      %v4345 = vpop.f32.mrf.mxu0
      %4346 = vdwg.mxu0
      %4347 = vmatpush.bf16.msra.mxu0 %v4234
      %4348 = vmatpush.bf16.msra.mxu0 %v4232
      %4349 = vmatpush.bf16.msra.mxu0 %v4230
      %4350 = vmatpush.bf16.msra.mxu0 %v4228
      %4351 = vmatpush.bf16.msra.mxu0 %v4226
      %4352 = vmatpush.bf16.msra.mxu0 %v4224
      %4353 = vmatpush.bf16.msra.mxu0 %v4222
      %4354 = vmatpush.bf16.msra.mxu0 %v4220
      %4355 = vmatmul.bf16.gmra.mxu0 %v3929
      %v4356 = vpop.f32.mrf.mxu0
      %v4357 = vadd.f32 %v4344, %v4356
      %v4358 = vpop.f32.mrf.mxu0
      %4359 = vdwg.mxu0
      %4360 = vmatpush.bf16.msra.mxu0 %v4250
      %4361 = vmatpush.bf16.msra.mxu0 %v4248
      %4362 = vmatpush.bf16.msra.mxu0 %v4246
      %4363 = vmatpush.bf16.msra.mxu0 %v4244
      %4364 = vmatpush.bf16.msra.mxu0 %v4242
      %4365 = vmatpush.bf16.msra.mxu0 %v4240
      %4366 = vmatpush.bf16.msra.mxu0 %v4238
      %4367 = vmatpush.bf16.msra.mxu0 %v4236
      %4368 = vmatmul.bf16.gmra.mxu0 %v3930
      %v4369 = vpop.f32.mrf.mxu0
      %v4370 = vadd.f32 %v4357, %v4369
      %v4371 = vpop.f32.mrf.mxu0
      %4372 = vdwg.mxu0
      %4373 = vmatpush.bf16.msra.mxu0 %v4203
      %4374 = vmatpush.bf16.msra.mxu0 %v4201
      %4375 = vmatpush.bf16.msra.mxu0 %v4199
      %4376 = vmatpush.bf16.msra.mxu0 %v4197
      %4377 = vmatpush.bf16.msra.mxu0 %v4195
      %4378 = vmatpush.bf16.msra.mxu0 %v4193
      %4379 = vmatpush.bf16.msra.mxu0 %v4191
      %4380 = vmatpush.bf16.msra.mxu0 %v4189
      %4381 = vmatmul.bf16.gmra.mxu0 %v3927
      %v4382 = vpop.f32.mrf.mxu0
      %v4383 = vadd.f32 %v4318, %v4382
      %v4384 = vpop.f32.mrf.mxu0
      %4385 = vdwg.mxu0
      %4386 = vmatpush.bf16.msra.mxu0 %v4219
      %4387 = vmatpush.bf16.msra.mxu0 %v4217
      %4388 = vmatpush.bf16.msra.mxu0 %v4215
      %4389 = vmatpush.bf16.msra.mxu0 %v4213
      %4390 = vmatpush.bf16.msra.mxu0 %v4211
      %4391 = vmatpush.bf16.msra.mxu0 %v4209
      %4392 = vmatpush.bf16.msra.mxu0 %v4207
      %4393 = vmatpush.bf16.msra.mxu0 %v4205
      %4394 = vmatmul.bf16.gmra.mxu0 %v3928
      %v4395 = vpop.f32.mrf.mxu0
      %v4396 = vadd.f32 %v4383, %v4395
      %v4397 = vpop.f32.mrf.mxu0
      %4398 = vdwg.mxu0
      %4399 = vmatpush.bf16.msra.mxu0 %v4235
      %4400 = vmatpush.bf16.msra.mxu0 %v4233
      %4401 = vmatpush.bf16.msra.mxu0 %v4231
      %4402 = vmatpush.bf16.msra.mxu0 %v4229
      %4403 = vmatpush.bf16.msra.mxu0 %v4227
      %4404 = vmatpush.bf16.msra.mxu0 %v4225
      %4405 = vmatpush.bf16.msra.mxu0 %v4223
      %4406 = vmatpush.bf16.msra.mxu0 %v4221
      %4407 = vmatmul.bf16.gmra.mxu0 %v3929
      %v4408 = vpop.f32.mrf.mxu0
      %v4409 = vadd.f32 %v4396, %v4408
      %v4410 = vpop.f32.mrf.mxu0
      %4411 = vdwg.mxu0
      %4412 = vmatpush.bf16.msra.mxu0 %v4251
      %4413 = vmatpush.bf16.msra.mxu0 %v4249
      %4414 = vmatpush.bf16.msra.mxu0 %v4247
      %4415 = vmatpush.bf16.msra.mxu0 %v4245
      %4416 = vmatpush.bf16.msra.mxu0 %v4243
      %4417 = vmatpush.bf16.msra.mxu0 %v4241
      %4418 = vmatpush.bf16.msra.mxu0 %v4239
      %4419 = vmatpush.bf16.msra.mxu0 %v4237
      %4420 = vmatmul.bf16.gmra.mxu0 %v3930
      %v4421 = vpop.f32.mrf.mxu0
      %v4422 = vadd.f32 %v4409, %v4421
      %v4423 = vpop.f32.mrf.mxu0
      %4424 = vdwg.mxu0
      %v4425 = vmax.f32 %v4370, 0.0
      %v4426 = vmax.f32 %v4422, 0.0
      %v4427 = vpack.c.bf16 %v4425, %v4425
      %v4428 = vpack.c.bf16 %v4426, %v4426
      %v4429 = vld [vmem:[%s15] sm:$0xff]
      %v4430 = vld [vmem:[%s15 + $0x8] sm:$0xff]
      %v4431 = vld [vmem:[%s15 + $0x10] sm:$0xff]
      %v4432 = vld [vmem:[%s15 + $0x18] sm:$0xff]
      %v4433 = vld [vmem:[%s15 + $0x20] sm:$0xff]
      %v4434 = vld [vmem:[%s15 + $0x28] sm:$0xff]
      %v4435 = vld [vmem:[%s15 + $0x30] sm:$0xff]
      %v4436 = vld [vmem:[%s15 + $0x38] sm:$0xff]
      %v4437 = vld [vmem:[%s15 + $0x40] sm:$0xff]
      %v4438 = vld [vmem:[%s15 + $0x48] sm:$0xff]
      %v4439 = vld [vmem:[%s15 + $0x50] sm:$0xff]
      %v4440 = vld [vmem:[%s15 + $0x58] sm:$0xff]
      %v4441 = vld [vmem:[%s15 + $0x60] sm:$0xff]
      %v4442 = vld [vmem:[%s15 + $0x68] sm:$0xff]
      %v4443 = vld [vmem:[%s15 + $0x70] sm:$0xff]
      %v4444 = vld [vmem:[%s15 + $0x78] sm:$0xff]
      %v4445 = vld [vmem:[%s15 + $0x80] sm:$0xff]
      %v4446 = vld [vmem:[%s15 + $0x88] sm:$0xff]
      %v4447 = vld [vmem:[%s15 + $0x90] sm:$0xff]
      %v4448 = vld [vmem:[%s15 + $0x98] sm:$0xff]
      %v4449 = vld [vmem:[%s15 + $0xa0] sm:$0xff]
      %v4450 = vld [vmem:[%s15 + $0xa8] sm:$0xff]
      %v4451 = vld [vmem:[%s15 + $0xb0] sm:$0xff]
      %v4452 = vld [vmem:[%s15 + $0xb8] sm:$0xff]
      %v4453 = vld [vmem:[%s15 + $0xc0] sm:$0xff]
      %v4454 = vld [vmem:[%s15 + $0xc8] sm:$0xff]
      %v4455 = vld [vmem:[%s15 + $0xd0] sm:$0xff]
      %v4456 = vld [vmem:[%s15 + $0xd8] sm:$0xff]
      %v4457 = vld [vmem:[%s15 + $0xe0] sm:$0xff]
      %v4458 = vld [vmem:[%s15 + $0xe8] sm:$0xff]
      %v4459 = vld [vmem:[%s15 + $0xf0] sm:$0xff]
      %v4460 = vld [vmem:[%s15 + $0xf8] sm:$0xff]
      %v4461 = vld [vmem:[%s16] sm:$0x3]
      %v4494 = vunpack.c.l.b16 %v4429
      %v4495 = vunpack.c.h.b16 %v4429
      %v4496 = vunpack.c.l.b16 %v4430
      %v4497 = vunpack.c.h.b16 %v4430
      %v4498 = vunpack.c.l.b16 %v4431
      %v4499 = vunpack.c.h.b16 %v4431
      %v4500 = vunpack.c.l.b16 %v4432
      %v4501 = vunpack.c.h.b16 %v4432
      %v4502 = vunpack.c.l.b16 %v4433
      %v4503 = vunpack.c.h.b16 %v4433
      %v4504 = vunpack.c.l.b16 %v4434
      %v4505 = vunpack.c.h.b16 %v4434
      %v4506 = vunpack.c.l.b16 %v4435
      %v4507 = vunpack.c.h.b16 %v4435
      %v4508 = vunpack.c.l.b16 %v4436
      %v4509 = vunpack.c.h.b16 %v4436
      %v4510 = vunpack.c.l.b16 %v4437
      %v4511 = vunpack.c.h.b16 %v4437
      %v4512 = vunpack.c.l.b16 %v4438
      %v4513 = vunpack.c.h.b16 %v4438
      %v4514 = vunpack.c.l.b16 %v4439
      %v4515 = vunpack.c.h.b16 %v4439
      %v4516 = vunpack.c.l.b16 %v4440
      %v4517 = vunpack.c.h.b16 %v4440
      %v4518 = vunpack.c.l.b16 %v4441
      %v4519 = vunpack.c.h.b16 %v4441
      %v4520 = vunpack.c.l.b16 %v4442
      %v4521 = vunpack.c.h.b16 %v4442
      %v4522 = vunpack.c.l.b16 %v4443
      %v4523 = vunpack.c.h.b16 %v4443
      %v4524 = vunpack.c.l.b16 %v4444
      %v4525 = vunpack.c.h.b16 %v4444
      %v4526 = vunpack.c.l.b16 %v4445
      %v4527 = vunpack.c.h.b16 %v4445
      %v4528 = vunpack.c.l.b16 %v4446
      %v4529 = vunpack.c.h.b16 %v4446
      %v4530 = vunpack.c.l.b16 %v4447
      %v4531 = vunpack.c.h.b16 %v4447
      %v4532 = vunpack.c.l.b16 %v4448
      %v4533 = vunpack.c.h.b16 %v4448
      %v4534 = vunpack.c.l.b16 %v4449
      %v4535 = vunpack.c.h.b16 %v4449
      %v4536 = vunpack.c.l.b16 %v4450
      %v4537 = vunpack.c.h.b16 %v4450
      %v4538 = vunpack.c.l.b16 %v4451
      %v4539 = vunpack.c.h.b16 %v4451
      %v4540 = vunpack.c.l.b16 %v4452
      %v4541 = vunpack.c.h.b16 %v4452
      %v4542 = vunpack.c.l.b16 %v4453
      %v4543 = vunpack.c.h.b16 %v4453
      %v4544 = vunpack.c.l.b16 %v4454
      %v4545 = vunpack.c.h.b16 %v4454
      %v4546 = vunpack.c.l.b16 %v4455
      %v4547 = vunpack.c.h.b16 %v4455
      %v4548 = vunpack.c.l.b16 %v4456
      %v4549 = vunpack.c.h.b16 %v4456
      %v4550 = vunpack.c.l.b16 %v4457
      %v4551 = vunpack.c.h.b16 %v4457
      %v4552 = vunpack.c.l.b16 %v4458
      %v4553 = vunpack.c.h.b16 %v4458
      %v4554 = vunpack.c.l.b16 %v4459
      %v4555 = vunpack.c.h.b16 %v4459
      %v4556 = vunpack.c.l.b16 %v4460
      %v4557 = vunpack.c.h.b16 %v4460
      %v4558 = vpack.c.b16 %v4496, %v4494
      %v4559 = vpack.c.b16 %v4497, %v4495
      %v4560 = vpack.c.b16 %v4500, %v4498
      %v4561 = vpack.c.b16 %v4501, %v4499
      %v4562 = vpack.c.b16 %v4504, %v4502
      %v4563 = vpack.c.b16 %v4505, %v4503
      %v4564 = vpack.c.b16 %v4508, %v4506
      %v4565 = vpack.c.b16 %v4509, %v4507
      %v4566 = vpack.c.b16 %v4512, %v4510
      %v4567 = vpack.c.b16 %v4513, %v4511
      %v4568 = vpack.c.b16 %v4516, %v4514
      %v4569 = vpack.c.b16 %v4517, %v4515
      %v4570 = vpack.c.b16 %v4520, %v4518
      %v4571 = vpack.c.b16 %v4521, %v4519
      %v4572 = vpack.c.b16 %v4524, %v4522
      %v4573 = vpack.c.b16 %v4525, %v4523
      %v4574 = vpack.c.b16 %v4528, %v4526
      %v4575 = vpack.c.b16 %v4529, %v4527
      %v4576 = vpack.c.b16 %v4532, %v4530
      %v4577 = vpack.c.b16 %v4533, %v4531
      %v4578 = vpack.c.b16 %v4536, %v4534
      %v4579 = vpack.c.b16 %v4537, %v4535
      %v4580 = vpack.c.b16 %v4540, %v4538
      %v4581 = vpack.c.b16 %v4541, %v4539
      %v4582 = vpack.c.b16 %v4544, %v4542
      %v4583 = vpack.c.b16 %v4545, %v4543
      %v4584 = vpack.c.b16 %v4548, %v4546
      %v4585 = vpack.c.b16 %v4549, %v4547
      %v4586 = vpack.c.b16 %v4552, %v4550
      %v4587 = vpack.c.b16 %v4553, %v4551
      %v4588 = vpack.c.b16 %v4556, %v4554
      %v4589 = vpack.c.b16 %v4557, %v4555
      %v4623 = vperm.slane %v4461, 0
      %v4624 = vperm.slane %v4461, 1
      %4627 = vmatpush.bf16.msra.mxu0 %v4572
      %4628 = vmatpush.bf16.msra.mxu0 %v4570
      %4629 = vmatpush.bf16.msra.mxu0 %v4568
      %4630 = vmatpush.bf16.msra.mxu0 %v4566
      %4631 = vmatpush.bf16.msra.mxu0 %v4564
      %4632 = vmatpush.bf16.msra.mxu0 %v4562
      %4633 = vmatpush.bf16.msra.mxu0 %v4560
      %4634 = vmatpush.bf16.msra.mxu0 %v4558
      %4635 = vmatmul.bf16.gmra.mxu0 %v4427
      %v4636 = vpop.f32.mrf.mxu0
      %v4637 = vadd.f32 %v4623, %v4636
      %v4638 = vpop.f32.mrf.mxu0
      %4639 = vdwg.mxu0
      %4640 = vmatpush.bf16.msra.mxu0 %v4588
      %4641 = vmatpush.bf16.msra.mxu0 %v4586
      %4642 = vmatpush.bf16.msra.mxu0 %v4584
      %4643 = vmatpush.bf16.msra.mxu0 %v4582
      %4644 = vmatpush.bf16.msra.mxu0 %v4580
      %4645 = vmatpush.bf16.msra.mxu0 %v4578
      %4646 = vmatpush.bf16.msra.mxu0 %v4576
      %4647 = vmatpush.bf16.msra.mxu0 %v4574
      %4648 = vmatmul.bf16.gmra.mxu0 %v4428
      %v4649 = vpop.f32.mrf.mxu0
      %v4650 = vadd.f32 %v4637, %v4649
      %v4651 = vpop.f32.mrf.mxu0
      %4652 = vdwg.mxu0
      %4653 = vmatpush.bf16.msra.mxu0 %v4573
      %4654 = vmatpush.bf16.msra.mxu0 %v4571
      %4655 = vmatpush.bf16.msra.mxu0 %v4569
      %4656 = vmatpush.bf16.msra.mxu0 %v4567
      %4657 = vmatpush.bf16.msra.mxu0 %v4565
      %4658 = vmatpush.bf16.msra.mxu0 %v4563
      %4659 = vmatpush.bf16.msra.mxu0 %v4561
      %4660 = vmatpush.bf16.msra.mxu0 %v4559
      %4661 = vmatmul.bf16.gmra.mxu0 %v4427
      %v4662 = vpop.f32.mrf.mxu0
      %v4663 = vadd.f32 %v4624, %v4662
      %v4664 = vpop.f32.mrf.mxu0
      %4665 = vdwg.mxu0
      %4666 = vmatpush.bf16.msra.mxu0 %v4589
      %4667 = vmatpush.bf16.msra.mxu0 %v4587
      %4668 = vmatpush.bf16.msra.mxu0 %v4585
      %4669 = vmatpush.bf16.msra.mxu0 %v4583
      %4670 = vmatpush.bf16.msra.mxu0 %v4581
      %4671 = vmatpush.bf16.msra.mxu0 %v4579
      %4672 = vmatpush.bf16.msra.mxu0 %v4577
      %4673 = vmatpush.bf16.msra.mxu0 %v4575
      %4674 = vmatmul.bf16.gmra.mxu0 %v4428
      %v4675 = vpop.f32.mrf.mxu0
      %v4676 = vadd.f32 %v4663, %v4675
      %v4677 = vpop.f32.mrf.mxu0
      %4678 = vdwg.mxu0
      %v4679 = vmax.f32 %v4650, 0.0
      %v4680 = vmax.f32 %v4676, 0.0
      %v4681 = vpack.c.bf16 %v4679, %v4679
      %v4682 = vpack.c.bf16 %v4680, %v4680
      %v4683 = vld [vmem:[%s17] sm:$0xff]
      %v4684 = vld [vmem:[%s17 + $0x8] sm:$0xff]
      %v4685 = vld [vmem:[%s17 + $0x10] sm:$0xff]
      %v4686 = vld [vmem:[%s17 + $0x18] sm:$0xff]
      %v4687 = vld [vmem:[%s17 + $0x20] sm:$0xff]
      %v4688 = vld [vmem:[%s17 + $0x28] sm:$0xff]
      %v4689 = vld [vmem:[%s17 + $0x30] sm:$0xff]
      %v4690 = vld [vmem:[%s17 + $0x38] sm:$0xff]
      %v4691 = vld [vmem:[%s17 + $0x40] sm:$0xff]
      %v4692 = vld [vmem:[%s17 + $0x48] sm:$0xff]
      %v4693 = vld [vmem:[%s17 + $0x50] sm:$0xff]
      %v4694 = vld [vmem:[%s17 + $0x58] sm:$0xff]
      %v4695 = vld [vmem:[%s17 + $0x60] sm:$0xff]
      %v4696 = vld [vmem:[%s17 + $0x68] sm:$0xff]
      %v4697 = vld [vmem:[%s17 + $0x70] sm:$0xff]
      %v4698 = vld [vmem:[%s17 + $0x78] sm:$0xff]
      %v4699 = vld [vmem:[%s17 + $0x80] sm:$0xff]
      %v4700 = vld [vmem:[%s17 + $0x88] sm:$0xff]
      %v4701 = vld [vmem:[%s17 + $0x90] sm:$0xff]
      %v4702 = vld [vmem:[%s17 + $0x98] sm:$0xff]
      %v4703 = vld [vmem:[%s17 + $0xa0] sm:$0xff]
      %v4704 = vld [vmem:[%s17 + $0xa8] sm:$0xff]
      %v4705 = vld [vmem:[%s17 + $0xb0] sm:$0xff]
      %v4706 = vld [vmem:[%s17 + $0xb8] sm:$0xff]
      %v4707 = vld [vmem:[%s17 + $0xc0] sm:$0xff]
      %v4708 = vld [vmem:[%s17 + $0xc8] sm:$0xff]
      %v4709 = vld [vmem:[%s17 + $0xd0] sm:$0xff]
      %v4710 = vld [vmem:[%s17 + $0xd8] sm:$0xff]
      %v4711 = vld [vmem:[%s17 + $0xe0] sm:$0xff]
      %v4712 = vld [vmem:[%s17 + $0xe8] sm:$0xff]
      %v4713 = vld [vmem:[%s17 + $0xf0] sm:$0xff]
      %v4714 = vld [vmem:[%s17 + $0xf8] sm:$0xff]
      %v4715 = vld [vmem:[%s17 + $0x100] sm:$0xff]
      %v4716 = vld [vmem:[%s17 + $0x108] sm:$0xff]
      %v4717 = vld [vmem:[%s17 + $0x110] sm:$0xff]
      %v4718 = vld [vmem:[%s17 + $0x118] sm:$0xff]
      %v4719 = vld [vmem:[%s17 + $0x120] sm:$0xff]
      %v4720 = vld [vmem:[%s17 + $0x128] sm:$0xff]
      %v4721 = vld [vmem:[%s17 + $0x130] sm:$0xff]
      %v4722 = vld [vmem:[%s17 + $0x138] sm:$0xff]
      %v4723 = vld [vmem:[%s17 + $0x140] sm:$0xff]
      %v4724 = vld [vmem:[%s17 + $0x148] sm:$0xff]
      %v4725 = vld [vmem:[%s17 + $0x150] sm:$0xff]
      %v4726 = vld [vmem:[%s17 + $0x158] sm:$0xff]
      %v4727 = vld [vmem:[%s17 + $0x160] sm:$0xff]
      %v4728 = vld [vmem:[%s17 + $0x168] sm:$0xff]
      %v4729 = vld [vmem:[%s17 + $0x170] sm:$0xff]
      %v4730 = vld [vmem:[%s17 + $0x178] sm:$0xff]
      %v4731 = vld [vmem:[%s17 + $0x180] sm:$0xff]
      %v4732 = vld [vmem:[%s17 + $0x188] sm:$0xff]
      %v4733 = vld [vmem:[%s17 + $0x190] sm:$0xff]
      %v4734 = vld [vmem:[%s17 + $0x198] sm:$0xff]
      %v4735 = vld [vmem:[%s17 + $0x1a0] sm:$0xff]
      %v4736 = vld [vmem:[%s17 + $0x1a8] sm:$0xff]
      %v4737 = vld [vmem:[%s17 + $0x1b0] sm:$0xff]
      %v4738 = vld [vmem:[%s17 + $0x1b8] sm:$0xff]
      %v4739 = vld [vmem:[%s17 + $0x1c0] sm:$0xff]
      %v4740 = vld [vmem:[%s17 + $0x1c8] sm:$0xff]
      %v4741 = vld [vmem:[%s17 + $0x1d0] sm:$0xff]
      %v4742 = vld [vmem:[%s17 + $0x1d8] sm:$0xff]
      %v4743 = vld [vmem:[%s17 + $0x1e0] sm:$0xff]
      %v4744 = vld [vmem:[%s17 + $0x1e8] sm:$0xff]
      %v4745 = vld [vmem:[%s17 + $0x1f0] sm:$0xff]
      %v4746 = vld [vmem:[%s17 + $0x1f8] sm:$0xff]
      %v4747 = vld [vmem:[%s18] sm:$0xf]
      %v4812 = vunpack.c.l.b16 %v4683
      %v4813 = vunpack.c.h.b16 %v4683
      %v4814 = vunpack.c.l.b16 %v4684
      %v4815 = vunpack.c.h.b16 %v4684
      %v4816 = vunpack.c.l.b16 %v4685
      %v4817 = vunpack.c.h.b16 %v4685
      %v4818 = vunpack.c.l.b16 %v4686
      %v4819 = vunpack.c.h.b16 %v4686
      %v4820 = vunpack.c.l.b16 %v4687
      %v4821 = vunpack.c.h.b16 %v4687
      %v4822 = vunpack.c.l.b16 %v4688
      %v4823 = vunpack.c.h.b16 %v4688
      %v4824 = vunpack.c.l.b16 %v4689
      %v4825 = vunpack.c.h.b16 %v4689
      %v4826 = vunpack.c.l.b16 %v4690
      %v4827 = vunpack.c.h.b16 %v4690
      %v4828 = vunpack.c.l.b16 %v4691
      %v4829 = vunpack.c.h.b16 %v4691
      %v4830 = vunpack.c.l.b16 %v4692
      %v4831 = vunpack.c.h.b16 %v4692
      %v4832 = vunpack.c.l.b16 %v4693
      %v4833 = vunpack.c.h.b16 %v4693
      %v4834 = vunpack.c.l.b16 %v4694
      %v4835 = vunpack.c.h.b16 %v4694
      %v4836 = vunpack.c.l.b16 %v4695
      %v4837 = vunpack.c.h.b16 %v4695
      %v4838 = vunpack.c.l.b16 %v4696
      %v4839 = vunpack.c.h.b16 %v4696
      %v4840 = vunpack.c.l.b16 %v4697
      %v4841 = vunpack.c.h.b16 %v4697
      %v4842 = vunpack.c.l.b16 %v4698
      %v4843 = vunpack.c.h.b16 %v4698
      %v4844 = vunpack.c.l.b16 %v4699
      %v4845 = vunpack.c.h.b16 %v4699
      %v4846 = vunpack.c.l.b16 %v4700
      %v4847 = vunpack.c.h.b16 %v4700
      %v4848 = vunpack.c.l.b16 %v4701
      %v4849 = vunpack.c.h.b16 %v4701
      %v4850 = vunpack.c.l.b16 %v4702
      %v4851 = vunpack.c.h.b16 %v4702
      %v4852 = vunpack.c.l.b16 %v4703
      %v4853 = vunpack.c.h.b16 %v4703
      %v4854 = vunpack.c.l.b16 %v4704
      %v4855 = vunpack.c.h.b16 %v4704
      %v4856 = vunpack.c.l.b16 %v4705
      %v4857 = vunpack.c.h.b16 %v4705
      %v4858 = vunpack.c.l.b16 %v4706
      %v4859 = vunpack.c.h.b16 %v4706
      %v4860 = vunpack.c.l.b16 %v4707
      %v4861 = vunpack.c.h.b16 %v4707
      %v4862 = vunpack.c.l.b16 %v4708
      %v4863 = vunpack.c.h.b16 %v4708
      %v4864 = vunpack.c.l.b16 %v4709
      %v4865 = vunpack.c.h.b16 %v4709
      %v4866 = vunpack.c.l.b16 %v4710
      %v4867 = vunpack.c.h.b16 %v4710
      %v4868 = vunpack.c.l.b16 %v4711
      %v4869 = vunpack.c.h.b16 %v4711
      %v4870 = vunpack.c.l.b16 %v4712
      %v4871 = vunpack.c.h.b16 %v4712
      %v4872 = vunpack.c.l.b16 %v4713
      %v4873 = vunpack.c.h.b16 %v4713
      %v4874 = vunpack.c.l.b16 %v4714
      %v4875 = vunpack.c.h.b16 %v4714
      %v4876 = vunpack.c.l.b16 %v4715
      %v4877 = vunpack.c.h.b16 %v4715
      %v4878 = vunpack.c.l.b16 %v4716
      %v4879 = vunpack.c.h.b16 %v4716
      %v4880 = vunpack.c.l.b16 %v4717
      %v4881 = vunpack.c.h.b16 %v4717
      %v4882 = vunpack.c.l.b16 %v4718
      %v4883 = vunpack.c.h.b16 %v4718
      %v4884 = vunpack.c.l.b16 %v4719
      %v4885 = vunpack.c.h.b16 %v4719
      %v4886 = vunpack.c.l.b16 %v4720
      %v4887 = vunpack.c.h.b16 %v4720
      %v4888 = vunpack.c.l.b16 %v4721
      %v4889 = vunpack.c.h.b16 %v4721
      %v4890 = vunpack.c.l.b16 %v4722
      %v4891 = vunpack.c.h.b16 %v4722
      %v4892 = vunpack.c.l.b16 %v4723
      %v4893 = vunpack.c.h.b16 %v4723
      %v4894 = vunpack.c.l.b16 %v4724
      %v4895 = vunpack.c.h.b16 %v4724
      %v4896 = vunpack.c.l.b16 %v4725
      %v4897 = vunpack.c.h.b16 %v4725
      %v4898 = vunpack.c.l.b16 %v4726
      %v4899 = vunpack.c.h.b16 %v4726
      %v4900 = vunpack.c.l.b16 %v4727
      %v4901 = vunpack.c.h.b16 %v4727
      %v4902 = vunpack.c.l.b16 %v4728
      %v4903 = vunpack.c.h.b16 %v4728
      %v4904 = vunpack.c.l.b16 %v4729
      %v4905 = vunpack.c.h.b16 %v4729
      %v4906 = vunpack.c.l.b16 %v4730
      %v4907 = vunpack.c.h.b16 %v4730
      %v4908 = vunpack.c.l.b16 %v4731
      %v4909 = vunpack.c.h.b16 %v4731
      %v4910 = vunpack.c.l.b16 %v4732
      %v4911 = vunpack.c.h.b16 %v4732
      %v4912 = vunpack.c.l.b16 %v4733
      %v4913 = vunpack.c.h.b16 %v4733
      %v4914 = vunpack.c.l.b16 %v4734
      %v4915 = vunpack.c.h.b16 %v4734
      %v4916 = vunpack.c.l.b16 %v4735
      %v4917 = vunpack.c.h.b16 %v4735
      %v4918 = vunpack.c.l.b16 %v4736
      %v4919 = vunpack.c.h.b16 %v4736
      %v4920 = vunpack.c.l.b16 %v4737
      %v4921 = vunpack.c.h.b16 %v4737
      %v4922 = vunpack.c.l.b16 %v4738
      %v4923 = vunpack.c.h.b16 %v4738
      %v4924 = vunpack.c.l.b16 %v4739
      %v4925 = vunpack.c.h.b16 %v4739
      %v4926 = vunpack.c.l.b16 %v4740
      %v4927 = vunpack.c.h.b16 %v4740
      %v4928 = vunpack.c.l.b16 %v4741
      %v4929 = vunpack.c.h.b16 %v4741
      %v4930 = vunpack.c.l.b16 %v4742
      %v4931 = vunpack.c.h.b16 %v4742
      %v4932 = vunpack.c.l.b16 %v4743
      %v4933 = vunpack.c.h.b16 %v4743
      %v4934 = vunpack.c.l.b16 %v4744
      %v4935 = vunpack.c.h.b16 %v4744
      %v4936 = vunpack.c.l.b16 %v4745
      %v4937 = vunpack.c.h.b16 %v4745
      %v4938 = vunpack.c.l.b16 %v4746
      %v4939 = vunpack.c.h.b16 %v4746
      %v4940 = vpack.c.b16 %v4816, %v4812
      %v4941 = vpack.c.b16 %v4817, %v4813
      %v4942 = vpack.c.b16 %v4818, %v4814
      %v4943 = vpack.c.b16 %v4819, %v4815
      %v4944 = vpack.c.b16 %v4824, %v4820
      %v4945 = vpack.c.b16 %v4825, %v4821
      %v4946 = vpack.c.b16 %v4826, %v4822
      %v4947 = vpack.c.b16 %v4827, %v4823
      %v4948 = vpack.c.b16 %v4832, %v4828
      %v4949 = vpack.c.b16 %v4833, %v4829
      %v4950 = vpack.c.b16 %v4834, %v4830
      %v4951 = vpack.c.b16 %v4835, %v4831
      %v4952 = vpack.c.b16 %v4840, %v4836
      %v4953 = vpack.c.b16 %v4841, %v4837
      %v4954 = vpack.c.b16 %v4842, %v4838
      %v4955 = vpack.c.b16 %v4843, %v4839
      %v4956 = vpack.c.b16 %v4848, %v4844
      %v4957 = vpack.c.b16 %v4849, %v4845
      %v4958 = vpack.c.b16 %v4850, %v4846
      %v4959 = vpack.c.b16 %v4851, %v4847
      %v4960 = vpack.c.b16 %v4856, %v4852
      %v4961 = vpack.c.b16 %v4857, %v4853
      %v4962 = vpack.c.b16 %v4858, %v4854
      %v4963 = vpack.c.b16 %v4859, %v4855
      %v4964 = vpack.c.b16 %v4864, %v4860
      %v4965 = vpack.c.b16 %v4865, %v4861
      %v4966 = vpack.c.b16 %v4866, %v4862
      %v4967 = vpack.c.b16 %v4867, %v4863
      %v4968 = vpack.c.b16 %v4872, %v4868
      %v4969 = vpack.c.b16 %v4873, %v4869
      %v4970 = vpack.c.b16 %v4874, %v4870
      %v4971 = vpack.c.b16 %v4875, %v4871
      %v4972 = vpack.c.b16 %v4880, %v4876
      %v4973 = vpack.c.b16 %v4881, %v4877
      %v4974 = vpack.c.b16 %v4882, %v4878
      %v4975 = vpack.c.b16 %v4883, %v4879
      %v4976 = vpack.c.b16 %v4888, %v4884
      %v4977 = vpack.c.b16 %v4889, %v4885
      %v4978 = vpack.c.b16 %v4890, %v4886
      %v4979 = vpack.c.b16 %v4891, %v4887
      %v4980 = vpack.c.b16 %v4896, %v4892
      %v4981 = vpack.c.b16 %v4897, %v4893
      %v4982 = vpack.c.b16 %v4898, %v4894
      %v4983 = vpack.c.b16 %v4899, %v4895
      %v4984 = vpack.c.b16 %v4904, %v4900
      %v4985 = vpack.c.b16 %v4905, %v4901
      %v4986 = vpack.c.b16 %v4906, %v4902
      %v4987 = vpack.c.b16 %v4907, %v4903
      %v4988 = vpack.c.b16 %v4912, %v4908
      %v4989 = vpack.c.b16 %v4913, %v4909
      %v4990 = vpack.c.b16 %v4914, %v4910
      %v4991 = vpack.c.b16 %v4915, %v4911
      %v4992 = vpack.c.b16 %v4920, %v4916
      %v4993 = vpack.c.b16 %v4921, %v4917
      %v4994 = vpack.c.b16 %v4922, %v4918
      %v4995 = vpack.c.b16 %v4923, %v4919
      %v4996 = vpack.c.b16 %v4928, %v4924
      %v4997 = vpack.c.b16 %v4929, %v4925
      %v4998 = vpack.c.b16 %v4930, %v4926
      %v4999 = vpack.c.b16 %v4931, %v4927
      %v5000 = vpack.c.b16 %v4936, %v4932
      %v5001 = vpack.c.b16 %v4937, %v4933
      %v5002 = vpack.c.b16 %v4938, %v4934
      %v5003 = vpack.c.b16 %v4939, %v4935
      %v5069 = vperm.slane %v4747, 0
      %v5070 = vperm.slane %v4747, 1
      %v5071 = vperm.slane %v4747, 2
      %v5072 = vperm.slane %v4747, 3
      %5077 = vmatpush.bf16.msra.mxu0 %v4968
      %5078 = vmatpush.bf16.msra.mxu0 %v4964
      %5079 = vmatpush.bf16.msra.mxu0 %v4960
      %5080 = vmatpush.bf16.msra.mxu0 %v4956
      %5081 = vmatpush.bf16.msra.mxu0 %v4952
      %5082 = vmatpush.bf16.msra.mxu0 %v4948
      %5083 = vmatpush.bf16.msra.mxu0 %v4944
      %5084 = vmatpush.bf16.msra.mxu0 %v4940
      %5085 = vmatmul.bf16.gmra.mxu0 %v4681
      %v5086 = vpop.f32.mrf.mxu0
      %v5087 = vadd.f32 %v5069, %v5086
      %v5088 = vpop.f32.mrf.mxu0
      %5089 = vdwg.mxu0
      %5090 = vmatpush.bf16.msra.mxu0 %v5000
      %5091 = vmatpush.bf16.msra.mxu0 %v4996
      %5092 = vmatpush.bf16.msra.mxu0 %v4992
      %5093 = vmatpush.bf16.msra.mxu0 %v4988
      %5094 = vmatpush.bf16.msra.mxu0 %v4984
      %5095 = vmatpush.bf16.msra.mxu0 %v4980
      %5096 = vmatpush.bf16.msra.mxu0 %v4976
      %5097 = vmatpush.bf16.msra.mxu0 %v4972
      %5098 = vmatmul.bf16.gmra.mxu0 %v4682
      %v5099 = vpop.f32.mrf.mxu0
      %v5100 = vadd.f32 %v5087, %v5099
      %v5101 = vpop.f32.mrf.mxu0
      %5102 = vdwg.mxu0
      %5103 = vmatpush.bf16.msra.mxu0 %v4969
      %5104 = vmatpush.bf16.msra.mxu0 %v4965
      %5105 = vmatpush.bf16.msra.mxu0 %v4961
      %5106 = vmatpush.bf16.msra.mxu0 %v4957
      %5107 = vmatpush.bf16.msra.mxu0 %v4953
      %5108 = vmatpush.bf16.msra.mxu0 %v4949
      %5109 = vmatpush.bf16.msra.mxu0 %v4945
      %5110 = vmatpush.bf16.msra.mxu0 %v4941
      %5111 = vmatmul.bf16.gmra.mxu0 %v4681
      %v5112 = vpop.f32.mrf.mxu0
      %v5113 = vadd.f32 %v5070, %v5112
      %v5114 = vpop.f32.mrf.mxu0
      %5115 = vdwg.mxu0
      %5116 = vmatpush.bf16.msra.mxu0 %v5001
      %5117 = vmatpush.bf16.msra.mxu0 %v4997
      %5118 = vmatpush.bf16.msra.mxu0 %v4993
      %5119 = vmatpush.bf16.msra.mxu0 %v4989
      %5120 = vmatpush.bf16.msra.mxu0 %v4985
      %5121 = vmatpush.bf16.msra.mxu0 %v4981
      %5122 = vmatpush.bf16.msra.mxu0 %v4977
      %5123 = vmatpush.bf16.msra.mxu0 %v4973
      %5124 = vmatmul.bf16.gmra.mxu0 %v4682
      %v5125 = vpop.f32.mrf.mxu0
      %v5126 = vadd.f32 %v5113, %v5125
      %v5127 = vpop.f32.mrf.mxu0
      %5128 = vdwg.mxu0
      %5129 = vmatpush.bf16.msra.mxu0 %v4970
      %5130 = vmatpush.bf16.msra.mxu0 %v4966
      %5131 = vmatpush.bf16.msra.mxu0 %v4962
      %5132 = vmatpush.bf16.msra.mxu0 %v4958
      %5133 = vmatpush.bf16.msra.mxu0 %v4954
      %5134 = vmatpush.bf16.msra.mxu0 %v4950
      %5135 = vmatpush.bf16.msra.mxu0 %v4946
      %5136 = vmatpush.bf16.msra.mxu0 %v4942
      %5137 = vmatmul.bf16.gmra.mxu0 %v4681
      %v5138 = vpop.f32.mrf.mxu0
      %v5139 = vadd.f32 %v5071, %v5138
      %v5140 = vpop.f32.mrf.mxu0
      %5141 = vdwg.mxu0
      %5142 = vmatpush.bf16.msra.mxu0 %v5002
      %5143 = vmatpush.bf16.msra.mxu0 %v4998
      %5144 = vmatpush.bf16.msra.mxu0 %v4994
      %5145 = vmatpush.bf16.msra.mxu0 %v4990
      %5146 = vmatpush.bf16.msra.mxu0 %v4986
      %5147 = vmatpush.bf16.msra.mxu0 %v4982
      %5148 = vmatpush.bf16.msra.mxu0 %v4978
      %5149 = vmatpush.bf16.msra.mxu0 %v4974
      %5150 = vmatmul.bf16.gmra.mxu0 %v4682
      %v5151 = vpop.f32.mrf.mxu0
      %v5152 = vadd.f32 %v5139, %v5151
      %v5153 = vpop.f32.mrf.mxu0
      %5154 = vdwg.mxu0
      %5155 = vmatpush.bf16.msra.mxu0 %v4971
      %5156 = vmatpush.bf16.msra.mxu0 %v4967
      %5157 = vmatpush.bf16.msra.mxu0 %v4963
      %5158 = vmatpush.bf16.msra.mxu0 %v4959
      %5159 = vmatpush.bf16.msra.mxu0 %v4955
      %5160 = vmatpush.bf16.msra.mxu0 %v4951
      %5161 = vmatpush.bf16.msra.mxu0 %v4947
      %5162 = vmatpush.bf16.msra.mxu0 %v4943
      %5163 = vmatmul.bf16.gmra.mxu0 %v4681
      %v5164 = vpop.f32.mrf.mxu0
      %v5165 = vadd.f32 %v5072, %v5164
      %v5166 = vpop.f32.mrf.mxu0
      %5167 = vdwg.mxu0
      %5168 = vmatpush.bf16.msra.mxu0 %v5003
      %5169 = vmatpush.bf16.msra.mxu0 %v4999
      %5170 = vmatpush.bf16.msra.mxu0 %v4995
      %5171 = vmatpush.bf16.msra.mxu0 %v4991
      %5172 = vmatpush.bf16.msra.mxu0 %v4987
      %5173 = vmatpush.bf16.msra.mxu0 %v4983
      %5174 = vmatpush.bf16.msra.mxu0 %v4979
      %5175 = vmatpush.bf16.msra.mxu0 %v4975
      %5176 = vmatmul.bf16.gmra.mxu0 %v4682
      %v5177 = vpop.f32.mrf.mxu0
      %v5178 = vadd.f32 %v5165, %v5177
      %v5179 = vpop.f32.mrf.mxu0
      %5180 = vdwg.mxu0
      %v5181 = vmax.f32 %v5100, 0.0
      %v5182 = vmax.f32 %v5126, 0.0
      %v5183 = vmax.f32 %v5152, 0.0
      %v5184 = vmax.f32 %v5178, 0.0
      %v5185 = vpack.c.bf16 %v5181, %v5181
      %v5186 = vpack.c.bf16 %v5182, %v5182
      %v5187 = vpack.c.bf16 %v5183, %v5183
      %v5188 = vpack.c.bf16 %v5184, %v5184
      %v5189 = vld [vmem:[%s19] sm:$0xff]
      %v5190 = vld [vmem:[%s19 + $0x8] sm:$0xff]
      %v5191 = vld [vmem:[%s19 + $0x10] sm:$0xff]
      %v5192 = vld [vmem:[%s19 + $0x18] sm:$0xff]
      %v5193 = vld [vmem:[%s19 + $0x20] sm:$0xff]
      %v5194 = vld [vmem:[%s19 + $0x28] sm:$0xff]
      %v5195 = vld [vmem:[%s19 + $0x30] sm:$0xff]
      %v5196 = vld [vmem:[%s19 + $0x38] sm:$0xff]
      %v5197 = vld [vmem:[%s19 + $0x40] sm:$0xff]
      %v5198 = vld [vmem:[%s19 + $0x48] sm:$0xff]
      %v5199 = vld [vmem:[%s19 + $0x50] sm:$0xff]
      %v5200 = vld [vmem:[%s19 + $0x58] sm:$0xff]
      %v5201 = vld [vmem:[%s19 + $0x60] sm:$0xff]
      %v5202 = vld [vmem:[%s19 + $0x68] sm:$0xff]
      %v5203 = vld [vmem:[%s19 + $0x70] sm:$0xff]
      %v5204 = vld [vmem:[%s19 + $0x78] sm:$0xff]
      %v5205 = vld [vmem:[%s19 + $0x80] sm:$0xff]
      %v5206 = vld [vmem:[%s19 + $0x88] sm:$0xff]
      %v5207 = vld [vmem:[%s19 + $0x90] sm:$0xff]
      %v5208 = vld [vmem:[%s19 + $0x98] sm:$0xff]
      %v5209 = vld [vmem:[%s19 + $0xa0] sm:$0xff]
      %v5210 = vld [vmem:[%s19 + $0xa8] sm:$0xff]
      %v5211 = vld [vmem:[%s19 + $0xb0] sm:$0xff]
      %v5212 = vld [vmem:[%s19 + $0xb8] sm:$0xff]
      %v5213 = vld [vmem:[%s19 + $0xc0] sm:$0xff]
      %v5214 = vld [vmem:[%s19 + $0xc8] sm:$0xff]
      %v5215 = vld [vmem:[%s19 + $0xd0] sm:$0xff]
      %v5216 = vld [vmem:[%s19 + $0xd8] sm:$0xff]
      %v5217 = vld [vmem:[%s19 + $0xe0] sm:$0xff]
      %v5218 = vld [vmem:[%s19 + $0xe8] sm:$0xff]
      %v5219 = vld [vmem:[%s19 + $0xf0] sm:$0xff]
      %v5220 = vld [vmem:[%s19 + $0xf8] sm:$0xff]
      %v5221 = vld [vmem:[%s19 + $0x100] sm:$0xff]
      %v5222 = vld [vmem:[%s19 + $0x108] sm:$0xff]
      %v5223 = vld [vmem:[%s19 + $0x110] sm:$0xff]
      %v5224 = vld [vmem:[%s19 + $0x118] sm:$0xff]
      %v5225 = vld [vmem:[%s19 + $0x120] sm:$0xff]
      %v5226 = vld [vmem:[%s19 + $0x128] sm:$0xff]
      %v5227 = vld [vmem:[%s19 + $0x130] sm:$0xff]
      %v5228 = vld [vmem:[%s19 + $0x138] sm:$0xff]
      %v5229 = vld [vmem:[%s19 + $0x140] sm:$0xff]
      %v5230 = vld [vmem:[%s19 + $0x148] sm:$0xff]
      %v5231 = vld [vmem:[%s19 + $0x150] sm:$0xff]
      %v5232 = vld [vmem:[%s19 + $0x158] sm:$0xff]
      %v5233 = vld [vmem:[%s19 + $0x160] sm:$0xff]
      %v5234 = vld [vmem:[%s19 + $0x168] sm:$0xff]
      %v5235 = vld [vmem:[%s19 + $0x170] sm:$0xff]
      %v5236 = vld [vmem:[%s19 + $0x178] sm:$0xff]
      %v5237 = vld [vmem:[%s19 + $0x180] sm:$0xff]
      %v5238 = vld [vmem:[%s19 + $0x188] sm:$0xff]
      %v5239 = vld [vmem:[%s19 + $0x190] sm:$0xff]
      %v5240 = vld [vmem:[%s19 + $0x198] sm:$0xff]
      %v5241 = vld [vmem:[%s19 + $0x1a0] sm:$0xff]
      %v5242 = vld [vmem:[%s19 + $0x1a8] sm:$0xff]
      %v5243 = vld [vmem:[%s19 + $0x1b0] sm:$0xff]
      %v5244 = vld [vmem:[%s19 + $0x1b8] sm:$0xff]
      %v5245 = vld [vmem:[%s19 + $0x1c0] sm:$0xff]
      %v5246 = vld [vmem:[%s19 + $0x1c8] sm:$0xff]
      %v5247 = vld [vmem:[%s19 + $0x1d0] sm:$0xff]
      %v5248 = vld [vmem:[%s19 + $0x1d8] sm:$0xff]
      %v5249 = vld [vmem:[%s19 + $0x1e0] sm:$0xff]
      %v5250 = vld [vmem:[%s19 + $0x1e8] sm:$0xff]
      %v5251 = vld [vmem:[%s19 + $0x1f0] sm:$0xff]
      %v5252 = vld [vmem:[%s19 + $0x1f8] sm:$0xff]
      %v5253 = vld [vmem:[%s19 + $0x200] sm:$0xff]
      %v5254 = vld [vmem:[%s19 + $0x208] sm:$0xff]
      %v5255 = vld [vmem:[%s19 + $0x210] sm:$0xff]
      %v5256 = vld [vmem:[%s19 + $0x218] sm:$0xff]
      %v5257 = vld [vmem:[%s19 + $0x220] sm:$0xff]
      %v5258 = vld [vmem:[%s19 + $0x228] sm:$0xff]
      %v5259 = vld [vmem:[%s19 + $0x230] sm:$0xff]
      %v5260 = vld [vmem:[%s19 + $0x238] sm:$0xff]
      %v5261 = vld [vmem:[%s19 + $0x240] sm:$0xff]
      %v5262 = vld [vmem:[%s19 + $0x248] sm:$0xff]
      %v5263 = vld [vmem:[%s19 + $0x250] sm:$0xff]
      %v5264 = vld [vmem:[%s19 + $0x258] sm:$0xff]
      %v5265 = vld [vmem:[%s19 + $0x260] sm:$0xff]
      %v5266 = vld [vmem:[%s19 + $0x268] sm:$0xff]
      %v5267 = vld [vmem:[%s19 + $0x270] sm:$0xff]
      %v5268 = vld [vmem:[%s19 + $0x278] sm:$0xff]
      %v5269 = vld [vmem:[%s19 + $0x280] sm:$0xff]
      %v5270 = vld [vmem:[%s19 + $0x288] sm:$0xff]
      %v5271 = vld [vmem:[%s19 + $0x290] sm:$0xff]
      %v5272 = vld [vmem:[%s19 + $0x298] sm:$0xff]
      %v5273 = vld [vmem:[%s19 + $0x2a0] sm:$0xff]
      %v5274 = vld [vmem:[%s19 + $0x2a8] sm:$0xff]
      %v5275 = vld [vmem:[%s19 + $0x2b0] sm:$0xff]
      %v5276 = vld [vmem:[%s19 + $0x2b8] sm:$0xff]
      %v5277 = vld [vmem:[%s19 + $0x2c0] sm:$0xff]
      %v5278 = vld [vmem:[%s19 + $0x2c8] sm:$0xff]
      %v5279 = vld [vmem:[%s19 + $0x2d0] sm:$0xff]
      %v5280 = vld [vmem:[%s19 + $0x2d8] sm:$0xff]
      %v5281 = vld [vmem:[%s19 + $0x2e0] sm:$0xff]
      %v5282 = vld [vmem:[%s19 + $0x2e8] sm:$0xff]
      %v5283 = vld [vmem:[%s19 + $0x2f0] sm:$0xff]
      %v5284 = vld [vmem:[%s19 + $0x2f8] sm:$0xff]
      %v5285 = vld [vmem:[%s19 + $0x300] sm:$0xff]
      %v5286 = vld [vmem:[%s19 + $0x308] sm:$0xff]
      %v5287 = vld [vmem:[%s19 + $0x310] sm:$0xff]
      %v5288 = vld [vmem:[%s19 + $0x318] sm:$0xff]
      %v5289 = vld [vmem:[%s19 + $0x320] sm:$0xff]
      %v5290 = vld [vmem:[%s19 + $0x328] sm:$0xff]
      %v5291 = vld [vmem:[%s19 + $0x330] sm:$0xff]
      %v5292 = vld [vmem:[%s19 + $0x338] sm:$0xff]
      %v5293 = vld [vmem:[%s19 + $0x340] sm:$0xff]
      %v5294 = vld [vmem:[%s19 + $0x348] sm:$0xff]
      %v5295 = vld [vmem:[%s19 + $0x350] sm:$0xff]
      %v5296 = vld [vmem:[%s19 + $0x358] sm:$0xff]
      %v5297 = vld [vmem:[%s19 + $0x360] sm:$0xff]
      %v5298 = vld [vmem:[%s19 + $0x368] sm:$0xff]
      %v5299 = vld [vmem:[%s19 + $0x370] sm:$0xff]
      %v5300 = vld [vmem:[%s19 + $0x378] sm:$0xff]
      %v5301 = vld [vmem:[%s19 + $0x380] sm:$0xff]
      %v5302 = vld [vmem:[%s19 + $0x388] sm:$0xff]
      %v5303 = vld [vmem:[%s19 + $0x390] sm:$0xff]
      %v5304 = vld [vmem:[%s19 + $0x398] sm:$0xff]
      %v5305 = vld [vmem:[%s19 + $0x3a0] sm:$0xff]
      %v5306 = vld [vmem:[%s19 + $0x3a8] sm:$0xff]
      %v5307 = vld [vmem:[%s19 + $0x3b0] sm:$0xff]
      %v5308 = vld [vmem:[%s19 + $0x3b8] sm:$0xff]
      %v5309 = vld [vmem:[%s19 + $0x3c0] sm:$0xff]
      %v5310 = vld [vmem:[%s19 + $0x3c8] sm:$0xff]
      %v5311 = vld [vmem:[%s19 + $0x3d0] sm:$0xff]
      %v5312 = vld [vmem:[%s19 + $0x3d8] sm:$0xff]
      %v5313 = vld [vmem:[%s19 + $0x3e0] sm:$0xff]
      %v5314 = vld [vmem:[%s19 + $0x3e8] sm:$0xff]
      %v5315 = vld [vmem:[%s19 + $0x3f0] sm:$0xff]
      %v5316 = vld [vmem:[%s19 + $0x3f8] sm:$0xff]
      %v5317 = vld [vmem:[%s20] sm:$0xf]
      %v5446 = vunpack.c.l.b16 %v5189
      %v5447 = vunpack.c.h.b16 %v5189
      %v5448 = vunpack.c.l.b16 %v5190
      %v5449 = vunpack.c.h.b16 %v5190
      %v5450 = vunpack.c.l.b16 %v5191
      %v5451 = vunpack.c.h.b16 %v5191
      %v5452 = vunpack.c.l.b16 %v5192
      %v5453 = vunpack.c.h.b16 %v5192
      %v5454 = vunpack.c.l.b16 %v5193
      %v5455 = vunpack.c.h.b16 %v5193
      %v5456 = vunpack.c.l.b16 %v5194
      %v5457 = vunpack.c.h.b16 %v5194
      %v5458 = vunpack.c.l.b16 %v5195
      %v5459 = vunpack.c.h.b16 %v5195
      %v5460 = vunpack.c.l.b16 %v5196
      %v5461 = vunpack.c.h.b16 %v5196
      %v5462 = vunpack.c.l.b16 %v5197
      %v5463 = vunpack.c.h.b16 %v5197
      %v5464 = vunpack.c.l.b16 %v5198
      %v5465 = vunpack.c.h.b16 %v5198
      %v5466 = vunpack.c.l.b16 %v5199
      %v5467 = vunpack.c.h.b16 %v5199
      %v5468 = vunpack.c.l.b16 %v5200
      %v5469 = vunpack.c.h.b16 %v5200
      %v5470 = vunpack.c.l.b16 %v5201
      %v5471 = vunpack.c.h.b16 %v5201
      %v5472 = vunpack.c.l.b16 %v5202
      %v5473 = vunpack.c.h.b16 %v5202
      %v5474 = vunpack.c.l.b16 %v5203
      %v5475 = vunpack.c.h.b16 %v5203
      %v5476 = vunpack.c.l.b16 %v5204
      %v5477 = vunpack.c.h.b16 %v5204
      %v5478 = vunpack.c.l.b16 %v5205
      %v5479 = vunpack.c.h.b16 %v5205
      %v5480 = vunpack.c.l.b16 %v5206
      %v5481 = vunpack.c.h.b16 %v5206
      %v5482 = vunpack.c.l.b16 %v5207
      %v5483 = vunpack.c.h.b16 %v5207
      %v5484 = vunpack.c.l.b16 %v5208
      %v5485 = vunpack.c.h.b16 %v5208
      %v5486 = vunpack.c.l.b16 %v5209
      %v5487 = vunpack.c.h.b16 %v5209
      %v5488 = vunpack.c.l.b16 %v5210
      %v5489 = vunpack.c.h.b16 %v5210
      %v5490 = vunpack.c.l.b16 %v5211
      %v5491 = vunpack.c.h.b16 %v5211
      %v5492 = vunpack.c.l.b16 %v5212
      %v5493 = vunpack.c.h.b16 %v5212
      %v5494 = vunpack.c.l.b16 %v5213
      %v5495 = vunpack.c.h.b16 %v5213
      %v5496 = vunpack.c.l.b16 %v5214
      %v5497 = vunpack.c.h.b16 %v5214
      %v5498 = vunpack.c.l.b16 %v5215
      %v5499 = vunpack.c.h.b16 %v5215
      %v5500 = vunpack.c.l.b16 %v5216
      %v5501 = vunpack.c.h.b16 %v5216
      %v5502 = vunpack.c.l.b16 %v5217
      %v5503 = vunpack.c.h.b16 %v5217
      %v5504 = vunpack.c.l.b16 %v5218
      %v5505 = vunpack.c.h.b16 %v5218
      %v5506 = vunpack.c.l.b16 %v5219
      %v5507 = vunpack.c.h.b16 %v5219
      %v5508 = vunpack.c.l.b16 %v5220
      %v5509 = vunpack.c.h.b16 %v5220
      %v5510 = vunpack.c.l.b16 %v5221
      %v5511 = vunpack.c.h.b16 %v5221
      %v5512 = vunpack.c.l.b16 %v5222
      %v5513 = vunpack.c.h.b16 %v5222
      %v5514 = vunpack.c.l.b16 %v5223
      %v5515 = vunpack.c.h.b16 %v5223
      %v5516 = vunpack.c.l.b16 %v5224
      %v5517 = vunpack.c.h.b16 %v5224
      %v5518 = vunpack.c.l.b16 %v5225
      %v5519 = vunpack.c.h.b16 %v5225
      %v5520 = vunpack.c.l.b16 %v5226
      %v5521 = vunpack.c.h.b16 %v5226
      %v5522 = vunpack.c.l.b16 %v5227
      %v5523 = vunpack.c.h.b16 %v5227
      %v5524 = vunpack.c.l.b16 %v5228
      %v5525 = vunpack.c.h.b16 %v5228
      %v5526 = vunpack.c.l.b16 %v5229
      %v5527 = vunpack.c.h.b16 %v5229
      %v5528 = vunpack.c.l.b16 %v5230
      %v5529 = vunpack.c.h.b16 %v5230
      %v5530 = vunpack.c.l.b16 %v5231
      %v5531 = vunpack.c.h.b16 %v5231
      %v5532 = vunpack.c.l.b16 %v5232
      %v5533 = vunpack.c.h.b16 %v5232
      %v5534 = vunpack.c.l.b16 %v5233
      %v5535 = vunpack.c.h.b16 %v5233
      %v5536 = vunpack.c.l.b16 %v5234
      %v5537 = vunpack.c.h.b16 %v5234
      %v5538 = vunpack.c.l.b16 %v5235
      %v5539 = vunpack.c.h.b16 %v5235
      %v5540 = vunpack.c.l.b16 %v5236
      %v5541 = vunpack.c.h.b16 %v5236
      %v5542 = vunpack.c.l.b16 %v5237
      %v5543 = vunpack.c.h.b16 %v5237
      %v5544 = vunpack.c.l.b16 %v5238
      %v5545 = vunpack.c.h.b16 %v5238
      %v5546 = vunpack.c.l.b16 %v5239
      %v5547 = vunpack.c.h.b16 %v5239
      %v5548 = vunpack.c.l.b16 %v5240
      %v5549 = vunpack.c.h.b16 %v5240
      %v5550 = vunpack.c.l.b16 %v5241
      %v5551 = vunpack.c.h.b16 %v5241
      %v5552 = vunpack.c.l.b16 %v5242
      %v5553 = vunpack.c.h.b16 %v5242
      %v5554 = vunpack.c.l.b16 %v5243
      %v5555 = vunpack.c.h.b16 %v5243
      %v5556 = vunpack.c.l.b16 %v5244
      %v5557 = vunpack.c.h.b16 %v5244
      %v5558 = vunpack.c.l.b16 %v5245
      %v5559 = vunpack.c.h.b16 %v5245
      %v5560 = vunpack.c.l.b16 %v5246
      %v5561 = vunpack.c.h.b16 %v5246
      %v5562 = vunpack.c.l.b16 %v5247
      %v5563 = vunpack.c.h.b16 %v5247
      %v5564 = vunpack.c.l.b16 %v5248
      %v5565 = vunpack.c.h.b16 %v5248
      %v5566 = vunpack.c.l.b16 %v5249
      %v5567 = vunpack.c.h.b16 %v5249
      %v5568 = vunpack.c.l.b16 %v5250
      %v5569 = vunpack.c.h.b16 %v5250
      %v5570 = vunpack.c.l.b16 %v5251
      %v5571 = vunpack.c.h.b16 %v5251
      %v5572 = vunpack.c.l.b16 %v5252
      %v5573 = vunpack.c.h.b16 %v5252
      %v5574 = vunpack.c.l.b16 %v5253
      %v5575 = vunpack.c.h.b16 %v5253
      %v5576 = vunpack.c.l.b16 %v5254
      %v5577 = vunpack.c.h.b16 %v5254
      %v5578 = vunpack.c.l.b16 %v5255
      %v5579 = vunpack.c.h.b16 %v5255
      %v5580 = vunpack.c.l.b16 %v5256
      %v5581 = vunpack.c.h.b16 %v5256
      %v5582 = vunpack.c.l.b16 %v5257
      %v5583 = vunpack.c.h.b16 %v5257
      %v5584 = vunpack.c.l.b16 %v5258
      %v5585 = vunpack.c.h.b16 %v5258
      %v5586 = vunpack.c.l.b16 %v5259
      %v5587 = vunpack.c.h.b16 %v5259
      %v5588 = vunpack.c.l.b16 %v5260
      %v5589 = vunpack.c.h.b16 %v5260
      %v5590 = vunpack.c.l.b16 %v5261
      %v5591 = vunpack.c.h.b16 %v5261
      %v5592 = vunpack.c.l.b16 %v5262
      %v5593 = vunpack.c.h.b16 %v5262
      %v5594 = vunpack.c.l.b16 %v5263
      %v5595 = vunpack.c.h.b16 %v5263
      %v5596 = vunpack.c.l.b16 %v5264
      %v5597 = vunpack.c.h.b16 %v5264
      %v5598 = vunpack.c.l.b16 %v5265
      %v5599 = vunpack.c.h.b16 %v5265
      %v5600 = vunpack.c.l.b16 %v5266
      %v5601 = vunpack.c.h.b16 %v5266
      %v5602 = vunpack.c.l.b16 %v5267
      %v5603 = vunpack.c.h.b16 %v5267
      %v5604 = vunpack.c.l.b16 %v5268
      %v5605 = vunpack.c.h.b16 %v5268
      %v5606 = vunpack.c.l.b16 %v5269
      %v5607 = vunpack.c.h.b16 %v5269
      %v5608 = vunpack.c.l.b16 %v5270
      %v5609 = vunpack.c.h.b16 %v5270
      %v5610 = vunpack.c.l.b16 %v5271
      %v5611 = vunpack.c.h.b16 %v5271
      %v5612 = vunpack.c.l.b16 %v5272
      %v5613 = vunpack.c.h.b16 %v5272
      %v5614 = vunpack.c.l.b16 %v5273
      %v5615 = vunpack.c.h.b16 %v5273
      %v5616 = vunpack.c.l.b16 %v5274
      %v5617 = vunpack.c.h.b16 %v5274
      %v5618 = vunpack.c.l.b16 %v5275
      %v5619 = vunpack.c.h.b16 %v5275
      %v5620 = vunpack.c.l.b16 %v5276
      %v5621 = vunpack.c.h.b16 %v5276
      %v5622 = vunpack.c.l.b16 %v5277
      %v5623 = vunpack.c.h.b16 %v5277
      %v5624 = vunpack.c.l.b16 %v5278
      %v5625 = vunpack.c.h.b16 %v5278
      %v5626 = vunpack.c.l.b16 %v5279
      %v5627 = vunpack.c.h.b16 %v5279
      %v5628 = vunpack.c.l.b16 %v5280
      %v5629 = vunpack.c.h.b16 %v5280
      %v5630 = vunpack.c.l.b16 %v5281
      %v5631 = vunpack.c.h.b16 %v5281
      %v5632 = vunpack.c.l.b16 %v5282
      %v5633 = vunpack.c.h.b16 %v5282
      %v5634 = vunpack.c.l.b16 %v5283
      %v5635 = vunpack.c.h.b16 %v5283
      %v5636 = vunpack.c.l.b16 %v5284
      %v5637 = vunpack.c.h.b16 %v5284
      %v5638 = vunpack.c.l.b16 %v5285
      %v5639 = vunpack.c.h.b16 %v5285
      %v5640 = vunpack.c.l.b16 %v5286
      %v5641 = vunpack.c.h.b16 %v5286
      %v5642 = vunpack.c.l.b16 %v5287
      %v5643 = vunpack.c.h.b16 %v5287
      %v5644 = vunpack.c.l.b16 %v5288
      %v5645 = vunpack.c.h.b16 %v5288
      %v5646 = vunpack.c.l.b16 %v5289
      %v5647 = vunpack.c.h.b16 %v5289
      %v5648 = vunpack.c.l.b16 %v5290
      %v5649 = vunpack.c.h.b16 %v5290
      %v5650 = vunpack.c.l.b16 %v5291
      %v5651 = vunpack.c.h.b16 %v5291
      %v5652 = vunpack.c.l.b16 %v5292
      %v5653 = vunpack.c.h.b16 %v5292
      %v5654 = vunpack.c.l.b16 %v5293
      %v5655 = vunpack.c.h.b16 %v5293
      %v5656 = vunpack.c.l.b16 %v5294
      %v5657 = vunpack.c.h.b16 %v5294
      %v5658 = vunpack.c.l.b16 %v5295
      %v5659 = vunpack.c.h.b16 %v5295
      %v5660 = vunpack.c.l.b16 %v5296
      %v5661 = vunpack.c.h.b16 %v5296
      %v5662 = vunpack.c.l.b16 %v5297
      %v5663 = vunpack.c.h.b16 %v5297
      %v5664 = vunpack.c.l.b16 %v5298
      %v5665 = vunpack.c.h.b16 %v5298
      %v5666 = vunpack.c.l.b16 %v5299
      %v5667 = vunpack.c.h.b16 %v5299
      %v5668 = vunpack.c.l.b16 %v5300
      %v5669 = vunpack.c.h.b16 %v5300
      %v5670 = vunpack.c.l.b16 %v5301
      %v5671 = vunpack.c.h.b16 %v5301
      %v5672 = vunpack.c.l.b16 %v5302
      %v5673 = vunpack.c.h.b16 %v5302
      %v5674 = vunpack.c.l.b16 %v5303
      %v5675 = vunpack.c.h.b16 %v5303
      %v5676 = vunpack.c.l.b16 %v5304
      %v5677 = vunpack.c.h.b16 %v5304
      %v5678 = vunpack.c.l.b16 %v5305
      %v5679 = vunpack.c.h.b16 %v5305
      %v5680 = vunpack.c.l.b16 %v5306
      %v5681 = vunpack.c.h.b16 %v5306
      %v5682 = vunpack.c.l.b16 %v5307
      %v5683 = vunpack.c.h.b16 %v5307
      %v5684 = vunpack.c.l.b16 %v5308
      %v5685 = vunpack.c.h.b16 %v5308
      %v5686 = vunpack.c.l.b16 %v5309
      %v5687 = vunpack.c.h.b16 %v5309
      %v5688 = vunpack.c.l.b16 %v5310
      %v5689 = vunpack.c.h.b16 %v5310
      %v5690 = vunpack.c.l.b16 %v5311
      %v5691 = vunpack.c.h.b16 %v5311
      %v5692 = vunpack.c.l.b16 %v5312
      %v5693 = vunpack.c.h.b16 %v5312
      %v5694 = vunpack.c.l.b16 %v5313
      %v5695 = vunpack.c.h.b16 %v5313
      %v5696 = vunpack.c.l.b16 %v5314
      %v5697 = vunpack.c.h.b16 %v5314
      %v5698 = vunpack.c.l.b16 %v5315
      %v5699 = vunpack.c.h.b16 %v5315
      %v5700 = vunpack.c.l.b16 %v5316
      %v5701 = vunpack.c.h.b16 %v5316
      %v5702 = vpack.c.b16 %v5450, %v5446
      %v5703 = vpack.c.b16 %v5451, %v5447
      %v5704 = vpack.c.b16 %v5452, %v5448
      %v5705 = vpack.c.b16 %v5453, %v5449
      %v5706 = vpack.c.b16 %v5458, %v5454
      %v5707 = vpack.c.b16 %v5459, %v5455
      %v5708 = vpack.c.b16 %v5460, %v5456
      %v5709 = vpack.c.b16 %v5461, %v5457
      %v5710 = vpack.c.b16 %v5466, %v5462
      %v5711 = vpack.c.b16 %v5467, %v5463
      %v5712 = vpack.c.b16 %v5468, %v5464
      %v5713 = vpack.c.b16 %v5469, %v5465
      %v5714 = vpack.c.b16 %v5474, %v5470
      %v5715 = vpack.c.b16 %v5475, %v5471
      %v5716 = vpack.c.b16 %v5476, %v5472
      %v5717 = vpack.c.b16 %v5477, %v5473
      %v5718 = vpack.c.b16 %v5482, %v5478
      %v5719 = vpack.c.b16 %v5483, %v5479
      %v5720 = vpack.c.b16 %v5484, %v5480
      %v5721 = vpack.c.b16 %v5485, %v5481
      %v5722 = vpack.c.b16 %v5490, %v5486
      %v5723 = vpack.c.b16 %v5491, %v5487
      %v5724 = vpack.c.b16 %v5492, %v5488
      %v5725 = vpack.c.b16 %v5493, %v5489
      %v5726 = vpack.c.b16 %v5498, %v5494
      %v5727 = vpack.c.b16 %v5499, %v5495
      %v5728 = vpack.c.b16 %v5500, %v5496
      %v5729 = vpack.c.b16 %v5501, %v5497
      %v5730 = vpack.c.b16 %v5506, %v5502
      %v5731 = vpack.c.b16 %v5507, %v5503
      %v5732 = vpack.c.b16 %v5508, %v5504
      %v5733 = vpack.c.b16 %v5509, %v5505
      %v5734 = vpack.c.b16 %v5514, %v5510
      %v5735 = vpack.c.b16 %v5515, %v5511
      %v5736 = vpack.c.b16 %v5516, %v5512
      %v5737 = vpack.c.b16 %v5517, %v5513
      %v5738 = vpack.c.b16 %v5522, %v5518
      %v5739 = vpack.c.b16 %v5523, %v5519
      %v5740 = vpack.c.b16 %v5524, %v5520
      %v5741 = vpack.c.b16 %v5525, %v5521
      %v5742 = vpack.c.b16 %v5530, %v5526
      %v5743 = vpack.c.b16 %v5531, %v5527
      %v5744 = vpack.c.b16 %v5532, %v5528
      %v5745 = vpack.c.b16 %v5533, %v5529
      %v5746 = vpack.c.b16 %v5538, %v5534
      %v5747 = vpack.c.b16 %v5539, %v5535
      %v5748 = vpack.c.b16 %v5540, %v5536
      %v5749 = vpack.c.b16 %v5541, %v5537
      %v5750 = vpack.c.b16 %v5546, %v5542
      %v5751 = vpack.c.b16 %v5547, %v5543
      %v5752 = vpack.c.b16 %v5548, %v5544
      %v5753 = vpack.c.b16 %v5549, %v5545
      %v5754 = vpack.c.b16 %v5554, %v5550
      %v5755 = vpack.c.b16 %v5555, %v5551
      %v5756 = vpack.c.b16 %v5556, %v5552
      %v5757 = vpack.c.b16 %v5557, %v5553
      %v5758 = vpack.c.b16 %v5562, %v5558
      %v5759 = vpack.c.b16 %v5563, %v5559
      %v5760 = vpack.c.b16 %v5564, %v5560
      %v5761 = vpack.c.b16 %v5565, %v5561
      %v5762 = vpack.c.b16 %v5570, %v5566
      %v5763 = vpack.c.b16 %v5571, %v5567
      %v5764 = vpack.c.b16 %v5572, %v5568
      %v5765 = vpack.c.b16 %v5573, %v5569
      %v5766 = vpack.c.b16 %v5578, %v5574
      %v5767 = vpack.c.b16 %v5579, %v5575
      %v5768 = vpack.c.b16 %v5580, %v5576
      %v5769 = vpack.c.b16 %v5581, %v5577
      %v5770 = vpack.c.b16 %v5586, %v5582
      %v5771 = vpack.c.b16 %v5587, %v5583
      %v5772 = vpack.c.b16 %v5588, %v5584
      %v5773 = vpack.c.b16 %v5589, %v5585
      %v5774 = vpack.c.b16 %v5594, %v5590
      %v5775 = vpack.c.b16 %v5595, %v5591
      %v5776 = vpack.c.b16 %v5596, %v5592
      %v5777 = vpack.c.b16 %v5597, %v5593
      %v5778 = vpack.c.b16 %v5602, %v5598
      %v5779 = vpack.c.b16 %v5603, %v5599
      %v5780 = vpack.c.b16 %v5604, %v5600
      %v5781 = vpack.c.b16 %v5605, %v5601
      %v5782 = vpack.c.b16 %v5610, %v5606
      %v5783 = vpack.c.b16 %v5611, %v5607
      %v5784 = vpack.c.b16 %v5612, %v5608
      %v5785 = vpack.c.b16 %v5613, %v5609
      %v5786 = vpack.c.b16 %v5618, %v5614
      %v5787 = vpack.c.b16 %v5619, %v5615
      %v5788 = vpack.c.b16 %v5620, %v5616
      %v5789 = vpack.c.b16 %v5621, %v5617
      %v5790 = vpack.c.b16 %v5626, %v5622
      %v5791 = vpack.c.b16 %v5627, %v5623
      %v5792 = vpack.c.b16 %v5628, %v5624
      %v5793 = vpack.c.b16 %v5629, %v5625
      %v5794 = vpack.c.b16 %v5634, %v5630
      %v5795 = vpack.c.b16 %v5635, %v5631
      %v5796 = vpack.c.b16 %v5636, %v5632
      %v5797 = vpack.c.b16 %v5637, %v5633
      %v5798 = vpack.c.b16 %v5642, %v5638
      %v5799 = vpack.c.b16 %v5643, %v5639
      %v5800 = vpack.c.b16 %v5644, %v5640
      %v5801 = vpack.c.b16 %v5645, %v5641
      %v5802 = vpack.c.b16 %v5650, %v5646
      %v5803 = vpack.c.b16 %v5651, %v5647
      %v5804 = vpack.c.b16 %v5652, %v5648
      %v5805 = vpack.c.b16 %v5653, %v5649
      %v5806 = vpack.c.b16 %v5658, %v5654
      %v5807 = vpack.c.b16 %v5659, %v5655
      %v5808 = vpack.c.b16 %v5660, %v5656
      %v5809 = vpack.c.b16 %v5661, %v5657
      %v5810 = vpack.c.b16 %v5666, %v5662
      %v5811 = vpack.c.b16 %v5667, %v5663
      %v5812 = vpack.c.b16 %v5668, %v5664
      %v5813 = vpack.c.b16 %v5669, %v5665
      %v5814 = vpack.c.b16 %v5674, %v5670
      %v5815 = vpack.c.b16 %v5675, %v5671
      %v5816 = vpack.c.b16 %v5676, %v5672
      %v5817 = vpack.c.b16 %v5677, %v5673
      %v5818 = vpack.c.b16 %v5682, %v5678
      %v5819 = vpack.c.b16 %v5683, %v5679
      %v5820 = vpack.c.b16 %v5684, %v5680
      %v5821 = vpack.c.b16 %v5685, %v5681
      %v5822 = vpack.c.b16 %v5690, %v5686
      %v5823 = vpack.c.b16 %v5691, %v5687
      %v5824 = vpack.c.b16 %v5692, %v5688
      %v5825 = vpack.c.b16 %v5693, %v5689
      %v5826 = vpack.c.b16 %v5698, %v5694
      %v5827 = vpack.c.b16 %v5699, %v5695
      %v5828 = vpack.c.b16 %v5700, %v5696
      %v5829 = vpack.c.b16 %v5701, %v5697
      %v5959 = vperm.slane %v5317, 0
      %v5960 = vperm.slane %v5317, 1
      %v5961 = vperm.slane %v5317, 2
      %v5962 = vperm.slane %v5317, 3
      %5967 = vmatpush.bf16.msra.mxu0 %v5730
      %5968 = vmatpush.bf16.msra.mxu0 %v5726
      %5969 = vmatpush.bf16.msra.mxu0 %v5722
      %5970 = vmatpush.bf16.msra.mxu0 %v5718
      %5971 = vmatpush.bf16.msra.mxu0 %v5714
      %5972 = vmatpush.bf16.msra.mxu0 %v5710
      %5973 = vmatpush.bf16.msra.mxu0 %v5706
      %5974 = vmatpush.bf16.msra.mxu0 %v5702
      %5975 = vmatmul.bf16.gmra.mxu0 %v5185
      %v5976 = vpop.f32.mrf.mxu0
      %v5977 = vadd.f32 %v5959, %v5976
      %v5978 = vpop.f32.mrf.mxu0
      %5979 = vdwg.mxu0
      %5980 = vmatpush.bf16.msra.mxu0 %v5762
      %5981 = vmatpush.bf16.msra.mxu0 %v5758
      %5982 = vmatpush.bf16.msra.mxu0 %v5754
      %5983 = vmatpush.bf16.msra.mxu0 %v5750
      %5984 = vmatpush.bf16.msra.mxu0 %v5746
      %5985 = vmatpush.bf16.msra.mxu0 %v5742
      %5986 = vmatpush.bf16.msra.mxu0 %v5738
      %5987 = vmatpush.bf16.msra.mxu0 %v5734
      %5988 = vmatmul.bf16.gmra.mxu0 %v5186
      %v5989 = vpop.f32.mrf.mxu0
      %v5990 = vadd.f32 %v5977, %v5989
      %v5991 = vpop.f32.mrf.mxu0
      %5992 = vdwg.mxu0
      %5993 = vmatpush.bf16.msra.mxu0 %v5794
      %5994 = vmatpush.bf16.msra.mxu0 %v5790
      %5995 = vmatpush.bf16.msra.mxu0 %v5786
      %5996 = vmatpush.bf16.msra.mxu0 %v5782
      %5997 = vmatpush.bf16.msra.mxu0 %v5778
      %5998 = vmatpush.bf16.msra.mxu0 %v5774
      %5999 = vmatpush.bf16.msra.mxu0 %v5770
      %6000 = vmatpush.bf16.msra.mxu0 %v5766
      %6001 = vmatmul.bf16.gmra.mxu0 %v5187
      %v6002 = vpop.f32.mrf.mxu0
      %v6003 = vadd.f32 %v5990, %v6002
      %v6004 = vpop.f32.mrf.mxu0
      %6005 = vdwg.mxu0
      %6006 = vmatpush.bf16.msra.mxu0 %v5826
      %6007 = vmatpush.bf16.msra.mxu0 %v5822
      %6008 = vmatpush.bf16.msra.mxu0 %v5818
      %6009 = vmatpush.bf16.msra.mxu0 %v5814
      %6010 = vmatpush.bf16.msra.mxu0 %v5810
      %6011 = vmatpush.bf16.msra.mxu0 %v5806
      %6012 = vmatpush.bf16.msra.mxu0 %v5802
      %6013 = vmatpush.bf16.msra.mxu0 %v5798
      %6014 = vmatmul.bf16.gmra.mxu0 %v5188
      %v6015 = vpop.f32.mrf.mxu0
      %v6016 = vadd.f32 %v6003, %v6015
      %v6017 = vpop.f32.mrf.mxu0
      %6018 = vdwg.mxu0
      %6019 = vmatpush.bf16.msra.mxu0 %v5731
      %6020 = vmatpush.bf16.msra.mxu0 %v5727
      %6021 = vmatpush.bf16.msra.mxu0 %v5723
      %6022 = vmatpush.bf16.msra.mxu0 %v5719
      %6023 = vmatpush.bf16.msra.mxu0 %v5715
      %6024 = vmatpush.bf16.msra.mxu0 %v5711
      %6025 = vmatpush.bf16.msra.mxu0 %v5707
      %6026 = vmatpush.bf16.msra.mxu0 %v5703
      %6027 = vmatmul.bf16.gmra.mxu0 %v5185
      %v6028 = vpop.f32.mrf.mxu0
      %v6029 = vadd.f32 %v5960, %v6028
      %v6030 = vpop.f32.mrf.mxu0
      %6031 = vdwg.mxu0
      %6032 = vmatpush.bf16.msra.mxu0 %v5763
      %6033 = vmatpush.bf16.msra.mxu0 %v5759
      %6034 = vmatpush.bf16.msra.mxu0 %v5755
      %6035 = vmatpush.bf16.msra.mxu0 %v5751
      %6036 = vmatpush.bf16.msra.mxu0 %v5747
      %6037 = vmatpush.bf16.msra.mxu0 %v5743
      %6038 = vmatpush.bf16.msra.mxu0 %v5739
      %6039 = vmatpush.bf16.msra.mxu0 %v5735
      %6040 = vmatmul.bf16.gmra.mxu0 %v5186
      %v6041 = vpop.f32.mrf.mxu0
      %v6042 = vadd.f32 %v6029, %v6041
      %v6043 = vpop.f32.mrf.mxu0
      %6044 = vdwg.mxu0
      %6045 = vmatpush.bf16.msra.mxu0 %v5795
      %6046 = vmatpush.bf16.msra.mxu0 %v5791
      %6047 = vmatpush.bf16.msra.mxu0 %v5787
      %6048 = vmatpush.bf16.msra.mxu0 %v5783
      %6049 = vmatpush.bf16.msra.mxu0 %v5779
      %6050 = vmatpush.bf16.msra.mxu0 %v5775
      %6051 = vmatpush.bf16.msra.mxu0 %v5771
      %6052 = vmatpush.bf16.msra.mxu0 %v5767
      %6053 = vmatmul.bf16.gmra.mxu0 %v5187
      %v6054 = vpop.f32.mrf.mxu0
      %v6055 = vadd.f32 %v6042, %v6054
      %v6056 = vpop.f32.mrf.mxu0
      %6057 = vdwg.mxu0
      %6058 = vmatpush.bf16.msra.mxu0 %v5827
      %6059 = vmatpush.bf16.msra.mxu0 %v5823
      %6060 = vmatpush.bf16.msra.mxu0 %v5819
      %6061 = vmatpush.bf16.msra.mxu0 %v5815
      %6062 = vmatpush.bf16.msra.mxu0 %v5811
      %6063 = vmatpush.bf16.msra.mxu0 %v5807
      %6064 = vmatpush.bf16.msra.mxu0 %v5803
      %6065 = vmatpush.bf16.msra.mxu0 %v5799
      %6066 = vmatmul.bf16.gmra.mxu0 %v5188
      %v6067 = vpop.f32.mrf.mxu0
      %v6068 = vadd.f32 %v6055, %v6067
      %v6069 = vpop.f32.mrf.mxu0
      %6070 = vdwg.mxu0
      %6071 = vmatpush.bf16.msra.mxu0 %v5732
      %6072 = vmatpush.bf16.msra.mxu0 %v5728
      %6073 = vmatpush.bf16.msra.mxu0 %v5724
      %6074 = vmatpush.bf16.msra.mxu0 %v5720
      %6075 = vmatpush.bf16.msra.mxu0 %v5716
      %6076 = vmatpush.bf16.msra.mxu0 %v5712
      %6077 = vmatpush.bf16.msra.mxu0 %v5708
      %6078 = vmatpush.bf16.msra.mxu0 %v5704
      %6079 = vmatmul.bf16.gmra.mxu0 %v5185
      %v6080 = vpop.f32.mrf.mxu0
      %v6081 = vadd.f32 %v5961, %v6080
      %v6082 = vpop.f32.mrf.mxu0
      %6083 = vdwg.mxu0
      %6084 = vmatpush.bf16.msra.mxu0 %v5764
      %6085 = vmatpush.bf16.msra.mxu0 %v5760
      %6086 = vmatpush.bf16.msra.mxu0 %v5756
      %6087 = vmatpush.bf16.msra.mxu0 %v5752
      %6088 = vmatpush.bf16.msra.mxu0 %v5748
      %6089 = vmatpush.bf16.msra.mxu0 %v5744
      %6090 = vmatpush.bf16.msra.mxu0 %v5740
      %6091 = vmatpush.bf16.msra.mxu0 %v5736
      %6092 = vmatmul.bf16.gmra.mxu0 %v5186
      %v6093 = vpop.f32.mrf.mxu0
      %v6094 = vadd.f32 %v6081, %v6093
      %v6095 = vpop.f32.mrf.mxu0
      %6096 = vdwg.mxu0
      %6097 = vmatpush.bf16.msra.mxu0 %v5796
      %6098 = vmatpush.bf16.msra.mxu0 %v5792
      %6099 = vmatpush.bf16.msra.mxu0 %v5788
      %6100 = vmatpush.bf16.msra.mxu0 %v5784
      %6101 = vmatpush.bf16.msra.mxu0 %v5780
      %6102 = vmatpush.bf16.msra.mxu0 %v5776
      %6103 = vmatpush.bf16.msra.mxu0 %v5772
      %6104 = vmatpush.bf16.msra.mxu0 %v5768
      %6105 = vmatmul.bf16.gmra.mxu0 %v5187
      %v6106 = vpop.f32.mrf.mxu0
      %v6107 = vadd.f32 %v6094, %v6106
      %v6108 = vpop.f32.mrf.mxu0
      %6109 = vdwg.mxu0
      %6110 = vmatpush.bf16.msra.mxu0 %v5828
      %6111 = vmatpush.bf16.msra.mxu0 %v5824
      %6112 = vmatpush.bf16.msra.mxu0 %v5820
      %6113 = vmatpush.bf16.msra.mxu0 %v5816
      %6114 = vmatpush.bf16.msra.mxu0 %v5812
      %6115 = vmatpush.bf16.msra.mxu0 %v5808
      %6116 = vmatpush.bf16.msra.mxu0 %v5804
      %6117 = vmatpush.bf16.msra.mxu0 %v5800
      %6118 = vmatmul.bf16.gmra.mxu0 %v5188
      %v6119 = vpop.f32.mrf.mxu0
      %v6120 = vadd.f32 %v6107, %v6119
      %v6121 = vpop.f32.mrf.mxu0
      %6122 = vdwg.mxu0
      %6123 = vmatpush.bf16.msra.mxu0 %v5733
      %6124 = vmatpush.bf16.msra.mxu0 %v5729
      %6125 = vmatpush.bf16.msra.mxu0 %v5725
      %6126 = vmatpush.bf16.msra.mxu0 %v5721
      %6127 = vmatpush.bf16.msra.mxu0 %v5717
      %6128 = vmatpush.bf16.msra.mxu0 %v5713
      %6129 = vmatpush.bf16.msra.mxu0 %v5709
      %6130 = vmatpush.bf16.msra.mxu0 %v5705
      %6131 = vmatmul.bf16.gmra.mxu0 %v5185
      %v6132 = vpop.f32.mrf.mxu0
      %v6133 = vadd.f32 %v5962, %v6132
      %v6134 = vpop.f32.mrf.mxu0
      %6135 = vdwg.mxu0
      %6136 = vmatpush.bf16.msra.mxu0 %v5765
      %6137 = vmatpush.bf16.msra.mxu0 %v5761
      %6138 = vmatpush.bf16.msra.mxu0 %v5757
      %6139 = vmatpush.bf16.msra.mxu0 %v5753
      %6140 = vmatpush.bf16.msra.mxu0 %v5749
      %6141 = vmatpush.bf16.msra.mxu0 %v5745
      %6142 = vmatpush.bf16.msra.mxu0 %v5741
      %6143 = vmatpush.bf16.msra.mxu0 %v5737
      %6144 = vmatmul.bf16.gmra.mxu0 %v5186
      %v6145 = vpop.f32.mrf.mxu0
      %v6146 = vadd.f32 %v6133, %v6145
      %v6147 = vpop.f32.mrf.mxu0
      %6148 = vdwg.mxu0
      %6149 = vmatpush.bf16.msra.mxu0 %v5797
      %6150 = vmatpush.bf16.msra.mxu0 %v5793
      %6151 = vmatpush.bf16.msra.mxu0 %v5789
      %6152 = vmatpush.bf16.msra.mxu0 %v5785
      %6153 = vmatpush.bf16.msra.mxu0 %v5781
      %6154 = vmatpush.bf16.msra.mxu0 %v5777
      %6155 = vmatpush.bf16.msra.mxu0 %v5773
      %6156 = vmatpush.bf16.msra.mxu0 %v5769
      %6157 = vmatmul.bf16.gmra.mxu0 %v5187
      %v6158 = vpop.f32.mrf.mxu0
      %v6159 = vadd.f32 %v6146, %v6158
      %v6160 = vpop.f32.mrf.mxu0
      %6161 = vdwg.mxu0
      %6162 = vmatpush.bf16.msra.mxu0 %v5829
      %6163 = vmatpush.bf16.msra.mxu0 %v5825
      %6164 = vmatpush.bf16.msra.mxu0 %v5821
      %6165 = vmatpush.bf16.msra.mxu0 %v5817
      %6166 = vmatpush.bf16.msra.mxu0 %v5813
      %6167 = vmatpush.bf16.msra.mxu0 %v5809
      %6168 = vmatpush.bf16.msra.mxu0 %v5805
      %6169 = vmatpush.bf16.msra.mxu0 %v5801
      %6170 = vmatmul.bf16.gmra.mxu0 %v5188
      %v6171 = vpop.f32.mrf.mxu0
      %v6172 = vadd.f32 %v6159, %v6171
      %v6173 = vpop.f32.mrf.mxu0
      %6174 = vdwg.mxu0
      %v6175 = vmax.f32 %v6016, 0.0
      %v6176 = vmax.f32 %v6068, 0.0
      %v6177 = vmax.f32 %v6120, 0.0
      %v6178 = vmax.f32 %v6172, 0.0
      %vm6179 = vcmask 1040384
      %v6180 = vsel %vm6179, %v6175, 0.0
      %v6181 = vsel %vm6179, %v6176, 0.0
      %v6182 = vsel %vm6179, %v6177, 0.0
      %v6183 = vsel %vm6179, %v6178, 0.0
      %v6184 = vpack.c.bf16 %v6180, %v6180
      %v6185 = vpack.c.bf16 %v6181, %v6181
      %v6186 = vpack.c.bf16 %v6182, %v6182
      %v6187 = vpack.c.bf16 %v6183, %v6183
      %v6188 = vld [vmem:[%s21] sm:$0xf]
      %v6189 = vld [vmem:[%s21 + $0x4] sm:$0xf]
      %v6190 = vld [vmem:[%s21 + $0x8] sm:$0xf]
      %v6191 = vld [vmem:[%s21 + $0xc] sm:$0xf]
      %v6192 = vld [vmem:[%s21 + $0x10] sm:$0xf]
      %v6193 = vld [vmem:[%s21 + $0x14] sm:$0xf]
      %v6194 = vld [vmem:[%s21 + $0x18] sm:$0xf]
      %v6195 = vld [vmem:[%s21 + $0x1c] sm:$0xf]
      %v6196 = vld [vmem:[%s21 + $0x20] sm:$0xf]
      %v6197 = vld [vmem:[%s21 + $0x24] sm:$0xf]
      %v6198 = vld [vmem:[%s21 + $0x28] sm:$0xf]
      %v6199 = vld [vmem:[%s21 + $0x2c] sm:$0xf]
      %v6200 = vld [vmem:[%s21 + $0x30] sm:$0xf]
      %v6201 = vld [vmem:[%s21 + $0x34] sm:$0xf]
      %v6202 = vld [vmem:[%s21 + $0x38] sm:$0xf]
      %v6203 = vld [vmem:[%s21 + $0x3c] sm:$0xf]
      %v6204 = vld [vmem:[%s21 + $0x40] sm:$0xf]
      %v6205 = vld [vmem:[%s21 + $0x44] sm:$0xf]
      %v6206 = vld [vmem:[%s21 + $0x48] sm:$0xf]
      %v6207 = vld [vmem:[%s21 + $0x4c] sm:$0xf]
      %v6208 = vld [vmem:[%s21 + $0x50] sm:$0xf]
      %v6209 = vld [vmem:[%s21 + $0x54] sm:$0xf]
      %v6210 = vld [vmem:[%s21 + $0x58] sm:$0xf]
      %v6211 = vld [vmem:[%s21 + $0x5c] sm:$0xf]
      %v6212 = vld [vmem:[%s21 + $0x60] sm:$0xf]
      %v6213 = vld [vmem:[%s21 + $0x64] sm:$0xf]
      %v6214 = vld [vmem:[%s21 + $0x68] sm:$0xf]
      %v6215 = vld [vmem:[%s21 + $0x6c] sm:$0xf]
      %v6216 = vld [vmem:[%s21 + $0x70] sm:$0xf]
      %v6217 = vld [vmem:[%s21 + $0x74] sm:$0xf]
      %v6218 = vld [vmem:[%s21 + $0x78] sm:$0xf]
      %v6219 = vld [vmem:[%s21 + $0x7c] sm:$0xf]
      %v6220 = vld [vmem:[%s21 + $0x80] sm:$0xf]
      %v6221 = vld [vmem:[%s21 + $0x84] sm:$0xf]
      %v6222 = vld [vmem:[%s21 + $0x88] sm:$0xf]
      %v6223 = vld [vmem:[%s21 + $0x8c] sm:$0xf]
      %v6224 = vld [vmem:[%s21 + $0x90] sm:$0xf]
      %v6225 = vld [vmem:[%s21 + $0x94] sm:$0xf]
      %v6226 = vld [vmem:[%s21 + $0x98] sm:$0xf]
      %v6227 = vld [vmem:[%s21 + $0x9c] sm:$0xf]
      %v6228 = vld [vmem:[%s21 + $0xa0] sm:$0xf]
      %v6229 = vld [vmem:[%s21 + $0xa4] sm:$0xf]
      %v6230 = vld [vmem:[%s21 + $0xa8] sm:$0xf]
      %v6231 = vld [vmem:[%s21 + $0xac] sm:$0xf]
      %v6232 = vld [vmem:[%s21 + $0xb0] sm:$0xf]
      %v6233 = vld [vmem:[%s21 + $0xb4] sm:$0xf]
      %v6234 = vld [vmem:[%s21 + $0xb8] sm:$0xf]
      %v6235 = vld [vmem:[%s21 + $0xbc] sm:$0xf]
      %v6236 = vld [vmem:[%s21 + $0xc0] sm:$0xf]
      %v6237 = vld [vmem:[%s21 + $0xc4] sm:$0xf]
      %v6238 = vld [vmem:[%s21 + $0xc8] sm:$0xf]
      %v6239 = vld [vmem:[%s21 + $0xcc] sm:$0xf]
      %v6240 = vld [vmem:[%s21 + $0xd0] sm:$0xf]
      %v6241 = vld [vmem:[%s21 + $0xd4] sm:$0xf]
      %v6242 = vld [vmem:[%s21 + $0xd8] sm:$0xf]
      %v6243 = vld [vmem:[%s21 + $0xdc] sm:$0xf]
      %v6244 = vld [vmem:[%s21 + $0xe0] sm:$0xf]
      %v6245 = vld [vmem:[%s21 + $0xe4] sm:$0xf]
      %v6246 = vld [vmem:[%s21 + $0xe8] sm:$0xf]
      %v6247 = vld [vmem:[%s21 + $0xec] sm:$0xf]
      %v6248 = vld [vmem:[%s21 + $0xf0] sm:$0xf]
      %v6249 = vld [vmem:[%s21 + $0xf4] sm:$0xf]
      %v6250 = vld [vmem:[%s21 + $0xf8] sm:$0xf]
      %v6251 = vld [vmem:[%s21 + $0xfc] sm:$0xf]
      %v6252 = vld [vmem:[%s22] sm:$0x1]
      %v6254 = vperm.slane %v6252, 0
      %v6320 = vunpack.c.l.b16 %v6188
      %v6321 = vunpack.c.l.b16 %v6189
      %v6322 = vunpack.c.l.b16 %v6190
      %v6323 = vunpack.c.l.b16 %v6191
      %v6324 = vunpack.c.l.b16 %v6192
      %v6325 = vunpack.c.l.b16 %v6193
      %v6326 = vunpack.c.l.b16 %v6194
      %v6327 = vunpack.c.l.b16 %v6195
      %v6328 = vunpack.c.l.b16 %v6196
      %v6329 = vunpack.c.l.b16 %v6197
      %v6330 = vunpack.c.l.b16 %v6198
      %v6331 = vunpack.c.l.b16 %v6199
      %v6332 = vunpack.c.l.b16 %v6200
      %v6333 = vunpack.c.l.b16 %v6201
      %v6334 = vunpack.c.l.b16 %v6202
      %v6335 = vunpack.c.l.b16 %v6203
      %v6336 = vunpack.c.l.b16 %v6204
      %v6337 = vunpack.c.l.b16 %v6205
      %v6338 = vunpack.c.l.b16 %v6206
      %v6339 = vunpack.c.l.b16 %v6207
      %v6340 = vunpack.c.l.b16 %v6208
      %v6341 = vunpack.c.l.b16 %v6209
      %v6342 = vunpack.c.l.b16 %v6210
      %v6343 = vunpack.c.l.b16 %v6211
      %v6344 = vunpack.c.l.b16 %v6212
      %v6345 = vunpack.c.l.b16 %v6213
      %v6346 = vunpack.c.l.b16 %v6214
      %v6347 = vunpack.c.l.b16 %v6215
      %v6348 = vunpack.c.l.b16 %v6216
      %v6349 = vunpack.c.l.b16 %v6217
      %v6350 = vunpack.c.l.b16 %v6218
      %v6351 = vunpack.c.l.b16 %v6219
      %v6352 = vunpack.c.l.b16 %v6220
      %v6353 = vunpack.c.l.b16 %v6221
      %v6354 = vunpack.c.l.b16 %v6222
      %v6355 = vunpack.c.l.b16 %v6223
      %v6356 = vunpack.c.l.b16 %v6224
      %v6357 = vunpack.c.l.b16 %v6225
      %v6358 = vunpack.c.l.b16 %v6226
      %v6359 = vunpack.c.l.b16 %v6227
      %v6360 = vunpack.c.l.b16 %v6228
      %v6361 = vunpack.c.l.b16 %v6229
      %v6362 = vunpack.c.l.b16 %v6230
      %v6363 = vunpack.c.l.b16 %v6231
      %v6364 = vunpack.c.l.b16 %v6232
      %v6365 = vunpack.c.l.b16 %v6233
      %v6366 = vunpack.c.l.b16 %v6234
      %v6367 = vunpack.c.l.b16 %v6235
      %v6368 = vunpack.c.l.b16 %v6236
      %v6369 = vunpack.c.l.b16 %v6237
      %v6370 = vunpack.c.l.b16 %v6238
      %v6371 = vunpack.c.l.b16 %v6239
      %v6372 = vunpack.c.l.b16 %v6240
      %v6373 = vunpack.c.l.b16 %v6241
      %v6374 = vunpack.c.l.b16 %v6242
      %v6375 = vunpack.c.l.b16 %v6243
      %v6376 = vunpack.c.l.b16 %v6244
      %v6377 = vunpack.c.l.b16 %v6245
      %v6378 = vunpack.c.l.b16 %v6246
      %v6379 = vunpack.c.l.b16 %v6247
      %v6380 = vunpack.c.l.b16 %v6248
      %v6381 = vunpack.c.l.b16 %v6249
      %v6382 = vunpack.c.l.b16 %v6250
      %v6383 = vunpack.c.l.b16 %v6251
      %v6384 = vpack.c.b16 %v6321, %v6320
      %v6385 = vpack.c.b16 %v6323, %v6322
      %v6386 = vpack.c.b16 %v6325, %v6324
      %v6387 = vpack.c.b16 %v6327, %v6326
      %v6388 = vpack.c.b16 %v6329, %v6328
      %v6389 = vpack.c.b16 %v6331, %v6330
      %v6390 = vpack.c.b16 %v6333, %v6332
      %v6391 = vpack.c.b16 %v6335, %v6334
      %v6392 = vpack.c.b16 %v6337, %v6336
      %v6393 = vpack.c.b16 %v6339, %v6338
      %v6394 = vpack.c.b16 %v6341, %v6340
      %v6395 = vpack.c.b16 %v6343, %v6342
      %v6396 = vpack.c.b16 %v6345, %v6344
      %v6397 = vpack.c.b16 %v6347, %v6346
      %v6398 = vpack.c.b16 %v6349, %v6348
      %v6399 = vpack.c.b16 %v6351, %v6350
      %v6400 = vpack.c.b16 %v6353, %v6352
      %v6401 = vpack.c.b16 %v6355, %v6354
      %v6402 = vpack.c.b16 %v6357, %v6356
      %v6403 = vpack.c.b16 %v6359, %v6358
      %v6404 = vpack.c.b16 %v6361, %v6360
      %v6405 = vpack.c.b16 %v6363, %v6362
      %v6406 = vpack.c.b16 %v6365, %v6364
      %v6407 = vpack.c.b16 %v6367, %v6366
      %v6408 = vpack.c.b16 %v6369, %v6368
      %v6409 = vpack.c.b16 %v6371, %v6370
      %v6410 = vpack.c.b16 %v6373, %v6372
      %v6411 = vpack.c.b16 %v6375, %v6374
      %v6412 = vpack.c.b16 %v6377, %v6376
      %v6413 = vpack.c.b16 %v6379, %v6378
      %v6414 = vpack.c.b16 %v6381, %v6380
      %v6415 = vpack.c.b16 %v6383, %v6382
      %6448 = vmatpush.bf16.msra.mxu0 %v6391
      %6449 = vmatpush.bf16.msra.mxu0 %v6390
      %6450 = vmatpush.bf16.msra.mxu0 %v6389
      %6451 = vmatpush.bf16.msra.mxu0 %v6388
      %6452 = vmatpush.bf16.msra.mxu0 %v6387
      %6453 = vmatpush.bf16.msra.mxu0 %v6386
      %6454 = vmatpush.bf16.msra.mxu0 %v6385
      %6455 = vmatpush.bf16.msra.mxu0 %v6384
      %6456 = vmatmul.bf16.gmra.mxu0 %v6184
      %v6457 = vpop.f32.mrf.mxu0
      %v6458 = vadd.f32 %v6254, %v6457
      %v6459 = vpop.f32.mrf.mxu0
      %6460 = vdwg.mxu0
      %6461 = vmatpush.bf16.msra.mxu0 %v6399
      %6462 = vmatpush.bf16.msra.mxu0 %v6398
      %6463 = vmatpush.bf16.msra.mxu0 %v6397
      %6464 = vmatpush.bf16.msra.mxu0 %v6396
      %6465 = vmatpush.bf16.msra.mxu0 %v6395
      %6466 = vmatpush.bf16.msra.mxu0 %v6394
      %6467 = vmatpush.bf16.msra.mxu0 %v6393
      %6468 = vmatpush.bf16.msra.mxu0 %v6392
      %6469 = vmatmul.bf16.gmra.mxu0 %v6185
      %v6470 = vpop.f32.mrf.mxu0
      %v6471 = vadd.f32 %v6458, %v6470
      %v6472 = vpop.f32.mrf.mxu0
      %6473 = vdwg.mxu0
      %6474 = vmatpush.bf16.msra.mxu0 %v6407
      %6475 = vmatpush.bf16.msra.mxu0 %v6406
      %6476 = vmatpush.bf16.msra.mxu0 %v6405
      %6477 = vmatpush.bf16.msra.mxu0 %v6404
      %6478 = vmatpush.bf16.msra.mxu0 %v6403
      %6479 = vmatpush.bf16.msra.mxu0 %v6402
      %6480 = vmatpush.bf16.msra.mxu0 %v6401
      %6481 = vmatpush.bf16.msra.mxu0 %v6400
      %6482 = vmatmul.bf16.gmra.mxu0 %v6186
      %v6483 = vpop.f32.mrf.mxu0
      %v6484 = vadd.f32 %v6471, %v6483
      %v6485 = vpop.f32.mrf.mxu0
      %6486 = vdwg.mxu0
      %6487 = vmatpush.bf16.msra.mxu0 %v6415
      %6488 = vmatpush.bf16.msra.mxu0 %v6414
      %6489 = vmatpush.bf16.msra.mxu0 %v6413
      %6490 = vmatpush.bf16.msra.mxu0 %v6412
      %6491 = vmatpush.bf16.msra.mxu0 %v6411
      %6492 = vmatpush.bf16.msra.mxu0 %v6410
      %6493 = vmatpush.bf16.msra.mxu0 %v6409
      %6494 = vmatpush.bf16.msra.mxu0 %v6408
      %6495 = vmatmul.bf16.gmra.mxu0 %v6187
      %v6496 = vpop.f32.mrf.mxu0
      %v6497 = vadd.f32 %v6484, %v6496
      %v6498 = vpop.f32.mrf.mxu0
      %6499 = vdwg.mxu0
      %6500 = vst [vmem:[%s710] sm:$0xff] %v6497
      %p6501 = scmp.lt.s32.totalorder %s34, 1
      %s6502 = scalar_select %p6501, %s34, 1
      %s6503 = smul.addr %s6502, 8
      %s6504 = scalar_lea.vmem %s23, %s6503
      // Predicated region
      $region113: #{nas_forward.1} parent=111 // pred_check
        %p6505 = pneg %p540
      $region114: #{nas_forward.1} parent=111 // pred_check_branch
        %6507 = sbr.rel (%p6505) target = $region116
      $region115: #{nas_forward.1} parent=111 // pred_region
        _
      $region116: #{nas_forward.1} parent=111 // pred_fallthru
        _
    $region112: #{nas_forward.1} parent=5 // pred_fallthru
      _
    %p6508 = scmp.le.s32.totalorder 2, %s29
    // Predicated region
    $region117: #{nas_forward.1} parent=5 // pred_check
      %p6509 = pneg %p6508
    $region118: #{nas_forward.1} parent=5 // pred_check_branch
      %6511 = sbr.rel (%p6509) target = $region120
    $region119: #{nas_forward.1} parent=5 // pred_region
      %s6512 = ssub.s32 %s29, 2
      // Predicated region
      $region121: #{nas_forward.1} parent=119 // pred_check
        %p6513 = pneg %p546
      $region122: #{nas_forward.1} parent=119 // pred_check_branch
        %6515 = sbr.rel (%p6513) target = $region124
      $region123: #{nas_forward.1} parent=119 // pred_region
        %p6516 = scmp.lt.s32.totalorder %s35, 1
        %s6517 = scalar_select %p6516, %s35, 1
        %s6518 = smul.addr %s6517, 8
        %s6519 = scalar_lea.vmem %s23, %s6518
      $region124: #{nas_forward.1} parent=119 // pred_fallthru
        _
    $region120: #{nas_forward.1} parent=5 // pred_fallthru
      _
  $region6: #{nas_forward.1} parent=0 // loop_footer
    %s33 = sadd.s32 1, %s29
  $region7: #{nas_forward.1} parent=0 // loop_footer_branch
    %28 = sbr.rel target = $region3
  $region8: #{nas_forward.1} parent=0 // loop_exit
    _

</llo_original>
